<compile_context>
chip_gen: v5e
topology: v5e:2x2
jax: 0.10.0
libtpu: 0.0.40
codegen_flags: <defaults>
</compile_context>

<pallas_src>
import functools

import jax
import jax.numpy as jnp
from jax.experimental import pallas as pl
from jax.experimental.pallas import tpu as pltpu

# ----------------------------------------------------------------------------
# synthetic feature vocabularies (get_atom_feature_dims / get_bond_feature_dims)
# ----------------------------------------------------------------------------
ATOM_FEATURE_DIMS = [16, 4, 8]   # sum = 28
BOND_FEATURE_DIMS = [8, 4]       # sum = 12

# small hyper-parameters consistent with the module's constructor
MLP_HIDDEN = 128
MLP_LAYERS = 2
LATENT = 128
NUM_MP_STEPS = 2          # last step has no global/face model (as in the module)
USE_FACE = True
INIT_FACE = False

ROW_TILE = 256                      # MXU M tile: fills 256x256 MXU (v6e/v7x), 2 passes on v5e
GROUP_K = 256                       # pair adjacent 128-wide concat parts -> K=256 layer-0 dots
SEG_BLOCK = 256                     # segment (output) rows per segment-sum tile
SEG_TILE = 512                      # value rows per segment-sum reduction step
MXU_DTYPE = jnp.bfloat16            # MXU operand dtype (f32 accumulate)
LATENT_DTYPE = jnp.bfloat16         # inter-kernel latents kept bf16 in HBM
VMEM_LIMIT = 32 * 1024 * 1024       # tiles are bounded & small; safe on v5e/v6e/v7x (64 MiB)


def _round_up(n, m):
    return ((n + m - 1) // m) * m


def _pad_rows(a, multiple):
    n = a.shape[0]
    n_pad = _round_up(n, multiple)
    if n_pad != n:
        a = jnp.pad(a, ((0, n_pad - n), (0, 0)))
    return a


def _pad_lanes(a, width):
    d = a.shape[1]
    if width != d:
        a = jnp.pad(a, ((0, 0), (0, width - d)))
    return a


def _group_parts(part_dims, max_k):
    """Group consecutive concat parts so each group's K is <= max_k."""
    groups, cur, cur_k = [], [], 0
    for idx, d in enumerate(part_dims):
        if cur and cur_k + d > max_k:
            groups.append(tuple(cur))
            cur, cur_k = [], 0
        cur.append(idx)
        cur_k += d
    if cur:
        groups.append(tuple(cur))
    return tuple(groups)


# ----------------------------------------------------------------------------
# Pallas kernel 1: fused 3-layer MLP over a (virtually) concatenated input.
# Weights resident in VMEM (bf16), intermediate activations never leave VMEM.
# ----------------------------------------------------------------------------
def _fused_mlp_kernel(*refs, part_dims, groups, n_layers, last_act):
    n_parts = len(part_dims)
    x_refs = refs[:n_parts]
    w_refs = refs[n_parts:n_parts + n_layers]
    b_refs = refs[n_parts + n_layers:n_parts + 2 * n_layers]
    o_ref = refs[n_parts + 2 * n_layers]

    # row offset of each part inside W0
    offs, off = [], 0
    for d in part_dims:
        offs.append(off)
        off += d

    # ---- layer 0: concat fused as split-weight partial dots; adjacent
    # 128-wide parts are paired in-register so each dot contracts over K=256 ----
    acc = None
    for grp in groups:
        xs = [x_refs[i][...].astype(MXU_DTYPE) for i in grp]
        xg = xs[0] if len(xs) == 1 else jnp.concatenate(xs, axis=-1)
        k0 = offs[grp[0]]
        kg = sum(part_dims[i] for i in grp)
        wg = w_refs[0][pl.ds(k0, kg), :]                 # static, 128-aligned slice (bf16)
        p = jnp.dot(xg, wg, preferred_element_type=jnp.float32)
        acc = p if acc is None else acc + p
    h = acc + b_refs[0][...]
    if last_act or n_layers > 1:
        h = jnp.maximum(h, 0.0)

    # ---- remaining layers: activation stays on-chip ----
    for li in range(1, n_layers):
        h = jnp.dot(h.astype(MXU_DTYPE), w_refs[li][...],
                    preferred_element_type=jnp.float32) + b_refs[li][...]
        if last_act or li < n_layers - 1:
            h = jnp.maximum(h, 0.0)
    o_ref[...] = h.astype(o_ref.dtype)


def fused_mlp(params, parts, *, last_act, out_dtype=LATENT_DTYPE):
    """Apply a whole MLP to concat(parts) in ONE pallas_call.

    parts: list of [N, K_i] arrays (the pieces that would be concatenated).
    params: list of (W_bf16, b_f32); layer-0 W has sum(K_i) rows.
    """
    n = parts[0].shape[0]
    part_dims = tuple(int(p.shape[1]) for p in parts)
    groups = _group_parts(part_dims, GROUP_K)
    n_layers = len(params)
    out_dim = params[-1][0].shape[1]

    tm = ROW_TILE
    n_pad = _round_up(max(n, 1), tm)
    parts = [_pad_rows(p, tm) for p in parts]
    ws = [w for (w, _) in params]                     # bf16, pre-cast at init time
    bs = [b.reshape(1, -1) for (_, b) in params]      # f32

    in_specs = ([pl.BlockSpec((tm, d), lambda i: (i, 0)) for d in part_dims]
                + [pl.BlockSpec(w.shape, lambda i: (0, 0)) for w in ws]   # weights resident
                + [pl.BlockSpec(b.shape, lambda i: (0, 0)) for b in bs])  # bias resident

    out = pl.pallas_call(
        functools.partial(_fused_mlp_kernel, part_dims=part_dims, groups=groups,
                          n_layers=n_layers, last_act=last_act),
        out_shape=jax.ShapeDtypeStruct((n_pad, out_dim), out_dtype),
        grid=(n_pad // tm,),
        in_specs=in_specs,
        out_specs=pl.BlockSpec((tm, out_dim), lambda i: (i, 0)),
        compiler_params=pltpu.CompilerParams(
            dimension_semantics=("parallel",),
            vmem_limit_bytes=VMEM_LIMIT),
    )(*parts, *ws, *bs)
    return out[:n] if n_pad != n else out


# ----------------------------------------------------------------------------
# Pallas kernel 2: tiled segment-sum (global_add_pool / scatter-add reducers).
# 2-D grid: ("parallel" segment blocks, "arbitrary" value-row reduction).
# One-hot is built only for the current segment block; the accumulator is the
# resident f32 output block (no scratch), so VMEM is bounded by the tile sizes.
# ----------------------------------------------------------------------------
def _segsum_kernel(ids_ref, v_ref, o_ref, *, seg_block):
    @pl.when(pl.program_id(1) == 0)
    def _():
        o_ref[...] = jnp.zeros_like(o_ref)

    ids = ids_ref[...]                                           # (1, tn) int32
    base = pl.program_id(0) * seg_block
    seg = base + jax.lax.broadcasted_iota(jnp.int32, (seg_block, ids.shape[1]), 0)
    onehot = (seg == ids).astype(MXU_DTYPE)                      # exact in bf16
    o_ref[...] += jnp.dot(onehot, v_ref[...], preferred_element_type=jnp.float32)


def segment_sum_pallas(values, seg_ids, num_segments, *, out_dtype=jnp.float32):
    """sum of `values` rows grouped by seg_ids -> [num_segments, D]."""
    n, d = values.shape
    tn, sb = SEG_TILE, SEG_BLOCK
    n_pad = _round_up(max(n, 1), tn)
    s_pad = _round_up(max(num_segments, 1), sb)
    vals = values.astype(MXU_DTYPE)           # bf16 value tiles: halves DMA bytes
    ids = seg_ids.astype(jnp.int32)
    if n_pad != n:
        vals = jnp.pad(vals, ((0, n_pad - n), (0, 0)))
        ids = jnp.pad(ids, (0, n_pad - n), constant_values=-1)   # never matches any segment
    ids2 = ids.reshape(1, n_pad)

    out = pl.pallas_call(
        functools.partial(_segsum_kernel, seg_block=sb),
        out_shape=jax.ShapeDtypeStruct((s_pad, d), jnp.float32),
        grid=(s_pad // sb, n_pad // tn),
        in_specs=[pl.BlockSpec((1, tn), lambda j, k: (0, k)),
                  pl.BlockSpec((tn, d), lambda j, k: (k, 0))],
        out_specs=pl.BlockSpec((sb, d), lambda j, k: (j, 0)),
        compiler_params=pltpu.CompilerParams(
            dimension_semantics=("parallel", "arbitrary"),
            vmem_limit_bytes=VMEM_LIMIT),
    )(ids2, vals)
    out = out[:num_segments] if s_pad != num_segments else out
    return out if out_dtype == jnp.float32 else out.astype(out_dtype)


# ----------------------------------------------------------------------------
# MLP parameter construction (MLP / MLPwoLastAct, layer-norm / bn disabled).
# Weights are stored bf16 (MXU operand dtype); biases stay f32.
# ----------------------------------------------------------------------------
def init_mlp(key, in_dim, dims):
    params = []
    d = in_dim
    for out_d in dims:
        key, kw = jax.random.split(key)
        w = (jax.random.normal(kw, (d, out_d), jnp.float32)
             * (1.0 / jnp.sqrt(jnp.float32(d)))).astype(MXU_DTYPE)
        b = jnp.zeros((out_d,), jnp.float32)
        params.append((w, b))
        d = out_d
    return params, key


def _mlp_jnp(params, x):
    """Tiny pure-JAX MLP (MLPwoLastAct) — used only for the constant MLP(0) row."""
    n_layers = len(params)
    h = x
    for li, (w, b) in enumerate(params):
        h = jnp.dot(h, w.astype(jnp.float32)) + b
        if li < n_layers - 1:
            h = jnp.maximum(h, 0.0)
    return h


# ----------------------------------------------------------------------------
# one-hot encoders (glue; lane axis padded to 128 for dense vector loads)
# ----------------------------------------------------------------------------
def one_hot_atoms(atoms):
    return jnp.concatenate(
        [jax.nn.one_hot(atoms[:, i], ATOM_FEATURE_DIMS[i], dtype=jnp.float32)
         for i in range(atoms.shape[1])], axis=1)


def one_hot_bonds(bonds):
    return jnp.concatenate(
        [jax.nn.one_hot(bonds[:, i], BOND_FEATURE_DIMS[i], dtype=jnp.float32)
         for i in range(bonds.shape[1])], axis=1)


# ----------------------------------------------------------------------------
# parameter construction (deterministic, matches __init__ shapes; encoder input
# dims padded to 128 lanes — padded one-hot columns are zero, so math is identical)
# ----------------------------------------------------------------------------
def init_gnn_params(seed=42):
    key = jax.random.PRNGKey(seed)
    hidden_dims = [MLP_HIDDEN] * MLP_LAYERS + [LATENT]
    p = {}
    p['encoder_node'], key = init_mlp(key, _round_up(sum(ATOM_FEATURE_DIMS), 128), hidden_dims)
    p['encoder_edge'], key = init_mlp(key, _round_up(sum(BOND_FEATURE_DIMS), 128), hidden_dims)
    p['encoder_face'], key = init_mlp(key, LATENT * (3 if INIT_FACE else 1), hidden_dims)
    p['global_init'] = jnp.zeros((1, LATENT), jnp.float32)
    layers = []
    for i in range(NUM_MP_STEPS):
        layer = {}
        layer['edge'], key = init_mlp(key, LATENT * (6 if USE_FACE else 4), hidden_dims)
        layer['node'], key = init_mlp(key, LATENT * (5 if USE_FACE else 4), hidden_dims)
        if i == NUM_MP_STEPS - 1:
            layer['global'] = None
            layer['face'] = None
        else:
            layer['global'], key = init_mlp(key, LATENT * (4 if USE_FACE else 3), hidden_dims)
            layer['face'], key = init_mlp(key, LATENT * 5, hidden_dims)
        layers.append(layer)
    p['layers'] = layers
    # NOTE: self.decoder and self.encoder_pe are not used in forward(); omitted.
    return p


# ----------------------------------------------------------------------------
# MetaLayer (message passing step)
# TODO(synk): MetaLayer source was not provided; its update rules are
# reconstructed from the latent_size concat multipliers (6/5/5/4) and the
# default sum-reducers; structure follows the O-GNN dual-graph design.
# ----------------------------------------------------------------------------
def meta_layer(lp, x, edge_index, edge_attr, u, node_batch, edge_batch,
               face_batch, face, face_mask, face_index, nf_node, nf_face,
               n_nodes, n_edges, n_faces, n_graphs):
    row, col = edge_index[0], edge_index[1]

    # TODO(synk): row gathers (x[row], u[batch], face[face_index], x1[nf_node])
    # remain XLA-level; fusing them into the consuming pallas_call via
    # scalar-prefetch DMA gather is a further HBM-traffic optimization.
    # ---- edge update: [x_src, x_dst, e, u_b, face_left, face_right] (concat fused) ----
    e1 = fused_mlp(lp['edge'],
                   [x[row], x[col], edge_attr, u[edge_batch],
                    face[face_index[0]], face[face_index[1]]],
                   last_act=True)

    # ---- node update: [x, sum(e out), sum(e in), sum(faces of node), u_b] ----
    sent = segment_sum_pallas(e1, row, n_nodes)
    recv = segment_sum_pallas(e1, col, n_nodes)
    f2n = segment_sum_pallas(face[nf_face], nf_node, n_nodes)
    x1 = fused_mlp(lp['node'], [x, sent, recv, f2n, u[node_batch]], last_act=True)

    # ---- face update: [face, sum(e left), sum(e right), sum(nodes), u_b] ----
    if lp['face'] is not None:
        e2f0 = segment_sum_pallas(e1, face_index[0], n_faces)
        e2f1 = segment_sum_pallas(e1, face_index[1], n_faces)
        n2f = segment_sum_pallas(x1[nf_node], nf_face, n_faces)
        f1 = fused_mlp(lp['face'], [face, e2f0, e2f1, n2f, u[face_batch]],
                       last_act=True)
        # TODO(synk): outer-face masking follows the reconstructed update rule;
        # the caller's residual may re-add the pre-layer face values.
        f1 = jnp.where(face_mask[:, None], 0.0, f1)
    else:
        f1 = face

    # ---- global update: [u, sum(nodes), sum(edges), sum(faces)] ----
    if lp['global'] is not None:
        n_agg = segment_sum_pallas(x1, node_batch, n_graphs)
        e_agg = segment_sum_pallas(e1, edge_batch, n_graphs)
        f_agg = segment_sum_pallas(f1, face_batch, n_graphs)
        u1 = fused_mlp(lp['global'], [u, n_agg, e_agg, f_agg], last_act=True)
    else:
        u1 = u

    return x1, e1, u1, f1


# ----------------------------------------------------------------------------
# GNN forward (eval mode: dropout=identity, no layer drop, residual=False)
# ----------------------------------------------------------------------------
def gnn_forward(params, atoms, bonds, edge_index, node_batch, edge_batch,
                face_batch, face_mask, face_index, nf_node, nf_face,
                n_nodes, n_edges, n_faces, n_graphs):
    in_node = params['encoder_node'][0][0].shape[0]
    in_edge = params['encoder_edge'][0][0].shape[0]
    x_oh = _pad_lanes(one_hot_atoms(atoms), in_node).astype(MXU_DTYPE)
    e_oh = _pad_lanes(one_hot_bonds(bonds), in_edge).astype(MXU_DTYPE)

    u = jnp.broadcast_to(params['global_init'], (n_graphs, LATENT)).astype(LATENT_DTYPE)
    x = fused_mlp(params['encoder_node'], [x_oh], last_act=False)        # MLPwoLastAct
    edge_attr = fused_mlp(params['encoder_edge'], [e_oh], last_act=False)

    # use_face=True, init_face=False: encoder_face is applied to an all-zeros
    # tensor, so its output depends only on the biases -> compute one row in
    # plain JAX and broadcast (saves a pallas_call + n_faces x 128 HBM round-trip).
    in_face = params['encoder_face'][0][0].shape[0]
    face_row = _mlp_jnp(params['encoder_face'], jnp.zeros((1, in_face), jnp.float32))
    face = jnp.broadcast_to(face_row.astype(LATENT_DTYPE), (n_faces, LATENT))

    for layer in params['layers']:
        x1, e1, u1, f1 = meta_layer(
            layer, x, edge_index, edge_attr, u, node_batch, edge_batch,
            face_batch, face, face_mask, face_index, nf_node, nf_face,
            n_nodes, n_edges, n_faces, n_graphs)
        # residual=False branch of forward(), eval: x = dropout(x1) + x == x1 + x
        x = x1 + x
        edge_attr = e1 + edge_attr
        u = u1 + u
        face = f1 + face

    # som_mode=False: return graph pooling of node features (global_add_pool)
    return segment_sum_pallas(x, node_batch, n_graphs, out_dtype=jnp.float32)


# ----------------------------------------------------------------------------
# main
# ----------------------------------------------------------------------------
if __name__ == "__main__":
    key = jax.random.PRNGKey(0)

    # synthetic dual-graph batch: 2 graphs
    N_GRAPHS = 2
    N_NODES = 8          # 5 + 3
    N_EDGES = 12         # 8 + 4
    N_FACES = 4          # 2 + 2 rings

    # categorical node / edge features
    katoms, kbonds, kei0, kei1, kfi = jax.random.split(key, 5)
    atoms = jnp.stack(
        [jax.random.randint(jax.random.fold_in(katoms, i), (N_NODES,), 0, d)
         for i, d in enumerate(ATOM_FEATURE_DIMS)], axis=1)            # [8, 3]
    bonds = jnp.stack(
        [jax.random.randint(jax.random.fold_in(kbonds, i), (N_EDGES,), 0, d)
         for i, d in enumerate(BOND_FEATURE_DIMS)], axis=1)            # [12, 2]

    # edge_index: valid node ids per graph (graph0: nodes 0..4, graph1: 5..7)
    ei_g0 = jax.random.randint(kei0, (2, 8), 0, 5)
    ei_g1 = jax.random.randint(kei1, (2, 4), 0, 3) + 5
    edge_index = jnp.concatenate([ei_g0, ei_g1], axis=1)              # [2, 12]

    node_batch = jnp.array([0] * 5 + [1] * 3, jnp.int32)
    edge_batch = jnp.repeat(jnp.arange(N_GRAPHS), jnp.array([8, 4]),
                            total_repeat_length=N_EDGES)
    face_batch = jnp.repeat(jnp.arange(N_GRAPHS), jnp.array([2, 2]),
                            total_repeat_length=N_FACES)

    # ring(face) index per edge: left / right face id of every edge
    fi_g0 = jax.random.randint(kfi, (2, 8), 0, 2)
    fi_g1 = jax.random.randint(jax.random.fold_in(kfi, 1), (2, 4), 0, 2) + 2
    face_index = jnp.concatenate([fi_g0, fi_g1], axis=1)              # [2, 12]

    face_mask = jnp.array([True, False, True, False])                 # outer faces
    nf_node = jnp.array([0, 1, 2, 2, 3, 4, 5, 6, 6, 7], jnp.int32)    # node/face
    nf_face = jnp.array([0, 0, 0, 1, 1, 1, 2, 2, 3, 3], jnp.int32)    # incidence

    params = init_gnn_params(seed=42)

    fwd = jax.jit(functools.partial(
        gnn_forward,
        n_nodes=N_NODES, n_edges=N_EDGES, n_faces=N_FACES, n_graphs=N_GRAPHS))
    out = fwd(params, atoms, bonds, edge_index, node_batch, edge_batch,
              face_batch, face_mask, face_index, nf_node, nf_face)
    out = jax.block_until_ready(out)
    assert out.shape == (N_GRAPHS, LATENT) and out.dtype == jnp.float32
    assert bool(jnp.all(jnp.isfinite(out)))
    print("KERNEL_OK")
</pallas_src>

<mosaic_0001>
module attributes {stable_mosaic.version = 11 : i64} {
  func.func @_fused_mlp_kernel(%arg0: i32, %arg1: memref<256x128xbf16, #tpu.memory_space<vmem>>, %arg2: memref<128x128xbf16, #tpu.memory_space<vmem>>, %arg3: memref<128x128xbf16, #tpu.memory_space<vmem>>, %arg4: memref<128x128xbf16, #tpu.memory_space<vmem>>, %arg5: memref<1x128xf32, #tpu.memory_space<vmem>>, %arg6: memref<1x128xf32, #tpu.memory_space<vmem>>, %arg7: memref<1x128xf32, #tpu.memory_space<vmem>>, %arg8: memref<256x128xbf16, #tpu.memory_space<vmem>>) attributes {dimension_semantics = [#tpu.dimension_semantics<parallel>], iteration_bounds = array<i64: 1>, scalar_prefetch = 0 : i64, scratch_operands = 0 : i64, tpu.core_type = #tpu.core_type<tc>, window_params = [{transform_indices = @transform_0, window_bounds = array<i64: 256, 128>}, {pipeline_mode = #tpu.pipeline_mode<synchronous>, transform_indices = @transform_1, window_bounds = array<i64: 128, 128>}, {pipeline_mode = #tpu.pipeline_mode<synchronous>, transform_indices = @transform_2, window_bounds = array<i64: 128, 128>}, {pipeline_mode = #tpu.pipeline_mode<synchronous>, transform_indices = @transform_3, window_bounds = array<i64: 128, 128>}, {pipeline_mode = #tpu.pipeline_mode<synchronous>, transform_indices = @transform_4, window_bounds = array<i64: 1, 128>}, {pipeline_mode = #tpu.pipeline_mode<synchronous>, transform_indices = @transform_5, window_bounds = array<i64: 1, 128>}, {pipeline_mode = #tpu.pipeline_mode<synchronous>, transform_indices = @transform_6, window_bounds = array<i64: 1, 128>}, {transform_indices = @transform_7, window_bounds = array<i64: 256, 128>}]} {
    %c0 = arith.constant 0 : index
    %c0_0 = arith.constant 0 : index
    %0 = vector.load %arg1[%c0, %c0_0] : memref<256x128xbf16, #tpu.memory_space<vmem>>, vector<256x128xbf16>
    %c0_1 = arith.constant 0 : index
    %c0_2 = arith.constant 0 : index
    %1 = vector.load %arg2[%c0_1, %c0_2] : memref<128x128xbf16, #tpu.memory_space<vmem>>, vector<128x128xbf16>
    %cst = arith.constant dense<0.000000e+00> : vector<256x128xf32>
    %2 = tpu.matmul %0, %1, %cst {dimension_numbers = #tpu.dot_dimension_numbers<[1], [0], [0], [1], [0, 0, 1, 1], [], []>} : vector<256x128xbf16>, vector<128x128xbf16>, vector<256x128xf32> -> vector<256x128xf32>
    %c0_3 = arith.constant 0 : index
    %c0_4 = arith.constant 0 : index
    %3 = vector.load %arg5[%c0_3, %c0_4] : memref<1x128xf32, #tpu.memory_space<vmem>>, vector<1x128xf32>
    %4 = vector.broadcast %3 : vector<1x128xf32> to vector<256x128xf32>
    %5 = arith.addf %2, %4 : vector<256x128xf32>
    %cst_5 = arith.constant 0.000000e+00 : f32
    %6 = vector.broadcast %cst_5 : f32 to vector<256x128xf32>
    %7 = arith.maximumf %5, %6 : vector<256x128xf32>
    %8 = arith.truncf %7 : vector<256x128xf32> to vector<256x128xbf16>
    %c0_6 = arith.constant 0 : index
    %c0_7 = arith.constant 0 : index
    %9 = vector.load %arg3[%c0_6, %c0_7] : memref<128x128xbf16, #tpu.memory_space<vmem>>, vector<128x128xbf16>
    %cst_8 = arith.constant dense<0.000000e+00> : vector<256x128xf32>
    %10 = tpu.matmul %8, %9, %cst_8 {dimension_numbers = #tpu.dot_dimension_numbers<[1], [0], [0], [1], [0, 0, 1, 1], [], []>} : vector<256x128xbf16>, vector<128x128xbf16>, vector<256x128xf32> -> vector<256x128xf32>
    %c0_9 = arith.constant 0 : index
    %c0_10 = arith.constant 0 : index
    %11 = vector.load %arg6[%c0_9, %c0_10] : memref<1x128xf32, #tpu.memory_space<vmem>>, vector<1x128xf32>
    %12 = vector.broadcast %11 : vector<1x128xf32> to vector<256x128xf32>
    %13 = arith.addf %10, %12 : vector<256x128xf32>
    %cst_11 = arith.constant 0.000000e+00 : f32
    %14 = vector.broadcast %cst_11 : f32 to vector<256x128xf32>
    %15 = arith.maximumf %13, %14 : vector<256x128xf32>
    %16 = arith.truncf %15 : vector<256x128xf32> to vector<256x128xbf16>
    %c0_12 = arith.constant 0 : index
    %c0_13 = arith.constant 0 : index
    %17 = vector.load %arg4[%c0_12, %c0_13] : memref<128x128xbf16, #tpu.memory_space<vmem>>, vector<128x128xbf16>
    %cst_14 = arith.constant dense<0.000000e+00> : vector<256x128xf32>
    %18 = tpu.matmul %16, %17, %cst_14 {dimension_numbers = #tpu.dot_dimension_numbers<[1], [0], [0], [1], [0, 0, 1, 1], [], []>} : vector<256x128xbf16>, vector<128x128xbf16>, vector<256x128xf32> -> vector<256x128xf32>
    %c0_15 = arith.constant 0 : index
    %c0_16 = arith.constant 0 : index
    %19 = vector.load %arg7[%c0_15, %c0_16] : memref<1x128xf32, #tpu.memory_space<vmem>>, vector<1x128xf32>
    %20 = vector.broadcast %19 : vector<1x128xf32> to vector<256x128xf32>
    %21 = arith.addf %18, %20 : vector<256x128xf32>
    %22 = arith.truncf %21 : vector<256x128xf32> to vector<256x128xbf16>
    %c0_17 = arith.constant 0 : index
    %c0_18 = arith.constant 0 : index
    %23 = vector.load %arg8[%c0_17, %c0_18] : memref<256x128xbf16, #tpu.memory_space<vmem>>, vector<256x128xbf16>
    tpu.vector_store %arg8[%c0_17, %c0_18], %22 {strides = array<i32>} : memref<256x128xbf16, #tpu.memory_space<vmem>>, vector<256x128xbf16>,
    return
  }
  func.func @transform_0(%arg0: i32) -> (i32, i32) {
    %c0_i32 = arith.constant 0 : i32
    %c0_i32_0 = arith.constant 0 : i32
    return %arg0, %c0_i32 : i32, i32
  }
  func.func @transform_1(%arg0: i32) -> (i32, i32) {
    %c0_i32 = arith.constant 0 : i32
    %c0_i32_0 = arith.constant 0 : i32
    %c0_i32_1 = arith.constant 0 : i32
    return %c0_i32, %c0_i32_0 : i32, i32
  }
  func.func @transform_2(%arg0: i32) -> (i32, i32) {
    %c0_i32 = arith.constant 0 : i32
    %c0_i32_0 = arith.constant 0 : i32
    %c0_i32_1 = arith.constant 0 : i32
    return %c0_i32, %c0_i32_0 : i32, i32
  }
  func.func @transform_3(%arg0: i32) -> (i32, i32) {
    %c0_i32 = arith.constant 0 : i32
    %c0_i32_0 = arith.constant 0 : i32
    %c0_i32_1 = arith.constant 0 : i32
    return %c0_i32, %c0_i32_0 : i32, i32
  }
  func.func @transform_4(%arg0: i32) -> (i32, i32) {
    %c0_i32 = arith.constant 0 : i32
    %c0_i32_0 = arith.constant 0 : i32
    %c0_i32_1 = arith.constant 0 : i32
    return %c0_i32, %c0_i32_0 : i32, i32
  }
  func.func @transform_5(%arg0: i32) -> (i32, i32) {
    %c0_i32 = arith.constant 0 : i32
    %c0_i32_0 = arith.constant 0 : i32
    %c0_i32_1 = arith.constant 0 : i32
    return %c0_i32, %c0_i32_0 : i32, i32
  }
  func.func @transform_6(%arg0: i32) -> (i32, i32) {
    %c0_i32 = arith.constant 0 : i32
    %c0_i32_0 = arith.constant 0 : i32
    %c0_i32_1 = arith.constant 0 : i32
    return %c0_i32, %c0_i32_0 : i32, i32
  }
  func.func @transform_7(%arg0: i32) -> (i32, i32) {
    %c0_i32 = arith.constant 0 : i32
    %c0_i32_0 = arith.constant 0 : i32
    return %arg0, %c0_i32 : i32, i32
  }
}

module attributes {stable_mosaic.version = 11 : i64} {
  func.func @_fused_mlp_kernel(%arg0: i32, %arg1: memref<256x128xbf16, #tpu.memory_space<vmem>>, %arg2: memref<128x128xbf16, #tpu.memory_space<vmem>>, %arg3: memref<128x128xbf16, #tpu.memory_space<vmem>>, %arg4: memref<128x128xbf16, #tpu.memory_space<vmem>>, %arg5: memref<1x128xf32, #tpu.memory_space<vmem>>, %arg6: memref<1x128xf32, #tpu.memory_space<vmem>>, %arg7: memref<1x128xf32, #tpu.memory_space<vmem>>, %arg8: memref<256x128xbf16, #tpu.memory_space<vmem>>) attributes {dimension_semantics = [#tpu.dimension_semantics<parallel>], iteration_bounds = array<i64: 1>, scalar_prefetch = 0 : i64, scratch_operands = 0 : i64, tpu.core_type = #tpu.core_type<tc>, window_params = [{transform_indices = @transform_0, window_bounds = array<i64: 256, 128>}, {pipeline_mode = #tpu.pipeline_mode<synchronous>, transform_indices = @transform_1, window_bounds = array<i64: 128, 128>}, {pipeline_mode = #tpu.pipeline_mode<synchronous>, transform_indices = @transform_2, window_bounds = array<i64: 128, 128>}, {pipeline_mode = #tpu.pipeline_mode<synchronous>, transform_indices = @transform_3, window_bounds = array<i64: 128, 128>}, {pipeline_mode = #tpu.pipeline_mode<synchronous>, transform_indices = @transform_4, window_bounds = array<i64: 1, 128>}, {pipeline_mode = #tpu.pipeline_mode<synchronous>, transform_indices = @transform_5, window_bounds = array<i64: 1, 128>}, {pipeline_mode = #tpu.pipeline_mode<synchronous>, transform_indices = @transform_6, window_bounds = array<i64: 1, 128>}, {transform_indices = @transform_7, window_bounds = array<i64: 256, 128>}]} {
    %c0 = arith.constant 0 : index
    %c0_0 = arith.constant 0 : index
    %0 = vector.load %arg1[%c0, %c0_0] : memref<256x128xbf16, #tpu.memory_space<vmem>>, vector<256x128xbf16>
    %c0_1 = arith.constant 0 : index
    %c0_2 = arith.constant 0 : index
    %1 = vector.load %arg2[%c0_1, %c0_2] : memref<128x128xbf16, #tpu.memory_space<vmem>>, vector<128x128xbf16>
    %cst = arith.constant dense<0.000000e+00> : vector<256x128xf32>
    %2 = tpu.matmul %0, %1, %cst {dimension_numbers = #tpu.dot_dimension_numbers<[1], [0], [0], [1], [0, 0, 1, 1], [], []>} : vector<256x128xbf16>, vector<128x128xbf16>, vector<256x128xf32> -> vector<256x128xf32>
    %c0_3 = arith.constant 0 : index
    %c0_4 = arith.constant 0 : index
    %3 = vector.load %arg5[%c0_3, %c0_4] : memref<1x128xf32, #tpu.memory_space<vmem>>, vector<1x128xf32>
    %4 = vector.broadcast %3 : vector<1x128xf32> to vector<256x128xf32>
    %5 = arith.addf %2, %4 : vector<256x128xf32>
    %cst_5 = arith.constant 0.000000e+00 : f32
    %6 = vector.broadcast %cst_5 : f32 to vector<256x128xf32>
    %7 = arith.maximumf %5, %6 : vector<256x128xf32>
    %8 = arith.truncf %7 : vector<256x128xf32> to vector<256x128xbf16>
    %c0_6 = arith.constant 0 : index
    %c0_7 = arith.constant 0 : index
    %9 = vector.load %arg3[%c0_6, %c0_7] : memref<128x128xbf16, #tpu.memory_space<vmem>>, vector<128x128xbf16>
    %cst_8 = arith.constant dense<0.000000e+00> : vector<256x128xf32>
    %10 = tpu.matmul %8, %9, %cst_8 {dimension_numbers = #tpu.dot_dimension_numbers<[1], [0], [0], [1], [0, 0, 1, 1], [], []>} : vector<256x128xbf16>, vector<128x128xbf16>, vector<256x128xf32> -> vector<256x128xf32>
    %c0_9 = arith.constant 0 : index
    %c0_10 = arith.constant 0 : index
    %11 = vector.load %arg6[%c0_9, %c0_10] : memref<1x128xf32, #tpu.memory_space<vmem>>, vector<1x128xf32>
    %12 = vector.broadcast %11 : vector<1x128xf32> to vector<256x128xf32>
    %13 = arith.addf %10, %12 : vector<256x128xf32>
    %cst_11 = arith.constant 0.000000e+00 : f32
    %14 = vector.broadcast %cst_11 : f32 to vector<256x128xf32>
    %15 = arith.maximumf %13, %14 : vector<256x128xf32>
    %16 = arith.truncf %15 : vector<256x128xf32> to vector<256x128xbf16>
    %c0_12 = arith.constant 0 : index
    %c0_13 = arith.constant 0 : index
    %17 = vector.load %arg4[%c0_12, %c0_13] : memref<128x128xbf16, #tpu.memory_space<vmem>>, vector<128x128xbf16>
    %cst_14 = arith.constant dense<0.000000e+00> : vector<256x128xf32>
    %18 = tpu.matmul %16, %17, %cst_14 {dimension_numbers = #tpu.dot_dimension_numbers<[1], [0], [0], [1], [0, 0, 1, 1], [], []>} : vector<256x128xbf16>, vector<128x128xbf16>, vector<256x128xf32> -> vector<256x128xf32>
    %c0_15 = arith.constant 0 : index
    %c0_16 = arith.constant 0 : index
    %19 = vector.load %arg7[%c0_15, %c0_16] : memref<1x128xf32, #tpu.memory_space<vmem>>, vector<1x128xf32>
    %20 = vector.broadcast %19 : vector<1x128xf32> to vector<256x128xf32>
    %21 = arith.addf %18, %20 : vector<256x128xf32>
    %22 = arith.truncf %21 : vector<256x128xf32> to vector<256x128xbf16>
    %c0_17 = arith.constant 0 : index
    %c0_18 = arith.constant 0 : index
    %23 = vector.load %arg8[%c0_17, %c0_18] : memref<256x128xbf16, #tpu.memory_space<vmem>>, vector<256x128xbf16>
    tpu.vector_store %arg8[%c0_17, %c0_18], %22 {strides = array<i32>} : memref<256x128xbf16, #tpu.memory_space<vmem>>, vector<256x128xbf16>,
    return
  }
  func.func @transform_0(%arg0: i32) -> (i32, i32) {
    %c0_i32 = arith.constant 0 : i32
    %c0_i32_0 = arith.constant 0 : i32
    return %arg0, %c0_i32 : i32, i32
  }
  func.func @transform_1(%arg0: i32) -> (i32, i32) {
    %c0_i32 = arith.constant 0 : i32
    %c0_i32_0 = arith.constant 0 : i32
    %c0_i32_1 = arith.constant 0 : i32
    return %c0_i32, %c0_i32_0 : i32, i32
  }
  func.func @transform_2(%arg0: i32) -> (i32, i32) {
    %c0_i32 = arith.constant 0 : i32
    %c0_i32_0 = arith.constant 0 : i32
    %c0_i32_1 = arith.constant 0 : i32
    return %c0_i32, %c0_i32_0 : i32, i32
  }
  func.func @transform_3(%arg0: i32) -> (i32, i32) {
    %c0_i32 = arith.constant 0 : i32
    %c0_i32_0 = arith.constant 0 : i32
    %c0_i32_1 = arith.constant 0 : i32
    return %c0_i32, %c0_i32_0 : i32, i32
  }
  func.func @transform_4(%arg0: i32) -> (i32, i32) {
    %c0_i32 = arith.constant 0 : i32
    %c0_i32_0 = arith.constant 0 : i32
    %c0_i32_1 = arith.constant 0 : i32
    return %c0_i32, %c0_i32_0 : i32, i32
  }
  func.func @transform_5(%arg0: i32) -> (i32, i32) {
    %c0_i32 = arith.constant 0 : i32
    %c0_i32_0 = arith.constant 0 : i32
    %c0_i32_1 = arith.constant 0 : i32
    return %c0_i32, %c0_i32_0 : i32, i32
  }
  func.func @transform_6(%arg0: i32) -> (i32, i32) {
    %c0_i32 = arith.constant 0 : i32
    %c0_i32_0 = arith.constant 0 : i32
    %c0_i32_1 = arith.constant 0 : i32
    return %c0_i32, %c0_i32_0 : i32, i32
  }
  func.func @transform_7(%arg0: i32) -> (i32, i32) {
    %c0_i32 = arith.constant 0 : i32
    %c0_i32_0 = arith.constant 0 : i32
    return %arg0, %c0_i32 : i32, i32
  }
}

module attributes {stable_mosaic.version = 11 : i64} {
  func.func @_fused_mlp_kernel(%arg0: i32, %arg1: memref<256x128xbf16, #tpu.memory_space<vmem>>, %arg2: memref<256x128xbf16, #tpu.memory_space<vmem>>, %arg3: memref<256x128xbf16, #tpu.memory_space<vmem>>, %arg4: memref<256x128xbf16, #tpu.memory_space<vmem>>, %arg5: memref<256x128xbf16, #tpu.memory_space<vmem>>, %arg6: memref<256x128xbf16, #tpu.memory_space<vmem>>, %arg7: memref<768x128xbf16, #tpu.memory_space<vmem>>, %arg8: memref<128x128xbf16, #tpu.memory_space<vmem>>, %arg9: memref<128x128xbf16, #tpu.memory_space<vmem>>, %arg10: memref<1x128xf32, #tpu.memory_space<vmem>>, %arg11: memref<1x128xf32, #tpu.memory_space<vmem>>, %arg12: memref<1x128xf32, #tpu.memory_space<vmem>>, %arg13: memref<256x128xbf16, #tpu.memory_space<vmem>>) attributes {dimension_semantics = [#tpu.dimension_semantics<parallel>], iteration_bounds = array<i64: 1>, scalar_prefetch = 0 : i64, scratch_operands = 0 : i64, tpu.core_type = #tpu.core_type<tc>, window_params = [{transform_indices = @transform_0, window_bounds = array<i64: 256, 128>}, {transform_indices = @transform_1, window_bounds = array<i64: 256, 128>}, {transform_indices = @transform_2, window_bounds = array<i64: 256, 128>}, {transform_indices = @transform_3, window_bounds = array<i64: 256, 128>}, {transform_indices = @transform_4, window_bounds = array<i64: 256, 128>}, {transform_indices = @transform_5, window_bounds = array<i64: 256, 128>}, {pipeline_mode = #tpu.pipeline_mode<synchronous>, transform_indices = @transform_6, window_bounds = array<i64: 768, 128>}, {pipeline_mode = #tpu.pipeline_mode<synchronous>, transform_indices = @transform_7, window_bounds = array<i64: 128, 128>}, {pipeline_mode = #tpu.pipeline_mode<synchronous>, transform_indices = @transform_8, window_bounds = array<i64: 128, 128>}, {pipeline_mode = #tpu.pipeline_mode<synchronous>, transform_indices = @transform_9, window_bounds = array<i64: 1, 128>}, {pipeline_mode = #tpu.pipeline_mode<synchronous>, transform_indices = @transform_10, window_bounds = array<i64: 1, 128>}, {pipeline_mode = #tpu.pipeline_mode<synchronous>, transform_indices = @transform_11, window_bounds = array<i64: 1, 128>}, {transform_indices = @transform_12, window_bounds = array<i64: 256, 128>}]} {
    %c0 = arith.constant 0 : index
    %c0_0 = arith.constant 0 : index
    %0 = vector.load %arg1[%c0, %c0_0] : memref<256x128xbf16, #tpu.memory_space<vmem>>, vector<256x128xbf16>
    %c0_1 = arith.constant 0 : index
    %c0_2 = arith.constant 0 : index
    %1 = vector.load %arg2[%c0_1, %c0_2] : memref<256x128xbf16, #tpu.memory_space<vmem>>, vector<256x128xbf16>
    %2 = tpu.concatenate %0, %1 in 1 : vector<256x128xbf16>, vector<256x128xbf16> -> vector<256x256xbf16>
    %c0_3 = arith.constant 0 : index
    %c0_4 = arith.constant 0 : index
    %3 = vector.load %arg7[%c0_3, %c0_4] : memref<768x128xbf16, #tpu.memory_space<vmem>>, vector<256x128xbf16>
    %cst = arith.constant dense<0.000000e+00> : vector<256x128xf32>
    %4 = tpu.matmul %2, %3, %cst {dimension_numbers = #tpu.dot_dimension_numbers<[1], [0], [0], [1], [0, 0, 1, 1], [], []>} : vector<256x256xbf16>, vector<256x128xbf16>, vector<256x128xf32> -> vector<256x128xf32>
    %c0_5 = arith.constant 0 : index
    %c0_6 = arith.constant 0 : index
    %5 = vector.load %arg3[%c0_5, %c0_6] : memref<256x128xbf16, #tpu.memory_space<vmem>>, vector<256x128xbf16>
    %c0_7 = arith.constant 0 : index
    %c0_8 = arith.constant 0 : index
    %6 = vector.load %arg4[%c0_7, %c0_8] : memref<256x128xbf16, #tpu.memory_space<vmem>>, vector<256x128xbf16>
    %7 = tpu.concatenate %5, %6 in 1 : vector<256x128xbf16>, vector<256x128xbf16> -> vector<256x256xbf16>
    %c256 = arith.constant 256 : index
    %c0_9 = arith.constant 0 : index
    %8 = vector.load %arg7[%c256, %c0_9] : memref<768x128xbf16, #tpu.memory_space<vmem>>, vector<256x128xbf16>
    %cst_10 = arith.constant dense<0.000000e+00> : vector<256x128xf32>
    %9 = tpu.matmul %7, %8, %cst_10 {dimension_numbers = #tpu.dot_dimension_numbers<[1], [0], [0], [1], [0, 0, 1, 1], [], []>} : vector<256x256xbf16>, vector<256x128xbf16>, vector<256x128xf32> -> vector<256x128xf32>
    %10 = arith.addf %4, %9 : vector<256x128xf32>
    %c0_11 = arith.constant 0 : index
    %c0_12 = arith.constant 0 : index
    %11 = vector.load %arg5[%c0_11, %c0_12] : memref<256x128xbf16, #tpu.memory_space<vmem>>, vector<256x128xbf16>
    %c0_13 = arith.constant 0 : index
    %c0_14 = arith.constant 0 : index
    %12 = vector.load %arg6[%c0_13, %c0_14] : memref<256x128xbf16, #tpu.memory_space<vmem>>, vector<256x128xbf16>
    %13 = tpu.concatenate %11, %12 in 1 : vector<256x128xbf16>, vector<256x128xbf16> -> vector<256x256xbf16>
    %c512 = arith.constant 512 : index
    %c0_15 = arith.constant 0 : index
    %14 = vector.load %arg7[%c512, %c0_15] : memref<768x128xbf16, #tpu.memory_space<vmem>>, vector<256x128xbf16>
    %cst_16 = arith.constant dense<0.000000e+00> : vector<256x128xf32>
    %15 = tpu.matmul %13, %14, %cst_16 {dimension_numbers = #tpu.dot_dimension_numbers<[1], [0], [0], [1], [0, 0, 1, 1], [], []>} : vector<256x256xbf16>, vector<256x128xbf16>, vector<256x128xf32> -> vector<256x128xf32>
    %16 = arith.addf %10, %15 : vector<256x128xf32>
    %c0_17 = arith.constant 0 : index
    %c0_18 = arith.constant 0 : index
    %17 = vector.load %arg10[%c0_17, %c0_18] : memref<1x128xf32, #tpu.memory_space<vmem>>, vector<1x128xf32>
    %18 = vector.broadcast %17 : vector<1x128xf32> to vector<256x128xf32>
    %19 = arith.addf %16, %18 : vector<256x128xf32>
    %cst_19 = arith.constant 0.000000e+00 : f32
    %20 = vector.broadcast %cst_19 : f32 to vector<256x128xf32>
    %21 = arith.maximumf %19, %20 : vector<256x128xf32>
    %22 = arith.truncf %21 : vector<256x128xf32> to vector<256x128xbf16>
    %c0_20 = arith.constant 0 : index
    %c0_21 = arith.constant 0 : index
    %23 = vector.load %arg8[%c0_20, %c0_21] : memref<128x128xbf16, #tpu.memory_space<vmem>>, vector<128x128xbf16>
    %cst_22 = arith.constant dense<0.000000e+00> : vector<256x128xf32>
    %24 = tpu.matmul %22, %23, %cst_22 {dimension_numbers = #tpu.dot_dimension_numbers<[1], [0], [0], [1], [0, 0, 1, 1], [], []>} : vector<256x128xbf16>, vector<128x128xbf16>, vector<256x128xf32> -> vector<256x128xf32>
    %c0_23 = arith.constant 0 : index
    %c0_24 = arith.constant 0 : index
    %25 = vector.load %arg11[%c0_23, %c0_24] : memref<1x128xf32, #tpu.memory_space<vmem>>, vector<1x128xf32>
    %26 = vector.broadcast %25 : vector<1x128xf32> to vector<256x128xf32>
    %27 = arith.addf %24, %26 : vector<256x128xf32>
    %cst_25 = arith.constant 0.000000e+00 : f32
    %28 = vector.broadcast %cst_25 : f32 to vector<256x128xf32>
    %29 = arith.maximumf %27, %28 : vector<256x128xf32>
    %30 = arith.truncf %29 : vector<256x128xf32> to vector<256x128xbf16>
    %c0_26 = arith.constant 0 : index
    %c0_27 = arith.constant 0 : index
    %31 = vector.load %arg9[%c0_26, %c0_27] : memref<128x128xbf16, #tpu.memory_space<vmem>>, vector<128x128xbf16>
    %cst_28 = arith.constant dense<0.000000e+00> : vector<256x128xf32>
    %32 = tpu.matmul %30, %31, %cst_28 {dimension_numbers = #tpu.dot_dimension_numbers<[1], [0], [0], [1], [0, 0, 1, 1], [], []>} : vector<256x128xbf16>, vector<128x128xbf16>, vector<256x128xf32> -> vector<256x128xf32>
    %c0_29 = arith.constant 0 : index
    %c0_30 = arith.constant 0 : index
    %33 = vector.load %arg12[%c0_29, %c0_30] : memref<1x128xf32, #tpu.memory_space<vmem>>, vector<1x128xf32>
    %34 = vector.broadcast %33 : vector<1x128xf32> to vector<256x128xf32>
    %35 = arith.addf %32, %34 : vector<256x128xf32>
    %cst_31 = arith.constant 0.000000e+00 : f32
    %36 = vector.broadcast %cst_31 : f32 to vector<256x128xf32>
    %37 = arith.maximumf %35, %36 : vector<256x128xf32>
    %38 = arith.truncf %37 : vector<256x128xf32> to vector<256x128xbf16>
    %c0_32 = arith.constant 0 : index
    %c0_33 = arith.constant 0 : index
    %39 = vector.load %arg13[%c0_32, %c0_33] : memref<256x128xbf16, #tpu.memory_space<vmem>>, vector<256x128xbf16>
    tpu.vector_store %arg13[%c0_32, %c0_33], %38 {strides = array<i32>} : memref<256x128xbf16, #tpu.memory_space<vmem>>, vector<256x128xbf16>,
    return
  }
  func.func @transform_0(%arg0: i32) -> (i32, i32) {
    %c0_i32 = arith.constant 0 : i32
    %c0_i32_0 = arith.constant 0 : i32
    return %arg0, %c0_i32 : i32, i32
  }
  func.func @transform_1(%arg0: i32) -> (i32, i32) {
    %c0_i32 = arith.constant 0 : i32
    %c0_i32_0 = arith.constant 0 : i32
    return %arg0, %c0_i32 : i32, i32
  }
  func.func @transform_2(%arg0: i32) -> (i32, i32) {
    %c0_i32 = arith.constant 0 : i32
    %c0_i32_0 = arith.constant 0 : i32
    return %arg0, %c0_i32 : i32, i32
  }
  func.func @transform_3(%arg0: i32) -> (i32, i32) {
    %c0_i32 = arith.constant 0 : i32
    %c0_i32_0 = arith.constant 0 : i32
    return %arg0, %c0_i32 : i32, i32
  }
  func.func @transform_4(%arg0: i32) -> (i32, i32) {
    %c0_i32 = arith.constant 0 : i32
    %c0_i32_0 = arith.constant 0 : i32
    return %arg0, %c0_i32 : i32, i32
  }
  func.func @transform_5(%arg0: i32) -> (i32, i32) {
    %c0_i32 = arith.constant 0 : i32
    %c0_i32_0 = arith.constant 0 : i32
    return %arg0, %c0_i32 : i32, i32
  }
  func.func @transform_6(%arg0: i32) -> (i32, i32) {
    %c0_i32 = arith.constant 0 : i32
    %c0_i32_0 = arith.constant 0 : i32
    %c0_i32_1 = arith.constant 0 : i32
    return %c0_i32, %c0_i32_0 : i32, i32
  }
  func.func @transform_7(%arg0: i32) -> (i32, i32) {
    %c0_i32 = arith.constant 0 : i32
    %c0_i32_0 = arith.constant 0 : i32
    %c0_i32_1 = arith.constant 0 : i32
    return %c0_i32, %c0_i32_0 : i32, i32
  }
  func.func @transform_8(%arg0: i32) -> (i32, i32) {
    %c0_i32 = arith.constant 0 : i32
    %c0_i32_0 = arith.constant 0 : i32
    %c0_i32_1 = arith.constant 0 : i32
    return %c0_i32, %c0_i32_0 : i32, i32
  }
  func.func @transform_9(%arg0: i32) -> (i32, i32) {
    %c0_i32 = arith.constant 0 : i32
    %c0_i32_0 = arith.constant 0 : i32
    %c0_i32_1 = arith.constant 0 : i32
    return %c0_i32, %c0_i32_0 : i32, i32
  }
  func.func @transform_10(%arg0: i32) -> (i32, i32) {
    %c0_i32 = arith.constant 0 : i32
    %c0_i32_0 = arith.constant 0 : i32
    %c0_i32_1 = arith.constant 0 : i32
    return %c0_i32, %c0_i32_0 : i32, i32
  }
  func.func @transform_11(%arg0: i32) -> (i32, i32) {
    %c0_i32 = arith.constant 0 : i32
    %c0_i32_0 = arith.constant 0 : i32
    %c0_i32_1 = arith.constant 0 : i32
    return %c0_i32, %c0_i32_0 : i32, i32
  }
  func.func @transform_12(%arg0: i32) -> (i32, i32) {
    %c0_i32 = arith.constant 0 : i32
    %c0_i32_0 = arith.constant 0 : i32
    return %arg0, %c0_i32 : i32, i32
  }
}

module attributes {stable_mosaic.version = 11 : i64} {
  func.func @_segsum_kernel(%arg0: i32, %arg1: i32, %arg2: memref<1x512xi32, #tpu.memory_space<vmem>>, %arg3: memref<512x128xbf16, #tpu.memory_space<vmem>>, %arg4: memref<256x128xf32, #tpu.memory_space<vmem>>) attributes {dimension_semantics = [#tpu.dimension_semantics<parallel>, #tpu.dimension_semantics<arbitrary>], iteration_bounds = array<i64: 1, 1>, scalar_prefetch = 0 : i64, scratch_operands = 0 : i64, tpu.core_type = #tpu.core_type<tc>, window_params = [{transform_indices = @transform_0, window_bounds = array<i64: 1, 512>}, {transform_indices = @transform_1, window_bounds = array<i64: 512, 128>}, {transform_indices = @transform_2, window_bounds = array<i64: 256, 128>}]} {
    %c0_i32 = arith.constant 0 : i32
    %0 = arith.cmpi eq, %arg1, %c0_i32 : i32
    %1 = arith.extui %0 : i1 to i32
    %c0_i32_0 = arith.constant 0 : i32
    %2 = arith.cmpi ne, %1, %c0_i32_0 : i32
    scf.if %2 {
      %cst_8 = arith.constant 0.000000e+00 : f32
      %18 = vector.broadcast %cst_8 : f32 to vector<256x128xf32>
      %c0_9 = arith.constant 0 : index
      %c0_10 = arith.constant 0 : index
      %19 = vector.load %arg4[%c0_9, %c0_10] : memref<256x128xf32, #tpu.memory_space<vmem>>, vector<256x128xf32>
      tpu.vector_store %arg4[%c0_9, %c0_10], %18 {strides = array<i32>} : memref<256x128xf32, #tpu.memory_space<vmem>>, vector<256x128xf32>,
    } else {
    }
    %c0 = arith.constant 0 : index
    %c0_1 = arith.constant 0 : index
    %3 = vector.load %arg2[%c0, %c0_1] : memref<1x512xi32, #tpu.memory_space<vmem>>, vector<1x512xi32>
    %c256_i32 = arith.constant 256 : i32
    %4 = arith.muli %arg0, %c256_i32 : i32
    %5 = tpu.iota {dimensions = array<i32: 0>} : vector<256x512xi32>
    %6 = vector.broadcast %4 : i32 to vector<256x512xi32>
    %7 = arith.addi %6, %5 : vector<256x512xi32>
    %8 = vector.broadcast %3 : vector<1x512xi32> to vector<256x512xi32>
    %9 = arith.cmpi eq, %7, %8 : vector<256x512xi32>
    %10 = arith.extui %9 : vector<256x512xi1> to vector<256x512xi32>
    %11 = arith.sitofp %10 : vector<256x512xi32> to vector<256x512xf32>
    %12 = arith.truncf %11 : vector<256x512xf32> to vector<256x512xbf16>
    %c0_2 = arith.constant 0 : index
    %c0_3 = arith.constant 0 : index
    %13 = vector.load %arg4[%c0_2, %c0_3] : memref<256x128xf32, #tpu.memory_space<vmem>>, vector<256x128xf32>
    %c0_4 = arith.constant 0 : index
    %c0_5 = arith.constant 0 : index
    %14 = vector.load %arg3[%c0_4, %c0_5] : memref<512x128xbf16, #tpu.memory_space<vmem>>, vector<512x128xbf16>
    %cst = arith.constant dense<0.000000e+00> : vector<256x128xf32>
    %15 = tpu.matmul %12, %14, %cst {dimension_numbers = #tpu.dot_dimension_numbers<[1], [0], [0], [1], [0, 0, 1, 1], [], []>} : vector<256x512xbf16>, vector<512x128xbf16>, vector<256x128xf32> -> vector<256x128xf32>
    %16 = arith.addf %13, %15 : vector<256x128xf32>
    %c0_6 = arith.constant 0 : index
    %c0_7 = arith.constant 0 : index
    %17 = vector.load %arg4[%c0_6, %c0_7] : memref<256x128xf32, #tpu.memory_space<vmem>>, vector<256x128xf32>
    tpu.vector_store %arg4[%c0_6, %c0_7], %16 {strides = array<i32>} : memref<256x128xf32, #tpu.memory_space<vmem>>, vector<256x128xf32>,
    return
  }
  func.func @transform_0(%arg0: i32, %arg1: i32) -> (i32, i32) {
    %c0_i32 = arith.constant 0 : i32
    %c0_i32_0 = arith.constant 0 : i32
    return %c0_i32, %arg1 : i32, i32
  }
  func.func @transform_1(%arg0: i32, %arg1: i32) -> (i32, i32) {
    %c0_i32 = arith.constant 0 : i32
    %c0_i32_0 = arith.constant 0 : i32
    return %arg1, %c0_i32 : i32, i32
  }
  func.func @transform_2(%arg0: i32, %arg1: i32) -> (i32, i32) {
    %c0_i32 = arith.constant 0 : i32
    %c0_i32_0 = arith.constant 0 : i32
    return %arg0, %c0_i32 : i32, i32
  }
}

module attributes {stable_mosaic.version = 11 : i64} {
  func.func @_fused_mlp_kernel(%arg0: i32, %arg1: memref<256x128xbf16, #tpu.memory_space<vmem>>, %arg2: memref<256x128xf32, #tpu.memory_space<vmem>>, %arg3: memref<256x128xf32, #tpu.memory_space<vmem>>, %arg4: memref<256x128xf32, #tpu.memory_space<vmem>>, %arg5: memref<256x128xbf16, #tpu.memory_space<vmem>>, %arg6: memref<640x128xbf16, #tpu.memory_space<vmem>>, %arg7: memref<128x128xbf16, #tpu.memory_space<vmem>>, %arg8: memref<128x128xbf16, #tpu.memory_space<vmem>>, %arg9: memref<1x128xf32, #tpu.memory_space<vmem>>, %arg10: memref<1x128xf32, #tpu.memory_space<vmem>>, %arg11: memref<1x128xf32, #tpu.memory_space<vmem>>, %arg12: memref<256x128xbf16, #tpu.memory_space<vmem>>) attributes {dimension_semantics = [#tpu.dimension_semantics<parallel>], iteration_bounds = array<i64: 1>, scalar_prefetch = 0 : i64, scratch_operands = 0 : i64, tpu.core_type = #tpu.core_type<tc>, window_params = [{transform_indices = @transform_0, window_bounds = array<i64: 256, 128>}, {transform_indices = @transform_1, window_bounds = array<i64: 256, 128>}, {transform_indices = @transform_2, window_bounds = array<i64: 256, 128>}, {transform_indices = @transform_3, window_bounds = array<i64: 256, 128>}, {transform_indices = @transform_4, window_bounds = array<i64: 256, 128>}, {pipeline_mode = #tpu.pipeline_mode<synchronous>, transform_indices = @transform_5, window_bounds = array<i64: 640, 128>}, {pipeline_mode = #tpu.pipeline_mode<synchronous>, transform_indices = @transform_6, window_bounds = array<i64: 128, 128>}, {pipeline_mode = #tpu.pipeline_mode<synchronous>, transform_indices = @transform_7, window_bounds = array<i64: 128, 128>}, {pipeline_mode = #tpu.pipeline_mode<synchronous>, transform_indices = @transform_8, window_bounds = array<i64: 1, 128>}, {pipeline_mode = #tpu.pipeline_mode<synchronous>, transform_indices = @transform_9, window_bounds = array<i64: 1, 128>}, {pipeline_mode = #tpu.pipeline_mode<synchronous>, transform_indices = @transform_10, window_bounds = array<i64: 1, 128>}, {transform_indices = @transform_11, window_bounds = array<i64: 256, 128>}]} {
    %c0 = arith.constant 0 : index
    %c0_0 = arith.constant 0 : index
    %0 = vector.load %arg1[%c0, %c0_0] : memref<256x128xbf16, #tpu.memory_space<vmem>>, vector<256x128xbf16>
    %c0_1 = arith.constant 0 : index
    %c0_2 = arith.constant 0 : index
    %1 = vector.load %arg2[%c0_1, %c0_2] : memref<256x128xf32, #tpu.memory_space<vmem>>, vector<256x128xf32>
    %2 = arith.truncf %1 : vector<256x128xf32> to vector<256x128xbf16>
    %3 = tpu.concatenate %0, %2 in 1 : vector<256x128xbf16>, vector<256x128xbf16> -> vector<256x256xbf16>
    %c0_3 = arith.constant 0 : index
    %c0_4 = arith.constant 0 : index
    %4 = vector.load %arg6[%c0_3, %c0_4] : memref<640x128xbf16, #tpu.memory_space<vmem>>, vector<256x128xbf16>
    %cst = arith.constant dense<0.000000e+00> : vector<256x128xf32>
    %5 = tpu.matmul %3, %4, %cst {dimension_numbers = #tpu.dot_dimension_numbers<[1], [0], [0], [1], [0, 0, 1, 1], [], []>} : vector<256x256xbf16>, vector<256x128xbf16>, vector<256x128xf32> -> vector<256x128xf32>
    %c0_5 = arith.constant 0 : index
    %c0_6 = arith.constant 0 : index
    %6 = vector.load %arg3[%c0_5, %c0_6] : memref<256x128xf32, #tpu.memory_space<vmem>>, vector<256x128xf32>
    %7 = arith.truncf %6 : vector<256x128xf32> to vector<256x128xbf16>
    %c0_7 = arith.constant 0 : index
    %c0_8 = arith.constant 0 : index
    %8 = vector.load %arg4[%c0_7, %c0_8] : memref<256x128xf32, #tpu.memory_space<vmem>>, vector<256x128xf32>
    %9 = arith.truncf %8 : vector<256x128xf32> to vector<256x128xbf16>
    %10 = tpu.concatenate %7, %9 in 1 : vector<256x128xbf16>, vector<256x128xbf16> -> vector<256x256xbf16>
    %c256 = arith.constant 256 : index
    %c0_9 = arith.constant 0 : index
    %11 = vector.load %arg6[%c256, %c0_9] : memref<640x128xbf16, #tpu.memory_space<vmem>>, vector<256x128xbf16>
    %cst_10 = arith.constant dense<0.000000e+00> : vector<256x128xf32>
    %12 = tpu.matmul %10, %11, %cst_10 {dimension_numbers = #tpu.dot_dimension_numbers<[1], [0], [0], [1], [0, 0, 1, 1], [], []>} : vector<256x256xbf16>, vector<256x128xbf16>, vector<256x128xf32> -> vector<256x128xf32>
    %13 = arith.addf %5, %12 : vector<256x128xf32>
    %c0_11 = arith.constant 0 : index
    %c0_12 = arith.constant 0 : index
    %14 = vector.load %arg5[%c0_11, %c0_12] : memref<256x128xbf16, #tpu.memory_space<vmem>>, vector<256x128xbf16>
    %c512 = arith.constant 512 : index
    %c0_13 = arith.constant 0 : index
    %15 = vector.load %arg6[%c512, %c0_13] : memref<640x128xbf16, #tpu.memory_space<vmem>>, vector<128x128xbf16>
    %cst_14 = arith.constant dense<0.000000e+00> : vector<256x128xf32>
    %16 = tpu.matmul %14, %15, %cst_14 {dimension_numbers = #tpu.dot_dimension_numbers<[1], [0], [0], [1], [0, 0, 1, 1], [], []>} : vector<256x128xbf16>, vector<128x128xbf16>, vector<256x128xf32> -> vector<256x128xf32>
    %17 = arith.addf %13, %16 : vector<256x128xf32>
    %c0_15 = arith.constant 0 : index
    %c0_16 = arith.constant 0 : index
    %18 = vector.load %arg9[%c0_15, %c0_16] : memref<1x128xf32, #tpu.memory_space<vmem>>, vector<1x128xf32>
    %19 = vector.broadcast %18 : vector<1x128xf32> to vector<256x128xf32>
    %20 = arith.addf %17, %19 : vector<256x128xf32>
    %cst_17 = arith.constant 0.000000e+00 : f32
    %21 = vector.broadcast %cst_17 : f32 to vector<256x128xf32>
    %22 = arith.maximumf %20, %21 : vector<256x128xf32>
    %23 = arith.truncf %22 : vector<256x128xf32> to vector<256x128xbf16>
    %c0_18 = arith.constant 0 : index
    %c0_19 = arith.constant 0 : index
    %24 = vector.load %arg7[%c0_18, %c0_19] : memref<128x128xbf16, #tpu.memory_space<vmem>>, vector<128x128xbf16>
    %cst_20 = arith.constant dense<0.000000e+00> : vector<256x128xf32>
    %25 = tpu.matmul %23, %24, %cst_20 {dimension_numbers = #tpu.dot_dimension_numbers<[1], [0], [0], [1], [0, 0, 1, 1], [], []>} : vector<256x128xbf16>, vector<128x128xbf16>, vector<256x128xf32> -> vector<256x128xf32>
    %c0_21 = arith.constant 0 : index
    %c0_22 = arith.constant 0 : index
    %26 = vector.load %arg10[%c0_21, %c0_22] : memref<1x128xf32, #tpu.memory_space<vmem>>, vector<1x128xf32>
    %27 = vector.broadcast %26 : vector<1x128xf32> to vector<256x128xf32>
    %28 = arith.addf %25, %27 : vector<256x128xf32>
    %cst_23 = arith.constant 0.000000e+00 : f32
    %29 = vector.broadcast %cst_23 : f32 to vector<256x128xf32>
    %30 = arith.maximumf %28, %29 : vector<256x128xf32>
    %31 = arith.truncf %30 : vector<256x128xf32> to vector<256x128xbf16>
    %c0_24 = arith.constant 0 : index
    %c0_25 = arith.constant 0 : index
    %32 = vector.load %arg8[%c0_24, %c0_25] : memref<128x128xbf16, #tpu.memory_space<vmem>>, vector<128x128xbf16>
    %cst_26 = arith.constant dense<0.000000e+00> : vector<256x128xf32>
    %33 = tpu.matmul %31, %32, %cst_26 {dimension_numbers = #tpu.dot_dimension_numbers<[1], [0], [0], [1], [0, 0, 1, 1], [], []>} : vector<256x128xbf16>, vector<128x128xbf16>, vector<256x128xf32> -> vector<256x128xf32>
    %c0_27 = arith.constant 0 : index
    %c0_28 = arith.constant 0 : index
    %34 = vector.load %arg11[%c0_27, %c0_28] : memref<1x128xf32, #tpu.memory_space<vmem>>, vector<1x128xf32>
    %35 = vector.broadcast %34 : vector<1x128xf32> to vector<256x128xf32>
    %36 = arith.addf %33, %35 : vector<256x128xf32>
    %cst_29 = arith.constant 0.000000e+00 : f32
    %37 = vector.broadcast %cst_29 : f32 to vector<256x128xf32>
    %38 = arith.maximumf %36, %37 : vector<256x128xf32>
    %39 = arith.truncf %38 : vector<256x128xf32> to vector<256x128xbf16>
    %c0_30 = arith.constant 0 : index
    %c0_31 = arith.constant 0 : index
    %40 = vector.load %arg12[%c0_30, %c0_31] : memref<256x128xbf16, #tpu.memory_space<vmem>>, vector<256x128xbf16>
    tpu.vector_store %arg12[%c0_30, %c0_31], %39 {strides = array<i32>} : memref<256x128xbf16, #tpu.memory_space<vmem>>, vector<256x128xbf16>,
    return
  }
  func.func @transform_0(%arg0: i32) -> (i32, i32) {
    %c0_i32 = arith.constant 0 : i32
    %c0_i32_0 = arith.constant 0 : i32
    return %arg0, %c0_i32 : i32, i32
  }
  func.func @transform_1(%arg0: i32) -> (i32, i32) {
    %c0_i32 = arith.constant 0 : i32
    %c0_i32_0 = arith.constant 0 : i32
    return %arg0, %c0_i32 : i32, i32
  }
  func.func @transform_2(%arg0: i32) -> (i32, i32) {
    %c0_i32 = arith.constant 0 : i32
    %c0_i32_0 = arith.constant 0 : i32
    return %arg0, %c0_i32 : i32, i32
  }
  func.func @transform_3(%arg0: i32) -> (i32, i32) {
    %c0_i32 = arith.constant 0 : i32
    %c0_i32_0 = arith.constant 0 : i32
    return %arg0, %c0_i32 : i32, i32
  }
  func.func @transform_4(%arg0: i32) -> (i32, i32) {
    %c0_i32 = arith.constant 0 : i32
    %c0_i32_0 = arith.constant 0 : i32
    return %arg0, %c0_i32 : i32, i32
  }
  func.func @transform_5(%arg0: i32) -> (i32, i32) {
    %c0_i32 = arith.constant 0 : i32
    %c0_i32_0 = arith.constant 0 : i32
    %c0_i32_1 = arith.constant 0 : i32
    return %c0_i32, %c0_i32_0 : i32, i32
  }
  func.func @transform_6(%arg0: i32) -> (i32, i32) {
    %c0_i32 = arith.constant 0 : i32
    %c0_i32_0 = arith.constant 0 : i32
    %c0_i32_1 = arith.constant 0 : i32
    return %c0_i32, %c0_i32_0 : i32, i32
  }
  func.func @transform_7(%arg0: i32) -> (i32, i32) {
    %c0_i32 = arith.constant 0 : i32
    %c0_i32_0 = arith.constant 0 : i32
    %c0_i32_1 = arith.constant 0 : i32
    return %c0_i32, %c0_i32_0 : i32, i32
  }
  func.func @transform_8(%arg0: i32) -> (i32, i32) {
    %c0_i32 = arith.constant 0 : i32
    %c0_i32_0 = arith.constant 0 : i32
    %c0_i32_1 = arith.constant 0 : i32
    return %c0_i32, %c0_i32_0 : i32, i32
  }
  func.func @transform_9(%arg0: i32) -> (i32, i32) {
    %c0_i32 = arith.constant 0 : i32
    %c0_i32_0 = arith.constant 0 : i32
    %c0_i32_1 = arith.constant 0 : i32
    return %c0_i32, %c0_i32_0 : i32, i32
  }
  func.func @transform_10(%arg0: i32) -> (i32, i32) {
    %c0_i32 = arith.constant 0 : i32
    %c0_i32_0 = arith.constant 0 : i32
    %c0_i32_1 = arith.constant 0 : i32
    return %c0_i32, %c0_i32_0 : i32, i32
  }
  func.func @transform_11(%arg0: i32) -> (i32, i32) {
    %c0_i32 = arith.constant 0 : i32
    %c0_i32_0 = arith.constant 0 : i32
    return %arg0, %c0_i32 : i32, i32
  }
}

module attributes {stable_mosaic.version = 11 : i64} {
  func.func @_fused_mlp_kernel(%arg0: i32, %arg1: memref<256x128xbf16, #tpu.memory_space<vmem>>, %arg2: memref<256x128xf32, #tpu.memory_space<vmem>>, %arg3: memref<256x128xf32, #tpu.memory_space<vmem>>, %arg4: memref<256x128xf32, #tpu.memory_space<vmem>>, %arg5: memref<512x128xbf16, #tpu.memory_space<vmem>>, %arg6: memref<128x128xbf16, #tpu.memory_space<vmem>>, %arg7: memref<128x128xbf16, #tpu.memory_space<vmem>>, %arg8: memref<1x128xf32, #tpu.memory_space<vmem>>, %arg9: memref<1x128xf32, #tpu.memory_space<vmem>>, %arg10: memref<1x128xf32, #tpu.memory_space<vmem>>, %arg11: memref<256x128xbf16, #tpu.memory_space<vmem>>) attributes {dimension_semantics = [#tpu.dimension_semantics<parallel>], iteration_bounds = array<i64: 1>, scalar_prefetch = 0 : i64, scratch_operands = 0 : i64, tpu.core_type = #tpu.core_type<tc>, window_params = [{transform_indices = @transform_0, window_bounds = array<i64: 256, 128>}, {transform_indices = @transform_1, window_bounds = array<i64: 256, 128>}, {transform_indices = @transform_2, window_bounds = array<i64: 256, 128>}, {transform_indices = @transform_3, window_bounds = array<i64: 256, 128>}, {pipeline_mode = #tpu.pipeline_mode<synchronous>, transform_indices = @transform_4, window_bounds = array<i64: 512, 128>}, {pipeline_mode = #tpu.pipeline_mode<synchronous>, transform_indices = @transform_5, window_bounds = array<i64: 128, 128>}, {pipeline_mode = #tpu.pipeline_mode<synchronous>, transform_indices = @transform_6, window_bounds = array<i64: 128, 128>}, {pipeline_mode = #tpu.pipeline_mode<synchronous>, transform_indices = @transform_7, window_bounds = array<i64: 1, 128>}, {pipeline_mode = #tpu.pipeline_mode<synchronous>, transform_indices = @transform_8, window_bounds = array<i64: 1, 128>}, {pipeline_mode = #tpu.pipeline_mode<synchronous>, transform_indices = @transform_9, window_bounds = array<i64: 1, 128>}, {transform_indices = @transform_10, window_bounds = array<i64: 256, 128>}]} {
    %c0 = arith.constant 0 : index
    %c0_0 = arith.constant 0 : index
    %0 = vector.load %arg1[%c0, %c0_0] : memref<256x128xbf16, #tpu.memory_space<vmem>>, vector<256x128xbf16>
    %c0_1 = arith.constant 0 : index
    %c0_2 = arith.constant 0 : index
    %1 = vector.load %arg2[%c0_1, %c0_2] : memref<256x128xf32, #tpu.memory_space<vmem>>, vector<256x128xf32>
    %2 = arith.truncf %1 : vector<256x128xf32> to vector<256x128xbf16>
    %3 = tpu.concatenate %0, %2 in 1 : vector<256x128xbf16>, vector<256x128xbf16> -> vector<256x256xbf16>
    %c0_3 = arith.constant 0 : index
    %c0_4 = arith.constant 0 : index
    %4 = vector.load %arg5[%c0_3, %c0_4] : memref<512x128xbf16, #tpu.memory_space<vmem>>, vector<256x128xbf16>
    %cst = arith.constant dense<0.000000e+00> : vector<256x128xf32>
    %5 = tpu.matmul %3, %4, %cst {dimension_numbers = #tpu.dot_dimension_numbers<[1], [0], [0], [1], [0, 0, 1, 1], [], []>} : vector<256x256xbf16>, vector<256x128xbf16>, vector<256x128xf32> -> vector<256x128xf32>
    %c0_5 = arith.constant 0 : index
    %c0_6 = arith.constant 0 : index
    %6 = vector.load %arg3[%c0_5, %c0_6] : memref<256x128xf32, #tpu.memory_space<vmem>>, vector<256x128xf32>
    %7 = arith.truncf %6 : vector<256x128xf32> to vector<256x128xbf16>
    %c0_7 = arith.constant 0 : index
    %c0_8 = arith.constant 0 : index
    %8 = vector.load %arg4[%c0_7, %c0_8] : memref<256x128xf32, #tpu.memory_space<vmem>>, vector<256x128xf32>
    %9 = arith.truncf %8 : vector<256x128xf32> to vector<256x128xbf16>
    %10 = tpu.concatenate %7, %9 in 1 : vector<256x128xbf16>, vector<256x128xbf16> -> vector<256x256xbf16>
    %c256 = arith.constant 256 : index
    %c0_9 = arith.constant 0 : index
    %11 = vector.load %arg5[%c256, %c0_9] : memref<512x128xbf16, #tpu.memory_space<vmem>>, vector<256x128xbf16>
    %cst_10 = arith.constant dense<0.000000e+00> : vector<256x128xf32>
    %12 = tpu.matmul %10, %11, %cst_10 {dimension_numbers = #tpu.dot_dimension_numbers<[1], [0], [0], [1], [0, 0, 1, 1], [], []>} : vector<256x256xbf16>, vector<256x128xbf16>, vector<256x128xf32> -> vector<256x128xf32>
    %13 = arith.addf %5, %12 : vector<256x128xf32>
    %c0_11 = arith.constant 0 : index
    %c0_12 = arith.constant 0 : index
    %14 = vector.load %arg8[%c0_11, %c0_12] : memref<1x128xf32, #tpu.memory_space<vmem>>, vector<1x128xf32>
    %15 = vector.broadcast %14 : vector<1x128xf32> to vector<256x128xf32>
    %16 = arith.addf %13, %15 : vector<256x128xf32>
    %cst_13 = arith.constant 0.000000e+00 : f32
    %17 = vector.broadcast %cst_13 : f32 to vector<256x128xf32>
    %18 = arith.maximumf %16, %17 : vector<256x128xf32>
    %19 = arith.truncf %18 : vector<256x128xf32> to vector<256x128xbf16>
    %c0_14 = arith.constant 0 : index
    %c0_15 = arith.constant 0 : index
    %20 = vector.load %arg6[%c0_14, %c0_15] : memref<128x128xbf16, #tpu.memory_space<vmem>>, vector<128x128xbf16>
    %cst_16 = arith.constant dense<0.000000e+00> : vector<256x128xf32>
    %21 = tpu.matmul %19, %20, %cst_16 {dimension_numbers = #tpu.dot_dimension_numbers<[1], [0], [0], [1], [0, 0, 1, 1], [], []>} : vector<256x128xbf16>, vector<128x128xbf16>, vector<256x128xf32> -> vector<256x128xf32>
    %c0_17 = arith.constant 0 : index
    %c0_18 = arith.constant 0 : index
    %22 = vector.load %arg9[%c0_17, %c0_18] : memref<1x128xf32, #tpu.memory_space<vmem>>, vector<1x128xf32>
    %23 = vector.broadcast %22 : vector<1x128xf32> to vector<256x128xf32>
    %24 = arith.addf %21, %23 : vector<256x128xf32>
    %cst_19 = arith.constant 0.000000e+00 : f32
    %25 = vector.broadcast %cst_19 : f32 to vector<256x128xf32>
    %26 = arith.maximumf %24, %25 : vector<256x128xf32>
    %27 = arith.truncf %26 : vector<256x128xf32> to vector<256x128xbf16>
    %c0_20 = arith.constant 0 : index
    %c0_21 = arith.constant 0 : index
    %28 = vector.load %arg7[%c0_20, %c0_21] : memref<128x128xbf16, #tpu.memory_space<vmem>>, vector<128x128xbf16>
    %cst_22 = arith.constant dense<0.000000e+00> : vector<256x128xf32>
    %29 = tpu.matmul %27, %28, %cst_22 {dimension_numbers = #tpu.dot_dimension_numbers<[1], [0], [0], [1], [0, 0, 1, 1], [], []>} : vector<256x128xbf16>, vector<128x128xbf16>, vector<256x128xf32> -> vector<256x128xf32>
    %c0_23 = arith.constant 0 : index
    %c0_24 = arith.constant 0 : index
    %30 = vector.load %arg10[%c0_23, %c0_24] : memref<1x128xf32, #tpu.memory_space<vmem>>, vector<1x128xf32>
    %31 = vector.broadcast %30 : vector<1x128xf32> to vector<256x128xf32>
    %32 = arith.addf %29, %31 : vector<256x128xf32>
    %cst_25 = arith.constant 0.000000e+00 : f32
    %33 = vector.broadcast %cst_25 : f32 to vector<256x128xf32>
    %34 = arith.maximumf %32, %33 : vector<256x128xf32>
    %35 = arith.truncf %34 : vector<256x128xf32> to vector<256x128xbf16>
    %c0_26 = arith.constant 0 : index
    %c0_27 = arith.constant 0 : index
    %36 = vector.load %arg11[%c0_26, %c0_27] : memref<256x128xbf16, #tpu.memory_space<vmem>>, vector<256x128xbf16>
    tpu.vector_store %arg11[%c0_26, %c0_27], %35 {strides = array<i32>} : memref<256x128xbf16, #tpu.memory_space<vmem>>, vector<256x128xbf16>,
    return
  }
  func.func @transform_0(%arg0: i32) -> (i32, i32) {
    %c0_i32 = arith.constant 0 : i32
    %c0_i32_0 = arith.constant 0 : i32
    return %arg0, %c0_i32 : i32, i32
  }
  func.func @transform_1(%arg0: i32) -> (i32, i32) {
    %c0_i32 = arith.constant 0 : i32
    %c0_i32_0 = arith.constant 0 : i32
    return %arg0, %c0_i32 : i32, i32
  }
  func.func @transform_2(%arg0: i32) -> (i32, i32) {
    %c0_i32 = arith.constant 0 : i32
    %c0_i32_0 = arith.constant 0 : i32
    return %arg0, %c0_i32 : i32, i32
  }
  func.func @transform_3(%arg0: i32) -> (i32, i32) {
    %c0_i32 = arith.constant 0 : i32
    %c0_i32_0 = arith.constant 0 : i32
    return %arg0, %c0_i32 : i32, i32
  }
  func.func @transform_4(%arg0: i32) -> (i32, i32) {
    %c0_i32 = arith.constant 0 : i32
    %c0_i32_0 = arith.constant 0 : i32
    %c0_i32_1 = arith.constant 0 : i32
    return %c0_i32, %c0_i32_0 : i32, i32
  }
  func.func @transform_5(%arg0: i32) -> (i32, i32) {
    %c0_i32 = arith.constant 0 : i32
    %c0_i32_0 = arith.constant 0 : i32
    %c0_i32_1 = arith.constant 0 : i32
    return %c0_i32, %c0_i32_0 : i32, i32
  }
  func.func @transform_6(%arg0: i32) -> (i32, i32) {
    %c0_i32 = arith.constant 0 : i32
    %c0_i32_0 = arith.constant 0 : i32
    %c0_i32_1 = arith.constant 0 : i32
    return %c0_i32, %c0_i32_0 : i32, i32
  }
  func.func @transform_7(%arg0: i32) -> (i32, i32) {
    %c0_i32 = arith.constant 0 : i32
    %c0_i32_0 = arith.constant 0 : i32
    %c0_i32_1 = arith.constant 0 : i32
    return %c0_i32, %c0_i32_0 : i32, i32
  }
  func.func @transform_8(%arg0: i32) -> (i32, i32) {
    %c0_i32 = arith.constant 0 : i32
    %c0_i32_0 = arith.constant 0 : i32
    %c0_i32_1 = arith.constant 0 : i32
    return %c0_i32, %c0_i32_0 : i32, i32
  }
  func.func @transform_9(%arg0: i32) -> (i32, i32) {
    %c0_i32 = arith.constant 0 : i32
    %c0_i32_0 = arith.constant 0 : i32
    %c0_i32_1 = arith.constant 0 : i32
    return %c0_i32, %c0_i32_0 : i32, i32
  }
  func.func @transform_10(%arg0: i32) -> (i32, i32) {
    %c0_i32 = arith.constant 0 : i32
    %c0_i32_0 = arith.constant 0 : i32
    return %arg0, %c0_i32 : i32, i32
  }
}

</mosaic_0001>

<llo_original>
// kernel: gnn_forward.21
$region0: #{gnn_forward.21}
  #allocation0 [shape = 'u32[]', space=smem, size = 0x4, offset = 0x4, fixed_abs, tag = 'smem constant byte address 0x4 - core index']
  #allocation1 [shape = 'u32[72,128]{1,0:T(1,128)}', space=vmem, size = 0x9000, scoped, tag = 'internal scratch']
  %s0 = inlined_call_operand.vmem [shape: bf16[256,128], index: 0, kind: input, shape index: {}]
  %s1 = inlined_call_operand.vmem [shape: bf16[128,128], index: 1, kind: input, shape index: {}]
  %s2 = inlined_call_operand.vmem [shape: bf16[128,128], index: 2, kind: input, shape index: {}]
  %s3 = inlined_call_operand.hbm [shape: bf16[128,128], index: 3, kind: input, shape index: {}]
  %s4 = inlined_call_operand.vmem [shape: f32[1,128], index: 4, kind: input, shape index: {}]
  %s5 = inlined_call_operand.vmem [shape: f32[1,128], index: 5, kind: input, shape index: {}]
  %s6 = inlined_call_operand.vmem [shape: f32[1,128], index: 6, kind: input, shape index: {}]
  %s7 = inlined_call_operand.vmem [shape: bf16[256,128], index: 7, kind: output, shape index: {}]
  %s8 = sld [smem:[#allocation0]]
  $region42: #{gnn_forward.21} parent=0
    _
  %s10 = ssub.s32 1, %s8
  %s11 = scalar_select 0, %s10, %s8
  $region1: #{gnn_forward.21} parent=0
    #allocation2 [shape = 'u8[32768]{0}', space=vmem, size = 0x8000, scoped, tag = 'input window, operand 3, single buffered']
    #allocation3 [shape = 's32[1]{0}', space=sflag, size = 0x4, scoped, tag = 'scoped memory for gnn_forward.21']
    %12 = vsyncpa [#allocation3], 0
    // Predicated region
    $region2: #{gnn_forward.21} parent=1 // pred_check
      _
    $region3: #{gnn_forward.21} parent=1 // pred_check_branch
      %14 = sbr.rel (0) target = $region5
    $region4: #{gnn_forward.21} parent=1 // pred_region
      _
    $region5: #{gnn_forward.21} parent=1 // pred_fallthru
      _
    // Predicated region
    $region6: #{gnn_forward.21} parent=1 // pred_check
      _
    $region7: #{gnn_forward.21} parent=1 // pred_check_branch
      %16 = sbr.rel (0) target = $region9
    $region8: #{gnn_forward.21} parent=1 // pred_region
      _
    $region9: #{gnn_forward.21} parent=1 // pred_fallthru
      _
    // Predicated region
    $region10: #{gnn_forward.21} parent=1 // pred_check
      _
    $region11: #{gnn_forward.21} parent=1 // pred_check_branch
      %18 = sbr.rel (0) target = $region13
    $region12: #{gnn_forward.21} parent=1 // pred_region
      _
    $region13: #{gnn_forward.21} parent=1 // pred_fallthru
      _
    // Predicated region
    $region14: #{gnn_forward.21} parent=1 // pred_check
      _
    $region15: #{gnn_forward.21} parent=1 // pred_check_branch
      %20 = sbr.rel (0) target = $region17
    $region16: #{gnn_forward.21} parent=1 // pred_region
      %22 = vsyncadd [#allocation3], 0
      %s23 = sshll.u32 %s3, 4
      %s24 = int_to_ptr.hbm [resolvable:$true] %s23
      %s25 = sshll.u32 [#allocation2], 4
      %s26 = int_to_ptr.vmem [resolvable:$true] %s25
      %31 = dma.hbm_to_vmem [thread:$0]  %s24, 1024, %s26, [#allocation3], 64, 64, 4
    $region17: #{gnn_forward.21} parent=1 // pred_fallthru
      _
    // Predicated region
    $region18: #{gnn_forward.21} parent=1 // pred_check
      _
    $region19: #{gnn_forward.21} parent=1 // pred_check_branch
      %33 = sbr.rel (0) target = $region21
    $region20: #{gnn_forward.21} parent=1 // pred_region
      _
    $region21: #{gnn_forward.21} parent=1 // pred_fallthru
      _
    // Predicated region
    $region22: #{gnn_forward.21} parent=1 // pred_check
      _
    $region23: #{gnn_forward.21} parent=1 // pred_check_branch
      %35 = sbr.rel (0) target = $region25
    $region24: #{gnn_forward.21} parent=1 // pred_region
      _
    $region25: #{gnn_forward.21} parent=1 // pred_fallthru
      _
    // Predicated region
    $region26: #{gnn_forward.21} parent=1 // pred_check
      _
    $region27: #{gnn_forward.21} parent=1 // pred_check_branch
      %37 = sbr.rel (0) target = $region29
    $region28: #{gnn_forward.21} parent=1 // pred_region
      _
    $region29: #{gnn_forward.21} parent=1 // pred_fallthru
      _
    // Predicated region
    $region30: #{gnn_forward.21} parent=1 // pred_check
      _
    $region31: #{gnn_forward.21} parent=1 // pred_check_branch
      %39 = sbr.rel (0) target = $region33
    $region32: #{gnn_forward.21} parent=1 // pred_region
      %41 = dma.done [#allocation3], 1024
    $region33: #{gnn_forward.21} parent=1 // pred_fallthru
      _
    %v42 = vld [vmem:[%s0] sm:$0xf]
    %v43 = vld [vmem:[%s0 + $0x4] sm:$0xf]
    %v44 = vld [vmem:[%s0 + $0x8] sm:$0xf]
    %v45 = vld [vmem:[%s0 + $0xc] sm:$0xf]
    %v46 = vld [vmem:[%s0 + $0x10] sm:$0xf]
    %v47 = vld [vmem:[%s0 + $0x14] sm:$0xf]
    %v48 = vld [vmem:[%s0 + $0x18] sm:$0xf]
    %v49 = vld [vmem:[%s0 + $0x1c] sm:$0xf]
    %v50 = vld [vmem:[%s0 + $0x20] sm:$0xf]
    %v51 = vld [vmem:[%s0 + $0x24] sm:$0xf]
    %v52 = vld [vmem:[%s0 + $0x28] sm:$0xf]
    %v53 = vld [vmem:[%s0 + $0x2c] sm:$0xf]
    %v54 = vld [vmem:[%s0 + $0x30] sm:$0xf]
    %v55 = vld [vmem:[%s0 + $0x34] sm:$0xf]
    %v56 = vld [vmem:[%s0 + $0x38] sm:$0xf]
    %v57 = vld [vmem:[%s0 + $0x3c] sm:$0xf]
    %v58 = vld [vmem:[%s0 + $0x40] sm:$0xf]
    %v59 = vld [vmem:[%s0 + $0x44] sm:$0xf]
    %v60 = vld [vmem:[%s0 + $0x48] sm:$0xf]
    %v61 = vld [vmem:[%s0 + $0x4c] sm:$0xf]
    %v62 = vld [vmem:[%s0 + $0x50] sm:$0xf]
    %v63 = vld [vmem:[%s0 + $0x54] sm:$0xf]
    %v64 = vld [vmem:[%s0 + $0x58] sm:$0xf]
    %v65 = vld [vmem:[%s0 + $0x5c] sm:$0xf]
    %v66 = vld [vmem:[%s0 + $0x60] sm:$0xf]
    %v67 = vld [vmem:[%s0 + $0x64] sm:$0xf]
    %v68 = vld [vmem:[%s0 + $0x68] sm:$0xf]
    %v69 = vld [vmem:[%s0 + $0x6c] sm:$0xf]
    %v70 = vld [vmem:[%s0 + $0x70] sm:$0xf]
    %v71 = vld [vmem:[%s0 + $0x74] sm:$0xf]
    %v72 = vld [vmem:[%s0 + $0x78] sm:$0xf]
    %v73 = vld [vmem:[%s0 + $0x7c] sm:$0xf]
    %v74 = vld [vmem:[%s1] sm:$0xf]
    %v75 = vld [vmem:[%s1 + $0x4] sm:$0xf]
    %v76 = vld [vmem:[%s1 + $0x8] sm:$0xf]
    %v77 = vld [vmem:[%s1 + $0xc] sm:$0xf]
    %v78 = vld [vmem:[%s1 + $0x10] sm:$0xf]
    %v79 = vld [vmem:[%s1 + $0x14] sm:$0xf]
    %v80 = vld [vmem:[%s1 + $0x18] sm:$0xf]
    %v81 = vld [vmem:[%s1 + $0x1c] sm:$0xf]
    %v82 = vld [vmem:[%s1 + $0x20] sm:$0xf]
    %v83 = vld [vmem:[%s1 + $0x24] sm:$0xf]
    %v84 = vld [vmem:[%s1 + $0x28] sm:$0xf]
    %v85 = vld [vmem:[%s1 + $0x2c] sm:$0xf]
    %v86 = vld [vmem:[%s1 + $0x30] sm:$0xf]
    %v87 = vld [vmem:[%s1 + $0x34] sm:$0xf]
    %v88 = vld [vmem:[%s1 + $0x38] sm:$0xf]
    %v89 = vld [vmem:[%s1 + $0x3c] sm:$0xf]
    %v90 = vld [vmem:[%s4] sm:$0x1]
    %v92 = vperm.slane %v90, 0
    %v126 = vunpack.c.l.b16 %v42
    %v127 = vunpack.c.l.b16 %v43
    %v128 = vunpack.c.l.b16 %v44
    %v129 = vunpack.c.l.b16 %v45
    %v130 = vunpack.c.l.b16 %v46
    %v131 = vunpack.c.l.b16 %v47
    %v132 = vunpack.c.l.b16 %v48
    %v133 = vunpack.c.l.b16 %v49
    %v134 = vunpack.c.l.b16 %v50
    %v135 = vunpack.c.l.b16 %v51
    %v136 = vunpack.c.l.b16 %v52
    %v137 = vunpack.c.l.b16 %v53
    %v138 = vunpack.c.l.b16 %v54
    %v139 = vunpack.c.l.b16 %v55
    %v140 = vunpack.c.l.b16 %v56
    %v141 = vunpack.c.l.b16 %v57
    %v142 = vunpack.c.l.b16 %v58
    %v143 = vunpack.c.l.b16 %v59
    %v144 = vunpack.c.l.b16 %v60
    %v145 = vunpack.c.l.b16 %v61
    %v146 = vunpack.c.l.b16 %v62
    %v147 = vunpack.c.l.b16 %v63
    %v148 = vunpack.c.l.b16 %v64
    %v149 = vunpack.c.l.b16 %v65
    %v150 = vunpack.c.l.b16 %v66
    %v151 = vunpack.c.l.b16 %v67
    %v152 = vunpack.c.l.b16 %v68
    %v153 = vunpack.c.l.b16 %v69
    %v154 = vunpack.c.l.b16 %v70
    %v155 = vunpack.c.l.b16 %v71
    %v156 = vunpack.c.l.b16 %v72
    %v157 = vunpack.c.l.b16 %v73
    %v158 = vpack.c.b16 %v127, %v126
    %v159 = vpack.c.b16 %v129, %v128
    %v160 = vpack.c.b16 %v131, %v130
    %v161 = vpack.c.b16 %v133, %v132
    %v162 = vpack.c.b16 %v135, %v134
    %v163 = vpack.c.b16 %v137, %v136
    %v164 = vpack.c.b16 %v139, %v138
    %v165 = vpack.c.b16 %v141, %v140
    %v166 = vpack.c.b16 %v143, %v142
    %v167 = vpack.c.b16 %v145, %v144
    %v168 = vpack.c.b16 %v147, %v146
    %v169 = vpack.c.b16 %v149, %v148
    %v170 = vpack.c.b16 %v151, %v150
    %v171 = vpack.c.b16 %v153, %v152
    %v172 = vpack.c.b16 %v155, %v154
    %v173 = vpack.c.b16 %v157, %v156
    %v206 = vunpack.c.l.b16 %v74
    %v207 = vunpack.c.l.b16 %v75
    %v208 = vunpack.c.l.b16 %v76
    %v209 = vunpack.c.l.b16 %v77
    %v210 = vunpack.c.l.b16 %v78
    %v211 = vunpack.c.l.b16 %v79
    %v212 = vunpack.c.l.b16 %v80
    %v213 = vunpack.c.l.b16 %v81
    %v214 = vunpack.c.l.b16 %v82
    %v215 = vunpack.c.l.b16 %v83
    %v216 = vunpack.c.l.b16 %v84
    %v217 = vunpack.c.l.b16 %v85
    %v218 = vunpack.c.l.b16 %v86
    %v219 = vunpack.c.l.b16 %v87
    %v220 = vunpack.c.l.b16 %v88
    %v221 = vunpack.c.l.b16 %v89
    %v222 = vpack.c.b16 %v207, %v206
    %v223 = vpack.c.b16 %v209, %v208
    %v224 = vpack.c.b16 %v211, %v210
    %v225 = vpack.c.b16 %v213, %v212
    %v226 = vpack.c.b16 %v215, %v214
    %v227 = vpack.c.b16 %v217, %v216
    %v228 = vpack.c.b16 %v219, %v218
    %v229 = vpack.c.b16 %v221, %v220
    %238 = vmatpush.bf16.msra.mxu0 %v229
    %239 = vmatpush.bf16.msra.mxu0 %v228
    %240 = vmatpush.bf16.msra.mxu0 %v227
    %241 = vmatpush.bf16.msra.mxu0 %v226
    %242 = vmatpush.bf16.msra.mxu0 %v225
    %243 = vmatpush.bf16.msra.mxu0 %v224
    %244 = vmatpush.bf16.msra.mxu0 %v223
    %245 = vmatpush.bf16.msra.mxu0 %v222
    %246 = vmatmul.bf16.gmra.mxu0 %v158
    %v247 = vpop.f32.mrf.mxu0
    %v248 = vadd.f32 %v92, %v247
    %v249 = vpop.f32.mrf.mxu0
    %v250 = vadd.f32 %v92, %v249
    %251 = vmatmul.bf16.gmra.mxu0 %v159
    %v252 = vpop.f32.mrf.mxu0
    %v253 = vadd.f32 %v92, %v252
    %v254 = vpop.f32.mrf.mxu0
    %v255 = vadd.f32 %v92, %v254
    %256 = vmatmul.bf16.gmra.mxu0 %v160
    %v257 = vpop.f32.mrf.mxu0
    %v258 = vadd.f32 %v92, %v257
    %v259 = vpop.f32.mrf.mxu0
    %v260 = vadd.f32 %v92, %v259
    %261 = vmatmul.bf16.gmra.mxu0 %v161
    %v262 = vpop.f32.mrf.mxu0
    %v263 = vadd.f32 %v92, %v262
    %v264 = vpop.f32.mrf.mxu0
    %v265 = vadd.f32 %v92, %v264
    %266 = vmatmul.bf16.gmra.mxu0 %v162
    %v267 = vpop.f32.mrf.mxu0
    %v268 = vadd.f32 %v92, %v267
    %v269 = vpop.f32.mrf.mxu0
    %v270 = vadd.f32 %v92, %v269
    %271 = vmatmul.bf16.gmra.mxu0 %v163
    %v272 = vpop.f32.mrf.mxu0
    %v273 = vadd.f32 %v92, %v272
    %v274 = vpop.f32.mrf.mxu0
    %v275 = vadd.f32 %v92, %v274
    %276 = vmatmul.bf16.gmra.mxu0 %v164
    %v277 = vpop.f32.mrf.mxu0
    %v278 = vadd.f32 %v92, %v277
    %v279 = vpop.f32.mrf.mxu0
    %v280 = vadd.f32 %v92, %v279
    %281 = vmatmul.bf16.gmra.mxu0 %v165
    %v282 = vpop.f32.mrf.mxu0
    %v283 = vadd.f32 %v92, %v282
    %v284 = vpop.f32.mrf.mxu0
    %v285 = vadd.f32 %v92, %v284
    %286 = vmatmul.bf16.gmra.mxu0 %v166
    %v287 = vpop.f32.mrf.mxu0
    %v288 = vadd.f32 %v92, %v287
    %v289 = vpop.f32.mrf.mxu0
    %v290 = vadd.f32 %v92, %v289
    %291 = vmatmul.bf16.gmra.mxu0 %v167
    %v292 = vpop.f32.mrf.mxu0
    %v293 = vadd.f32 %v92, %v292
    %v294 = vpop.f32.mrf.mxu0
    %v295 = vadd.f32 %v92, %v294
    %296 = vmatmul.bf16.gmra.mxu0 %v168
    %v297 = vpop.f32.mrf.mxu0
    %v298 = vadd.f32 %v92, %v297
    %v299 = vpop.f32.mrf.mxu0
    %v300 = vadd.f32 %v92, %v299
    %301 = vmatmul.bf16.gmra.mxu0 %v169
    %v302 = vpop.f32.mrf.mxu0
    %v303 = vadd.f32 %v92, %v302
    %v304 = vpop.f32.mrf.mxu0
    %v305 = vadd.f32 %v92, %v304
    %306 = vmatmul.bf16.gmra.mxu0 %v170
    %v307 = vpop.f32.mrf.mxu0
    %v308 = vadd.f32 %v92, %v307
    %v309 = vpop.f32.mrf.mxu0
    %v310 = vadd.f32 %v92, %v309
    %311 = vmatmul.bf16.gmra.mxu0 %v171
    %v312 = vpop.f32.mrf.mxu0
    %v313 = vadd.f32 %v92, %v312
    %v314 = vpop.f32.mrf.mxu0
    %v315 = vadd.f32 %v92, %v314
    %316 = vmatmul.bf16.gmra.mxu0 %v172
    %v317 = vpop.f32.mrf.mxu0
    %v318 = vadd.f32 %v92, %v317
    %v319 = vpop.f32.mrf.mxu0
    %v320 = vadd.f32 %v92, %v319
    %321 = vmatmul.bf16.gmra.mxu0 %v173
    %v322 = vpop.f32.mrf.mxu0
    %v323 = vadd.f32 %v92, %v322
    %v324 = vpop.f32.mrf.mxu0
    %v325 = vadd.f32 %v92, %v324
    %326 = vdwg.mxu0
    %v327 = vmax.f32 %v248, 0.0
    %v328 = vmax.f32 %v250, 0.0
    %v329 = vmax.f32 %v253, 0.0
    %v330 = vmax.f32 %v255, 0.0
    %v331 = vmax.f32 %v258, 0.0
    %v332 = vmax.f32 %v260, 0.0
    %v333 = vmax.f32 %v263, 0.0
    %v334 = vmax.f32 %v265, 0.0
    %v335 = vmax.f32 %v268, 0.0
    %v336 = vmax.f32 %v270, 0.0
    %v337 = vmax.f32 %v273, 0.0
    %v338 = vmax.f32 %v275, 0.0
    %v339 = vmax.f32 %v278, 0.0
    %v340 = vmax.f32 %v280, 0.0
    %v341 = vmax.f32 %v283, 0.0
    %v342 = vmax.f32 %v285, 0.0
    %v343 = vmax.f32 %v288, 0.0
    %v344 = vmax.f32 %v290, 0.0
    %v345 = vmax.f32 %v293, 0.0
    %v346 = vmax.f32 %v295, 0.0
    %v347 = vmax.f32 %v298, 0.0
    %v348 = vmax.f32 %v300, 0.0
    %v349 = vmax.f32 %v303, 0.0
    %v350 = vmax.f32 %v305, 0.0
    %v351 = vmax.f32 %v308, 0.0
    %v352 = vmax.f32 %v310, 0.0
    %v353 = vmax.f32 %v313, 0.0
    %v354 = vmax.f32 %v315, 0.0
    %v355 = vmax.f32 %v318, 0.0
    %v356 = vmax.f32 %v320, 0.0
    %v357 = vmax.f32 %v323, 0.0
    %v358 = vmax.f32 %v325, 0.0
    %v359 = vpack.c.bf16 %v328, %v327
    %v360 = vpack.c.bf16 %v330, %v329
    %v361 = vpack.c.bf16 %v332, %v331
    %v362 = vpack.c.bf16 %v334, %v333
    %v363 = vpack.c.bf16 %v336, %v335
    %v364 = vpack.c.bf16 %v338, %v337
    %v365 = vpack.c.bf16 %v340, %v339
    %v366 = vpack.c.bf16 %v342, %v341
    %v367 = vpack.c.bf16 %v344, %v343
    %v368 = vpack.c.bf16 %v346, %v345
    %v369 = vpack.c.bf16 %v348, %v347
    %v370 = vpack.c.bf16 %v350, %v349
    %v371 = vpack.c.bf16 %v352, %v351
    %v372 = vpack.c.bf16 %v354, %v353
    %v373 = vpack.c.bf16 %v356, %v355
    %v374 = vpack.c.bf16 %v358, %v357
    %v375 = vld [vmem:[%s2] sm:$0xf]
    %v376 = vld [vmem:[%s2 + $0x4] sm:$0xf]
    %v377 = vld [vmem:[%s2 + $0x8] sm:$0xf]
    %v378 = vld [vmem:[%s2 + $0xc] sm:$0xf]
    %v379 = vld [vmem:[%s2 + $0x10] sm:$0xf]
    %v380 = vld [vmem:[%s2 + $0x14] sm:$0xf]
    %v381 = vld [vmem:[%s2 + $0x18] sm:$0xf]
    %v382 = vld [vmem:[%s2 + $0x1c] sm:$0xf]
    %v383 = vld [vmem:[%s2 + $0x20] sm:$0xf]
    %v384 = vld [vmem:[%s2 + $0x24] sm:$0xf]
    %v385 = vld [vmem:[%s2 + $0x28] sm:$0xf]
    %v386 = vld [vmem:[%s2 + $0x2c] sm:$0xf]
    %v387 = vld [vmem:[%s2 + $0x30] sm:$0xf]
    %v388 = vld [vmem:[%s2 + $0x34] sm:$0xf]
    %v389 = vld [vmem:[%s2 + $0x38] sm:$0xf]
    %v390 = vld [vmem:[%s2 + $0x3c] sm:$0xf]
    %v391 = vld [vmem:[%s5] sm:$0x1]
    %v393 = vperm.slane %v391, 0
    %v411 = vunpack.c.l.b16 %v375
    %v412 = vunpack.c.l.b16 %v376
    %v413 = vunpack.c.l.b16 %v377
    %v414 = vunpack.c.l.b16 %v378
    %v415 = vunpack.c.l.b16 %v379
    %v416 = vunpack.c.l.b16 %v380
    %v417 = vunpack.c.l.b16 %v381
    %v418 = vunpack.c.l.b16 %v382
    %v419 = vunpack.c.l.b16 %v383
    %v420 = vunpack.c.l.b16 %v384
    %v421 = vunpack.c.l.b16 %v385
    %v422 = vunpack.c.l.b16 %v386
    %v423 = vunpack.c.l.b16 %v387
    %v424 = vunpack.c.l.b16 %v388
    %v425 = vunpack.c.l.b16 %v389
    %v426 = vunpack.c.l.b16 %v390
    %v427 = vpack.c.b16 %v412, %v411
    %v428 = vpack.c.b16 %v414, %v413
    %v429 = vpack.c.b16 %v416, %v415
    %v430 = vpack.c.b16 %v418, %v417
    %v431 = vpack.c.b16 %v420, %v419
    %v432 = vpack.c.b16 %v422, %v421
    %v433 = vpack.c.b16 %v424, %v423
    %v434 = vpack.c.b16 %v426, %v425
    %443 = vmatpush.bf16.msra.mxu0 %v434
    %444 = vmatpush.bf16.msra.mxu0 %v433
    %445 = vmatpush.bf16.msra.mxu0 %v432
    %446 = vmatpush.bf16.msra.mxu0 %v431
    %447 = vmatpush.bf16.msra.mxu0 %v430
    %448 = vmatpush.bf16.msra.mxu0 %v429
    %449 = vmatpush.bf16.msra.mxu0 %v428
    %450 = vmatpush.bf16.msra.mxu0 %v427
    %451 = vmatmul.bf16.gmra.mxu0 %v359
    %v452 = vpop.f32.mrf.mxu0
    %v453 = vadd.f32 %v393, %v452
    %v454 = vpop.f32.mrf.mxu0
    %v455 = vadd.f32 %v393, %v454
    %456 = vmatmul.bf16.gmra.mxu0 %v360
    %v457 = vpop.f32.mrf.mxu0
    %v458 = vadd.f32 %v393, %v457
    %v459 = vpop.f32.mrf.mxu0
    %v460 = vadd.f32 %v393, %v459
    %461 = vmatmul.bf16.gmra.mxu0 %v361
    %v462 = vpop.f32.mrf.mxu0
    %v463 = vadd.f32 %v393, %v462
    %v464 = vpop.f32.mrf.mxu0
    %v465 = vadd.f32 %v393, %v464
    %466 = vmatmul.bf16.gmra.mxu0 %v362
    %v467 = vpop.f32.mrf.mxu0
    %v468 = vadd.f32 %v393, %v467
    %v469 = vpop.f32.mrf.mxu0
    %v470 = vadd.f32 %v393, %v469
    %471 = vmatmul.bf16.gmra.mxu0 %v363
    %v472 = vpop.f32.mrf.mxu0
    %v473 = vadd.f32 %v393, %v472
    %v474 = vpop.f32.mrf.mxu0
    %v475 = vadd.f32 %v393, %v474
    %476 = vmatmul.bf16.gmra.mxu0 %v364
    %v477 = vpop.f32.mrf.mxu0
    %v478 = vadd.f32 %v393, %v477
    %v479 = vpop.f32.mrf.mxu0
    %v480 = vadd.f32 %v393, %v479
    %481 = vmatmul.bf16.gmra.mxu0 %v365
    %v482 = vpop.f32.mrf.mxu0
    %v483 = vadd.f32 %v393, %v482
    %v484 = vpop.f32.mrf.mxu0
    %v485 = vadd.f32 %v393, %v484
    %486 = vmatmul.bf16.gmra.mxu0 %v366
    %v487 = vpop.f32.mrf.mxu0
    %v488 = vadd.f32 %v393, %v487
    %v489 = vpop.f32.mrf.mxu0
    %v490 = vadd.f32 %v393, %v489
    %491 = vmatmul.bf16.gmra.mxu0 %v367
    %v492 = vpop.f32.mrf.mxu0
    %v493 = vadd.f32 %v393, %v492
    %v494 = vpop.f32.mrf.mxu0
    %v495 = vadd.f32 %v393, %v494
    %496 = vmatmul.bf16.gmra.mxu0 %v368
    %v497 = vpop.f32.mrf.mxu0
    %v498 = vadd.f32 %v393, %v497
    %v499 = vpop.f32.mrf.mxu0
    %v500 = vadd.f32 %v393, %v499
    %501 = vmatmul.bf16.gmra.mxu0 %v369
    %v502 = vpop.f32.mrf.mxu0
    %v503 = vadd.f32 %v393, %v502
    %v504 = vpop.f32.mrf.mxu0
    %v505 = vadd.f32 %v393, %v504
    %506 = vmatmul.bf16.gmra.mxu0 %v370
    %v507 = vpop.f32.mrf.mxu0
    %v508 = vadd.f32 %v393, %v507
    %v509 = vpop.f32.mrf.mxu0
    %v510 = vadd.f32 %v393, %v509
    %511 = vmatmul.bf16.gmra.mxu0 %v371
    %v512 = vpop.f32.mrf.mxu0
    %v513 = vadd.f32 %v393, %v512
    %v514 = vpop.f32.mrf.mxu0
    %v515 = vadd.f32 %v393, %v514
    %516 = vmatmul.bf16.gmra.mxu0 %v372
    %v517 = vpop.f32.mrf.mxu0
    %v518 = vadd.f32 %v393, %v517
    %v519 = vpop.f32.mrf.mxu0
    %v520 = vadd.f32 %v393, %v519
    %521 = vmatmul.bf16.gmra.mxu0 %v373
    %v522 = vpop.f32.mrf.mxu0
    %v523 = vadd.f32 %v393, %v522
    %v524 = vpop.f32.mrf.mxu0
    %v525 = vadd.f32 %v393, %v524
    %526 = vmatmul.bf16.gmra.mxu0 %v374
    %v527 = vpop.f32.mrf.mxu0
    %v528 = vadd.f32 %v393, %v527
    %v529 = vpop.f32.mrf.mxu0
    %v530 = vadd.f32 %v393, %v529
    %531 = vdwg.mxu0
    %v532 = vmax.f32 %v453, 0.0
    %v533 = vmax.f32 %v455, 0.0
    %v534 = vmax.f32 %v458, 0.0
    %v535 = vmax.f32 %v460, 0.0
    %v536 = vmax.f32 %v463, 0.0
    %v537 = vmax.f32 %v465, 0.0
    %v538 = vmax.f32 %v468, 0.0
    %v539 = vmax.f32 %v470, 0.0
    %v540 = vmax.f32 %v473, 0.0
    %v541 = vmax.f32 %v475, 0.0
    %v542 = vmax.f32 %v478, 0.0
    %v543 = vmax.f32 %v480, 0.0
    %v544 = vmax.f32 %v483, 0.0
    %v545 = vmax.f32 %v485, 0.0
    %v546 = vmax.f32 %v488, 0.0
    %v547 = vmax.f32 %v490, 0.0
    %v548 = vmax.f32 %v493, 0.0
    %v549 = vmax.f32 %v495, 0.0
    %v550 = vmax.f32 %v498, 0.0
    %v551 = vmax.f32 %v500, 0.0
    %v552 = vmax.f32 %v503, 0.0
    %v553 = vmax.f32 %v505, 0.0
    %v554 = vmax.f32 %v508, 0.0
    %v555 = vmax.f32 %v510, 0.0
    %v556 = vmax.f32 %v513, 0.0
    %v557 = vmax.f32 %v515, 0.0
    %v558 = vmax.f32 %v518, 0.0
    %v559 = vmax.f32 %v520, 0.0
    %v560 = vmax.f32 %v523, 0.0
    %v561 = vmax.f32 %v525, 0.0
    %v562 = vmax.f32 %v528, 0.0
    %v563 = vmax.f32 %v530, 0.0
    %v564 = vpack.c.bf16 %v533, %v532
    %v565 = vpack.c.bf16 %v535, %v534
    %v566 = vpack.c.bf16 %v537, %v536
    %v567 = vpack.c.bf16 %v539, %v538
    %v568 = vpack.c.bf16 %v541, %v540
    %v569 = vpack.c.bf16 %v543, %v542
    %v570 = vpack.c.bf16 %v545, %v544
    %v571 = vpack.c.bf16 %v547, %v546
    %v572 = vpack.c.bf16 %v549, %v548
    %v573 = vpack.c.bf16 %v551, %v550
    %v574 = vpack.c.bf16 %v553, %v552
    %v575 = vpack.c.bf16 %v555, %v554
    %v576 = vpack.c.bf16 %v557, %v556
    %v577 = vpack.c.bf16 %v559, %v558
    %v578 = vpack.c.bf16 %v561, %v560
    %v579 = vpack.c.bf16 %v563, %v562
    %v580 = vld [vmem:[#allocation2] sm:$0xf]
    %v581 = vld [vmem:[#allocation2 + $0x4] sm:$0xf]
    %v582 = vld [vmem:[#allocation2 + $0x8] sm:$0xf]
    %v583 = vld [vmem:[#allocation2 + $0xc] sm:$0xf]
    %v584 = vld [vmem:[#allocation2 + $0x10] sm:$0xf]
    %v585 = vld [vmem:[#allocation2 + $0x14] sm:$0xf]
    %v586 = vld [vmem:[#allocation2 + $0x18] sm:$0xf]
    %v587 = vld [vmem:[#allocation2 + $0x1c] sm:$0xf]
    %v588 = vld [vmem:[#allocation2 + $0x20] sm:$0xf]
    %v589 = vld [vmem:[#allocation2 + $0x24] sm:$0xf]
    %v590 = vld [vmem:[#allocation2 + $0x28] sm:$0xf]
    %v591 = vld [vmem:[#allocation2 + $0x2c] sm:$0xf]
    %v592 = vld [vmem:[#allocation2 + $0x30] sm:$0xf]
    %v593 = vld [vmem:[#allocation2 + $0x34] sm:$0xf]
    %v594 = vld [vmem:[#allocation2 + $0x38] sm:$0xf]
    %v595 = vld [vmem:[#allocation2 + $0x3c] sm:$0xf]
    %v596 = vld [vmem:[%s6] sm:$0x1]
    %v598 = vperm.slane %v596, 0
    %v616 = vunpack.c.l.b16 %v580
    %v617 = vunpack.c.l.b16 %v581
    %v618 = vunpack.c.l.b16 %v582
    %v619 = vunpack.c.l.b16 %v583
    %v620 = vunpack.c.l.b16 %v584
    %v621 = vunpack.c.l.b16 %v585
    %v622 = vunpack.c.l.b16 %v586
    %v623 = vunpack.c.l.b16 %v587
    %v624 = vunpack.c.l.b16 %v588
    %v625 = vunpack.c.l.b16 %v589
    %v626 = vunpack.c.l.b16 %v590
    %v627 = vunpack.c.l.b16 %v591
    %v628 = vunpack.c.l.b16 %v592
    %v629 = vunpack.c.l.b16 %v593
    %v630 = vunpack.c.l.b16 %v594
    %v631 = vunpack.c.l.b16 %v595
    %v632 = vpack.c.b16 %v617, %v616
    %v633 = vpack.c.b16 %v619, %v618
    %v634 = vpack.c.b16 %v621, %v620
    %v635 = vpack.c.b16 %v623, %v622
    %v636 = vpack.c.b16 %v625, %v624
    %v637 = vpack.c.b16 %v627, %v626
    %v638 = vpack.c.b16 %v629, %v628
    %v639 = vpack.c.b16 %v631, %v630
    %648 = vmatpush.bf16.msra.mxu0 %v639
    %649 = vmatpush.bf16.msra.mxu0 %v638
    %650 = vmatpush.bf16.msra.mxu0 %v637
    %651 = vmatpush.bf16.msra.mxu0 %v636
    %652 = vmatpush.bf16.msra.mxu0 %v635
    %653 = vmatpush.bf16.msra.mxu0 %v634
    %654 = vmatpush.bf16.msra.mxu0 %v633
    %655 = vmatpush.bf16.msra.mxu0 %v632
    %656 = vmatmul.bf16.gmra.mxu0 %v564
    %v657 = vpop.f32.mrf.mxu0
    %v658 = vadd.f32 %v598, %v657
    %v659 = vpop.f32.mrf.mxu0
    %v660 = vadd.f32 %v598, %v659
    %661 = vmatmul.bf16.gmra.mxu0 %v565
    %v662 = vpop.f32.mrf.mxu0
    %v663 = vadd.f32 %v598, %v662
    %v664 = vpop.f32.mrf.mxu0
    %v665 = vadd.f32 %v598, %v664
    %666 = vmatmul.bf16.gmra.mxu0 %v566
    %v667 = vpop.f32.mrf.mxu0
    %v668 = vadd.f32 %v598, %v667
    %v669 = vpop.f32.mrf.mxu0
    %v670 = vadd.f32 %v598, %v669
    %671 = vmatmul.bf16.gmra.mxu0 %v567
    %v672 = vpop.f32.mrf.mxu0
    %v673 = vadd.f32 %v598, %v672
    %v674 = vpop.f32.mrf.mxu0
    %v675 = vadd.f32 %v598, %v674
    %676 = vmatmul.bf16.gmra.mxu0 %v568
    %v677 = vpop.f32.mrf.mxu0
    %v678 = vadd.f32 %v598, %v677
    %v679 = vpop.f32.mrf.mxu0
    %v680 = vadd.f32 %v598, %v679
    %681 = vmatmul.bf16.gmra.mxu0 %v569
    %v682 = vpop.f32.mrf.mxu0
    %v683 = vadd.f32 %v598, %v682
    %v684 = vpop.f32.mrf.mxu0
    %v685 = vadd.f32 %v598, %v684
    %686 = vmatmul.bf16.gmra.mxu0 %v570
    %v687 = vpop.f32.mrf.mxu0
    %v688 = vadd.f32 %v598, %v687
    %v689 = vpop.f32.mrf.mxu0
    %v690 = vadd.f32 %v598, %v689
    %691 = vmatmul.bf16.gmra.mxu0 %v571
    %v692 = vpop.f32.mrf.mxu0
    %v693 = vadd.f32 %v598, %v692
    %v694 = vpop.f32.mrf.mxu0
    %v695 = vadd.f32 %v598, %v694
    %696 = vmatmul.bf16.gmra.mxu0 %v572
    %v697 = vpop.f32.mrf.mxu0
    %v698 = vadd.f32 %v598, %v697
    %v699 = vpop.f32.mrf.mxu0
    %v700 = vadd.f32 %v598, %v699
    %701 = vmatmul.bf16.gmra.mxu0 %v573
    %v702 = vpop.f32.mrf.mxu0
    %v703 = vadd.f32 %v598, %v702
    %v704 = vpop.f32.mrf.mxu0
    %v705 = vadd.f32 %v598, %v704
    %706 = vmatmul.bf16.gmra.mxu0 %v574
    %v707 = vpop.f32.mrf.mxu0
    %v708 = vadd.f32 %v598, %v707
    %v709 = vpop.f32.mrf.mxu0
    %v710 = vadd.f32 %v598, %v709
    %711 = vmatmul.bf16.gmra.mxu0 %v575
    %v712 = vpop.f32.mrf.mxu0
    %v713 = vadd.f32 %v598, %v712
    %v714 = vpop.f32.mrf.mxu0
    %v715 = vadd.f32 %v598, %v714
    %716 = vmatmul.bf16.gmra.mxu0 %v576
    %v717 = vpop.f32.mrf.mxu0
    %v718 = vadd.f32 %v598, %v717
    %v719 = vpop.f32.mrf.mxu0
    %v720 = vadd.f32 %v598, %v719
    %721 = vmatmul.bf16.gmra.mxu0 %v577
    %v722 = vpop.f32.mrf.mxu0
    %v723 = vadd.f32 %v598, %v722
    %v724 = vpop.f32.mrf.mxu0
    %v725 = vadd.f32 %v598, %v724
    %726 = vmatmul.bf16.gmra.mxu0 %v578
    %v727 = vpop.f32.mrf.mxu0
    %v728 = vadd.f32 %v598, %v727
    %v729 = vpop.f32.mrf.mxu0
    %v730 = vadd.f32 %v598, %v729
    %731 = vmatmul.bf16.gmra.mxu0 %v579
    %v732 = vpop.f32.mrf.mxu0
    %v733 = vadd.f32 %v598, %v732
    %v734 = vpop.f32.mrf.mxu0
    %v735 = vadd.f32 %v598, %v734
    %736 = vdwg.mxu0
    %v737 = vpack.c.bf16 %v658, %v658
    %v738 = vpack.c.bf16 %v660, %v660
    %v739 = vpack.c.bf16 %v663, %v663
    %v740 = vpack.c.bf16 %v665, %v665
    %v741 = vpack.c.bf16 %v668, %v668
    %v742 = vpack.c.bf16 %v670, %v670
    %v743 = vpack.c.bf16 %v673, %v673
    %v744 = vpack.c.bf16 %v675, %v675
    %v745 = vpack.c.bf16 %v678, %v678
    %v746 = vpack.c.bf16 %v680, %v680
    %v747 = vpack.c.bf16 %v683, %v683
    %v748 = vpack.c.bf16 %v685, %v685
    %v749 = vpack.c.bf16 %v688, %v688
    %v750 = vpack.c.bf16 %v690, %v690
    %v751 = vpack.c.bf16 %v693, %v693
    %v752 = vpack.c.bf16 %v695, %v695
    %v753 = vpack.c.bf16 %v698, %v698
    %v754 = vpack.c.bf16 %v700, %v700
    %v755 = vpack.c.bf16 %v703, %v703
    %v756 = vpack.c.bf16 %v705, %v705
    %v757 = vpack.c.bf16 %v708, %v708
    %v758 = vpack.c.bf16 %v710, %v710
    %v759 = vpack.c.bf16 %v713, %v713
    %v760 = vpack.c.bf16 %v715, %v715
    %v761 = vpack.c.bf16 %v718, %v718
    %v762 = vpack.c.bf16 %v720, %v720
    %v763 = vpack.c.bf16 %v723, %v723
    %v764 = vpack.c.bf16 %v725, %v725
    %v765 = vpack.c.bf16 %v728, %v728
    %v766 = vpack.c.bf16 %v730, %v730
    %v767 = vpack.c.bf16 %v733, %v733
    %v768 = vpack.c.bf16 %v735, %v735
    %769 = vst [vmem:[%s7] sm:$0xf] %v737
    %770 = vst [vmem:[%s7 + $0x4] sm:$0xf] %v738
    %771 = vst [vmem:[%s7 + $0x8] sm:$0xf] %v739
    %772 = vst [vmem:[%s7 + $0xc] sm:$0xf] %v740
    %773 = vst [vmem:[%s7 + $0x10] sm:$0xf] %v741
    %774 = vst [vmem:[%s7 + $0x14] sm:$0xf] %v742
    %775 = vst [vmem:[%s7 + $0x18] sm:$0xf] %v743
    %776 = vst [vmem:[%s7 + $0x1c] sm:$0xf] %v744
    %777 = vst [vmem:[%s7 + $0x20] sm:$0xf] %v745
    %778 = vst [vmem:[%s7 + $0x24] sm:$0xf] %v746
    %779 = vst [vmem:[%s7 + $0x28] sm:$0xf] %v747
    %780 = vst [vmem:[%s7 + $0x2c] sm:$0xf] %v748
    %781 = vst [vmem:[%s7 + $0x30] sm:$0xf] %v749
    %782 = vst [vmem:[%s7 + $0x34] sm:$0xf] %v750
    %783 = vst [vmem:[%s7 + $0x38] sm:$0xf] %v751
    %784 = vst [vmem:[%s7 + $0x3c] sm:$0xf] %v752
    %785 = vst [vmem:[%s7 + $0x40] sm:$0xf] %v753
    %786 = vst [vmem:[%s7 + $0x44] sm:$0xf] %v754
    %787 = vst [vmem:[%s7 + $0x48] sm:$0xf] %v755
    %788 = vst [vmem:[%s7 + $0x4c] sm:$0xf] %v756
    %789 = vst [vmem:[%s7 + $0x50] sm:$0xf] %v757
    %790 = vst [vmem:[%s7 + $0x54] sm:$0xf] %v758
    %791 = vst [vmem:[%s7 + $0x58] sm:$0xf] %v759
    %792 = vst [vmem:[%s7 + $0x5c] sm:$0xf] %v760
    %793 = vst [vmem:[%s7 + $0x60] sm:$0xf] %v761
    %794 = vst [vmem:[%s7 + $0x64] sm:$0xf] %v762
    %795 = vst [vmem:[%s7 + $0x68] sm:$0xf] %v763
    %796 = vst [vmem:[%s7 + $0x6c] sm:$0xf] %v764
    %797 = vst [vmem:[%s7 + $0x70] sm:$0xf] %v765
    %798 = vst [vmem:[%s7 + $0x74] sm:$0xf] %v766
    %799 = vst [vmem:[%s7 + $0x78] sm:$0xf] %v767
    %800 = vst [vmem:[%s7 + $0x7c] sm:$0xf] %v768
    // Predicated region
    $region34: #{gnn_forward.21} parent=1 // pred_check
      _
    $region35: #{gnn_forward.21} parent=1 // pred_check_branch
      %802 = sbr.rel (0) target = $region37
    $region36: #{gnn_forward.21} parent=1 // pred_region
      _
    $region37: #{gnn_forward.21} parent=1 // pred_fallthru
      _
    // Predicated region
    $region38: #{gnn_forward.21} parent=1 // pred_check
      _
    $region39: #{gnn_forward.21} parent=1 // pred_check_branch
      %804 = sbr.rel (0) target = $region41
    $region40: #{gnn_forward.21} parent=1 // pred_region
      _
    $region41: #{gnn_forward.21} parent=1 // pred_fallthru
      _
    %805 = vsyncpa [#allocation3], 1

// kernel: gnn_forward.24
$region0: #{gnn_forward.24}
  #allocation0 [shape = 'u32[]', space=smem, size = 0x4, offset = 0x4, fixed_abs, tag = 'smem constant byte address 0x4 - core index']
  #allocation1 [shape = 'u32[72,128]{1,0:T(1,128)}', space=vmem, size = 0x9000, scoped, tag = 'internal scratch']
  %s0 = inlined_call_operand.vmem [shape: s32[1,512], index: 0, kind: input, shape index: {}]
  %s1 = inlined_call_operand.vmem [shape: bf16[512,128], index: 1, kind: input, shape index: {}]
  %s2 = inlined_call_operand.vmem [shape: f32[256,128], index: 2, kind: output, shape index: {}]
  %s3 = sld [smem:[#allocation0]]
  $region22: #{gnn_forward.24} parent=0
    _
  %s5 = ssub.s32 1, %s3
  %s6 = scalar_select 0, %s5, %s3
  // Predicated region
  $region2: #{gnn_forward.24} parent=0 // pred_check
    _
  $region3: #{gnn_forward.24} parent=0 // pred_check_branch
    %8 = sbr.rel (0) target = $region5
  $region4: #{gnn_forward.24} parent=0 // pred_region
    _
  $region5: #{gnn_forward.24} parent=0 // pred_fallthru
    _
  // Predicated region
  $region6: #{gnn_forward.24} parent=0 // pred_check
    _
  $region7: #{gnn_forward.24} parent=0 // pred_check_branch
    %10 = sbr.rel (0) target = $region9
  $region8: #{gnn_forward.24} parent=0 // pred_region
    _
  $region9: #{gnn_forward.24} parent=0 // pred_fallthru
    _
  %p11 = scmp.eq.s32.totalorder 0, 0
  // Predicated region
  $region10: #{gnn_forward.24} parent=0 // pred_check
    %p12 = pneg %p11
  $region11: #{gnn_forward.24} parent=0 // pred_check_branch
    %14 = sbr.rel (%p12) target = $region13
  $region12: #{gnn_forward.24} parent=0 // pred_region
    %15 = vst [vmem:[%s2] sm:$0xff] 0.0
    %16 = vst [vmem:[%s2 + $0x8] sm:$0xff] 0.0
    %17 = vst [vmem:[%s2 + $0x10] sm:$0xff] 0.0
    %18 = vst [vmem:[%s2 + $0x18] sm:$0xff] 0.0
    %19 = vst [vmem:[%s2 + $0x20] sm:$0xff] 0.0
    %20 = vst [vmem:[%s2 + $0x28] sm:$0xff] 0.0
    %21 = vst [vmem:[%s2 + $0x30] sm:$0xff] 0.0
    %22 = vst [vmem:[%s2 + $0x38] sm:$0xff] 0.0
    %23 = vst [vmem:[%s2 + $0x40] sm:$0xff] 0.0
    %24 = vst [vmem:[%s2 + $0x48] sm:$0xff] 0.0
    %25 = vst [vmem:[%s2 + $0x50] sm:$0xff] 0.0
    %26 = vst [vmem:[%s2 + $0x58] sm:$0xff] 0.0
    %27 = vst [vmem:[%s2 + $0x60] sm:$0xff] 0.0
    %28 = vst [vmem:[%s2 + $0x68] sm:$0xff] 0.0
    %29 = vst [vmem:[%s2 + $0x70] sm:$0xff] 0.0
    %30 = vst [vmem:[%s2 + $0x78] sm:$0xff] 0.0
    %31 = vst [vmem:[%s2 + $0x80] sm:$0xff] 0.0
    %32 = vst [vmem:[%s2 + $0x88] sm:$0xff] 0.0
    %33 = vst [vmem:[%s2 + $0x90] sm:$0xff] 0.0
    %34 = vst [vmem:[%s2 + $0x98] sm:$0xff] 0.0
    %35 = vst [vmem:[%s2 + $0xa0] sm:$0xff] 0.0
    %36 = vst [vmem:[%s2 + $0xa8] sm:$0xff] 0.0
    %37 = vst [vmem:[%s2 + $0xb0] sm:$0xff] 0.0
    %38 = vst [vmem:[%s2 + $0xb8] sm:$0xff] 0.0
    %39 = vst [vmem:[%s2 + $0xc0] sm:$0xff] 0.0
    %40 = vst [vmem:[%s2 + $0xc8] sm:$0xff] 0.0
    %41 = vst [vmem:[%s2 + $0xd0] sm:$0xff] 0.0
    %42 = vst [vmem:[%s2 + $0xd8] sm:$0xff] 0.0
    %43 = vst [vmem:[%s2 + $0xe0] sm:$0xff] 0.0
    %44 = vst [vmem:[%s2 + $0xe8] sm:$0xff] 0.0
    %45 = vst [vmem:[%s2 + $0xf0] sm:$0xff] 0.0
    %46 = vst [vmem:[%s2 + $0xf8] sm:$0xff] 0.0
  $region13: #{gnn_forward.24} parent=0 // pred_fallthru
    _
  %v47 = vld [vmem:[%s0] sm:$0xf]
  %s48 = smul.u32 0, 256
  %v49 = vlaneseq
  %v50 = vshrl.u32 %v49, 7
  %v51 = vadd.s32 %v50, 8
  %v52 = vadd.s32 %v50, 16
  %v53 = vadd.s32 %v50, 24
  %v54 = vadd.s32 %v50, 32
  %v55 = vadd.s32 %v50, 40
  %v56 = vadd.s32 %v50, 48
  %v57 = vadd.s32 %v50, 56
  %v58 = vadd.s32 %v50, 64
  %v59 = vadd.s32 %v50, 72
  %v60 = vadd.s32 %v50, 80
  %v61 = vadd.s32 %v50, 88
  %v62 = vadd.s32 %v50, 96
  %v63 = vadd.s32 %v50, 104
  %v64 = vadd.s32 %v50, 112
  %v65 = vadd.s32 %v50, 120
  %v66 = vadd.s32 %v50, 128
  %v67 = vadd.s32 %v50, 136
  %v68 = vadd.s32 %v50, 144
  %v69 = vadd.s32 %v50, 152
  %v70 = vadd.s32 %v50, 160
  %v71 = vadd.s32 %v50, 168
  %v72 = vadd.s32 %v50, 176
  %v73 = vadd.s32 %v50, 184
  %v74 = vadd.s32 %v50, 192
  %v75 = vadd.s32 %v50, 200
  %v76 = vadd.s32 %v50, 208
  %v77 = vadd.s32 %v50, 216
  %v78 = vadd.s32 %v50, 224
  %v79 = vadd.s32 %v50, 232
  %v80 = vadd.s32 %v50, 240
  %v81 = vadd.s32 %v50, 248
  %v82 = vstv %s48
  %v83 = vadd.s32 %v82, %v50
  %v84 = vadd.s32 %v82, %v51
  %v85 = vadd.s32 %v82, %v52
  %v86 = vadd.s32 %v82, %v53
  %v87 = vadd.s32 %v82, %v54
  %v88 = vadd.s32 %v82, %v55
  %v89 = vadd.s32 %v82, %v56
  %v90 = vadd.s32 %v82, %v57
  %v91 = vadd.s32 %v82, %v58
  %v92 = vadd.s32 %v82, %v59
  %v93 = vadd.s32 %v82, %v60
  %v94 = vadd.s32 %v82, %v61
  %v95 = vadd.s32 %v82, %v62
  %v96 = vadd.s32 %v82, %v63
  %v97 = vadd.s32 %v82, %v64
  %v98 = vadd.s32 %v82, %v65
  %v99 = vadd.s32 %v82, %v66
  %v100 = vadd.s32 %v82, %v67
  %v101 = vadd.s32 %v82, %v68
  %v102 = vadd.s32 %v82, %v69
  %v103 = vadd.s32 %v82, %v70
  %v104 = vadd.s32 %v82, %v71
  %v105 = vadd.s32 %v82, %v72
  %v106 = vadd.s32 %v82, %v73
  %v107 = vadd.s32 %v82, %v74
  %v108 = vadd.s32 %v82, %v75
  %v109 = vadd.s32 %v82, %v76
  %v110 = vadd.s32 %v82, %v77
  %v111 = vadd.s32 %v82, %v78
  %v112 = vadd.s32 %v82, %v79
  %v113 = vadd.s32 %v82, %v80
  %v114 = vadd.s32 %v82, %v81
  %v115 = vperm.slane %v47, 0
  %v116 = vperm.slane %v47, 1
  %v117 = vperm.slane %v47, 2
  %v118 = vperm.slane %v47, 3
  %vm119 = vcmp.eq.s32.totalorder %v83, %v115
  %vm120 = vcmp.eq.s32.totalorder %v83, %v116
  %vm121 = vcmp.eq.s32.totalorder %v83, %v117
  %vm122 = vcmp.eq.s32.totalorder %v83, %v118
  %vm123 = vcmp.eq.s32.totalorder %v84, %v115
  %vm124 = vcmp.eq.s32.totalorder %v84, %v116
  %vm125 = vcmp.eq.s32.totalorder %v84, %v117
  %vm126 = vcmp.eq.s32.totalorder %v84, %v118
  %vm127 = vcmp.eq.s32.totalorder %v85, %v115
  %vm128 = vcmp.eq.s32.totalorder %v85, %v116
  %vm129 = vcmp.eq.s32.totalorder %v85, %v117
  %vm130 = vcmp.eq.s32.totalorder %v85, %v118
  %vm131 = vcmp.eq.s32.totalorder %v86, %v115
  %vm132 = vcmp.eq.s32.totalorder %v86, %v116
  %vm133 = vcmp.eq.s32.totalorder %v86, %v117
  %vm134 = vcmp.eq.s32.totalorder %v86, %v118
  %vm135 = vcmp.eq.s32.totalorder %v87, %v115
  %vm136 = vcmp.eq.s32.totalorder %v87, %v116
  %vm137 = vcmp.eq.s32.totalorder %v87, %v117
  %vm138 = vcmp.eq.s32.totalorder %v87, %v118
  %vm139 = vcmp.eq.s32.totalorder %v88, %v115
  %vm140 = vcmp.eq.s32.totalorder %v88, %v116
  %vm141 = vcmp.eq.s32.totalorder %v88, %v117
  %vm142 = vcmp.eq.s32.totalorder %v88, %v118
  %vm143 = vcmp.eq.s32.totalorder %v89, %v115
  %vm144 = vcmp.eq.s32.totalorder %v89, %v116
  %vm145 = vcmp.eq.s32.totalorder %v89, %v117
  %vm146 = vcmp.eq.s32.totalorder %v89, %v118
  %vm147 = vcmp.eq.s32.totalorder %v90, %v115
  %vm148 = vcmp.eq.s32.totalorder %v90, %v116
  %vm149 = vcmp.eq.s32.totalorder %v90, %v117
  %vm150 = vcmp.eq.s32.totalorder %v90, %v118
  %vm151 = vcmp.eq.s32.totalorder %v91, %v115
  %vm152 = vcmp.eq.s32.totalorder %v91, %v116
  %vm153 = vcmp.eq.s32.totalorder %v91, %v117
  %vm154 = vcmp.eq.s32.totalorder %v91, %v118
  %vm155 = vcmp.eq.s32.totalorder %v92, %v115
  %vm156 = vcmp.eq.s32.totalorder %v92, %v116
  %vm157 = vcmp.eq.s32.totalorder %v92, %v117
  %vm158 = vcmp.eq.s32.totalorder %v92, %v118
  %vm159 = vcmp.eq.s32.totalorder %v93, %v115
  %vm160 = vcmp.eq.s32.totalorder %v93, %v116
  %vm161 = vcmp.eq.s32.totalorder %v93, %v117
  %vm162 = vcmp.eq.s32.totalorder %v93, %v118
  %vm163 = vcmp.eq.s32.totalorder %v94, %v115
  %vm164 = vcmp.eq.s32.totalorder %v94, %v116
  %vm165 = vcmp.eq.s32.totalorder %v94, %v117
  %vm166 = vcmp.eq.s32.totalorder %v94, %v118
  %vm167 = vcmp.eq.s32.totalorder %v95, %v115
  %vm168 = vcmp.eq.s32.totalorder %v95, %v116
  %vm169 = vcmp.eq.s32.totalorder %v95, %v117
  %vm170 = vcmp.eq.s32.totalorder %v95, %v118
  %vm171 = vcmp.eq.s32.totalorder %v96, %v115
  %vm172 = vcmp.eq.s32.totalorder %v96, %v116
  %vm173 = vcmp.eq.s32.totalorder %v96, %v117
  %vm174 = vcmp.eq.s32.totalorder %v96, %v118
  %vm175 = vcmp.eq.s32.totalorder %v97, %v115
  %vm176 = vcmp.eq.s32.totalorder %v97, %v116
  %vm177 = vcmp.eq.s32.totalorder %v97, %v117
  %vm178 = vcmp.eq.s32.totalorder %v97, %v118
  %vm179 = vcmp.eq.s32.totalorder %v98, %v115
  %vm180 = vcmp.eq.s32.totalorder %v98, %v116
  %vm181 = vcmp.eq.s32.totalorder %v98, %v117
  %vm182 = vcmp.eq.s32.totalorder %v98, %v118
  %vm183 = vcmp.eq.s32.totalorder %v99, %v115
  %vm184 = vcmp.eq.s32.totalorder %v99, %v116
  %vm185 = vcmp.eq.s32.totalorder %v99, %v117
  %vm186 = vcmp.eq.s32.totalorder %v99, %v118
  %vm187 = vcmp.eq.s32.totalorder %v100, %v115
  %vm188 = vcmp.eq.s32.totalorder %v100, %v116
  %vm189 = vcmp.eq.s32.totalorder %v100, %v117
  %vm190 = vcmp.eq.s32.totalorder %v100, %v118
  %vm191 = vcmp.eq.s32.totalorder %v101, %v115
  %vm192 = vcmp.eq.s32.totalorder %v101, %v116
  %vm193 = vcmp.eq.s32.totalorder %v101, %v117
  %vm194 = vcmp.eq.s32.totalorder %v101, %v118
  %vm195 = vcmp.eq.s32.totalorder %v102, %v115
  %vm196 = vcmp.eq.s32.totalorder %v102, %v116
  %vm197 = vcmp.eq.s32.totalorder %v102, %v117
  %vm198 = vcmp.eq.s32.totalorder %v102, %v118
  %vm199 = vcmp.eq.s32.totalorder %v103, %v115
  %vm200 = vcmp.eq.s32.totalorder %v103, %v116
  %vm201 = vcmp.eq.s32.totalorder %v103, %v117
  %vm202 = vcmp.eq.s32.totalorder %v103, %v118
  %vm203 = vcmp.eq.s32.totalorder %v104, %v115
  %vm204 = vcmp.eq.s32.totalorder %v104, %v116
  %vm205 = vcmp.eq.s32.totalorder %v104, %v117
  %vm206 = vcmp.eq.s32.totalorder %v104, %v118
  %vm207 = vcmp.eq.s32.totalorder %v105, %v115
  %vm208 = vcmp.eq.s32.totalorder %v105, %v116
  %vm209 = vcmp.eq.s32.totalorder %v105, %v117
  %vm210 = vcmp.eq.s32.totalorder %v105, %v118
  %vm211 = vcmp.eq.s32.totalorder %v106, %v115
  %vm212 = vcmp.eq.s32.totalorder %v106, %v116
  %vm213 = vcmp.eq.s32.totalorder %v106, %v117
  %vm214 = vcmp.eq.s32.totalorder %v106, %v118
  %vm215 = vcmp.eq.s32.totalorder %v107, %v115
  %vm216 = vcmp.eq.s32.totalorder %v107, %v116
  %vm217 = vcmp.eq.s32.totalorder %v107, %v117
  %vm218 = vcmp.eq.s32.totalorder %v107, %v118
  %vm219 = vcmp.eq.s32.totalorder %v108, %v115
  %vm220 = vcmp.eq.s32.totalorder %v108, %v116
  %vm221 = vcmp.eq.s32.totalorder %v108, %v117
  %vm222 = vcmp.eq.s32.totalorder %v108, %v118
  %vm223 = vcmp.eq.s32.totalorder %v109, %v115
  %vm224 = vcmp.eq.s32.totalorder %v109, %v116
  %vm225 = vcmp.eq.s32.totalorder %v109, %v117
  %vm226 = vcmp.eq.s32.totalorder %v109, %v118
  %vm227 = vcmp.eq.s32.totalorder %v110, %v115
  %vm228 = vcmp.eq.s32.totalorder %v110, %v116
  %vm229 = vcmp.eq.s32.totalorder %v110, %v117
  %vm230 = vcmp.eq.s32.totalorder %v110, %v118
  %vm231 = vcmp.eq.s32.totalorder %v111, %v115
  %vm232 = vcmp.eq.s32.totalorder %v111, %v116
  %vm233 = vcmp.eq.s32.totalorder %v111, %v117
  %vm234 = vcmp.eq.s32.totalorder %v111, %v118
  %vm235 = vcmp.eq.s32.totalorder %v112, %v115
  %vm236 = vcmp.eq.s32.totalorder %v112, %v116
  %vm237 = vcmp.eq.s32.totalorder %v112, %v117
  %vm238 = vcmp.eq.s32.totalorder %v112, %v118
  %vm239 = vcmp.eq.s32.totalorder %v113, %v115
  %vm240 = vcmp.eq.s32.totalorder %v113, %v116
  %vm241 = vcmp.eq.s32.totalorder %v113, %v117
  %vm242 = vcmp.eq.s32.totalorder %v113, %v118
  %vm243 = vcmp.eq.s32.totalorder %v114, %v115
  %vm244 = vcmp.eq.s32.totalorder %v114, %v116
  %vm245 = vcmp.eq.s32.totalorder %v114, %v117
  %vm246 = vcmp.eq.s32.totalorder %v114, %v118
  %v247 = vsel %vm119, 1, 0
  %v248 = vsel %vm120, 1, 0
  %v249 = vsel %vm121, 1, 0
  %v250 = vsel %vm122, 1, 0
  %v251 = vsel %vm123, 1, 0
  %v252 = vsel %vm124, 1, 0
  %v253 = vsel %vm125, 1, 0
  %v254 = vsel %vm126, 1, 0
  %v255 = vsel %vm127, 1, 0
  %v256 = vsel %vm128, 1, 0
  %v257 = vsel %vm129, 1, 0
  %v258 = vsel %vm130, 1, 0
  %v259 = vsel %vm131, 1, 0
  %v260 = vsel %vm132, 1, 0
  %v261 = vsel %vm133, 1, 0
  %v262 = vsel %vm134, 1, 0
  %v263 = vsel %vm135, 1, 0
  %v264 = vsel %vm136, 1, 0
  %v265 = vsel %vm137, 1, 0
  %v266 = vsel %vm138, 1, 0
  %v267 = vsel %vm139, 1, 0
  %v268 = vsel %vm140, 1, 0
  %v269 = vsel %vm141, 1, 0
  %v270 = vsel %vm142, 1, 0
  %v271 = vsel %vm143, 1, 0
  %v272 = vsel %vm144, 1, 0
  %v273 = vsel %vm145, 1, 0
  %v274 = vsel %vm146, 1, 0
  %v275 = vsel %vm147, 1, 0
  %v276 = vsel %vm148, 1, 0
  %v277 = vsel %vm149, 1, 0
  %v278 = vsel %vm150, 1, 0
  %v279 = vsel %vm151, 1, 0
  %v280 = vsel %vm152, 1, 0
  %v281 = vsel %vm153, 1, 0
  %v282 = vsel %vm154, 1, 0
  %v283 = vsel %vm155, 1, 0
  %v284 = vsel %vm156, 1, 0
  %v285 = vsel %vm157, 1, 0
  %v286 = vsel %vm158, 1, 0
  %v287 = vsel %vm159, 1, 0
  %v288 = vsel %vm160, 1, 0
  %v289 = vsel %vm161, 1, 0
  %v290 = vsel %vm162, 1, 0
  %v291 = vsel %vm163, 1, 0
  %v292 = vsel %vm164, 1, 0
  %v293 = vsel %vm165, 1, 0
  %v294 = vsel %vm166, 1, 0
  %v295 = vsel %vm167, 1, 0
  %v296 = vsel %vm168, 1, 0
  %v297 = vsel %vm169, 1, 0
  %v298 = vsel %vm170, 1, 0
  %v299 = vsel %vm171, 1, 0
  %v300 = vsel %vm172, 1, 0
  %v301 = vsel %vm173, 1, 0
  %v302 = vsel %vm174, 1, 0
  %v303 = vsel %vm175, 1, 0
  %v304 = vsel %vm176, 1, 0
  %v305 = vsel %vm177, 1, 0
  %v306 = vsel %vm178, 1, 0
  %v307 = vsel %vm179, 1, 0
  %v308 = vsel %vm180, 1, 0
  %v309 = vsel %vm181, 1, 0
  %v310 = vsel %vm182, 1, 0
  %v311 = vsel %vm183, 1, 0
  %v312 = vsel %vm184, 1, 0
  %v313 = vsel %vm185, 1, 0
  %v314 = vsel %vm186, 1, 0
  %v315 = vsel %vm187, 1, 0
  %v316 = vsel %vm188, 1, 0
  %v317 = vsel %vm189, 1, 0
  %v318 = vsel %vm190, 1, 0
  %v319 = vsel %vm191, 1, 0
  %v320 = vsel %vm192, 1, 0
  %v321 = vsel %vm193, 1, 0
  %v322 = vsel %vm194, 1, 0
  %v323 = vsel %vm195, 1, 0
  %v324 = vsel %vm196, 1, 0
  %v325 = vsel %vm197, 1, 0
  %v326 = vsel %vm198, 1, 0
  %v327 = vsel %vm199, 1, 0
  %v328 = vsel %vm200, 1, 0
  %v329 = vsel %vm201, 1, 0
  %v330 = vsel %vm202, 1, 0
  %v331 = vsel %vm203, 1, 0
  %v332 = vsel %vm204, 1, 0
  %v333 = vsel %vm205, 1, 0
  %v334 = vsel %vm206, 1, 0
  %v335 = vsel %vm207, 1, 0
  %v336 = vsel %vm208, 1, 0
  %v337 = vsel %vm209, 1, 0
  %v338 = vsel %vm210, 1, 0
  %v339 = vsel %vm211, 1, 0
  %v340 = vsel %vm212, 1, 0
  %v341 = vsel %vm213, 1, 0
  %v342 = vsel %vm214, 1, 0
  %v343 = vsel %vm215, 1, 0
  %v344 = vsel %vm216, 1, 0
  %v345 = vsel %vm217, 1, 0
  %v346 = vsel %vm218, 1, 0
  %v347 = vsel %vm219, 1, 0
  %v348 = vsel %vm220, 1, 0
  %v349 = vsel %vm221, 1, 0
  %v350 = vsel %vm222, 1, 0
  %v351 = vsel %vm223, 1, 0
  %v352 = vsel %vm224, 1, 0
  %v353 = vsel %vm225, 1, 0
  %v354 = vsel %vm226, 1, 0
  %v355 = vsel %vm227, 1, 0
  %v356 = vsel %vm228, 1, 0
  %v357 = vsel %vm229, 1, 0
  %v358 = vsel %vm230, 1, 0
  %v359 = vsel %vm231, 1, 0
  %v360 = vsel %vm232, 1, 0
  %v361 = vsel %vm233, 1, 0
  %v362 = vsel %vm234, 1, 0
  %v363 = vsel %vm235, 1, 0
  %v364 = vsel %vm236, 1, 0
  %v365 = vsel %vm237, 1, 0
  %v366 = vsel %vm238, 1, 0
  %v367 = vsel %vm239, 1, 0
  %v368 = vsel %vm240, 1, 0
  %v369 = vsel %vm241, 1, 0
  %v370 = vsel %vm242, 1, 0
  %v371 = vsel %vm243, 1, 0
  %v372 = vsel %vm244, 1, 0
  %v373 = vsel %vm245, 1, 0
  %v374 = vsel %vm246, 1, 0
  %v375 = vcvt.s32.f32 %v247
  %v376 = vcvt.s32.f32 %v248
  %v377 = vcvt.s32.f32 %v249
  %v378 = vcvt.s32.f32 %v250
  %v379 = vcvt.s32.f32 %v251
  %v380 = vcvt.s32.f32 %v252
  %v381 = vcvt.s32.f32 %v253
  %v382 = vcvt.s32.f32 %v254
  %v383 = vcvt.s32.f32 %v255
  %v384 = vcvt.s32.f32 %v256
  %v385 = vcvt.s32.f32 %v257
  %v386 = vcvt.s32.f32 %v258
  %v387 = vcvt.s32.f32 %v259
  %v388 = vcvt.s32.f32 %v260
  %v389 = vcvt.s32.f32 %v261
  %v390 = vcvt.s32.f32 %v262
  %v391 = vcvt.s32.f32 %v263
  %v392 = vcvt.s32.f32 %v264
  %v393 = vcvt.s32.f32 %v265
  %v394 = vcvt.s32.f32 %v266
  %v395 = vcvt.s32.f32 %v267
  %v396 = vcvt.s32.f32 %v268
  %v397 = vcvt.s32.f32 %v269
  %v398 = vcvt.s32.f32 %v270
  %v399 = vcvt.s32.f32 %v271
  %v400 = vcvt.s32.f32 %v272
  %v401 = vcvt.s32.f32 %v273
  %v402 = vcvt.s32.f32 %v274
  %v403 = vcvt.s32.f32 %v275
  %v404 = vcvt.s32.f32 %v276
  %v405 = vcvt.s32.f32 %v277
  %v406 = vcvt.s32.f32 %v278
  %v407 = vcvt.s32.f32 %v279
  %v408 = vcvt.s32.f32 %v280
  %v409 = vcvt.s32.f32 %v281
  %v410 = vcvt.s32.f32 %v282
  %v411 = vcvt.s32.f32 %v283
  %v412 = vcvt.s32.f32 %v284
  %v413 = vcvt.s32.f32 %v285
  %v414 = vcvt.s32.f32 %v286
  %v415 = vcvt.s32.f32 %v287
  %v416 = vcvt.s32.f32 %v288
  %v417 = vcvt.s32.f32 %v289
  %v418 = vcvt.s32.f32 %v290
  %v419 = vcvt.s32.f32 %v291
  %v420 = vcvt.s32.f32 %v292
  %v421 = vcvt.s32.f32 %v293
  %v422 = vcvt.s32.f32 %v294
  %v423 = vcvt.s32.f32 %v295
  %v424 = vcvt.s32.f32 %v296
  %v425 = vcvt.s32.f32 %v297
  %v426 = vcvt.s32.f32 %v298
  %v427 = vcvt.s32.f32 %v299
  %v428 = vcvt.s32.f32 %v300
  %v429 = vcvt.s32.f32 %v301
  %v430 = vcvt.s32.f32 %v302
  %v431 = vcvt.s32.f32 %v303
  %v432 = vcvt.s32.f32 %v304
  %v433 = vcvt.s32.f32 %v305
  %v434 = vcvt.s32.f32 %v306
  %v435 = vcvt.s32.f32 %v307
  %v436 = vcvt.s32.f32 %v308
  %v437 = vcvt.s32.f32 %v309
  %v438 = vcvt.s32.f32 %v310
  %v439 = vcvt.s32.f32 %v311
  %v440 = vcvt.s32.f32 %v312
  %v441 = vcvt.s32.f32 %v313
  %v442 = vcvt.s32.f32 %v314
  %v443 = vcvt.s32.f32 %v315
  %v444 = vcvt.s32.f32 %v316
  %v445 = vcvt.s32.f32 %v317
  %v446 = vcvt.s32.f32 %v318
  %v447 = vcvt.s32.f32 %v319
  %v448 = vcvt.s32.f32 %v320
  %v449 = vcvt.s32.f32 %v321
  %v450 = vcvt.s32.f32 %v322
  %v451 = vcvt.s32.f32 %v323
  %v452 = vcvt.s32.f32 %v324
  %v453 = vcvt.s32.f32 %v325
  %v454 = vcvt.s32.f32 %v326
  %v455 = vcvt.s32.f32 %v327
  %v456 = vcvt.s32.f32 %v328
  %v457 = vcvt.s32.f32 %v329
  %v458 = vcvt.s32.f32 %v330
  %v459 = vcvt.s32.f32 %v331
  %v460 = vcvt.s32.f32 %v332
  %v461 = vcvt.s32.f32 %v333
  %v462 = vcvt.s32.f32 %v334
  %v463 = vcvt.s32.f32 %v335
  %v464 = vcvt.s32.f32 %v336
  %v465 = vcvt.s32.f32 %v337
  %v466 = vcvt.s32.f32 %v338
  %v467 = vcvt.s32.f32 %v339
  %v468 = vcvt.s32.f32 %v340
  %v469 = vcvt.s32.f32 %v341
  %v470 = vcvt.s32.f32 %v342
  %v471 = vcvt.s32.f32 %v343
  %v472 = vcvt.s32.f32 %v344
  %v473 = vcvt.s32.f32 %v345
  %v474 = vcvt.s32.f32 %v346
  %v475 = vcvt.s32.f32 %v347
  %v476 = vcvt.s32.f32 %v348
  %v477 = vcvt.s32.f32 %v349
  %v478 = vcvt.s32.f32 %v350
  %v479 = vcvt.s32.f32 %v351
  %v480 = vcvt.s32.f32 %v352
  %v481 = vcvt.s32.f32 %v353
  %v482 = vcvt.s32.f32 %v354
  %v483 = vcvt.s32.f32 %v355
  %v484 = vcvt.s32.f32 %v356
  %v485 = vcvt.s32.f32 %v357
  %v486 = vcvt.s32.f32 %v358
  %v487 = vcvt.s32.f32 %v359
  %v488 = vcvt.s32.f32 %v360
  %v489 = vcvt.s32.f32 %v361
  %v490 = vcvt.s32.f32 %v362
  %v491 = vcvt.s32.f32 %v363
  %v492 = vcvt.s32.f32 %v364
  %v493 = vcvt.s32.f32 %v365
  %v494 = vcvt.s32.f32 %v366
  %v495 = vcvt.s32.f32 %v367
  %v496 = vcvt.s32.f32 %v368
  %v497 = vcvt.s32.f32 %v369
  %v498 = vcvt.s32.f32 %v370
  %v499 = vcvt.s32.f32 %v371
  %v500 = vcvt.s32.f32 %v372
  %v501 = vcvt.s32.f32 %v373
  %v502 = vcvt.s32.f32 %v374
  %v503 = vpack.c.bf16 %v379, %v375
  %v504 = vpack.c.bf16 %v380, %v376
  %v505 = vpack.c.bf16 %v381, %v377
  %v506 = vpack.c.bf16 %v382, %v378
  %v507 = vpack.c.bf16 %v387, %v383
  %v508 = vpack.c.bf16 %v388, %v384
  %v509 = vpack.c.bf16 %v389, %v385
  %v510 = vpack.c.bf16 %v390, %v386
  %v511 = vpack.c.bf16 %v395, %v391
  %v512 = vpack.c.bf16 %v396, %v392
  %v513 = vpack.c.bf16 %v397, %v393
  %v514 = vpack.c.bf16 %v398, %v394
  %v515 = vpack.c.bf16 %v403, %v399
  %v516 = vpack.c.bf16 %v404, %v400
  %v517 = vpack.c.bf16 %v405, %v401
  %v518 = vpack.c.bf16 %v406, %v402
  %v519 = vpack.c.bf16 %v411, %v407
  %v520 = vpack.c.bf16 %v412, %v408
  %v521 = vpack.c.bf16 %v413, %v409
  %v522 = vpack.c.bf16 %v414, %v410
  %v523 = vpack.c.bf16 %v419, %v415
  %v524 = vpack.c.bf16 %v420, %v416
  %v525 = vpack.c.bf16 %v421, %v417
  %v526 = vpack.c.bf16 %v422, %v418
  %v527 = vpack.c.bf16 %v427, %v423
  %v528 = vpack.c.bf16 %v428, %v424
  %v529 = vpack.c.bf16 %v429, %v425
  %v530 = vpack.c.bf16 %v430, %v426
  %v531 = vpack.c.bf16 %v435, %v431
  %v532 = vpack.c.bf16 %v436, %v432
  %v533 = vpack.c.bf16 %v437, %v433
  %v534 = vpack.c.bf16 %v438, %v434
  %v535 = vpack.c.bf16 %v443, %v439
  %v536 = vpack.c.bf16 %v444, %v440
  %v537 = vpack.c.bf16 %v445, %v441
  %v538 = vpack.c.bf16 %v446, %v442
  %v539 = vpack.c.bf16 %v451, %v447
  %v540 = vpack.c.bf16 %v452, %v448
  %v541 = vpack.c.bf16 %v453, %v449
  %v542 = vpack.c.bf16 %v454, %v450
  %v543 = vpack.c.bf16 %v459, %v455
  %v544 = vpack.c.bf16 %v460, %v456
  %v545 = vpack.c.bf16 %v461, %v457
  %v546 = vpack.c.bf16 %v462, %v458
  %v547 = vpack.c.bf16 %v467, %v463
  %v548 = vpack.c.bf16 %v468, %v464
  %v549 = vpack.c.bf16 %v469, %v465
  %v550 = vpack.c.bf16 %v470, %v466
  %v551 = vpack.c.bf16 %v475, %v471
  %v552 = vpack.c.bf16 %v476, %v472
  %v553 = vpack.c.bf16 %v477, %v473
  %v554 = vpack.c.bf16 %v478, %v474
  %v555 = vpack.c.bf16 %v483, %v479
  %v556 = vpack.c.bf16 %v484, %v480
  %v557 = vpack.c.bf16 %v485, %v481
  %v558 = vpack.c.bf16 %v486, %v482
  %v559 = vpack.c.bf16 %v491, %v487
  %v560 = vpack.c.bf16 %v492, %v488
  %v561 = vpack.c.bf16 %v493, %v489
  %v562 = vpack.c.bf16 %v494, %v490
  %v563 = vpack.c.bf16 %v499, %v495
  %v564 = vpack.c.bf16 %v500, %v496
  %v565 = vpack.c.bf16 %v501, %v497
  %v566 = vpack.c.bf16 %v502, %v498
  %v567 = vld [vmem:[%s2] sm:$0xff]
  %v568 = vld [vmem:[%s2 + $0x8] sm:$0xff]
  %v569 = vld [vmem:[%s2 + $0x10] sm:$0xff]
  %v570 = vld [vmem:[%s2 + $0x18] sm:$0xff]
  %v571 = vld [vmem:[%s2 + $0x20] sm:$0xff]
  %v572 = vld [vmem:[%s2 + $0x28] sm:$0xff]
  %v573 = vld [vmem:[%s2 + $0x30] sm:$0xff]
  %v574 = vld [vmem:[%s2 + $0x38] sm:$0xff]
  %v575 = vld [vmem:[%s2 + $0x40] sm:$0xff]
  %v576 = vld [vmem:[%s2 + $0x48] sm:$0xff]
  %v577 = vld [vmem:[%s2 + $0x50] sm:$0xff]
  %v578 = vld [vmem:[%s2 + $0x58] sm:$0xff]
  %v579 = vld [vmem:[%s2 + $0x60] sm:$0xff]
  %v580 = vld [vmem:[%s2 + $0x68] sm:$0xff]
  %v581 = vld [vmem:[%s2 + $0x70] sm:$0xff]
  %v582 = vld [vmem:[%s2 + $0x78] sm:$0xff]
  %v583 = vld [vmem:[%s2 + $0x80] sm:$0xff]
  %v584 = vld [vmem:[%s2 + $0x88] sm:$0xff]
  %v585 = vld [vmem:[%s2 + $0x90] sm:$0xff]
  %v586 = vld [vmem:[%s2 + $0x98] sm:$0xff]
  %v587 = vld [vmem:[%s2 + $0xa0] sm:$0xff]
  %v588 = vld [vmem:[%s2 + $0xa8] sm:$0xff]
  %v589 = vld [vmem:[%s2 + $0xb0] sm:$0xff]
  %v590 = vld [vmem:[%s2 + $0xb8] sm:$0xff]
  %v591 = vld [vmem:[%s2 + $0xc0] sm:$0xff]
  %v592 = vld [vmem:[%s2 + $0xc8] sm:$0xff]
  %v593 = vld [vmem:[%s2 + $0xd0] sm:$0xff]
  %v594 = vld [vmem:[%s2 + $0xd8] sm:$0xff]
  %v595 = vld [vmem:[%s2 + $0xe0] sm:$0xff]
  %v596 = vld [vmem:[%s2 + $0xe8] sm:$0xff]
  %v597 = vld [vmem:[%s2 + $0xf0] sm:$0xff]
  %v598 = vld [vmem:[%s2 + $0xf8] sm:$0xff]
  %v599 = vld [vmem:[%s1] sm:$0xf]
  %v600 = vld [vmem:[%s1 + $0x4] sm:$0xf]
  %v601 = vld [vmem:[%s1 + $0x8] sm:$0xf]
  %v602 = vld [vmem:[%s1 + $0xc] sm:$0xf]
  %v603 = vld [vmem:[%s1 + $0x10] sm:$0xf]
  %v604 = vld [vmem:[%s1 + $0x14] sm:$0xf]
  %v605 = vld [vmem:[%s1 + $0x18] sm:$0xf]
  %v606 = vld [vmem:[%s1 + $0x1c] sm:$0xf]
  %v607 = vld [vmem:[%s1 + $0x20] sm:$0xf]
  %v608 = vld [vmem:[%s1 + $0x24] sm:$0xf]
  %v609 = vld [vmem:[%s1 + $0x28] sm:$0xf]
  %v610 = vld [vmem:[%s1 + $0x2c] sm:$0xf]
  %v611 = vld [vmem:[%s1 + $0x30] sm:$0xf]
  %v612 = vld [vmem:[%s1 + $0x34] sm:$0xf]
  %v613 = vld [vmem:[%s1 + $0x38] sm:$0xf]
  %v614 = vld [vmem:[%s1 + $0x3c] sm:$0xf]
  %v615 = vld [vmem:[%s1 + $0x40] sm:$0xf]
  %v616 = vld [vmem:[%s1 + $0x44] sm:$0xf]
  %v617 = vld [vmem:[%s1 + $0x48] sm:$0xf]
  %v618 = vld [vmem:[%s1 + $0x4c] sm:$0xf]
  %v619 = vld [vmem:[%s1 + $0x50] sm:$0xf]
  %v620 = vld [vmem:[%s1 + $0x54] sm:$0xf]
  %v621 = vld [vmem:[%s1 + $0x58] sm:$0xf]
  %v622 = vld [vmem:[%s1 + $0x5c] sm:$0xf]
  %v623 = vld [vmem:[%s1 + $0x60] sm:$0xf]
  %v624 = vld [vmem:[%s1 + $0x64] sm:$0xf]
  %v625 = vld [vmem:[%s1 + $0x68] sm:$0xf]
  %v626 = vld [vmem:[%s1 + $0x6c] sm:$0xf]
  %v627 = vld [vmem:[%s1 + $0x70] sm:$0xf]
  %v628 = vld [vmem:[%s1 + $0x74] sm:$0xf]
  %v629 = vld [vmem:[%s1 + $0x78] sm:$0xf]
  %v630 = vld [vmem:[%s1 + $0x7c] sm:$0xf]
  %v631 = vld [vmem:[%s1 + $0x80] sm:$0xf]
  %v632 = vld [vmem:[%s1 + $0x84] sm:$0xf]
  %v633 = vld [vmem:[%s1 + $0x88] sm:$0xf]
  %v634 = vld [vmem:[%s1 + $0x8c] sm:$0xf]
  %v635 = vld [vmem:[%s1 + $0x90] sm:$0xf]
  %v636 = vld [vmem:[%s1 + $0x94] sm:$0xf]
  %v637 = vld [vmem:[%s1 + $0x98] sm:$0xf]
  %v638 = vld [vmem:[%s1 + $0x9c] sm:$0xf]
  %v639 = vld [vmem:[%s1 + $0xa0] sm:$0xf]
  %v640 = vld [vmem:[%s1 + $0xa4] sm:$0xf]
  %v641 = vld [vmem:[%s1 + $0xa8] sm:$0xf]
  %v642 = vld [vmem:[%s1 + $0xac] sm:$0xf]
  %v643 = vld [vmem:[%s1 + $0xb0] sm:$0xf]
  %v644 = vld [vmem:[%s1 + $0xb4] sm:$0xf]
  %v645 = vld [vmem:[%s1 + $0xb8] sm:$0xf]
  %v646 = vld [vmem:[%s1 + $0xbc] sm:$0xf]
  %v647 = vld [vmem:[%s1 + $0xc0] sm:$0xf]
  %v648 = vld [vmem:[%s1 + $0xc4] sm:$0xf]
  %v649 = vld [vmem:[%s1 + $0xc8] sm:$0xf]
  %v650 = vld [vmem:[%s1 + $0xcc] sm:$0xf]
  %v651 = vld [vmem:[%s1 + $0xd0] sm:$0xf]
  %v652 = vld [vmem:[%s1 + $0xd4] sm:$0xf]
  %v653 = vld [vmem:[%s1 + $0xd8] sm:$0xf]
  %v654 = vld [vmem:[%s1 + $0xdc] sm:$0xf]
  %v655 = vld [vmem:[%s1 + $0xe0] sm:$0xf]
  %v656 = vld [vmem:[%s1 + $0xe4] sm:$0xf]
  %v657 = vld [vmem:[%s1 + $0xe8] sm:$0xf]
  %v658 = vld [vmem:[%s1 + $0xec] sm:$0xf]
  %v659 = vld [vmem:[%s1 + $0xf0] sm:$0xf]
  %v660 = vld [vmem:[%s1 + $0xf4] sm:$0xf]
  %v661 = vld [vmem:[%s1 + $0xf8] sm:$0xf]
  %v662 = vld [vmem:[%s1 + $0xfc] sm:$0xf]
  %v727 = vunpack.c.l.b16 %v599
  %v728 = vunpack.c.l.b16 %v600
  %v729 = vunpack.c.l.b16 %v601
  %v730 = vunpack.c.l.b16 %v602
  %v731 = vunpack.c.l.b16 %v603
  %v732 = vunpack.c.l.b16 %v604
  %v733 = vunpack.c.l.b16 %v605
  %v734 = vunpack.c.l.b16 %v606
  %v735 = vunpack.c.l.b16 %v607
  %v736 = vunpack.c.l.b16 %v608
  %v737 = vunpack.c.l.b16 %v609
  %v738 = vunpack.c.l.b16 %v610
  %v739 = vunpack.c.l.b16 %v611
  %v740 = vunpack.c.l.b16 %v612
  %v741 = vunpack.c.l.b16 %v613
  %v742 = vunpack.c.l.b16 %v614
  %v743 = vunpack.c.l.b16 %v615
  %v744 = vunpack.c.l.b16 %v616
  %v745 = vunpack.c.l.b16 %v617
  %v746 = vunpack.c.l.b16 %v618
  %v747 = vunpack.c.l.b16 %v619
  %v748 = vunpack.c.l.b16 %v620
  %v749 = vunpack.c.l.b16 %v621
  %v750 = vunpack.c.l.b16 %v622
  %v751 = vunpack.c.l.b16 %v623
  %v752 = vunpack.c.l.b16 %v624
  %v753 = vunpack.c.l.b16 %v625
  %v754 = vunpack.c.l.b16 %v626
  %v755 = vunpack.c.l.b16 %v627
  %v756 = vunpack.c.l.b16 %v628
  %v757 = vunpack.c.l.b16 %v629
  %v758 = vunpack.c.l.b16 %v630
  %v759 = vunpack.c.l.b16 %v631
  %v760 = vunpack.c.l.b16 %v632
  %v761 = vunpack.c.l.b16 %v633
  %v762 = vunpack.c.l.b16 %v634
  %v763 = vunpack.c.l.b16 %v635
  %v764 = vunpack.c.l.b16 %v636
  %v765 = vunpack.c.l.b16 %v637
  %v766 = vunpack.c.l.b16 %v638
  %v767 = vunpack.c.l.b16 %v639
  %v768 = vunpack.c.l.b16 %v640
  %v769 = vunpack.c.l.b16 %v641
  %v770 = vunpack.c.l.b16 %v642
  %v771 = vunpack.c.l.b16 %v643
  %v772 = vunpack.c.l.b16 %v644
  %v773 = vunpack.c.l.b16 %v645
  %v774 = vunpack.c.l.b16 %v646
  %v775 = vunpack.c.l.b16 %v647
  %v776 = vunpack.c.l.b16 %v648
  %v777 = vunpack.c.l.b16 %v649
  %v778 = vunpack.c.l.b16 %v650
  %v779 = vunpack.c.l.b16 %v651
  %v780 = vunpack.c.l.b16 %v652
  %v781 = vunpack.c.l.b16 %v653
  %v782 = vunpack.c.l.b16 %v654
  %v783 = vunpack.c.l.b16 %v655
  %v784 = vunpack.c.l.b16 %v656
  %v785 = vunpack.c.l.b16 %v657
  %v786 = vunpack.c.l.b16 %v658
  %v787 = vunpack.c.l.b16 %v659
  %v788 = vunpack.c.l.b16 %v660
  %v789 = vunpack.c.l.b16 %v661
  %v790 = vunpack.c.l.b16 %v662
  %v791 = vpack.c.b16 %v728, %v727
  %v792 = vpack.c.b16 %v730, %v729
  %v793 = vpack.c.b16 %v732, %v731
  %v794 = vpack.c.b16 %v734, %v733
  %v795 = vpack.c.b16 %v736, %v735
  %v796 = vpack.c.b16 %v738, %v737
  %v797 = vpack.c.b16 %v740, %v739
  %v798 = vpack.c.b16 %v742, %v741
  %v799 = vpack.c.b16 %v744, %v743
  %v800 = vpack.c.b16 %v746, %v745
  %v801 = vpack.c.b16 %v748, %v747
  %v802 = vpack.c.b16 %v750, %v749
  %v803 = vpack.c.b16 %v752, %v751
  %v804 = vpack.c.b16 %v754, %v753
  %v805 = vpack.c.b16 %v756, %v755
  %v806 = vpack.c.b16 %v758, %v757
  %v807 = vpack.c.b16 %v760, %v759
  %v808 = vpack.c.b16 %v762, %v761
  %v809 = vpack.c.b16 %v764, %v763
  %v810 = vpack.c.b16 %v766, %v765
  %v811 = vpack.c.b16 %v768, %v767
  %v812 = vpack.c.b16 %v770, %v769
  %v813 = vpack.c.b16 %v772, %v771
  %v814 = vpack.c.b16 %v774, %v773
  %v815 = vpack.c.b16 %v776, %v775
  %v816 = vpack.c.b16 %v778, %v777
  %v817 = vpack.c.b16 %v780, %v779
  %v818 = vpack.c.b16 %v782, %v781
  %v819 = vpack.c.b16 %v784, %v783
  %v820 = vpack.c.b16 %v786, %v785
  %v821 = vpack.c.b16 %v788, %v787
  %v822 = vpack.c.b16 %v790, %v789
  %855 = vmatpush.bf16.msra.mxu0 %v798
  %856 = vmatpush.bf16.msra.mxu0 %v797
  %857 = vmatpush.bf16.msra.mxu0 %v796
  %858 = vmatpush.bf16.msra.mxu0 %v795
  %859 = vmatpush.bf16.msra.mxu0 %v794
  %860 = vmatpush.bf16.msra.mxu0 %v793
  %861 = vmatpush.bf16.msra.mxu0 %v792
  %862 = vmatpush.bf16.msra.mxu0 %v791
  %863 = vmatmul.bf16.gmra.mxu0 %v503
  %v864 = vpop.f32.mrf.mxu0
  %v865 = vadd.f32 0.0, %v864
  %v866 = vpop.f32.mrf.mxu0
  %v867 = vadd.f32 0.0, %v866
  %868 = vmatmul.bf16.gmra.mxu0 %v507
  %v869 = vpop.f32.mrf.mxu0
  %v870 = vadd.f32 0.0, %v869
  %v871 = vpop.f32.mrf.mxu0
  %v872 = vadd.f32 0.0, %v871
  %873 = vmatmul.bf16.gmra.mxu0 %v511
  %v874 = vpop.f32.mrf.mxu0
  %v875 = vadd.f32 0.0, %v874
  %v876 = vpop.f32.mrf.mxu0
  %v877 = vadd.f32 0.0, %v876
  %878 = vmatmul.bf16.gmra.mxu0 %v515
  %v879 = vpop.f32.mrf.mxu0
  %v880 = vadd.f32 0.0, %v879
  %v881 = vpop.f32.mrf.mxu0
  %v882 = vadd.f32 0.0, %v881
  %883 = vmatmul.bf16.gmra.mxu0 %v519
  %v884 = vpop.f32.mrf.mxu0
  %v885 = vadd.f32 0.0, %v884
  %v886 = vpop.f32.mrf.mxu0
  %v887 = vadd.f32 0.0, %v886
  %888 = vmatmul.bf16.gmra.mxu0 %v523
  %v889 = vpop.f32.mrf.mxu0
  %v890 = vadd.f32 0.0, %v889
  %v891 = vpop.f32.mrf.mxu0
  %v892 = vadd.f32 0.0, %v891
  %893 = vmatmul.bf16.gmra.mxu0 %v527
  %v894 = vpop.f32.mrf.mxu0
  %v895 = vadd.f32 0.0, %v894
  %v896 = vpop.f32.mrf.mxu0
  %v897 = vadd.f32 0.0, %v896
  %898 = vmatmul.bf16.gmra.mxu0 %v531
  %v899 = vpop.f32.mrf.mxu0
  %v900 = vadd.f32 0.0, %v899
  %v901 = vpop.f32.mrf.mxu0
  %v902 = vadd.f32 0.0, %v901
  %903 = vmatmul.bf16.gmra.mxu0 %v535
  %v904 = vpop.f32.mrf.mxu0
  %v905 = vadd.f32 0.0, %v904
  %v906 = vpop.f32.mrf.mxu0
  %v907 = vadd.f32 0.0, %v906
  %908 = vmatmul.bf16.gmra.mxu0 %v539
  %v909 = vpop.f32.mrf.mxu0
  %v910 = vadd.f32 0.0, %v909
  %v911 = vpop.f32.mrf.mxu0
  %v912 = vadd.f32 0.0, %v911
  %913 = vmatmul.bf16.gmra.mxu0 %v543
  %v914 = vpop.f32.mrf.mxu0
  %v915 = vadd.f32 0.0, %v914
  %v916 = vpop.f32.mrf.mxu0
  %v917 = vadd.f32 0.0, %v916
  %918 = vmatmul.bf16.gmra.mxu0 %v547
  %v919 = vpop.f32.mrf.mxu0
  %v920 = vadd.f32 0.0, %v919
  %v921 = vpop.f32.mrf.mxu0
  %v922 = vadd.f32 0.0, %v921
  %923 = vmatmul.bf16.gmra.mxu0 %v551
  %v924 = vpop.f32.mrf.mxu0
  %v925 = vadd.f32 0.0, %v924
  %v926 = vpop.f32.mrf.mxu0
  %v927 = vadd.f32 0.0, %v926
  %928 = vmatmul.bf16.gmra.mxu0 %v555
  %v929 = vpop.f32.mrf.mxu0
  %v930 = vadd.f32 0.0, %v929
  %v931 = vpop.f32.mrf.mxu0
  %v932 = vadd.f32 0.0, %v931
  %933 = vmatmul.bf16.gmra.mxu0 %v559
  %v934 = vpop.f32.mrf.mxu0
  %v935 = vadd.f32 0.0, %v934
  %v936 = vpop.f32.mrf.mxu0
  %v937 = vadd.f32 0.0, %v936
  %938 = vmatmul.bf16.gmra.mxu0 %v563
  %v939 = vpop.f32.mrf.mxu0
  %v940 = vadd.f32 0.0, %v939
  %v941 = vpop.f32.mrf.mxu0
  %v942 = vadd.f32 0.0, %v941
  %943 = vdwg.mxu0
  %944 = vmatpush.bf16.msra.mxu0 %v806
  %945 = vmatpush.bf16.msra.mxu0 %v805
  %946 = vmatpush.bf16.msra.mxu0 %v804
  %947 = vmatpush.bf16.msra.mxu0 %v803
  %948 = vmatpush.bf16.msra.mxu0 %v802
  %949 = vmatpush.bf16.msra.mxu0 %v801
  %950 = vmatpush.bf16.msra.mxu0 %v800
  %951 = vmatpush.bf16.msra.mxu0 %v799
  %952 = vmatmul.bf16.gmra.mxu0 %v504
  %v953 = vpop.f32.mrf.mxu0
  %v954 = vadd.f32 %v865, %v953
  %v955 = vpop.f32.mrf.mxu0
  %v956 = vadd.f32 %v867, %v955
  %957 = vmatmul.bf16.gmra.mxu0 %v508
  %v958 = vpop.f32.mrf.mxu0
  %v959 = vadd.f32 %v870, %v958
  %v960 = vpop.f32.mrf.mxu0
  %v961 = vadd.f32 %v872, %v960
  %962 = vmatmul.bf16.gmra.mxu0 %v512
  %v963 = vpop.f32.mrf.mxu0
  %v964 = vadd.f32 %v875, %v963
  %v965 = vpop.f32.mrf.mxu0
  %v966 = vadd.f32 %v877, %v965
  %967 = vmatmul.bf16.gmra.mxu0 %v516
  %v968 = vpop.f32.mrf.mxu0
  %v969 = vadd.f32 %v880, %v968
  %v970 = vpop.f32.mrf.mxu0
  %v971 = vadd.f32 %v882, %v970
  %972 = vmatmul.bf16.gmra.mxu0 %v520
  %v973 = vpop.f32.mrf.mxu0
  %v974 = vadd.f32 %v885, %v973
  %v975 = vpop.f32.mrf.mxu0
  %v976 = vadd.f32 %v887, %v975
  %977 = vmatmul.bf16.gmra.mxu0 %v524
  %v978 = vpop.f32.mrf.mxu0
  %v979 = vadd.f32 %v890, %v978
  %v980 = vpop.f32.mrf.mxu0
  %v981 = vadd.f32 %v892, %v980
  %982 = vmatmul.bf16.gmra.mxu0 %v528
  %v983 = vpop.f32.mrf.mxu0
  %v984 = vadd.f32 %v895, %v983
  %v985 = vpop.f32.mrf.mxu0
  %v986 = vadd.f32 %v897, %v985
  %987 = vmatmul.bf16.gmra.mxu0 %v532
  %v988 = vpop.f32.mrf.mxu0
  %v989 = vadd.f32 %v900, %v988
  %v990 = vpop.f32.mrf.mxu0
  %v991 = vadd.f32 %v902, %v990
  %992 = vmatmul.bf16.gmra.mxu0 %v536
  %v993 = vpop.f32.mrf.mxu0
  %v994 = vadd.f32 %v905, %v993
  %v995 = vpop.f32.mrf.mxu0
  %v996 = vadd.f32 %v907, %v995
  %997 = vmatmul.bf16.gmra.mxu0 %v540
  %v998 = vpop.f32.mrf.mxu0
  %v999 = vadd.f32 %v910, %v998
  %v1000 = vpop.f32.mrf.mxu0
  %v1001 = vadd.f32 %v912, %v1000
  %1002 = vmatmul.bf16.gmra.mxu0 %v544
  %v1003 = vpop.f32.mrf.mxu0
  %v1004 = vadd.f32 %v915, %v1003
  %v1005 = vpop.f32.mrf.mxu0
  %v1006 = vadd.f32 %v917, %v1005
  %1007 = vmatmul.bf16.gmra.mxu0 %v548
  %v1008 = vpop.f32.mrf.mxu0
  %v1009 = vadd.f32 %v920, %v1008
  %v1010 = vpop.f32.mrf.mxu0
  %v1011 = vadd.f32 %v922, %v1010
  %1012 = vmatmul.bf16.gmra.mxu0 %v552
  %v1013 = vpop.f32.mrf.mxu0
  %v1014 = vadd.f32 %v925, %v1013
  %v1015 = vpop.f32.mrf.mxu0
  %v1016 = vadd.f32 %v927, %v1015
  %1017 = vmatmul.bf16.gmra.mxu0 %v556
  %v1018 = vpop.f32.mrf.mxu0
  %v1019 = vadd.f32 %v930, %v1018
  %v1020 = vpop.f32.mrf.mxu0
  %v1021 = vadd.f32 %v932, %v1020
  %1022 = vmatmul.bf16.gmra.mxu0 %v560
  %v1023 = vpop.f32.mrf.mxu0
  %v1024 = vadd.f32 %v935, %v1023
  %v1025 = vpop.f32.mrf.mxu0
  %v1026 = vadd.f32 %v937, %v1025
  %1027 = vmatmul.bf16.gmra.mxu0 %v564
  %v1028 = vpop.f32.mrf.mxu0
  %v1029 = vadd.f32 %v940, %v1028
  %v1030 = vpop.f32.mrf.mxu0
  %v1031 = vadd.f32 %v942, %v1030
  %1032 = vdwg.mxu0
  %1033 = vmatpush.bf16.msra.mxu0 %v814
  %1034 = vmatpush.bf16.msra.mxu0 %v813
  %1035 = vmatpush.bf16.msra.mxu0 %v812
  %1036 = vmatpush.bf16.msra.mxu0 %v811
  %1037 = vmatpush.bf16.msra.mxu0 %v810
  %1038 = vmatpush.bf16.msra.mxu0 %v809
  %1039 = vmatpush.bf16.msra.mxu0 %v808
  %1040 = vmatpush.bf16.msra.mxu0 %v807
  %1041 = vmatmul.bf16.gmra.mxu0 %v505
  %v1042 = vpop.f32.mrf.mxu0
  %v1043 = vadd.f32 %v954, %v1042
  %v1044 = vpop.f32.mrf.mxu0
  %v1045 = vadd.f32 %v956, %v1044
  %1046 = vmatmul.bf16.gmra.mxu0 %v509
  %v1047 = vpop.f32.mrf.mxu0
  %v1048 = vadd.f32 %v959, %v1047
  %v1049 = vpop.f32.mrf.mxu0
  %v1050 = vadd.f32 %v961, %v1049
  %1051 = vmatmul.bf16.gmra.mxu0 %v513
  %v1052 = vpop.f32.mrf.mxu0
  %v1053 = vadd.f32 %v964, %v1052
  %v1054 = vpop.f32.mrf.mxu0
  %v1055 = vadd.f32 %v966, %v1054
  %1056 = vmatmul.bf16.gmra.mxu0 %v517
  %v1057 = vpop.f32.mrf.mxu0
  %v1058 = vadd.f32 %v969, %v1057
  %v1059 = vpop.f32.mrf.mxu0
  %v1060 = vadd.f32 %v971, %v1059
  %1061 = vmatmul.bf16.gmra.mxu0 %v521
  %v1062 = vpop.f32.mrf.mxu0
  %v1063 = vadd.f32 %v974, %v1062
  %v1064 = vpop.f32.mrf.mxu0
  %v1065 = vadd.f32 %v976, %v1064
  %1066 = vmatmul.bf16.gmra.mxu0 %v525
  %v1067 = vpop.f32.mrf.mxu0
  %v1068 = vadd.f32 %v979, %v1067
  %v1069 = vpop.f32.mrf.mxu0
  %v1070 = vadd.f32 %v981, %v1069
  %1071 = vmatmul.bf16.gmra.mxu0 %v529
  %v1072 = vpop.f32.mrf.mxu0
  %v1073 = vadd.f32 %v984, %v1072
  %v1074 = vpop.f32.mrf.mxu0
  %v1075 = vadd.f32 %v986, %v1074
  %1076 = vmatmul.bf16.gmra.mxu0 %v533
  %v1077 = vpop.f32.mrf.mxu0
  %v1078 = vadd.f32 %v989, %v1077
  %v1079 = vpop.f32.mrf.mxu0
  %v1080 = vadd.f32 %v991, %v1079
  %1081 = vmatmul.bf16.gmra.mxu0 %v537
  %v1082 = vpop.f32.mrf.mxu0
  %v1083 = vadd.f32 %v994, %v1082
  %v1084 = vpop.f32.mrf.mxu0
  %v1085 = vadd.f32 %v996, %v1084
  %1086 = vmatmul.bf16.gmra.mxu0 %v541
  %v1087 = vpop.f32.mrf.mxu0
  %v1088 = vadd.f32 %v999, %v1087
  %v1089 = vpop.f32.mrf.mxu0
  %v1090 = vadd.f32 %v1001, %v1089
  %1091 = vmatmul.bf16.gmra.mxu0 %v545
  %v1092 = vpop.f32.mrf.mxu0
  %v1093 = vadd.f32 %v1004, %v1092
  %v1094 = vpop.f32.mrf.mxu0
  %v1095 = vadd.f32 %v1006, %v1094
  %1096 = vmatmul.bf16.gmra.mxu0 %v549
  %v1097 = vpop.f32.mrf.mxu0
  %v1098 = vadd.f32 %v1009, %v1097
  %v1099 = vpop.f32.mrf.mxu0
  %v1100 = vadd.f32 %v1011, %v1099
  %1101 = vmatmul.bf16.gmra.mxu0 %v553
  %v1102 = vpop.f32.mrf.mxu0
  %v1103 = vadd.f32 %v1014, %v1102
  %v1104 = vpop.f32.mrf.mxu0
  %v1105 = vadd.f32 %v1016, %v1104
  %1106 = vmatmul.bf16.gmra.mxu0 %v557
  %v1107 = vpop.f32.mrf.mxu0
  %v1108 = vadd.f32 %v1019, %v1107
  %v1109 = vpop.f32.mrf.mxu0
  %v1110 = vadd.f32 %v1021, %v1109
  %1111 = vmatmul.bf16.gmra.mxu0 %v561
  %v1112 = vpop.f32.mrf.mxu0
  %v1113 = vadd.f32 %v1024, %v1112
  %v1114 = vpop.f32.mrf.mxu0
  %v1115 = vadd.f32 %v1026, %v1114
  %1116 = vmatmul.bf16.gmra.mxu0 %v565
  %v1117 = vpop.f32.mrf.mxu0
  %v1118 = vadd.f32 %v1029, %v1117
  %v1119 = vpop.f32.mrf.mxu0
  %v1120 = vadd.f32 %v1031, %v1119
  %1121 = vdwg.mxu0
  %1122 = vmatpush.bf16.msra.mxu0 %v822
  %1123 = vmatpush.bf16.msra.mxu0 %v821
  %1124 = vmatpush.bf16.msra.mxu0 %v820
  %1125 = vmatpush.bf16.msra.mxu0 %v819
  %1126 = vmatpush.bf16.msra.mxu0 %v818
  %1127 = vmatpush.bf16.msra.mxu0 %v817
  %1128 = vmatpush.bf16.msra.mxu0 %v816
  %1129 = vmatpush.bf16.msra.mxu0 %v815
  %1130 = vmatmul.bf16.gmra.mxu0 %v506
  %v1131 = vpop.f32.mrf.mxu0
  %v1132 = vadd.f32 %v1043, %v1131
  %v1133 = vpop.f32.mrf.mxu0
  %v1134 = vadd.f32 %v1045, %v1133
  %1135 = vmatmul.bf16.gmra.mxu0 %v510
  %v1136 = vpop.f32.mrf.mxu0
  %v1137 = vadd.f32 %v1048, %v1136
  %v1138 = vpop.f32.mrf.mxu0
  %v1139 = vadd.f32 %v1050, %v1138
  %1140 = vmatmul.bf16.gmra.mxu0 %v514
  %v1141 = vpop.f32.mrf.mxu0
  %v1142 = vadd.f32 %v1053, %v1141
  %v1143 = vpop.f32.mrf.mxu0
  %v1144 = vadd.f32 %v1055, %v1143
  %1145 = vmatmul.bf16.gmra.mxu0 %v518
  %v1146 = vpop.f32.mrf.mxu0
  %v1147 = vadd.f32 %v1058, %v1146
  %v1148 = vpop.f32.mrf.mxu0
  %v1149 = vadd.f32 %v1060, %v1148
  %1150 = vmatmul.bf16.gmra.mxu0 %v522
  %v1151 = vpop.f32.mrf.mxu0
  %v1152 = vadd.f32 %v1063, %v1151
  %v1153 = vpop.f32.mrf.mxu0
  %v1154 = vadd.f32 %v1065, %v1153
  %1155 = vmatmul.bf16.gmra.mxu0 %v526
  %v1156 = vpop.f32.mrf.mxu0
  %v1157 = vadd.f32 %v1068, %v1156
  %v1158 = vpop.f32.mrf.mxu0
  %v1159 = vadd.f32 %v1070, %v1158
  %1160 = vmatmul.bf16.gmra.mxu0 %v530
  %v1161 = vpop.f32.mrf.mxu0
  %v1162 = vadd.f32 %v1073, %v1161
  %v1163 = vpop.f32.mrf.mxu0
  %v1164 = vadd.f32 %v1075, %v1163
  %1165 = vmatmul.bf16.gmra.mxu0 %v534
  %v1166 = vpop.f32.mrf.mxu0
  %v1167 = vadd.f32 %v1078, %v1166
  %v1168 = vpop.f32.mrf.mxu0
  %v1169 = vadd.f32 %v1080, %v1168
  %1170 = vmatmul.bf16.gmra.mxu0 %v538
  %v1171 = vpop.f32.mrf.mxu0
  %v1172 = vadd.f32 %v1083, %v1171
  %v1173 = vpop.f32.mrf.mxu0
  %v1174 = vadd.f32 %v1085, %v1173
  %1175 = vmatmul.bf16.gmra.mxu0 %v542
  %v1176 = vpop.f32.mrf.mxu0
  %v1177 = vadd.f32 %v1088, %v1176
  %v1178 = vpop.f32.mrf.mxu0
  %v1179 = vadd.f32 %v1090, %v1178
  %1180 = vmatmul.bf16.gmra.mxu0 %v546
  %v1181 = vpop.f32.mrf.mxu0
  %v1182 = vadd.f32 %v1093, %v1181
  %v1183 = vpop.f32.mrf.mxu0
  %v1184 = vadd.f32 %v1095, %v1183
  %1185 = vmatmul.bf16.gmra.mxu0 %v550
  %v1186 = vpop.f32.mrf.mxu0
  %v1187 = vadd.f32 %v1098, %v1186
  %v1188 = vpop.f32.mrf.mxu0
  %v1189 = vadd.f32 %v1100, %v1188
  %1190 = vmatmul.bf16.gmra.mxu0 %v554
  %v1191 = vpop.f32.mrf.mxu0
  %v1192 = vadd.f32 %v1103, %v1191
  %v1193 = vpop.f32.mrf.mxu0
  %v1194 = vadd.f32 %v1105, %v1193
  %1195 = vmatmul.bf16.gmra.mxu0 %v558
  %v1196 = vpop.f32.mrf.mxu0
  %v1197 = vadd.f32 %v1108, %v1196
  %v1198 = vpop.f32.mrf.mxu0
  %v1199 = vadd.f32 %v1110, %v1198
  %1200 = vmatmul.bf16.gmra.mxu0 %v562
  %v1201 = vpop.f32.mrf.mxu0
  %v1202 = vadd.f32 %v1113, %v1201
  %v1203 = vpop.f32.mrf.mxu0
  %v1204 = vadd.f32 %v1115, %v1203
  %1205 = vmatmul.bf16.gmra.mxu0 %v566
  %v1206 = vpop.f32.mrf.mxu0
  %v1207 = vadd.f32 %v1118, %v1206
  %v1208 = vpop.f32.mrf.mxu0
  %v1209 = vadd.f32 %v1120, %v1208
  %1210 = vdwg.mxu0
  %v1211 = vadd.f32 %v567, %v1132
  %v1212 = vadd.f32 %v568, %v1134
  %v1213 = vadd.f32 %v569, %v1137
  %v1214 = vadd.f32 %v570, %v1139
  %v1215 = vadd.f32 %v571, %v1142
  %v1216 = vadd.f32 %v572, %v1144
  %v1217 = vadd.f32 %v573, %v1147
  %v1218 = vadd.f32 %v574, %v1149
  %v1219 = vadd.f32 %v575, %v1152
  %v1220 = vadd.f32 %v576, %v1154
  %v1221 = vadd.f32 %v577, %v1157
  %v1222 = vadd.f32 %v578, %v1159
  %v1223 = vadd.f32 %v579, %v1162
  %v1224 = vadd.f32 %v580, %v1164
  %v1225 = vadd.f32 %v581, %v1167
  %v1226 = vadd.f32 %v582, %v1169
  %v1227 = vadd.f32 %v583, %v1172
  %v1228 = vadd.f32 %v584, %v1174
  %v1229 = vadd.f32 %v585, %v1177
  %v1230 = vadd.f32 %v586, %v1179
  %v1231 = vadd.f32 %v587, %v1182
  %v1232 = vadd.f32 %v588, %v1184
  %v1233 = vadd.f32 %v589, %v1187
  %v1234 = vadd.f32 %v590, %v1189
  %v1235 = vadd.f32 %v591, %v1192
  %v1236 = vadd.f32 %v592, %v1194
  %v1237 = vadd.f32 %v593, %v1197
  %v1238 = vadd.f32 %v594, %v1199
  %v1239 = vadd.f32 %v595, %v1202
  %v1240 = vadd.f32 %v596, %v1204
  %v1241 = vadd.f32 %v597, %v1207
  %v1242 = vadd.f32 %v598, %v1209
  %1243 = vst [vmem:[%s2] sm:$0xff] %v1211
  %1244 = vst [vmem:[%s2 + $0x8] sm:$0xff] %v1212
  %1245 = vst [vmem:[%s2 + $0x10] sm:$0xff] %v1213
  %1246 = vst [vmem:[%s2 + $0x18] sm:$0xff] %v1214
  %1247 = vst [vmem:[%s2 + $0x20] sm:$0xff] %v1215
  %1248 = vst [vmem:[%s2 + $0x28] sm:$0xff] %v1216
  %1249 = vst [vmem:[%s2 + $0x30] sm:$0xff] %v1217
  %1250 = vst [vmem:[%s2 + $0x38] sm:$0xff] %v1218
  %1251 = vst [vmem:[%s2 + $0x40] sm:$0xff] %v1219
  %1252 = vst [vmem:[%s2 + $0x48] sm:$0xff] %v1220
  %1253 = vst [vmem:[%s2 + $0x50] sm:$0xff] %v1221
  %1254 = vst [vmem:[%s2 + $0x58] sm:$0xff] %v1222
  %1255 = vst [vmem:[%s2 + $0x60] sm:$0xff] %v1223
  %1256 = vst [vmem:[%s2 + $0x68] sm:$0xff] %v1224
  %1257 = vst [vmem:[%s2 + $0x70] sm:$0xff] %v1225
  %1258 = vst [vmem:[%s2 + $0x78] sm:$0xff] %v1226
  %1259 = vst [vmem:[%s2 + $0x80] sm:$0xff] %v1227
  %1260 = vst [vmem:[%s2 + $0x88] sm:$0xff] %v1228
  %1261 = vst [vmem:[%s2 + $0x90] sm:$0xff] %v1229
  %1262 = vst [vmem:[%s2 + $0x98] sm:$0xff] %v1230
  %1263 = vst [vmem:[%s2 + $0xa0] sm:$0xff] %v1231
  %1264 = vst [vmem:[%s2 + $0xa8] sm:$0xff] %v1232
  %1265 = vst [vmem:[%s2 + $0xb0] sm:$0xff] %v1233
  %1266 = vst [vmem:[%s2 + $0xb8] sm:$0xff] %v1234
  %1267 = vst [vmem:[%s2 + $0xc0] sm:$0xff] %v1235
  %1268 = vst [vmem:[%s2 + $0xc8] sm:$0xff] %v1236
  %1269 = vst [vmem:[%s2 + $0xd0] sm:$0xff] %v1237
  %1270 = vst [vmem:[%s2 + $0xd8] sm:$0xff] %v1238
  %1271 = vst [vmem:[%s2 + $0xe0] sm:$0xff] %v1239
  %1272 = vst [vmem:[%s2 + $0xe8] sm:$0xff] %v1240
  %1273 = vst [vmem:[%s2 + $0xf0] sm:$0xff] %v1241
  %1274 = vst [vmem:[%s2 + $0xf8] sm:$0xff] %v1242
  // Predicated region
  $region14: #{gnn_forward.24} parent=0 // pred_check
    _
  $region15: #{gnn_forward.24} parent=0 // pred_check_branch
    %1276 = sbr.rel (0) target = $region17
  $region16: #{gnn_forward.24} parent=0 // pred_region
    _
  $region17: #{gnn_forward.24} parent=0 // pred_fallthru
    _
  // Predicated region
  $region18: #{gnn_forward.24} parent=0 // pred_check
    _
  $region19: #{gnn_forward.24} parent=0 // pred_check_branch
    %1278 = sbr.rel (0) target = $region21
  $region20: #{gnn_forward.24} parent=0 // pred_region
    _
  $region21: #{gnn_forward.24} parent=0 // pred_fallthru
    _

// kernel: gnn_forward.22
$region0: #{gnn_forward.22}
  #allocation0 [shape = 'u32[]', space=smem, size = 0x4, offset = 0x4, fixed_abs, tag = 'smem constant byte address 0x4 - core index']
  #allocation1 [shape = 'u32[72,128]{1,0:T(1,128)}', space=vmem, size = 0x9000, scoped, tag = 'internal scratch']
  %s0 = inlined_call_operand.vmem [shape: bf16[256,128], index: 0, kind: input, shape index: {}]
  %s1 = inlined_call_operand.vmem [shape: bf16[128,128], index: 1, kind: input, shape index: {}]
  %s2 = inlined_call_operand.vmem [shape: bf16[128,128], index: 2, kind: input, shape index: {}]
  %s3 = inlined_call_operand.vmem [shape: bf16[128,128], index: 3, kind: input, shape index: {}]
  %s4 = inlined_call_operand.vmem [shape: f32[1,128], index: 4, kind: input, shape index: {}]
  %s5 = inlined_call_operand.vmem [shape: f32[1,128], index: 5, kind: input, shape index: {}]
  %s6 = inlined_call_operand.vmem [shape: f32[1,128], index: 6, kind: input, shape index: {}]
  %s7 = inlined_call_operand.vmem [shape: bf16[256,128], index: 7, kind: output, shape index: {}]
  %s8 = sld [smem:[#allocation0]]
  $region38: #{gnn_forward.22} parent=0
    _
  %s10 = ssub.s32 1, %s8
  %s11 = scalar_select 0, %s10, %s8
  // Predicated region
  $region2: #{gnn_forward.22} parent=0 // pred_check
    _
  $region3: #{gnn_forward.22} parent=0 // pred_check_branch
    %13 = sbr.rel (0) target = $region5
  $region4: #{gnn_forward.22} parent=0 // pred_region
    _
  $region5: #{gnn_forward.22} parent=0 // pred_fallthru
    _
  // Predicated region
  $region6: #{gnn_forward.22} parent=0 // pred_check
    _
  $region7: #{gnn_forward.22} parent=0 // pred_check_branch
    %15 = sbr.rel (0) target = $region9
  $region8: #{gnn_forward.22} parent=0 // pred_region
    _
  $region9: #{gnn_forward.22} parent=0 // pred_fallthru
    _
  // Predicated region
  $region10: #{gnn_forward.22} parent=0 // pred_check
    _
  $region11: #{gnn_forward.22} parent=0 // pred_check_branch
    %17 = sbr.rel (0) target = $region13
  $region12: #{gnn_forward.22} parent=0 // pred_region
    _
  $region13: #{gnn_forward.22} parent=0 // pred_fallthru
    _
  // Predicated region
  $region14: #{gnn_forward.22} parent=0 // pred_check
    _
  $region15: #{gnn_forward.22} parent=0 // pred_check_branch
    %19 = sbr.rel (0) target = $region17
  $region16: #{gnn_forward.22} parent=0 // pred_region
    _
  $region17: #{gnn_forward.22} parent=0 // pred_fallthru
    _
  // Predicated region
  $region18: #{gnn_forward.22} parent=0 // pred_check
    _
  $region19: #{gnn_forward.22} parent=0 // pred_check_branch
    %21 = sbr.rel (0) target = $region21
  $region20: #{gnn_forward.22} parent=0 // pred_region
    _
  $region21: #{gnn_forward.22} parent=0 // pred_fallthru
    _
  // Predicated region
  $region22: #{gnn_forward.22} parent=0 // pred_check
    _
  $region23: #{gnn_forward.22} parent=0 // pred_check_branch
    %23 = sbr.rel (0) target = $region25
  $region24: #{gnn_forward.22} parent=0 // pred_region
    _
  $region25: #{gnn_forward.22} parent=0 // pred_fallthru
    _
  // Predicated region
  $region26: #{gnn_forward.22} parent=0 // pred_check
    _
  $region27: #{gnn_forward.22} parent=0 // pred_check_branch
    %25 = sbr.rel (0) target = $region29
  $region28: #{gnn_forward.22} parent=0 // pred_region
    _
  $region29: #{gnn_forward.22} parent=0 // pred_fallthru
    _
  %v26 = vld [vmem:[%s0] sm:$0xf]
  %v27 = vld [vmem:[%s0 + $0x4] sm:$0xf]
  %v28 = vld [vmem:[%s0 + $0x8] sm:$0xf]
  %v29 = vld [vmem:[%s0 + $0xc] sm:$0xf]
  %v30 = vld [vmem:[%s0 + $0x10] sm:$0xf]
  %v31 = vld [vmem:[%s0 + $0x14] sm:$0xf]
  %v32 = vld [vmem:[%s0 + $0x18] sm:$0xf]
  %v33 = vld [vmem:[%s0 + $0x1c] sm:$0xf]
  %v34 = vld [vmem:[%s0 + $0x20] sm:$0xf]
  %v35 = vld [vmem:[%s0 + $0x24] sm:$0xf]
  %v36 = vld [vmem:[%s0 + $0x28] sm:$0xf]
  %v37 = vld [vmem:[%s0 + $0x2c] sm:$0xf]
  %v38 = vld [vmem:[%s0 + $0x30] sm:$0xf]
  %v39 = vld [vmem:[%s0 + $0x34] sm:$0xf]
  %v40 = vld [vmem:[%s0 + $0x38] sm:$0xf]
  %v41 = vld [vmem:[%s0 + $0x3c] sm:$0xf]
  %v42 = vld [vmem:[%s0 + $0x40] sm:$0xf]
  %v43 = vld [vmem:[%s0 + $0x44] sm:$0xf]
  %v44 = vld [vmem:[%s0 + $0x48] sm:$0xf]
  %v45 = vld [vmem:[%s0 + $0x4c] sm:$0xf]
  %v46 = vld [vmem:[%s0 + $0x50] sm:$0xf]
  %v47 = vld [vmem:[%s0 + $0x54] sm:$0xf]
  %v48 = vld [vmem:[%s0 + $0x58] sm:$0xf]
  %v49 = vld [vmem:[%s0 + $0x5c] sm:$0xf]
  %v50 = vld [vmem:[%s0 + $0x60] sm:$0xf]
  %v51 = vld [vmem:[%s0 + $0x64] sm:$0xf]
  %v52 = vld [vmem:[%s0 + $0x68] sm:$0xf]
  %v53 = vld [vmem:[%s0 + $0x6c] sm:$0xf]
  %v54 = vld [vmem:[%s0 + $0x70] sm:$0xf]
  %v55 = vld [vmem:[%s0 + $0x74] sm:$0xf]
  %v56 = vld [vmem:[%s0 + $0x78] sm:$0xf]
  %v57 = vld [vmem:[%s0 + $0x7c] sm:$0xf]
  %v58 = vld [vmem:[%s1] sm:$0xf]
  %v59 = vld [vmem:[%s1 + $0x4] sm:$0xf]
  %v60 = vld [vmem:[%s1 + $0x8] sm:$0xf]
  %v61 = vld [vmem:[%s1 + $0xc] sm:$0xf]
  %v62 = vld [vmem:[%s1 + $0x10] sm:$0xf]
  %v63 = vld [vmem:[%s1 + $0x14] sm:$0xf]
  %v64 = vld [vmem:[%s1 + $0x18] sm:$0xf]
  %v65 = vld [vmem:[%s1 + $0x1c] sm:$0xf]
  %v66 = vld [vmem:[%s1 + $0x20] sm:$0xf]
  %v67 = vld [vmem:[%s1 + $0x24] sm:$0xf]
  %v68 = vld [vmem:[%s1 + $0x28] sm:$0xf]
  %v69 = vld [vmem:[%s1 + $0x2c] sm:$0xf]
  %v70 = vld [vmem:[%s1 + $0x30] sm:$0xf]
  %v71 = vld [vmem:[%s1 + $0x34] sm:$0xf]
  %v72 = vld [vmem:[%s1 + $0x38] sm:$0xf]
  %v73 = vld [vmem:[%s1 + $0x3c] sm:$0xf]
  %v74 = vld [vmem:[%s4] sm:$0x1]
  %v76 = vperm.slane %v74, 0
  %v110 = vunpack.c.l.b16 %v26
  %v111 = vunpack.c.l.b16 %v27
  %v112 = vunpack.c.l.b16 %v28
  %v113 = vunpack.c.l.b16 %v29
  %v114 = vunpack.c.l.b16 %v30
  %v115 = vunpack.c.l.b16 %v31
  %v116 = vunpack.c.l.b16 %v32
  %v117 = vunpack.c.l.b16 %v33
  %v118 = vunpack.c.l.b16 %v34
  %v119 = vunpack.c.l.b16 %v35
  %v120 = vunpack.c.l.b16 %v36
  %v121 = vunpack.c.l.b16 %v37
  %v122 = vunpack.c.l.b16 %v38
  %v123 = vunpack.c.l.b16 %v39
  %v124 = vunpack.c.l.b16 %v40
  %v125 = vunpack.c.l.b16 %v41
  %v126 = vunpack.c.l.b16 %v42
  %v127 = vunpack.c.l.b16 %v43
  %v128 = vunpack.c.l.b16 %v44
  %v129 = vunpack.c.l.b16 %v45
  %v130 = vunpack.c.l.b16 %v46
  %v131 = vunpack.c.l.b16 %v47
  %v132 = vunpack.c.l.b16 %v48
  %v133 = vunpack.c.l.b16 %v49
  %v134 = vunpack.c.l.b16 %v50
  %v135 = vunpack.c.l.b16 %v51
  %v136 = vunpack.c.l.b16 %v52
  %v137 = vunpack.c.l.b16 %v53
  %v138 = vunpack.c.l.b16 %v54
  %v139 = vunpack.c.l.b16 %v55
  %v140 = vunpack.c.l.b16 %v56
  %v141 = vunpack.c.l.b16 %v57
  %v142 = vpack.c.b16 %v111, %v110
  %v143 = vpack.c.b16 %v113, %v112
  %v144 = vpack.c.b16 %v115, %v114
  %v145 = vpack.c.b16 %v117, %v116
  %v146 = vpack.c.b16 %v119, %v118
  %v147 = vpack.c.b16 %v121, %v120
  %v148 = vpack.c.b16 %v123, %v122
  %v149 = vpack.c.b16 %v125, %v124
  %v150 = vpack.c.b16 %v127, %v126
  %v151 = vpack.c.b16 %v129, %v128
  %v152 = vpack.c.b16 %v131, %v130
  %v153 = vpack.c.b16 %v133, %v132
  %v154 = vpack.c.b16 %v135, %v134
  %v155 = vpack.c.b16 %v137, %v136
  %v156 = vpack.c.b16 %v139, %v138
  %v157 = vpack.c.b16 %v141, %v140
  %v190 = vunpack.c.l.b16 %v58
  %v191 = vunpack.c.l.b16 %v59
  %v192 = vunpack.c.l.b16 %v60
  %v193 = vunpack.c.l.b16 %v61
  %v194 = vunpack.c.l.b16 %v62
  %v195 = vunpack.c.l.b16 %v63
  %v196 = vunpack.c.l.b16 %v64
  %v197 = vunpack.c.l.b16 %v65
  %v198 = vunpack.c.l.b16 %v66
  %v199 = vunpack.c.l.b16 %v67
  %v200 = vunpack.c.l.b16 %v68
  %v201 = vunpack.c.l.b16 %v69
  %v202 = vunpack.c.l.b16 %v70
  %v203 = vunpack.c.l.b16 %v71
  %v204 = vunpack.c.l.b16 %v72
  %v205 = vunpack.c.l.b16 %v73
  %v206 = vpack.c.b16 %v191, %v190
  %v207 = vpack.c.b16 %v193, %v192
  %v208 = vpack.c.b16 %v195, %v194
  %v209 = vpack.c.b16 %v197, %v196
  %v210 = vpack.c.b16 %v199, %v198
  %v211 = vpack.c.b16 %v201, %v200
  %v212 = vpack.c.b16 %v203, %v202
  %v213 = vpack.c.b16 %v205, %v204
  %222 = vmatpush.bf16.msra.mxu0 %v213
  %223 = vmatpush.bf16.msra.mxu0 %v212
  %224 = vmatpush.bf16.msra.mxu0 %v211
  %225 = vmatpush.bf16.msra.mxu0 %v210
  %226 = vmatpush.bf16.msra.mxu0 %v209
  %227 = vmatpush.bf16.msra.mxu0 %v208
  %228 = vmatpush.bf16.msra.mxu0 %v207
  %229 = vmatpush.bf16.msra.mxu0 %v206
  %230 = vmatmul.bf16.gmra.mxu0 %v142
  %v231 = vpop.f32.mrf.mxu0
  %v232 = vadd.f32 %v76, %v231
  %v233 = vpop.f32.mrf.mxu0
  %v234 = vadd.f32 %v76, %v233
  %235 = vmatmul.bf16.gmra.mxu0 %v143
  %v236 = vpop.f32.mrf.mxu0
  %v237 = vadd.f32 %v76, %v236
  %v238 = vpop.f32.mrf.mxu0
  %v239 = vadd.f32 %v76, %v238
  %240 = vmatmul.bf16.gmra.mxu0 %v144
  %v241 = vpop.f32.mrf.mxu0
  %v242 = vadd.f32 %v76, %v241
  %v243 = vpop.f32.mrf.mxu0
  %v244 = vadd.f32 %v76, %v243
  %245 = vmatmul.bf16.gmra.mxu0 %v145
  %v246 = vpop.f32.mrf.mxu0
  %v247 = vadd.f32 %v76, %v246
  %v248 = vpop.f32.mrf.mxu0
  %v249 = vadd.f32 %v76, %v248
  %250 = vmatmul.bf16.gmra.mxu0 %v146
  %v251 = vpop.f32.mrf.mxu0
  %v252 = vadd.f32 %v76, %v251
  %v253 = vpop.f32.mrf.mxu0
  %v254 = vadd.f32 %v76, %v253
  %255 = vmatmul.bf16.gmra.mxu0 %v147
  %v256 = vpop.f32.mrf.mxu0
  %v257 = vadd.f32 %v76, %v256
  %v258 = vpop.f32.mrf.mxu0
  %v259 = vadd.f32 %v76, %v258
  %260 = vmatmul.bf16.gmra.mxu0 %v148
  %v261 = vpop.f32.mrf.mxu0
  %v262 = vadd.f32 %v76, %v261
  %v263 = vpop.f32.mrf.mxu0
  %v264 = vadd.f32 %v76, %v263
  %265 = vmatmul.bf16.gmra.mxu0 %v149
  %v266 = vpop.f32.mrf.mxu0
  %v267 = vadd.f32 %v76, %v266
  %v268 = vpop.f32.mrf.mxu0
  %v269 = vadd.f32 %v76, %v268
  %270 = vmatmul.bf16.gmra.mxu0 %v150
  %v271 = vpop.f32.mrf.mxu0
  %v272 = vadd.f32 %v76, %v271
  %v273 = vpop.f32.mrf.mxu0
  %v274 = vadd.f32 %v76, %v273
  %275 = vmatmul.bf16.gmra.mxu0 %v151
  %v276 = vpop.f32.mrf.mxu0
  %v277 = vadd.f32 %v76, %v276
  %v278 = vpop.f32.mrf.mxu0
  %v279 = vadd.f32 %v76, %v278
  %280 = vmatmul.bf16.gmra.mxu0 %v152
  %v281 = vpop.f32.mrf.mxu0
  %v282 = vadd.f32 %v76, %v281
  %v283 = vpop.f32.mrf.mxu0
  %v284 = vadd.f32 %v76, %v283
  %285 = vmatmul.bf16.gmra.mxu0 %v153
  %v286 = vpop.f32.mrf.mxu0
  %v287 = vadd.f32 %v76, %v286
  %v288 = vpop.f32.mrf.mxu0
  %v289 = vadd.f32 %v76, %v288
  %290 = vmatmul.bf16.gmra.mxu0 %v154
  %v291 = vpop.f32.mrf.mxu0
  %v292 = vadd.f32 %v76, %v291
  %v293 = vpop.f32.mrf.mxu0
  %v294 = vadd.f32 %v76, %v293
  %295 = vmatmul.bf16.gmra.mxu0 %v155
  %v296 = vpop.f32.mrf.mxu0
  %v297 = vadd.f32 %v76, %v296
  %v298 = vpop.f32.mrf.mxu0
  %v299 = vadd.f32 %v76, %v298
  %300 = vmatmul.bf16.gmra.mxu0 %v156
  %v301 = vpop.f32.mrf.mxu0
  %v302 = vadd.f32 %v76, %v301
  %v303 = vpop.f32.mrf.mxu0
  %v304 = vadd.f32 %v76, %v303
  %305 = vmatmul.bf16.gmra.mxu0 %v157
  %v306 = vpop.f32.mrf.mxu0
  %v307 = vadd.f32 %v76, %v306
  %v308 = vpop.f32.mrf.mxu0
  %v309 = vadd.f32 %v76, %v308
  %310 = vdwg.mxu0
  %v311 = vmax.f32 %v232, 0.0
  %v312 = vmax.f32 %v234, 0.0
  %v313 = vmax.f32 %v237, 0.0
  %v314 = vmax.f32 %v239, 0.0
  %v315 = vmax.f32 %v242, 0.0
  %v316 = vmax.f32 %v244, 0.0
  %v317 = vmax.f32 %v247, 0.0
  %v318 = vmax.f32 %v249, 0.0
  %v319 = vmax.f32 %v252, 0.0
  %v320 = vmax.f32 %v254, 0.0
  %v321 = vmax.f32 %v257, 0.0
  %v322 = vmax.f32 %v259, 0.0
  %v323 = vmax.f32 %v262, 0.0
  %v324 = vmax.f32 %v264, 0.0
  %v325 = vmax.f32 %v267, 0.0
  %v326 = vmax.f32 %v269, 0.0
  %v327 = vmax.f32 %v272, 0.0
  %v328 = vmax.f32 %v274, 0.0
  %v329 = vmax.f32 %v277, 0.0
  %v330 = vmax.f32 %v279, 0.0
  %v331 = vmax.f32 %v282, 0.0
  %v332 = vmax.f32 %v284, 0.0
  %v333 = vmax.f32 %v287, 0.0
  %v334 = vmax.f32 %v289, 0.0
  %v335 = vmax.f32 %v292, 0.0
  %v336 = vmax.f32 %v294, 0.0
  %v337 = vmax.f32 %v297, 0.0
  %v338 = vmax.f32 %v299, 0.0
  %v339 = vmax.f32 %v302, 0.0
  %v340 = vmax.f32 %v304, 0.0
  %v341 = vmax.f32 %v307, 0.0
  %v342 = vmax.f32 %v309, 0.0
  %v343 = vpack.c.bf16 %v312, %v311
  %v344 = vpack.c.bf16 %v314, %v313
  %v345 = vpack.c.bf16 %v316, %v315
  %v346 = vpack.c.bf16 %v318, %v317
  %v347 = vpack.c.bf16 %v320, %v319
  %v348 = vpack.c.bf16 %v322, %v321
  %v349 = vpack.c.bf16 %v324, %v323
  %v350 = vpack.c.bf16 %v326, %v325
  %v351 = vpack.c.bf16 %v328, %v327
  %v352 = vpack.c.bf16 %v330, %v329
  %v353 = vpack.c.bf16 %v332, %v331
  %v354 = vpack.c.bf16 %v334, %v333
  %v355 = vpack.c.bf16 %v336, %v335
  %v356 = vpack.c.bf16 %v338, %v337
  %v357 = vpack.c.bf16 %v340, %v339
  %v358 = vpack.c.bf16 %v342, %v341
  %v359 = vld [vmem:[%s2] sm:$0xf]
  %v360 = vld [vmem:[%s2 + $0x4] sm:$0xf]
  %v361 = vld [vmem:[%s2 + $0x8] sm:$0xf]
  %v362 = vld [vmem:[%s2 + $0xc] sm:$0xf]
  %v363 = vld [vmem:[%s2 + $0x10] sm:$0xf]
  %v364 = vld [vmem:[%s2 + $0x14] sm:$0xf]
  %v365 = vld [vmem:[%s2 + $0x18] sm:$0xf]
  %v366 = vld [vmem:[%s2 + $0x1c] sm:$0xf]
  %v367 = vld [vmem:[%s2 + $0x20] sm:$0xf]
  %v368 = vld [vmem:[%s2 + $0x24] sm:$0xf]
  %v369 = vld [vmem:[%s2 + $0x28] sm:$0xf]
  %v370 = vld [vmem:[%s2 + $0x2c] sm:$0xf]
  %v371 = vld [vmem:[%s2 + $0x30] sm:$0xf]
  %v372 = vld [vmem:[%s2 + $0x34] sm:$0xf]
  %v373 = vld [vmem:[%s2 + $0x38] sm:$0xf]
  %v374 = vld [vmem:[%s2 + $0x3c] sm:$0xf]
  %v375 = vld [vmem:[%s5] sm:$0x1]
  %v377 = vperm.slane %v375, 0
  %v395 = vunpack.c.l.b16 %v359
  %v396 = vunpack.c.l.b16 %v360
  %v397 = vunpack.c.l.b16 %v361
  %v398 = vunpack.c.l.b16 %v362
  %v399 = vunpack.c.l.b16 %v363
  %v400 = vunpack.c.l.b16 %v364
  %v401 = vunpack.c.l.b16 %v365
  %v402 = vunpack.c.l.b16 %v366
  %v403 = vunpack.c.l.b16 %v367
  %v404 = vunpack.c.l.b16 %v368
  %v405 = vunpack.c.l.b16 %v369
  %v406 = vunpack.c.l.b16 %v370
  %v407 = vunpack.c.l.b16 %v371
  %v408 = vunpack.c.l.b16 %v372
  %v409 = vunpack.c.l.b16 %v373
  %v410 = vunpack.c.l.b16 %v374
  %v411 = vpack.c.b16 %v396, %v395
  %v412 = vpack.c.b16 %v398, %v397
  %v413 = vpack.c.b16 %v400, %v399
  %v414 = vpack.c.b16 %v402, %v401
  %v415 = vpack.c.b16 %v404, %v403
  %v416 = vpack.c.b16 %v406, %v405
  %v417 = vpack.c.b16 %v408, %v407
  %v418 = vpack.c.b16 %v410, %v409
  %427 = vmatpush.bf16.msra.mxu0 %v418
  %428 = vmatpush.bf16.msra.mxu0 %v417
  %429 = vmatpush.bf16.msra.mxu0 %v416
  %430 = vmatpush.bf16.msra.mxu0 %v415
  %431 = vmatpush.bf16.msra.mxu0 %v414
  %432 = vmatpush.bf16.msra.mxu0 %v413
  %433 = vmatpush.bf16.msra.mxu0 %v412
  %434 = vmatpush.bf16.msra.mxu0 %v411
  %435 = vmatmul.bf16.gmra.mxu0 %v343
  %v436 = vpop.f32.mrf.mxu0
  %v437 = vadd.f32 %v377, %v436
  %v438 = vpop.f32.mrf.mxu0
  %v439 = vadd.f32 %v377, %v438
  %440 = vmatmul.bf16.gmra.mxu0 %v344
  %v441 = vpop.f32.mrf.mxu0
  %v442 = vadd.f32 %v377, %v441
  %v443 = vpop.f32.mrf.mxu0
  %v444 = vadd.f32 %v377, %v443
  %445 = vmatmul.bf16.gmra.mxu0 %v345
  %v446 = vpop.f32.mrf.mxu0
  %v447 = vadd.f32 %v377, %v446
  %v448 = vpop.f32.mrf.mxu0
  %v449 = vadd.f32 %v377, %v448
  %450 = vmatmul.bf16.gmra.mxu0 %v346
  %v451 = vpop.f32.mrf.mxu0
  %v452 = vadd.f32 %v377, %v451
  %v453 = vpop.f32.mrf.mxu0
  %v454 = vadd.f32 %v377, %v453
  %455 = vmatmul.bf16.gmra.mxu0 %v347
  %v456 = vpop.f32.mrf.mxu0
  %v457 = vadd.f32 %v377, %v456
  %v458 = vpop.f32.mrf.mxu0
  %v459 = vadd.f32 %v377, %v458
  %460 = vmatmul.bf16.gmra.mxu0 %v348
  %v461 = vpop.f32.mrf.mxu0
  %v462 = vadd.f32 %v377, %v461
  %v463 = vpop.f32.mrf.mxu0
  %v464 = vadd.f32 %v377, %v463
  %465 = vmatmul.bf16.gmra.mxu0 %v349
  %v466 = vpop.f32.mrf.mxu0
  %v467 = vadd.f32 %v377, %v466
  %v468 = vpop.f32.mrf.mxu0
  %v469 = vadd.f32 %v377, %v468
  %470 = vmatmul.bf16.gmra.mxu0 %v350
  %v471 = vpop.f32.mrf.mxu0
  %v472 = vadd.f32 %v377, %v471
  %v473 = vpop.f32.mrf.mxu0
  %v474 = vadd.f32 %v377, %v473
  %475 = vmatmul.bf16.gmra.mxu0 %v351
  %v476 = vpop.f32.mrf.mxu0
  %v477 = vadd.f32 %v377, %v476
  %v478 = vpop.f32.mrf.mxu0
  %v479 = vadd.f32 %v377, %v478
  %480 = vmatmul.bf16.gmra.mxu0 %v352
  %v481 = vpop.f32.mrf.mxu0
  %v482 = vadd.f32 %v377, %v481
  %v483 = vpop.f32.mrf.mxu0
  %v484 = vadd.f32 %v377, %v483
  %485 = vmatmul.bf16.gmra.mxu0 %v353
  %v486 = vpop.f32.mrf.mxu0
  %v487 = vadd.f32 %v377, %v486
  %v488 = vpop.f32.mrf.mxu0
  %v489 = vadd.f32 %v377, %v488
  %490 = vmatmul.bf16.gmra.mxu0 %v354
  %v491 = vpop.f32.mrf.mxu0
  %v492 = vadd.f32 %v377, %v491
  %v493 = vpop.f32.mrf.mxu0
  %v494 = vadd.f32 %v377, %v493
  %495 = vmatmul.bf16.gmra.mxu0 %v355
  %v496 = vpop.f32.mrf.mxu0
  %v497 = vadd.f32 %v377, %v496
  %v498 = vpop.f32.mrf.mxu0
  %v499 = vadd.f32 %v377, %v498
  %500 = vmatmul.bf16.gmra.mxu0 %v356
  %v501 = vpop.f32.mrf.mxu0
  %v502 = vadd.f32 %v377, %v501
  %v503 = vpop.f32.mrf.mxu0
  %v504 = vadd.f32 %v377, %v503
  %505 = vmatmul.bf16.gmra.mxu0 %v357
  %v506 = vpop.f32.mrf.mxu0
  %v507 = vadd.f32 %v377, %v506
  %v508 = vpop.f32.mrf.mxu0
  %v509 = vadd.f32 %v377, %v508
  %510 = vmatmul.bf16.gmra.mxu0 %v358
  %v511 = vpop.f32.mrf.mxu0
  %v512 = vadd.f32 %v377, %v511
  %v513 = vpop.f32.mrf.mxu0
  %v514 = vadd.f32 %v377, %v513
  %515 = vdwg.mxu0
  %v516 = vmax.f32 %v437, 0.0
  %v517 = vmax.f32 %v439, 0.0
  %v518 = vmax.f32 %v442, 0.0
  %v519 = vmax.f32 %v444, 0.0
  %v520 = vmax.f32 %v447, 0.0
  %v521 = vmax.f32 %v449, 0.0
  %v522 = vmax.f32 %v452, 0.0
  %v523 = vmax.f32 %v454, 0.0
  %v524 = vmax.f32 %v457, 0.0
  %v525 = vmax.f32 %v459, 0.0
  %v526 = vmax.f32 %v462, 0.0
  %v527 = vmax.f32 %v464, 0.0
  %v528 = vmax.f32 %v467, 0.0
  %v529 = vmax.f32 %v469, 0.0
  %v530 = vmax.f32 %v472, 0.0
  %v531 = vmax.f32 %v474, 0.0
  %v532 = vmax.f32 %v477, 0.0
  %v533 = vmax.f32 %v479, 0.0
  %v534 = vmax.f32 %v482, 0.0
  %v535 = vmax.f32 %v484, 0.0
  %v536 = vmax.f32 %v487, 0.0
  %v537 = vmax.f32 %v489, 0.0
  %v538 = vmax.f32 %v492, 0.0
  %v539 = vmax.f32 %v494, 0.0
  %v540 = vmax.f32 %v497, 0.0
  %v541 = vmax.f32 %v499, 0.0
  %v542 = vmax.f32 %v502, 0.0
  %v543 = vmax.f32 %v504, 0.0
  %v544 = vmax.f32 %v507, 0.0
  %v545 = vmax.f32 %v509, 0.0
  %v546 = vmax.f32 %v512, 0.0
  %v547 = vmax.f32 %v514, 0.0
  %v548 = vpack.c.bf16 %v517, %v516
  %v549 = vpack.c.bf16 %v519, %v518
  %v550 = vpack.c.bf16 %v521, %v520
  %v551 = vpack.c.bf16 %v523, %v522
  %v552 = vpack.c.bf16 %v525, %v524
  %v553 = vpack.c.bf16 %v527, %v526
  %v554 = vpack.c.bf16 %v529, %v528
  %v555 = vpack.c.bf16 %v531, %v530
  %v556 = vpack.c.bf16 %v533, %v532
  %v557 = vpack.c.bf16 %v535, %v534
  %v558 = vpack.c.bf16 %v537, %v536
  %v559 = vpack.c.bf16 %v539, %v538
  %v560 = vpack.c.bf16 %v541, %v540
  %v561 = vpack.c.bf16 %v543, %v542
  %v562 = vpack.c.bf16 %v545, %v544
  %v563 = vpack.c.bf16 %v547, %v546
  %v564 = vld [vmem:[%s3] sm:$0xf]
  %v565 = vld [vmem:[%s3 + $0x4] sm:$0xf]
  %v566 = vld [vmem:[%s3 + $0x8] sm:$0xf]
  %v567 = vld [vmem:[%s3 + $0xc] sm:$0xf]
  %v568 = vld [vmem:[%s3 + $0x10] sm:$0xf]
  %v569 = vld [vmem:[%s3 + $0x14] sm:$0xf]
  %v570 = vld [vmem:[%s3 + $0x18] sm:$0xf]
  %v571 = vld [vmem:[%s3 + $0x1c] sm:$0xf]
  %v572 = vld [vmem:[%s3 + $0x20] sm:$0xf]
  %v573 = vld [vmem:[%s3 + $0x24] sm:$0xf]
  %v574 = vld [vmem:[%s3 + $0x28] sm:$0xf]
  %v575 = vld [vmem:[%s3 + $0x2c] sm:$0xf]
  %v576 = vld [vmem:[%s3 + $0x30] sm:$0xf]
  %v577 = vld [vmem:[%s3 + $0x34] sm:$0xf]
  %v578 = vld [vmem:[%s3 + $0x38] sm:$0xf]
  %v579 = vld [vmem:[%s3 + $0x3c] sm:$0xf]
  %v580 = vld [vmem:[%s6] sm:$0x1]
  %v582 = vperm.slane %v580, 0
  %v600 = vunpack.c.l.b16 %v564
  %v601 = vunpack.c.l.b16 %v565
  %v602 = vunpack.c.l.b16 %v566
  %v603 = vunpack.c.l.b16 %v567
  %v604 = vunpack.c.l.b16 %v568
  %v605 = vunpack.c.l.b16 %v569
  %v606 = vunpack.c.l.b16 %v570
  %v607 = vunpack.c.l.b16 %v571
  %v608 = vunpack.c.l.b16 %v572
  %v609 = vunpack.c.l.b16 %v573
  %v610 = vunpack.c.l.b16 %v574
  %v611 = vunpack.c.l.b16 %v575
  %v612 = vunpack.c.l.b16 %v576
  %v613 = vunpack.c.l.b16 %v577
  %v614 = vunpack.c.l.b16 %v578
  %v615 = vunpack.c.l.b16 %v579
  %v616 = vpack.c.b16 %v601, %v600
  %v617 = vpack.c.b16 %v603, %v602
  %v618 = vpack.c.b16 %v605, %v604
  %v619 = vpack.c.b16 %v607, %v606
  %v620 = vpack.c.b16 %v609, %v608
  %v621 = vpack.c.b16 %v611, %v610
  %v622 = vpack.c.b16 %v613, %v612
  %v623 = vpack.c.b16 %v615, %v614
  %632 = vmatpush.bf16.msra.mxu0 %v623
  %633 = vmatpush.bf16.msra.mxu0 %v622
  %634 = vmatpush.bf16.msra.mxu0 %v621
  %635 = vmatpush.bf16.msra.mxu0 %v620
  %636 = vmatpush.bf16.msra.mxu0 %v619
  %637 = vmatpush.bf16.msra.mxu0 %v618
  %638 = vmatpush.bf16.msra.mxu0 %v617
  %639 = vmatpush.bf16.msra.mxu0 %v616
  %640 = vmatmul.bf16.gmra.mxu0 %v548
  %v641 = vpop.f32.mrf.mxu0
  %v642 = vadd.f32 %v582, %v641
  %v643 = vpop.f32.mrf.mxu0
  %v644 = vadd.f32 %v582, %v643
  %645 = vmatmul.bf16.gmra.mxu0 %v549
  %v646 = vpop.f32.mrf.mxu0
  %v647 = vadd.f32 %v582, %v646
  %v648 = vpop.f32.mrf.mxu0
  %v649 = vadd.f32 %v582, %v648
  %650 = vmatmul.bf16.gmra.mxu0 %v550
  %v651 = vpop.f32.mrf.mxu0
  %v652 = vadd.f32 %v582, %v651
  %v653 = vpop.f32.mrf.mxu0
  %v654 = vadd.f32 %v582, %v653
  %655 = vmatmul.bf16.gmra.mxu0 %v551
  %v656 = vpop.f32.mrf.mxu0
  %v657 = vadd.f32 %v582, %v656
  %v658 = vpop.f32.mrf.mxu0
  %v659 = vadd.f32 %v582, %v658
  %660 = vmatmul.bf16.gmra.mxu0 %v552
  %v661 = vpop.f32.mrf.mxu0
  %v662 = vadd.f32 %v582, %v661
  %v663 = vpop.f32.mrf.mxu0
  %v664 = vadd.f32 %v582, %v663
  %665 = vmatmul.bf16.gmra.mxu0 %v553
  %v666 = vpop.f32.mrf.mxu0
  %v667 = vadd.f32 %v582, %v666
  %v668 = vpop.f32.mrf.mxu0
  %v669 = vadd.f32 %v582, %v668
  %670 = vmatmul.bf16.gmra.mxu0 %v554
  %v671 = vpop.f32.mrf.mxu0
  %v672 = vadd.f32 %v582, %v671
  %v673 = vpop.f32.mrf.mxu0
  %v674 = vadd.f32 %v582, %v673
  %675 = vmatmul.bf16.gmra.mxu0 %v555
  %v676 = vpop.f32.mrf.mxu0
  %v677 = vadd.f32 %v582, %v676
  %v678 = vpop.f32.mrf.mxu0
  %v679 = vadd.f32 %v582, %v678
  %680 = vmatmul.bf16.gmra.mxu0 %v556
  %v681 = vpop.f32.mrf.mxu0
  %v682 = vadd.f32 %v582, %v681
  %v683 = vpop.f32.mrf.mxu0
  %v684 = vadd.f32 %v582, %v683
  %685 = vmatmul.bf16.gmra.mxu0 %v557
  %v686 = vpop.f32.mrf.mxu0
  %v687 = vadd.f32 %v582, %v686
  %v688 = vpop.f32.mrf.mxu0
  %v689 = vadd.f32 %v582, %v688
  %690 = vmatmul.bf16.gmra.mxu0 %v558
  %v691 = vpop.f32.mrf.mxu0
  %v692 = vadd.f32 %v582, %v691
  %v693 = vpop.f32.mrf.mxu0
  %v694 = vadd.f32 %v582, %v693
  %695 = vmatmul.bf16.gmra.mxu0 %v559
  %v696 = vpop.f32.mrf.mxu0
  %v697 = vadd.f32 %v582, %v696
  %v698 = vpop.f32.mrf.mxu0
  %v699 = vadd.f32 %v582, %v698
  %700 = vmatmul.bf16.gmra.mxu0 %v560
  %v701 = vpop.f32.mrf.mxu0
  %v702 = vadd.f32 %v582, %v701
  %v703 = vpop.f32.mrf.mxu0
  %v704 = vadd.f32 %v582, %v703
  %705 = vmatmul.bf16.gmra.mxu0 %v561
  %v706 = vpop.f32.mrf.mxu0
  %v707 = vadd.f32 %v582, %v706
  %v708 = vpop.f32.mrf.mxu0
  %v709 = vadd.f32 %v582, %v708
  %710 = vmatmul.bf16.gmra.mxu0 %v562
  %v711 = vpop.f32.mrf.mxu0
  %v712 = vadd.f32 %v582, %v711
  %v713 = vpop.f32.mrf.mxu0
  %v714 = vadd.f32 %v582, %v713
  %715 = vmatmul.bf16.gmra.mxu0 %v563
  %v716 = vpop.f32.mrf.mxu0
  %v717 = vadd.f32 %v582, %v716
  %v718 = vpop.f32.mrf.mxu0
  %v719 = vadd.f32 %v582, %v718
  %720 = vdwg.mxu0
  %v721 = vpack.c.bf16 %v642, %v642
  %v722 = vpack.c.bf16 %v644, %v644
  %v723 = vpack.c.bf16 %v647, %v647
  %v724 = vpack.c.bf16 %v649, %v649
  %v725 = vpack.c.bf16 %v652, %v652
  %v726 = vpack.c.bf16 %v654, %v654
  %v727 = vpack.c.bf16 %v657, %v657
  %v728 = vpack.c.bf16 %v659, %v659
  %v729 = vpack.c.bf16 %v662, %v662
  %v730 = vpack.c.bf16 %v664, %v664
  %v731 = vpack.c.bf16 %v667, %v667
  %v732 = vpack.c.bf16 %v669, %v669
  %v733 = vpack.c.bf16 %v672, %v672
  %v734 = vpack.c.bf16 %v674, %v674
  %v735 = vpack.c.bf16 %v677, %v677
  %v736 = vpack.c.bf16 %v679, %v679
  %v737 = vpack.c.bf16 %v682, %v682
  %v738 = vpack.c.bf16 %v684, %v684
  %v739 = vpack.c.bf16 %v687, %v687
  %v740 = vpack.c.bf16 %v689, %v689
  %v741 = vpack.c.bf16 %v692, %v692
  %v742 = vpack.c.bf16 %v694, %v694
  %v743 = vpack.c.bf16 %v697, %v697
  %v744 = vpack.c.bf16 %v699, %v699
  %v745 = vpack.c.bf16 %v702, %v702
  %v746 = vpack.c.bf16 %v704, %v704
  %v747 = vpack.c.bf16 %v707, %v707
  %v748 = vpack.c.bf16 %v709, %v709
  %v749 = vpack.c.bf16 %v712, %v712
  %v750 = vpack.c.bf16 %v714, %v714
  %v751 = vpack.c.bf16 %v717, %v717
  %v752 = vpack.c.bf16 %v719, %v719
  %753 = vst [vmem:[%s7] sm:$0xf] %v721
  %754 = vst [vmem:[%s7 + $0x4] sm:$0xf] %v722
  %755 = vst [vmem:[%s7 + $0x8] sm:$0xf] %v723
  %756 = vst [vmem:[%s7 + $0xc] sm:$0xf] %v724
  %757 = vst [vmem:[%s7 + $0x10] sm:$0xf] %v725
  %758 = vst [vmem:[%s7 + $0x14] sm:$0xf] %v726
  %759 = vst [vmem:[%s7 + $0x18] sm:$0xf] %v727
  %760 = vst [vmem:[%s7 + $0x1c] sm:$0xf] %v728
  %761 = vst [vmem:[%s7 + $0x20] sm:$0xf] %v729
  %762 = vst [vmem:[%s7 + $0x24] sm:$0xf] %v730
  %763 = vst [vmem:[%s7 + $0x28] sm:$0xf] %v731
  %764 = vst [vmem:[%s7 + $0x2c] sm:$0xf] %v732
  %765 = vst [vmem:[%s7 + $0x30] sm:$0xf] %v733
  %766 = vst [vmem:[%s7 + $0x34] sm:$0xf] %v734
  %767 = vst [vmem:[%s7 + $0x38] sm:$0xf] %v735
  %768 = vst [vmem:[%s7 + $0x3c] sm:$0xf] %v736
  %769 = vst [vmem:[%s7 + $0x40] sm:$0xf] %v737
  %770 = vst [vmem:[%s7 + $0x44] sm:$0xf] %v738
  %771 = vst [vmem:[%s7 + $0x48] sm:$0xf] %v739
  %772 = vst [vmem:[%s7 + $0x4c] sm:$0xf] %v740
  %773 = vst [vmem:[%s7 + $0x50] sm:$0xf] %v741
  %774 = vst [vmem:[%s7 + $0x54] sm:$0xf] %v742
  %775 = vst [vmem:[%s7 + $0x58] sm:$0xf] %v743
  %776 = vst [vmem:[%s7 + $0x5c] sm:$0xf] %v744
  %777 = vst [vmem:[%s7 + $0x60] sm:$0xf] %v745
  %778 = vst [vmem:[%s7 + $0x64] sm:$0xf] %v746
  %779 = vst [vmem:[%s7 + $0x68] sm:$0xf] %v747
  %780 = vst [vmem:[%s7 + $0x6c] sm:$0xf] %v748
  %781 = vst [vmem:[%s7 + $0x70] sm:$0xf] %v749
  %782 = vst [vmem:[%s7 + $0x74] sm:$0xf] %v750
  %783 = vst [vmem:[%s7 + $0x78] sm:$0xf] %v751
  %784 = vst [vmem:[%s7 + $0x7c] sm:$0xf] %v752
  // Predicated region
  $region30: #{gnn_forward.22} parent=0 // pred_check
    _
  $region31: #{gnn_forward.22} parent=0 // pred_check_branch
    %786 = sbr.rel (0) target = $region33
  $region32: #{gnn_forward.22} parent=0 // pred_region
    _
  $region33: #{gnn_forward.22} parent=0 // pred_fallthru
    _
  // Predicated region
  $region34: #{gnn_forward.22} parent=0 // pred_check
    _
  $region35: #{gnn_forward.22} parent=0 // pred_check_branch
    %788 = sbr.rel (0) target = $region37
  $region36: #{gnn_forward.22} parent=0 // pred_region
    _
  $region37: #{gnn_forward.22} parent=0 // pred_fallthru
    _

// kernel: gnn_forward.23
$region0: #{gnn_forward.23}
  #allocation0 [shape = 'u32[]', space=smem, size = 0x4, offset = 0x4, fixed_abs, tag = 'smem constant byte address 0x4 - core index']
  #allocation1 [shape = 'u32[72,128]{1,0:T(1,128)}', space=vmem, size = 0x9000, scoped, tag = 'internal scratch']
  %s0 = inlined_call_operand.vmem [shape: bf16[256,128], index: 0, kind: input, shape index: {}]
  %s1 = inlined_call_operand.vmem [shape: bf16[256,128], index: 1, kind: input, shape index: {}]
  %s2 = inlined_call_operand.vmem [shape: bf16[256,128], index: 2, kind: input, shape index: {}]
  %s3 = inlined_call_operand.vmem [shape: bf16[256,128], index: 3, kind: input, shape index: {}]
  %s4 = inlined_call_operand.vmem [shape: bf16[256,128], index: 4, kind: input, shape index: {}]
  %s5 = inlined_call_operand.vmem [shape: bf16[256,128], index: 5, kind: input, shape index: {}]
  %s6 = inlined_call_operand.vmem [shape: bf16[768,128], index: 6, kind: input, shape index: {}]
  %s7 = inlined_call_operand.vmem [shape: bf16[128,128], index: 7, kind: input, shape index: {}]
  %s8 = inlined_call_operand.vmem [shape: bf16[128,128], index: 8, kind: input, shape index: {}]
  %s9 = inlined_call_operand.vmem [shape: f32[1,128], index: 9, kind: input, shape index: {}]
  %s10 = inlined_call_operand.vmem [shape: f32[1,128], index: 10, kind: input, shape index: {}]
  %s11 = inlined_call_operand.vmem [shape: f32[1,128], index: 11, kind: input, shape index: {}]
  %s12 = inlined_call_operand.vmem [shape: bf16[256,128], index: 12, kind: output, shape index: {}]
  %s13 = sld [smem:[#allocation0]]
  $region58: #{gnn_forward.23} parent=0
    _
  %s15 = ssub.s32 1, %s13
  %s16 = scalar_select 0, %s15, %s13
  // Predicated region
  $region2: #{gnn_forward.23} parent=0 // pred_check
    _
  $region3: #{gnn_forward.23} parent=0 // pred_check_branch
    %18 = sbr.rel (0) target = $region5
  $region4: #{gnn_forward.23} parent=0 // pred_region
    _
  $region5: #{gnn_forward.23} parent=0 // pred_fallthru
    _
  // Predicated region
  $region6: #{gnn_forward.23} parent=0 // pred_check
    _
  $region7: #{gnn_forward.23} parent=0 // pred_check_branch
    %20 = sbr.rel (0) target = $region9
  $region8: #{gnn_forward.23} parent=0 // pred_region
    _
  $region9: #{gnn_forward.23} parent=0 // pred_fallthru
    _
  // Predicated region
  $region10: #{gnn_forward.23} parent=0 // pred_check
    _
  $region11: #{gnn_forward.23} parent=0 // pred_check_branch
    %22 = sbr.rel (0) target = $region13
  $region12: #{gnn_forward.23} parent=0 // pred_region
    _
  $region13: #{gnn_forward.23} parent=0 // pred_fallthru
    _
  // Predicated region
  $region14: #{gnn_forward.23} parent=0 // pred_check
    _
  $region15: #{gnn_forward.23} parent=0 // pred_check_branch
    %24 = sbr.rel (0) target = $region17
  $region16: #{gnn_forward.23} parent=0 // pred_region
    _
  $region17: #{gnn_forward.23} parent=0 // pred_fallthru
    _
  // Predicated region
  $region18: #{gnn_forward.23} parent=0 // pred_check
    _
  $region19: #{gnn_forward.23} parent=0 // pred_check_branch
    %26 = sbr.rel (0) target = $region21
  $region20: #{gnn_forward.23} parent=0 // pred_region
    _
  $region21: #{gnn_forward.23} parent=0 // pred_fallthru
    _
  // Predicated region
  $region22: #{gnn_forward.23} parent=0 // pred_check
    _
  $region23: #{gnn_forward.23} parent=0 // pred_check_branch
    %28 = sbr.rel (0) target = $region25
  $region24: #{gnn_forward.23} parent=0 // pred_region
    _
  $region25: #{gnn_forward.23} parent=0 // pred_fallthru
    _
  // Predicated region
  $region26: #{gnn_forward.23} parent=0 // pred_check
    _
  $region27: #{gnn_forward.23} parent=0 // pred_check_branch
    %30 = sbr.rel (0) target = $region29
  $region28: #{gnn_forward.23} parent=0 // pred_region
    _
  $region29: #{gnn_forward.23} parent=0 // pred_fallthru
    _
  // Predicated region
  $region30: #{gnn_forward.23} parent=0 // pred_check
    _
  $region31: #{gnn_forward.23} parent=0 // pred_check_branch
    %32 = sbr.rel (0) target = $region33
  $region32: #{gnn_forward.23} parent=0 // pred_region
    _
  $region33: #{gnn_forward.23} parent=0 // pred_fallthru
    _
  // Predicated region
  $region34: #{gnn_forward.23} parent=0 // pred_check
    _
  $region35: #{gnn_forward.23} parent=0 // pred_check_branch
    %34 = sbr.rel (0) target = $region37
  $region36: #{gnn_forward.23} parent=0 // pred_region
    _
  $region37: #{gnn_forward.23} parent=0 // pred_fallthru
    _
  // Predicated region
  $region38: #{gnn_forward.23} parent=0 // pred_check
    _
  $region39: #{gnn_forward.23} parent=0 // pred_check_branch
    %36 = sbr.rel (0) target = $region41
  $region40: #{gnn_forward.23} parent=0 // pred_region
    _
  $region41: #{gnn_forward.23} parent=0 // pred_fallthru
    _
  // Predicated region
  $region42: #{gnn_forward.23} parent=0 // pred_check
    _
  $region43: #{gnn_forward.23} parent=0 // pred_check_branch
    %38 = sbr.rel (0) target = $region45
  $region44: #{gnn_forward.23} parent=0 // pred_region
    _
  $region45: #{gnn_forward.23} parent=0 // pred_fallthru
    _
  // Predicated region
  $region46: #{gnn_forward.23} parent=0 // pred_check
    _
  $region47: #{gnn_forward.23} parent=0 // pred_check_branch
    %40 = sbr.rel (0) target = $region49
  $region48: #{gnn_forward.23} parent=0 // pred_region
    _
  $region49: #{gnn_forward.23} parent=0 // pred_fallthru
    _
  %v41 = vld [vmem:[%s0] sm:$0xf]
  %v42 = vld [vmem:[%s0 + $0x4] sm:$0xf]
  %v43 = vld [vmem:[%s0 + $0x8] sm:$0xf]
  %v44 = vld [vmem:[%s0 + $0xc] sm:$0xf]
  %v45 = vld [vmem:[%s0 + $0x10] sm:$0xf]
  %v46 = vld [vmem:[%s0 + $0x14] sm:$0xf]
  %v47 = vld [vmem:[%s0 + $0x18] sm:$0xf]
  %v48 = vld [vmem:[%s0 + $0x1c] sm:$0xf]
  %v49 = vld [vmem:[%s0 + $0x20] sm:$0xf]
  %v50 = vld [vmem:[%s0 + $0x24] sm:$0xf]
  %v51 = vld [vmem:[%s0 + $0x28] sm:$0xf]
  %v52 = vld [vmem:[%s0 + $0x2c] sm:$0xf]
  %v53 = vld [vmem:[%s0 + $0x30] sm:$0xf]
  %v54 = vld [vmem:[%s0 + $0x34] sm:$0xf]
  %v55 = vld [vmem:[%s0 + $0x38] sm:$0xf]
  %v56 = vld [vmem:[%s0 + $0x3c] sm:$0xf]
  %v57 = vld [vmem:[%s0 + $0x40] sm:$0xf]
  %v58 = vld [vmem:[%s0 + $0x44] sm:$0xf]
  %v59 = vld [vmem:[%s0 + $0x48] sm:$0xf]
  %v60 = vld [vmem:[%s0 + $0x4c] sm:$0xf]
  %v61 = vld [vmem:[%s0 + $0x50] sm:$0xf]
  %v62 = vld [vmem:[%s0 + $0x54] sm:$0xf]
  %v63 = vld [vmem:[%s0 + $0x58] sm:$0xf]
  %v64 = vld [vmem:[%s0 + $0x5c] sm:$0xf]
  %v65 = vld [vmem:[%s0 + $0x60] sm:$0xf]
  %v66 = vld [vmem:[%s0 + $0x64] sm:$0xf]
  %v67 = vld [vmem:[%s0 + $0x68] sm:$0xf]
  %v68 = vld [vmem:[%s0 + $0x6c] sm:$0xf]
  %v69 = vld [vmem:[%s0 + $0x70] sm:$0xf]
  %v70 = vld [vmem:[%s0 + $0x74] sm:$0xf]
  %v71 = vld [vmem:[%s0 + $0x78] sm:$0xf]
  %v72 = vld [vmem:[%s0 + $0x7c] sm:$0xf]
  %v73 = vld [vmem:[%s1] sm:$0xf]
  %v74 = vld [vmem:[%s1 + $0x4] sm:$0xf]
  %v75 = vld [vmem:[%s1 + $0x8] sm:$0xf]
  %v76 = vld [vmem:[%s1 + $0xc] sm:$0xf]
  %v77 = vld [vmem:[%s1 + $0x10] sm:$0xf]
  %v78 = vld [vmem:[%s1 + $0x14] sm:$0xf]
  %v79 = vld [vmem:[%s1 + $0x18] sm:$0xf]
  %v80 = vld [vmem:[%s1 + $0x1c] sm:$0xf]
  %v81 = vld [vmem:[%s1 + $0x20] sm:$0xf]
  %v82 = vld [vmem:[%s1 + $0x24] sm:$0xf]
  %v83 = vld [vmem:[%s1 + $0x28] sm:$0xf]
  %v84 = vld [vmem:[%s1 + $0x2c] sm:$0xf]
  %v85 = vld [vmem:[%s1 + $0x30] sm:$0xf]
  %v86 = vld [vmem:[%s1 + $0x34] sm:$0xf]
  %v87 = vld [vmem:[%s1 + $0x38] sm:$0xf]
  %v88 = vld [vmem:[%s1 + $0x3c] sm:$0xf]
  %v89 = vld [vmem:[%s1 + $0x40] sm:$0xf]
  %v90 = vld [vmem:[%s1 + $0x44] sm:$0xf]
  %v91 = vld [vmem:[%s1 + $0x48] sm:$0xf]
  %v92 = vld [vmem:[%s1 + $0x4c] sm:$0xf]
  %v93 = vld [vmem:[%s1 + $0x50] sm:$0xf]
  %v94 = vld [vmem:[%s1 + $0x54] sm:$0xf]
  %v95 = vld [vmem:[%s1 + $0x58] sm:$0xf]
  %v96 = vld [vmem:[%s1 + $0x5c] sm:$0xf]
  %v97 = vld [vmem:[%s1 + $0x60] sm:$0xf]
  %v98 = vld [vmem:[%s1 + $0x64] sm:$0xf]
  %v99 = vld [vmem:[%s1 + $0x68] sm:$0xf]
  %v100 = vld [vmem:[%s1 + $0x6c] sm:$0xf]
  %v101 = vld [vmem:[%s1 + $0x70] sm:$0xf]
  %v102 = vld [vmem:[%s1 + $0x74] sm:$0xf]
  %v103 = vld [vmem:[%s1 + $0x78] sm:$0xf]
  %v104 = vld [vmem:[%s1 + $0x7c] sm:$0xf]
  %v137 = vunpack.c.l.b16 %v41
  %v138 = vunpack.c.l.b16 %v42
  %v139 = vunpack.c.l.b16 %v43
  %v140 = vunpack.c.l.b16 %v44
  %v141 = vunpack.c.l.b16 %v45
  %v142 = vunpack.c.l.b16 %v46
  %v143 = vunpack.c.l.b16 %v47
  %v144 = vunpack.c.l.b16 %v48
  %v145 = vunpack.c.l.b16 %v49
  %v146 = vunpack.c.l.b16 %v50
  %v147 = vunpack.c.l.b16 %v51
  %v148 = vunpack.c.l.b16 %v52
  %v149 = vunpack.c.l.b16 %v53
  %v150 = vunpack.c.l.b16 %v54
  %v151 = vunpack.c.l.b16 %v55
  %v152 = vunpack.c.l.b16 %v56
  %v153 = vunpack.c.l.b16 %v57
  %v154 = vunpack.c.l.b16 %v58
  %v155 = vunpack.c.l.b16 %v59
  %v156 = vunpack.c.l.b16 %v60
  %v157 = vunpack.c.l.b16 %v61
  %v158 = vunpack.c.l.b16 %v62
  %v159 = vunpack.c.l.b16 %v63
  %v160 = vunpack.c.l.b16 %v64
  %v161 = vunpack.c.l.b16 %v65
  %v162 = vunpack.c.l.b16 %v66
  %v163 = vunpack.c.l.b16 %v67
  %v164 = vunpack.c.l.b16 %v68
  %v165 = vunpack.c.l.b16 %v69
  %v166 = vunpack.c.l.b16 %v70
  %v167 = vunpack.c.l.b16 %v71
  %v168 = vunpack.c.l.b16 %v72
  %v169 = vpack.c.b16 %v138, %v137
  %v170 = vpack.c.b16 %v140, %v139
  %v171 = vpack.c.b16 %v142, %v141
  %v172 = vpack.c.b16 %v144, %v143
  %v173 = vpack.c.b16 %v146, %v145
  %v174 = vpack.c.b16 %v148, %v147
  %v175 = vpack.c.b16 %v150, %v149
  %v176 = vpack.c.b16 %v152, %v151
  %v177 = vpack.c.b16 %v154, %v153
  %v178 = vpack.c.b16 %v156, %v155
  %v179 = vpack.c.b16 %v158, %v157
  %v180 = vpack.c.b16 %v160, %v159
  %v181 = vpack.c.b16 %v162, %v161
  %v182 = vpack.c.b16 %v164, %v163
  %v183 = vpack.c.b16 %v166, %v165
  %v184 = vpack.c.b16 %v168, %v167
  %v233 = vunpack.c.l.b16 %v73
  %v234 = vunpack.c.l.b16 %v74
  %v235 = vunpack.c.l.b16 %v75
  %v236 = vunpack.c.l.b16 %v76
  %v237 = vunpack.c.l.b16 %v77
  %v238 = vunpack.c.l.b16 %v78
  %v239 = vunpack.c.l.b16 %v79
  %v240 = vunpack.c.l.b16 %v80
  %v241 = vunpack.c.l.b16 %v81
  %v242 = vunpack.c.l.b16 %v82
  %v243 = vunpack.c.l.b16 %v83
  %v244 = vunpack.c.l.b16 %v84
  %v245 = vunpack.c.l.b16 %v85
  %v246 = vunpack.c.l.b16 %v86
  %v247 = vunpack.c.l.b16 %v87
  %v248 = vunpack.c.l.b16 %v88
  %v249 = vunpack.c.l.b16 %v89
  %v250 = vunpack.c.l.b16 %v90
  %v251 = vunpack.c.l.b16 %v91
  %v252 = vunpack.c.l.b16 %v92
  %v253 = vunpack.c.l.b16 %v93
  %v254 = vunpack.c.l.b16 %v94
  %v255 = vunpack.c.l.b16 %v95
  %v256 = vunpack.c.l.b16 %v96
  %v257 = vunpack.c.l.b16 %v97
  %v258 = vunpack.c.l.b16 %v98
  %v259 = vunpack.c.l.b16 %v99
  %v260 = vunpack.c.l.b16 %v100
  %v261 = vunpack.c.l.b16 %v101
  %v262 = vunpack.c.l.b16 %v102
  %v263 = vunpack.c.l.b16 %v103
  %v264 = vunpack.c.l.b16 %v104
  %v265 = vpack.c.b16 %v234, %v233
  %v266 = vpack.c.b16 %v236, %v235
  %v267 = vpack.c.b16 %v238, %v237
  %v268 = vpack.c.b16 %v240, %v239
  %v269 = vpack.c.b16 %v242, %v241
  %v270 = vpack.c.b16 %v244, %v243
  %v271 = vpack.c.b16 %v246, %v245
  %v272 = vpack.c.b16 %v248, %v247
  %v273 = vpack.c.b16 %v250, %v249
  %v274 = vpack.c.b16 %v252, %v251
  %v275 = vpack.c.b16 %v254, %v253
  %v276 = vpack.c.b16 %v256, %v255
  %v277 = vpack.c.b16 %v258, %v257
  %v278 = vpack.c.b16 %v260, %v259
  %v279 = vpack.c.b16 %v262, %v261
  %v280 = vpack.c.b16 %v264, %v263
  %v297 = vld [vmem:[%s6] sm:$0xf]
  %v298 = vld [vmem:[%s6 + $0x4] sm:$0xf]
  %v299 = vld [vmem:[%s6 + $0x8] sm:$0xf]
  %v300 = vld [vmem:[%s6 + $0xc] sm:$0xf]
  %v301 = vld [vmem:[%s6 + $0x10] sm:$0xf]
  %v302 = vld [vmem:[%s6 + $0x14] sm:$0xf]
  %v303 = vld [vmem:[%s6 + $0x18] sm:$0xf]
  %v304 = vld [vmem:[%s6 + $0x1c] sm:$0xf]
  %v305 = vld [vmem:[%s6 + $0x20] sm:$0xf]
  %v306 = vld [vmem:[%s6 + $0x24] sm:$0xf]
  %v307 = vld [vmem:[%s6 + $0x28] sm:$0xf]
  %v308 = vld [vmem:[%s6 + $0x2c] sm:$0xf]
  %v309 = vld [vmem:[%s6 + $0x30] sm:$0xf]
  %v310 = vld [vmem:[%s6 + $0x34] sm:$0xf]
  %v311 = vld [vmem:[%s6 + $0x38] sm:$0xf]
  %v312 = vld [vmem:[%s6 + $0x3c] sm:$0xf]
  %v313 = vld [vmem:[%s6 + $0x40] sm:$0xf]
  %v314 = vld [vmem:[%s6 + $0x44] sm:$0xf]
  %v315 = vld [vmem:[%s6 + $0x48] sm:$0xf]
  %v316 = vld [vmem:[%s6 + $0x4c] sm:$0xf]
  %v317 = vld [vmem:[%s6 + $0x50] sm:$0xf]
  %v318 = vld [vmem:[%s6 + $0x54] sm:$0xf]
  %v319 = vld [vmem:[%s6 + $0x58] sm:$0xf]
  %v320 = vld [vmem:[%s6 + $0x5c] sm:$0xf]
  %v321 = vld [vmem:[%s6 + $0x60] sm:$0xf]
  %v322 = vld [vmem:[%s6 + $0x64] sm:$0xf]
  %v323 = vld [vmem:[%s6 + $0x68] sm:$0xf]
  %v324 = vld [vmem:[%s6 + $0x6c] sm:$0xf]
  %v325 = vld [vmem:[%s6 + $0x70] sm:$0xf]
  %v326 = vld [vmem:[%s6 + $0x74] sm:$0xf]
  %v327 = vld [vmem:[%s6 + $0x78] sm:$0xf]
  %v328 = vld [vmem:[%s6 + $0x7c] sm:$0xf]
  %v329 = vld [vmem:[%s2] sm:$0xf]
  %v330 = vld [vmem:[%s2 + $0x4] sm:$0xf]
  %v331 = vld [vmem:[%s2 + $0x8] sm:$0xf]
  %v332 = vld [vmem:[%s2 + $0xc] sm:$0xf]
  %v333 = vld [vmem:[%s2 + $0x10] sm:$0xf]
  %v334 = vld [vmem:[%s2 + $0x14] sm:$0xf]
  %v335 = vld [vmem:[%s2 + $0x18] sm:$0xf]
  %v336 = vld [vmem:[%s2 + $0x1c] sm:$0xf]
  %v337 = vld [vmem:[%s2 + $0x20] sm:$0xf]
  %v338 = vld [vmem:[%s2 + $0x24] sm:$0xf]
  %v339 = vld [vmem:[%s2 + $0x28] sm:$0xf]
  %v340 = vld [vmem:[%s2 + $0x2c] sm:$0xf]
  %v341 = vld [vmem:[%s2 + $0x30] sm:$0xf]
  %v342 = vld [vmem:[%s2 + $0x34] sm:$0xf]
  %v343 = vld [vmem:[%s2 + $0x38] sm:$0xf]
  %v344 = vld [vmem:[%s2 + $0x3c] sm:$0xf]
  %v345 = vld [vmem:[%s2 + $0x40] sm:$0xf]
  %v346 = vld [vmem:[%s2 + $0x44] sm:$0xf]
  %v347 = vld [vmem:[%s2 + $0x48] sm:$0xf]
  %v348 = vld [vmem:[%s2 + $0x4c] sm:$0xf]
  %v349 = vld [vmem:[%s2 + $0x50] sm:$0xf]
  %v350 = vld [vmem:[%s2 + $0x54] sm:$0xf]
  %v351 = vld [vmem:[%s2 + $0x58] sm:$0xf]
  %v352 = vld [vmem:[%s2 + $0x5c] sm:$0xf]
  %v353 = vld [vmem:[%s2 + $0x60] sm:$0xf]
  %v354 = vld [vmem:[%s2 + $0x64] sm:$0xf]
  %v355 = vld [vmem:[%s2 + $0x68] sm:$0xf]
  %v356 = vld [vmem:[%s2 + $0x6c] sm:$0xf]
  %v357 = vld [vmem:[%s2 + $0x70] sm:$0xf]
  %v358 = vld [vmem:[%s2 + $0x74] sm:$0xf]
  %v359 = vld [vmem:[%s2 + $0x78] sm:$0xf]
  %v360 = vld [vmem:[%s2 + $0x7c] sm:$0xf]
  %v361 = vld [vmem:[%s3] sm:$0xf]
  %v362 = vld [vmem:[%s3 + $0x4] sm:$0xf]
  %v363 = vld [vmem:[%s3 + $0x8] sm:$0xf]
  %v364 = vld [vmem:[%s3 + $0xc] sm:$0xf]
  %v365 = vld [vmem:[%s3 + $0x10] sm:$0xf]
  %v366 = vld [vmem:[%s3 + $0x14] sm:$0xf]
  %v367 = vld [vmem:[%s3 + $0x18] sm:$0xf]
  %v368 = vld [vmem:[%s3 + $0x1c] sm:$0xf]
  %v369 = vld [vmem:[%s3 + $0x20] sm:$0xf]
  %v370 = vld [vmem:[%s3 + $0x24] sm:$0xf]
  %v371 = vld [vmem:[%s3 + $0x28] sm:$0xf]
  %v372 = vld [vmem:[%s3 + $0x2c] sm:$0xf]
  %v373 = vld [vmem:[%s3 + $0x30] sm:$0xf]
  %v374 = vld [vmem:[%s3 + $0x34] sm:$0xf]
  %v375 = vld [vmem:[%s3 + $0x38] sm:$0xf]
  %v376 = vld [vmem:[%s3 + $0x3c] sm:$0xf]
  %v377 = vld [vmem:[%s3 + $0x40] sm:$0xf]
  %v378 = vld [vmem:[%s3 + $0x44] sm:$0xf]
  %v379 = vld [vmem:[%s3 + $0x48] sm:$0xf]
  %v380 = vld [vmem:[%s3 + $0x4c] sm:$0xf]
  %v381 = vld [vmem:[%s3 + $0x50] sm:$0xf]
  %v382 = vld [vmem:[%s3 + $0x54] sm:$0xf]
  %v383 = vld [vmem:[%s3 + $0x58] sm:$0xf]
  %v384 = vld [vmem:[%s3 + $0x5c] sm:$0xf]
  %v385 = vld [vmem:[%s3 + $0x60] sm:$0xf]
  %v386 = vld [vmem:[%s3 + $0x64] sm:$0xf]
  %v387 = vld [vmem:[%s3 + $0x68] sm:$0xf]
  %v388 = vld [vmem:[%s3 + $0x6c] sm:$0xf]
  %v389 = vld [vmem:[%s3 + $0x70] sm:$0xf]
  %v390 = vld [vmem:[%s3 + $0x74] sm:$0xf]
  %v391 = vld [vmem:[%s3 + $0x78] sm:$0xf]
  %v392 = vld [vmem:[%s3 + $0x7c] sm:$0xf]
  %v425 = vunpack.c.l.b16 %v329
  %v426 = vunpack.c.l.b16 %v330
  %v427 = vunpack.c.l.b16 %v331
  %v428 = vunpack.c.l.b16 %v332
  %v429 = vunpack.c.l.b16 %v333
  %v430 = vunpack.c.l.b16 %v334
  %v431 = vunpack.c.l.b16 %v335
  %v432 = vunpack.c.l.b16 %v336
  %v433 = vunpack.c.l.b16 %v337
  %v434 = vunpack.c.l.b16 %v338
  %v435 = vunpack.c.l.b16 %v339
  %v436 = vunpack.c.l.b16 %v340
  %v437 = vunpack.c.l.b16 %v341
  %v438 = vunpack.c.l.b16 %v342
  %v439 = vunpack.c.l.b16 %v343
  %v440 = vunpack.c.l.b16 %v344
  %v441 = vunpack.c.l.b16 %v345
  %v442 = vunpack.c.l.b16 %v346
  %v443 = vunpack.c.l.b16 %v347
  %v444 = vunpack.c.l.b16 %v348
  %v445 = vunpack.c.l.b16 %v349
  %v446 = vunpack.c.l.b16 %v350
  %v447 = vunpack.c.l.b16 %v351
  %v448 = vunpack.c.l.b16 %v352
  %v449 = vunpack.c.l.b16 %v353
  %v450 = vunpack.c.l.b16 %v354
  %v451 = vunpack.c.l.b16 %v355
  %v452 = vunpack.c.l.b16 %v356
  %v453 = vunpack.c.l.b16 %v357
  %v454 = vunpack.c.l.b16 %v358
  %v455 = vunpack.c.l.b16 %v359
  %v456 = vunpack.c.l.b16 %v360
  %v457 = vpack.c.b16 %v426, %v425
  %v458 = vpack.c.b16 %v428, %v427
  %v459 = vpack.c.b16 %v430, %v429
  %v460 = vpack.c.b16 %v432, %v431
  %v461 = vpack.c.b16 %v434, %v433
  %v462 = vpack.c.b16 %v436, %v435
  %v463 = vpack.c.b16 %v438, %v437
  %v464 = vpack.c.b16 %v440, %v439
  %v465 = vpack.c.b16 %v442, %v441
  %v466 = vpack.c.b16 %v444, %v443
  %v467 = vpack.c.b16 %v446, %v445
  %v468 = vpack.c.b16 %v448, %v447
  %v469 = vpack.c.b16 %v450, %v449
  %v470 = vpack.c.b16 %v452, %v451
  %v471 = vpack.c.b16 %v454, %v453
  %v472 = vpack.c.b16 %v456, %v455
  %v521 = vunpack.c.l.b16 %v361
  %v522 = vunpack.c.l.b16 %v362
  %v523 = vunpack.c.l.b16 %v363
  %v524 = vunpack.c.l.b16 %v364
  %v525 = vunpack.c.l.b16 %v365
  %v526 = vunpack.c.l.b16 %v366
  %v527 = vunpack.c.l.b16 %v367
  %v528 = vunpack.c.l.b16 %v368
  %v529 = vunpack.c.l.b16 %v369
  %v530 = vunpack.c.l.b16 %v370
  %v531 = vunpack.c.l.b16 %v371
  %v532 = vunpack.c.l.b16 %v372
  %v533 = vunpack.c.l.b16 %v373
  %v534 = vunpack.c.l.b16 %v374
  %v535 = vunpack.c.l.b16 %v375
  %v536 = vunpack.c.l.b16 %v376
  %v537 = vunpack.c.l.b16 %v377
  %v538 = vunpack.c.l.b16 %v378
  %v539 = vunpack.c.l.b16 %v379
  %v540 = vunpack.c.l.b16 %v380
  %v541 = vunpack.c.l.b16 %v381
  %v542 = vunpack.c.l.b16 %v382
  %v543 = vunpack.c.l.b16 %v383
  %v544 = vunpack.c.l.b16 %v384
  %v545 = vunpack.c.l.b16 %v385
  %v546 = vunpack.c.l.b16 %v386
  %v547 = vunpack.c.l.b16 %v387
  %v548 = vunpack.c.l.b16 %v388
  %v549 = vunpack.c.l.b16 %v389
  %v550 = vunpack.c.l.b16 %v390
  %v551 = vunpack.c.l.b16 %v391
  %v552 = vunpack.c.l.b16 %v392
  %v553 = vpack.c.b16 %v522, %v521
  %v554 = vpack.c.b16 %v524, %v523
  %v555 = vpack.c.b16 %v526, %v525
  %v556 = vpack.c.b16 %v528, %v527
  %v557 = vpack.c.b16 %v530, %v529
  %v558 = vpack.c.b16 %v532, %v531
  %v559 = vpack.c.b16 %v534, %v533
  %v560 = vpack.c.b16 %v536, %v535
  %v561 = vpack.c.b16 %v538, %v537
  %v562 = vpack.c.b16 %v540, %v539
  %v563 = vpack.c.b16 %v542, %v541
  %v564 = vpack.c.b16 %v544, %v543
  %v565 = vpack.c.b16 %v546, %v545
  %v566 = vpack.c.b16 %v548, %v547
  %v567 = vpack.c.b16 %v550, %v549
  %v568 = vpack.c.b16 %v552, %v551
  %v585 = vld [vmem:[%s6 + $0x80] sm:$0xf]
  %v586 = vld [vmem:[%s6 + $0x84] sm:$0xf]
  %v587 = vld [vmem:[%s6 + $0x88] sm:$0xf]
  %v588 = vld [vmem:[%s6 + $0x8c] sm:$0xf]
  %v589 = vld [vmem:[%s6 + $0x90] sm:$0xf]
  %v590 = vld [vmem:[%s6 + $0x94] sm:$0xf]
  %v591 = vld [vmem:[%s6 + $0x98] sm:$0xf]
  %v592 = vld [vmem:[%s6 + $0x9c] sm:$0xf]
  %v593 = vld [vmem:[%s6 + $0xa0] sm:$0xf]
  %v594 = vld [vmem:[%s6 + $0xa4] sm:$0xf]
  %v595 = vld [vmem:[%s6 + $0xa8] sm:$0xf]
  %v596 = vld [vmem:[%s6 + $0xac] sm:$0xf]
  %v597 = vld [vmem:[%s6 + $0xb0] sm:$0xf]
  %v598 = vld [vmem:[%s6 + $0xb4] sm:$0xf]
  %v599 = vld [vmem:[%s6 + $0xb8] sm:$0xf]
  %v600 = vld [vmem:[%s6 + $0xbc] sm:$0xf]
  %v601 = vld [vmem:[%s6 + $0xc0] sm:$0xf]
  %v602 = vld [vmem:[%s6 + $0xc4] sm:$0xf]
  %v603 = vld [vmem:[%s6 + $0xc8] sm:$0xf]
  %v604 = vld [vmem:[%s6 + $0xcc] sm:$0xf]
  %v605 = vld [vmem:[%s6 + $0xd0] sm:$0xf]
  %v606 = vld [vmem:[%s6 + $0xd4] sm:$0xf]
  %v607 = vld [vmem:[%s6 + $0xd8] sm:$0xf]
  %v608 = vld [vmem:[%s6 + $0xdc] sm:$0xf]
  %v609 = vld [vmem:[%s6 + $0xe0] sm:$0xf]
  %v610 = vld [vmem:[%s6 + $0xe4] sm:$0xf]
  %v611 = vld [vmem:[%s6 + $0xe8] sm:$0xf]
  %v612 = vld [vmem:[%s6 + $0xec] sm:$0xf]
  %v613 = vld [vmem:[%s6 + $0xf0] sm:$0xf]
  %v614 = vld [vmem:[%s6 + $0xf4] sm:$0xf]
  %v615 = vld [vmem:[%s6 + $0xf8] sm:$0xf]
  %v616 = vld [vmem:[%s6 + $0xfc] sm:$0xf]
  %v649 = vunpack.c.l.b16 %v585
  %v650 = vunpack.c.l.b16 %v586
  %v651 = vunpack.c.l.b16 %v587
  %v652 = vunpack.c.l.b16 %v588
  %v653 = vunpack.c.l.b16 %v589
  %v654 = vunpack.c.l.b16 %v590
  %v655 = vunpack.c.l.b16 %v591
  %v656 = vunpack.c.l.b16 %v592
  %v657 = vunpack.c.l.b16 %v593
  %v658 = vunpack.c.l.b16 %v594
  %v659 = vunpack.c.l.b16 %v595
  %v660 = vunpack.c.l.b16 %v596
  %v661 = vunpack.c.l.b16 %v597
  %v662 = vunpack.c.l.b16 %v598
  %v663 = vunpack.c.l.b16 %v599
  %v664 = vunpack.c.l.b16 %v600
  %v665 = vunpack.c.l.b16 %v601
  %v666 = vunpack.c.l.b16 %v602
  %v667 = vunpack.c.l.b16 %v603
  %v668 = vunpack.c.l.b16 %v604
  %v669 = vunpack.c.l.b16 %v605
  %v670 = vunpack.c.l.b16 %v606
  %v671 = vunpack.c.l.b16 %v607
  %v672 = vunpack.c.l.b16 %v608
  %v673 = vunpack.c.l.b16 %v609
  %v674 = vunpack.c.l.b16 %v610
  %v675 = vunpack.c.l.b16 %v611
  %v676 = vunpack.c.l.b16 %v612
  %v677 = vunpack.c.l.b16 %v613
  %v678 = vunpack.c.l.b16 %v614
  %v679 = vunpack.c.l.b16 %v615
  %v680 = vunpack.c.l.b16 %v616
  %v681 = vpack.c.b16 %v650, %v649
  %v682 = vpack.c.b16 %v652, %v651
  %v683 = vpack.c.b16 %v654, %v653
  %v684 = vpack.c.b16 %v656, %v655
  %v685 = vpack.c.b16 %v658, %v657
  %v686 = vpack.c.b16 %v660, %v659
  %v687 = vpack.c.b16 %v662, %v661
  %v688 = vpack.c.b16 %v664, %v663
  %v689 = vpack.c.b16 %v666, %v665
  %v690 = vpack.c.b16 %v668, %v667
  %v691 = vpack.c.b16 %v670, %v669
  %v692 = vpack.c.b16 %v672, %v671
  %v693 = vpack.c.b16 %v674, %v673
  %v694 = vpack.c.b16 %v676, %v675
  %v695 = vpack.c.b16 %v678, %v677
  %v696 = vpack.c.b16 %v680, %v679
  %713 = vmatpush.bf16.msra.mxu0 %v688
  %714 = vmatpush.bf16.msra.mxu0 %v687
  %715 = vmatpush.bf16.msra.mxu0 %v686
  %716 = vmatpush.bf16.msra.mxu0 %v685
  %717 = vmatpush.bf16.msra.mxu0 %v684
  %718 = vmatpush.bf16.msra.mxu0 %v683
  %719 = vmatpush.bf16.msra.mxu0 %v682
  %720 = vmatpush.bf16.msra.mxu0 %v681
  %721 = vmatmul.bf16.gmra.mxu0 %v457
  %v722 = vpop.f32.mrf.mxu0
  %v723 = vadd.f32 0.0, %v722
  %v724 = vpop.f32.mrf.mxu0
  %v725 = vadd.f32 0.0, %v724
  %726 = vmatmul.bf16.gmra.mxu0 %v458
  %v727 = vpop.f32.mrf.mxu0
  %v728 = vadd.f32 0.0, %v727
  %v729 = vpop.f32.mrf.mxu0
  %v730 = vadd.f32 0.0, %v729
  %731 = vmatmul.bf16.gmra.mxu0 %v459
  %v732 = vpop.f32.mrf.mxu0
  %v733 = vadd.f32 0.0, %v732
  %v734 = vpop.f32.mrf.mxu0
  %v735 = vadd.f32 0.0, %v734
  %736 = vmatmul.bf16.gmra.mxu0 %v460
  %v737 = vpop.f32.mrf.mxu0
  %v738 = vadd.f32 0.0, %v737
  %v739 = vpop.f32.mrf.mxu0
  %v740 = vadd.f32 0.0, %v739
  %741 = vmatmul.bf16.gmra.mxu0 %v461
  %v742 = vpop.f32.mrf.mxu0
  %v743 = vadd.f32 0.0, %v742
  %v744 = vpop.f32.mrf.mxu0
  %v745 = vadd.f32 0.0, %v744
  %746 = vmatmul.bf16.gmra.mxu0 %v462
  %v747 = vpop.f32.mrf.mxu0
  %v748 = vadd.f32 0.0, %v747
  %v749 = vpop.f32.mrf.mxu0
  %v750 = vadd.f32 0.0, %v749
  %751 = vmatmul.bf16.gmra.mxu0 %v463
  %v752 = vpop.f32.mrf.mxu0
  %v753 = vadd.f32 0.0, %v752
  %v754 = vpop.f32.mrf.mxu0
  %v755 = vadd.f32 0.0, %v754
  %756 = vmatmul.bf16.gmra.mxu0 %v464
  %v757 = vpop.f32.mrf.mxu0
  %v758 = vadd.f32 0.0, %v757
  %v759 = vpop.f32.mrf.mxu0
  %v760 = vadd.f32 0.0, %v759
  %761 = vmatmul.bf16.gmra.mxu0 %v465
  %v762 = vpop.f32.mrf.mxu0
  %v763 = vadd.f32 0.0, %v762
  %v764 = vpop.f32.mrf.mxu0
  %v765 = vadd.f32 0.0, %v764
  %766 = vmatmul.bf16.gmra.mxu0 %v466
  %v767 = vpop.f32.mrf.mxu0
  %v768 = vadd.f32 0.0, %v767
  %v769 = vpop.f32.mrf.mxu0
  %v770 = vadd.f32 0.0, %v769
  %771 = vmatmul.bf16.gmra.mxu0 %v467
  %v772 = vpop.f32.mrf.mxu0
  %v773 = vadd.f32 0.0, %v772
  %v774 = vpop.f32.mrf.mxu0
  %v775 = vadd.f32 0.0, %v774
  %776 = vmatmul.bf16.gmra.mxu0 %v468
  %v777 = vpop.f32.mrf.mxu0
  %v778 = vadd.f32 0.0, %v777
  %v779 = vpop.f32.mrf.mxu0
  %v780 = vadd.f32 0.0, %v779
  %781 = vmatmul.bf16.gmra.mxu0 %v469
  %v782 = vpop.f32.mrf.mxu0
  %v783 = vadd.f32 0.0, %v782
  %v784 = vpop.f32.mrf.mxu0
  %v785 = vadd.f32 0.0, %v784
  %786 = vmatmul.bf16.gmra.mxu0 %v470
  %v787 = vpop.f32.mrf.mxu0
  %v788 = vadd.f32 0.0, %v787
  %v789 = vpop.f32.mrf.mxu0
  %v790 = vadd.f32 0.0, %v789
  %791 = vmatmul.bf16.gmra.mxu0 %v471
  %v792 = vpop.f32.mrf.mxu0
  %v793 = vadd.f32 0.0, %v792
  %v794 = vpop.f32.mrf.mxu0
  %v795 = vadd.f32 0.0, %v794
  %796 = vmatmul.bf16.gmra.mxu0 %v472
  %v797 = vpop.f32.mrf.mxu0
  %v798 = vadd.f32 0.0, %v797
  %v799 = vpop.f32.mrf.mxu0
  %v800 = vadd.f32 0.0, %v799
  %801 = vdwg.mxu0
  %802 = vmatpush.bf16.msra.mxu0 %v696
  %803 = vmatpush.bf16.msra.mxu0 %v695
  %804 = vmatpush.bf16.msra.mxu0 %v694
  %805 = vmatpush.bf16.msra.mxu0 %v693
  %806 = vmatpush.bf16.msra.mxu0 %v692
  %807 = vmatpush.bf16.msra.mxu0 %v691
  %808 = vmatpush.bf16.msra.mxu0 %v690
  %809 = vmatpush.bf16.msra.mxu0 %v689
  %810 = vmatmul.bf16.gmra.mxu0 %v553
  %v811 = vpop.f32.mrf.mxu0
  %v812 = vadd.f32 %v723, %v811
  %v813 = vpop.f32.mrf.mxu0
  %v814 = vadd.f32 %v725, %v813
  %815 = vmatmul.bf16.gmra.mxu0 %v554
  %v816 = vpop.f32.mrf.mxu0
  %v817 = vadd.f32 %v728, %v816
  %v818 = vpop.f32.mrf.mxu0
  %v819 = vadd.f32 %v730, %v818
  %820 = vmatmul.bf16.gmra.mxu0 %v555
  %v821 = vpop.f32.mrf.mxu0
  %v822 = vadd.f32 %v733, %v821
  %v823 = vpop.f32.mrf.mxu0
  %v824 = vadd.f32 %v735, %v823
  %825 = vmatmul.bf16.gmra.mxu0 %v556
  %v826 = vpop.f32.mrf.mxu0
  %v827 = vadd.f32 %v738, %v826
  %v828 = vpop.f32.mrf.mxu0
  %v829 = vadd.f32 %v740, %v828
  %830 = vmatmul.bf16.gmra.mxu0 %v557
  %v831 = vpop.f32.mrf.mxu0
  %v832 = vadd.f32 %v743, %v831
  %v833 = vpop.f32.mrf.mxu0
  %v834 = vadd.f32 %v745, %v833
  %835 = vmatmul.bf16.gmra.mxu0 %v558
  %v836 = vpop.f32.mrf.mxu0
  %v837 = vadd.f32 %v748, %v836
  %v838 = vpop.f32.mrf.mxu0
  %v839 = vadd.f32 %v750, %v838
  %840 = vmatmul.bf16.gmra.mxu0 %v559
  %v841 = vpop.f32.mrf.mxu0
  %v842 = vadd.f32 %v753, %v841
  %v843 = vpop.f32.mrf.mxu0
  %v844 = vadd.f32 %v755, %v843
  %845 = vmatmul.bf16.gmra.mxu0 %v560
  %v846 = vpop.f32.mrf.mxu0
  %v847 = vadd.f32 %v758, %v846
  %v848 = vpop.f32.mrf.mxu0
  %v849 = vadd.f32 %v760, %v848
  %850 = vmatmul.bf16.gmra.mxu0 %v561
  %v851 = vpop.f32.mrf.mxu0
  %v852 = vadd.f32 %v763, %v851
  %v853 = vpop.f32.mrf.mxu0
  %v854 = vadd.f32 %v765, %v853
  %855 = vmatmul.bf16.gmra.mxu0 %v562
  %v856 = vpop.f32.mrf.mxu0
  %v857 = vadd.f32 %v768, %v856
  %v858 = vpop.f32.mrf.mxu0
  %v859 = vadd.f32 %v770, %v858
  %860 = vmatmul.bf16.gmra.mxu0 %v563
  %v861 = vpop.f32.mrf.mxu0
  %v862 = vadd.f32 %v773, %v861
  %v863 = vpop.f32.mrf.mxu0
  %v864 = vadd.f32 %v775, %v863
  %865 = vmatmul.bf16.gmra.mxu0 %v564
  %v866 = vpop.f32.mrf.mxu0
  %v867 = vadd.f32 %v778, %v866
  %v868 = vpop.f32.mrf.mxu0
  %v869 = vadd.f32 %v780, %v868
  %870 = vmatmul.bf16.gmra.mxu0 %v565
  %v871 = vpop.f32.mrf.mxu0
  %v872 = vadd.f32 %v783, %v871
  %v873 = vpop.f32.mrf.mxu0
  %v874 = vadd.f32 %v785, %v873
  %875 = vmatmul.bf16.gmra.mxu0 %v566
  %v876 = vpop.f32.mrf.mxu0
  %v877 = vadd.f32 %v788, %v876
  %v878 = vpop.f32.mrf.mxu0
  %v879 = vadd.f32 %v790, %v878
  %880 = vmatmul.bf16.gmra.mxu0 %v567
  %v881 = vpop.f32.mrf.mxu0
  %v882 = vadd.f32 %v793, %v881
  %v883 = vpop.f32.mrf.mxu0
  %v884 = vadd.f32 %v795, %v883
  %885 = vmatmul.bf16.gmra.mxu0 %v568
  %v886 = vpop.f32.mrf.mxu0
  %v887 = vadd.f32 %v798, %v886
  %v888 = vpop.f32.mrf.mxu0
  %v889 = vadd.f32 %v800, %v888
  %890 = vdwg.mxu0
  %v923 = vunpack.c.l.b16 %v297
  %v924 = vunpack.c.l.b16 %v298
  %v925 = vunpack.c.l.b16 %v299
  %v926 = vunpack.c.l.b16 %v300
  %v927 = vunpack.c.l.b16 %v301
  %v928 = vunpack.c.l.b16 %v302
  %v929 = vunpack.c.l.b16 %v303
  %v930 = vunpack.c.l.b16 %v304
  %v931 = vunpack.c.l.b16 %v305
  %v932 = vunpack.c.l.b16 %v306
  %v933 = vunpack.c.l.b16 %v307
  %v934 = vunpack.c.l.b16 %v308
  %v935 = vunpack.c.l.b16 %v309
  %v936 = vunpack.c.l.b16 %v310
  %v937 = vunpack.c.l.b16 %v311
  %v938 = vunpack.c.l.b16 %v312
  %v939 = vunpack.c.l.b16 %v313
  %v940 = vunpack.c.l.b16 %v314
  %v941 = vunpack.c.l.b16 %v315
  %v942 = vunpack.c.l.b16 %v316
  %v943 = vunpack.c.l.b16 %v317
  %v944 = vunpack.c.l.b16 %v318
  %v945 = vunpack.c.l.b16 %v319
  %v946 = vunpack.c.l.b16 %v320
  %v947 = vunpack.c.l.b16 %v321
  %v948 = vunpack.c.l.b16 %v322
  %v949 = vunpack.c.l.b16 %v323
  %v950 = vunpack.c.l.b16 %v324
  %v951 = vunpack.c.l.b16 %v325
  %v952 = vunpack.c.l.b16 %v326
  %v953 = vunpack.c.l.b16 %v327
  %v954 = vunpack.c.l.b16 %v328
  %v955 = vpack.c.b16 %v924, %v923
  %v956 = vpack.c.b16 %v926, %v925
  %v957 = vpack.c.b16 %v928, %v927
  %v958 = vpack.c.b16 %v930, %v929
  %v959 = vpack.c.b16 %v932, %v931
  %v960 = vpack.c.b16 %v934, %v933
  %v961 = vpack.c.b16 %v936, %v935
  %v962 = vpack.c.b16 %v938, %v937
  %v963 = vpack.c.b16 %v940, %v939
  %v964 = vpack.c.b16 %v942, %v941
  %v965 = vpack.c.b16 %v944, %v943
  %v966 = vpack.c.b16 %v946, %v945
  %v967 = vpack.c.b16 %v948, %v947
  %v968 = vpack.c.b16 %v950, %v949
  %v969 = vpack.c.b16 %v952, %v951
  %v970 = vpack.c.b16 %v954, %v953
  %987 = vmatpush.bf16.msra.mxu0 %v962
  %988 = vmatpush.bf16.msra.mxu0 %v961
  %989 = vmatpush.bf16.msra.mxu0 %v960
  %990 = vmatpush.bf16.msra.mxu0 %v959
  %991 = vmatpush.bf16.msra.mxu0 %v958
  %992 = vmatpush.bf16.msra.mxu0 %v957
  %993 = vmatpush.bf16.msra.mxu0 %v956
  %994 = vmatpush.bf16.msra.mxu0 %v955
  %995 = vmatmul.bf16.gmra.mxu0 %v169
  %v996 = vpop.f32.mrf.mxu0
  %v997 = vadd.f32 %v812, %v996
  %v998 = vpop.f32.mrf.mxu0
  %v999 = vadd.f32 %v814, %v998
  %1000 = vmatmul.bf16.gmra.mxu0 %v170
  %v1001 = vpop.f32.mrf.mxu0
  %v1002 = vadd.f32 %v817, %v1001
  %v1003 = vpop.f32.mrf.mxu0
  %v1004 = vadd.f32 %v819, %v1003
  %1005 = vmatmul.bf16.gmra.mxu0 %v171
  %v1006 = vpop.f32.mrf.mxu0
  %v1007 = vadd.f32 %v822, %v1006
  %v1008 = vpop.f32.mrf.mxu0
  %v1009 = vadd.f32 %v824, %v1008
  %1010 = vmatmul.bf16.gmra.mxu0 %v172
  %v1011 = vpop.f32.mrf.mxu0
  %v1012 = vadd.f32 %v827, %v1011
  %v1013 = vpop.f32.mrf.mxu0
  %v1014 = vadd.f32 %v829, %v1013
  %1015 = vmatmul.bf16.gmra.mxu0 %v173
  %v1016 = vpop.f32.mrf.mxu0
  %v1017 = vadd.f32 %v832, %v1016
  %v1018 = vpop.f32.mrf.mxu0
  %v1019 = vadd.f32 %v834, %v1018
  %1020 = vmatmul.bf16.gmra.mxu0 %v174
  %v1021 = vpop.f32.mrf.mxu0
  %v1022 = vadd.f32 %v837, %v1021
  %v1023 = vpop.f32.mrf.mxu0
  %v1024 = vadd.f32 %v839, %v1023
  %1025 = vmatmul.bf16.gmra.mxu0 %v175
  %v1026 = vpop.f32.mrf.mxu0
  %v1027 = vadd.f32 %v842, %v1026
  %v1028 = vpop.f32.mrf.mxu0
  %v1029 = vadd.f32 %v844, %v1028
  %1030 = vmatmul.bf16.gmra.mxu0 %v176
  %v1031 = vpop.f32.mrf.mxu0
  %v1032 = vadd.f32 %v847, %v1031
  %v1033 = vpop.f32.mrf.mxu0
  %v1034 = vadd.f32 %v849, %v1033
  %1035 = vmatmul.bf16.gmra.mxu0 %v177
  %v1036 = vpop.f32.mrf.mxu0
  %v1037 = vadd.f32 %v852, %v1036
  %v1038 = vpop.f32.mrf.mxu0
  %v1039 = vadd.f32 %v854, %v1038
  %1040 = vmatmul.bf16.gmra.mxu0 %v178
  %v1041 = vpop.f32.mrf.mxu0
  %v1042 = vadd.f32 %v857, %v1041
  %v1043 = vpop.f32.mrf.mxu0
  %v1044 = vadd.f32 %v859, %v1043
  %1045 = vmatmul.bf16.gmra.mxu0 %v179
  %v1046 = vpop.f32.mrf.mxu0
  %v1047 = vadd.f32 %v862, %v1046
  %v1048 = vpop.f32.mrf.mxu0
  %v1049 = vadd.f32 %v864, %v1048
  %1050 = vmatmul.bf16.gmra.mxu0 %v180
  %v1051 = vpop.f32.mrf.mxu0
  %v1052 = vadd.f32 %v867, %v1051
  %v1053 = vpop.f32.mrf.mxu0
  %v1054 = vadd.f32 %v869, %v1053
  %1055 = vmatmul.bf16.gmra.mxu0 %v181
  %v1056 = vpop.f32.mrf.mxu0
  %v1057 = vadd.f32 %v872, %v1056
  %v1058 = vpop.f32.mrf.mxu0
  %v1059 = vadd.f32 %v874, %v1058
  %1060 = vmatmul.bf16.gmra.mxu0 %v182
  %v1061 = vpop.f32.mrf.mxu0
  %v1062 = vadd.f32 %v877, %v1061
  %v1063 = vpop.f32.mrf.mxu0
  %v1064 = vadd.f32 %v879, %v1063
  %1065 = vmatmul.bf16.gmra.mxu0 %v183
  %v1066 = vpop.f32.mrf.mxu0
  %v1067 = vadd.f32 %v882, %v1066
  %v1068 = vpop.f32.mrf.mxu0
  %v1069 = vadd.f32 %v884, %v1068
  %1070 = vmatmul.bf16.gmra.mxu0 %v184
  %v1071 = vpop.f32.mrf.mxu0
  %v1072 = vadd.f32 %v887, %v1071
  %v1073 = vpop.f32.mrf.mxu0
  %v1074 = vadd.f32 %v889, %v1073
  %1075 = vdwg.mxu0
  %1076 = vmatpush.bf16.msra.mxu0 %v970
  %1077 = vmatpush.bf16.msra.mxu0 %v969
  %1078 = vmatpush.bf16.msra.mxu0 %v968
  %1079 = vmatpush.bf16.msra.mxu0 %v967
  %1080 = vmatpush.bf16.msra.mxu0 %v966
  %1081 = vmatpush.bf16.msra.mxu0 %v965
  %1082 = vmatpush.bf16.msra.mxu0 %v964
  %1083 = vmatpush.bf16.msra.mxu0 %v963
  %1084 = vmatmul.bf16.gmra.mxu0 %v265
  %v1085 = vpop.f32.mrf.mxu0
  %v1086 = vadd.f32 %v997, %v1085
  %v1087 = vpop.f32.mrf.mxu0
  %v1088 = vadd.f32 %v999, %v1087
  %1089 = vmatmul.bf16.gmra.mxu0 %v266
  %v1090 = vpop.f32.mrf.mxu0
  %v1091 = vadd.f32 %v1002, %v1090
  %v1092 = vpop.f32.mrf.mxu0
  %v1093 = vadd.f32 %v1004, %v1092
  %1094 = vmatmul.bf16.gmra.mxu0 %v267
  %v1095 = vpop.f32.mrf.mxu0
  %v1096 = vadd.f32 %v1007, %v1095
  %v1097 = vpop.f32.mrf.mxu0
  %v1098 = vadd.f32 %v1009, %v1097
  %1099 = vmatmul.bf16.gmra.mxu0 %v268
  %v1100 = vpop.f32.mrf.mxu0
  %v1101 = vadd.f32 %v1012, %v1100
  %v1102 = vpop.f32.mrf.mxu0
  %v1103 = vadd.f32 %v1014, %v1102
  %1104 = vmatmul.bf16.gmra.mxu0 %v269
  %v1105 = vpop.f32.mrf.mxu0
  %v1106 = vadd.f32 %v1017, %v1105
  %v1107 = vpop.f32.mrf.mxu0
  %v1108 = vadd.f32 %v1019, %v1107
  %1109 = vmatmul.bf16.gmra.mxu0 %v270
  %v1110 = vpop.f32.mrf.mxu0
  %v1111 = vadd.f32 %v1022, %v1110
  %v1112 = vpop.f32.mrf.mxu0
  %v1113 = vadd.f32 %v1024, %v1112
  %1114 = vmatmul.bf16.gmra.mxu0 %v271
  %v1115 = vpop.f32.mrf.mxu0
  %v1116 = vadd.f32 %v1027, %v1115
  %v1117 = vpop.f32.mrf.mxu0
  %v1118 = vadd.f32 %v1029, %v1117
  %1119 = vmatmul.bf16.gmra.mxu0 %v272
  %v1120 = vpop.f32.mrf.mxu0
  %v1121 = vadd.f32 %v1032, %v1120
  %v1122 = vpop.f32.mrf.mxu0
  %v1123 = vadd.f32 %v1034, %v1122
  %1124 = vmatmul.bf16.gmra.mxu0 %v273
  %v1125 = vpop.f32.mrf.mxu0
  %v1126 = vadd.f32 %v1037, %v1125
  %v1127 = vpop.f32.mrf.mxu0
  %v1128 = vadd.f32 %v1039, %v1127
  %1129 = vmatmul.bf16.gmra.mxu0 %v274
  %v1130 = vpop.f32.mrf.mxu0
  %v1131 = vadd.f32 %v1042, %v1130
  %v1132 = vpop.f32.mrf.mxu0
  %v1133 = vadd.f32 %v1044, %v1132
  %1134 = vmatmul.bf16.gmra.mxu0 %v275
  %v1135 = vpop.f32.mrf.mxu0
  %v1136 = vadd.f32 %v1047, %v1135
  %v1137 = vpop.f32.mrf.mxu0
  %v1138 = vadd.f32 %v1049, %v1137
  %1139 = vmatmul.bf16.gmra.mxu0 %v276
  %v1140 = vpop.f32.mrf.mxu0
  %v1141 = vadd.f32 %v1052, %v1140
  %v1142 = vpop.f32.mrf.mxu0
  %v1143 = vadd.f32 %v1054, %v1142
  %1144 = vmatmul.bf16.gmra.mxu0 %v277
  %v1145 = vpop.f32.mrf.mxu0
  %v1146 = vadd.f32 %v1057, %v1145
  %v1147 = vpop.f32.mrf.mxu0
  %v1148 = vadd.f32 %v1059, %v1147
  %1149 = vmatmul.bf16.gmra.mxu0 %v278
  %v1150 = vpop.f32.mrf.mxu0
  %v1151 = vadd.f32 %v1062, %v1150
  %v1152 = vpop.f32.mrf.mxu0
  %v1153 = vadd.f32 %v1064, %v1152
  %1154 = vmatmul.bf16.gmra.mxu0 %v279
  %v1155 = vpop.f32.mrf.mxu0
  %v1156 = vadd.f32 %v1067, %v1155
  %v1157 = vpop.f32.mrf.mxu0
  %v1158 = vadd.f32 %v1069, %v1157
  %1159 = vmatmul.bf16.gmra.mxu0 %v280
  %v1160 = vpop.f32.mrf.mxu0
  %v1161 = vadd.f32 %v1072, %v1160
  %v1162 = vpop.f32.mrf.mxu0
  %v1163 = vadd.f32 %v1074, %v1162
  %1164 = vdwg.mxu0
  %v1165 = vld [vmem:[%s4] sm:$0xf]
  %v1166 = vld [vmem:[%s4 + $0x4] sm:$0xf]
  %v1167 = vld [vmem:[%s4 + $0x8] sm:$0xf]
  %v1168 = vld [vmem:[%s4 + $0xc] sm:$0xf]
  %v1169 = vld [vmem:[%s4 + $0x10] sm:$0xf]
  %v1170 = vld [vmem:[%s4 + $0x14] sm:$0xf]
  %v1171 = vld [vmem:[%s4 + $0x18] sm:$0xf]
  %v1172 = vld [vmem:[%s4 + $0x1c] sm:$0xf]
  %v1173 = vld [vmem:[%s4 + $0x20] sm:$0xf]
  %v1174 = vld [vmem:[%s4 + $0x24] sm:$0xf]
  %v1175 = vld [vmem:[%s4 + $0x28] sm:$0xf]
  %v1176 = vld [vmem:[%s4 + $0x2c] sm:$0xf]
  %v1177 = vld [vmem:[%s4 + $0x30] sm:$0xf]
  %v1178 = vld [vmem:[%s4 + $0x34] sm:$0xf]
  %v1179 = vld [vmem:[%s4 + $0x38] sm:$0xf]
  %v1180 = vld [vmem:[%s4 + $0x3c] sm:$0xf]
  %v1181 = vld [vmem:[%s4 + $0x40] sm:$0xf]
  %v1182 = vld [vmem:[%s4 + $0x44] sm:$0xf]
  %v1183 = vld [vmem:[%s4 + $0x48] sm:$0xf]
  %v1184 = vld [vmem:[%s4 + $0x4c] sm:$0xf]
  %v1185 = vld [vmem:[%s4 + $0x50] sm:$0xf]
  %v1186 = vld [vmem:[%s4 + $0x54] sm:$0xf]
  %v1187 = vld [vmem:[%s4 + $0x58] sm:$0xf]
  %v1188 = vld [vmem:[%s4 + $0x5c] sm:$0xf]
  %v1189 = vld [vmem:[%s4 + $0x60] sm:$0xf]
  %v1190 = vld [vmem:[%s4 + $0x64] sm:$0xf]
  %v1191 = vld [vmem:[%s4 + $0x68] sm:$0xf]
  %v1192 = vld [vmem:[%s4 + $0x6c] sm:$0xf]
  %v1193 = vld [vmem:[%s4 + $0x70] sm:$0xf]
  %v1194 = vld [vmem:[%s4 + $0x74] sm:$0xf]
  %v1195 = vld [vmem:[%s4 + $0x78] sm:$0xf]
  %v1196 = vld [vmem:[%s4 + $0x7c] sm:$0xf]
  %v1197 = vld [vmem:[%s5] sm:$0xf]
  %v1198 = vld [vmem:[%s5 + $0x4] sm:$0xf]
  %v1199 = vld [vmem:[%s5 + $0x8] sm:$0xf]
  %v1200 = vld [vmem:[%s5 + $0xc] sm:$0xf]
  %v1201 = vld [vmem:[%s5 + $0x10] sm:$0xf]
  %v1202 = vld [vmem:[%s5 + $0x14] sm:$0xf]
  %v1203 = vld [vmem:[%s5 + $0x18] sm:$0xf]
  %v1204 = vld [vmem:[%s5 + $0x1c] sm:$0xf]
  %v1205 = vld [vmem:[%s5 + $0x20] sm:$0xf]
  %v1206 = vld [vmem:[%s5 + $0x24] sm:$0xf]
  %v1207 = vld [vmem:[%s5 + $0x28] sm:$0xf]
  %v1208 = vld [vmem:[%s5 + $0x2c] sm:$0xf]
  %v1209 = vld [vmem:[%s5 + $0x30] sm:$0xf]
  %v1210 = vld [vmem:[%s5 + $0x34] sm:$0xf]
  %v1211 = vld [vmem:[%s5 + $0x38] sm:$0xf]
  %v1212 = vld [vmem:[%s5 + $0x3c] sm:$0xf]
  %v1213 = vld [vmem:[%s5 + $0x40] sm:$0xf]
  %v1214 = vld [vmem:[%s5 + $0x44] sm:$0xf]
  %v1215 = vld [vmem:[%s5 + $0x48] sm:$0xf]
  %v1216 = vld [vmem:[%s5 + $0x4c] sm:$0xf]
  %v1217 = vld [vmem:[%s5 + $0x50] sm:$0xf]
  %v1218 = vld [vmem:[%s5 + $0x54] sm:$0xf]
  %v1219 = vld [vmem:[%s5 + $0x58] sm:$0xf]
  %v1220 = vld [vmem:[%s5 + $0x5c] sm:$0xf]
  %v1221 = vld [vmem:[%s5 + $0x60] sm:$0xf]
  %v1222 = vld [vmem:[%s5 + $0x64] sm:$0xf]
  %v1223 = vld [vmem:[%s5 + $0x68] sm:$0xf]
  %v1224 = vld [vmem:[%s5 + $0x6c] sm:$0xf]
  %v1225 = vld [vmem:[%s5 + $0x70] sm:$0xf]
  %v1226 = vld [vmem:[%s5 + $0x74] sm:$0xf]
  %v1227 = vld [vmem:[%s5 + $0x78] sm:$0xf]
  %v1228 = vld [vmem:[%s5 + $0x7c] sm:$0xf]
  %v1261 = vunpack.c.l.b16 %v1165
  %v1262 = vunpack.c.l.b16 %v1166
  %v1263 = vunpack.c.l.b16 %v1167
  %v1264 = vunpack.c.l.b16 %v1168
  %v1265 = vunpack.c.l.b16 %v1169
  %v1266 = vunpack.c.l.b16 %v1170
  %v1267 = vunpack.c.l.b16 %v1171
  %v1268 = vunpack.c.l.b16 %v1172
  %v1269 = vunpack.c.l.b16 %v1173
  %v1270 = vunpack.c.l.b16 %v1174
  %v1271 = vunpack.c.l.b16 %v1175
  %v1272 = vunpack.c.l.b16 %v1176
  %v1273 = vunpack.c.l.b16 %v1177
  %v1274 = vunpack.c.l.b16 %v1178
  %v1275 = vunpack.c.l.b16 %v1179
  %v1276 = vunpack.c.l.b16 %v1180
  %v1277 = vunpack.c.l.b16 %v1181
  %v1278 = vunpack.c.l.b16 %v1182
  %v1279 = vunpack.c.l.b16 %v1183
  %v1280 = vunpack.c.l.b16 %v1184
  %v1281 = vunpack.c.l.b16 %v1185
  %v1282 = vunpack.c.l.b16 %v1186
  %v1283 = vunpack.c.l.b16 %v1187
  %v1284 = vunpack.c.l.b16 %v1188
  %v1285 = vunpack.c.l.b16 %v1189
  %v1286 = vunpack.c.l.b16 %v1190
  %v1287 = vunpack.c.l.b16 %v1191
  %v1288 = vunpack.c.l.b16 %v1192
  %v1289 = vunpack.c.l.b16 %v1193
  %v1290 = vunpack.c.l.b16 %v1194
  %v1291 = vunpack.c.l.b16 %v1195
  %v1292 = vunpack.c.l.b16 %v1196
  %v1293 = vpack.c.b16 %v1262, %v1261
  %v1294 = vpack.c.b16 %v1264, %v1263
  %v1295 = vpack.c.b16 %v1266, %v1265
  %v1296 = vpack.c.b16 %v1268, %v1267
  %v1297 = vpack.c.b16 %v1270, %v1269
  %v1298 = vpack.c.b16 %v1272, %v1271
  %v1299 = vpack.c.b16 %v1274, %v1273
  %v1300 = vpack.c.b16 %v1276, %v1275
  %v1301 = vpack.c.b16 %v1278, %v1277
  %v1302 = vpack.c.b16 %v1280, %v1279
  %v1303 = vpack.c.b16 %v1282, %v1281
  %v1304 = vpack.c.b16 %v1284, %v1283
  %v1305 = vpack.c.b16 %v1286, %v1285
  %v1306 = vpack.c.b16 %v1288, %v1287
  %v1307 = vpack.c.b16 %v1290, %v1289
  %v1308 = vpack.c.b16 %v1292, %v1291
  %v1357 = vunpack.c.l.b16 %v1197
  %v1358 = vunpack.c.l.b16 %v1198
  %v1359 = vunpack.c.l.b16 %v1199
  %v1360 = vunpack.c.l.b16 %v1200
  %v1361 = vunpack.c.l.b16 %v1201
  %v1362 = vunpack.c.l.b16 %v1202
  %v1363 = vunpack.c.l.b16 %v1203
  %v1364 = vunpack.c.l.b16 %v1204
  %v1365 = vunpack.c.l.b16 %v1205
  %v1366 = vunpack.c.l.b16 %v1206
  %v1367 = vunpack.c.l.b16 %v1207
  %v1368 = vunpack.c.l.b16 %v1208
  %v1369 = vunpack.c.l.b16 %v1209
  %v1370 = vunpack.c.l.b16 %v1210
  %v1371 = vunpack.c.l.b16 %v1211
  %v1372 = vunpack.c.l.b16 %v1212
  %v1373 = vunpack.c.l.b16 %v1213
  %v1374 = vunpack.c.l.b16 %v1214
  %v1375 = vunpack.c.l.b16 %v1215
  %v1376 = vunpack.c.l.b16 %v1216
  %v1377 = vunpack.c.l.b16 %v1217
  %v1378 = vunpack.c.l.b16 %v1218
  %v1379 = vunpack.c.l.b16 %v1219
  %v1380 = vunpack.c.l.b16 %v1220
  %v1381 = vunpack.c.l.b16 %v1221
  %v1382 = vunpack.c.l.b16 %v1222
  %v1383 = vunpack.c.l.b16 %v1223
  %v1384 = vunpack.c.l.b16 %v1224
  %v1385 = vunpack.c.l.b16 %v1225
  %v1386 = vunpack.c.l.b16 %v1226
  %v1387 = vunpack.c.l.b16 %v1227
  %v1388 = vunpack.c.l.b16 %v1228
  %v1389 = vpack.c.b16 %v1358, %v1357
  %v1390 = vpack.c.b16 %v1360, %v1359
  %v1391 = vpack.c.b16 %v1362, %v1361
  %v1392 = vpack.c.b16 %v1364, %v1363
  %v1393 = vpack.c.b16 %v1366, %v1365
  %v1394 = vpack.c.b16 %v1368, %v1367
  %v1395 = vpack.c.b16 %v1370, %v1369
  %v1396 = vpack.c.b16 %v1372, %v1371
  %v1397 = vpack.c.b16 %v1374, %v1373
  %v1398 = vpack.c.b16 %v1376, %v1375
  %v1399 = vpack.c.b16 %v1378, %v1377
  %v1400 = vpack.c.b16 %v1380, %v1379
  %v1401 = vpack.c.b16 %v1382, %v1381
  %v1402 = vpack.c.b16 %v1384, %v1383
  %v1403 = vpack.c.b16 %v1386, %v1385
  %v1404 = vpack.c.b16 %v1388, %v1387
  %v1421 = vld [vmem:[%s6 + $0x100] sm:$0xf]
  %v1422 = vld [vmem:[%s6 + $0x104] sm:$0xf]
  %v1423 = vld [vmem:[%s6 + $0x108] sm:$0xf]
  %v1424 = vld [vmem:[%s6 + $0x10c] sm:$0xf]
  %v1425 = vld [vmem:[%s6 + $0x110] sm:$0xf]
  %v1426 = vld [vmem:[%s6 + $0x114] sm:$0xf]
  %v1427 = vld [vmem:[%s6 + $0x118] sm:$0xf]
  %v1428 = vld [vmem:[%s6 + $0x11c] sm:$0xf]
  %v1429 = vld [vmem:[%s6 + $0x120] sm:$0xf]
  %v1430 = vld [vmem:[%s6 + $0x124] sm:$0xf]
  %v1431 = vld [vmem:[%s6 + $0x128] sm:$0xf]
  %v1432 = vld [vmem:[%s6 + $0x12c] sm:$0xf]
  %v1433 = vld [vmem:[%s6 + $0x130] sm:$0xf]
  %v1434 = vld [vmem:[%s6 + $0x134] sm:$0xf]
  %v1435 = vld [vmem:[%s6 + $0x138] sm:$0xf]
  %v1436 = vld [vmem:[%s6 + $0x13c] sm:$0xf]
  %v1437 = vld [vmem:[%s6 + $0x140] sm:$0xf]
  %v1438 = vld [vmem:[%s6 + $0x144] sm:$0xf]
  %v1439 = vld [vmem:[%s6 + $0x148] sm:$0xf]
  %v1440 = vld [vmem:[%s6 + $0x14c] sm:$0xf]
  %v1441 = vld [vmem:[%s6 + $0x150] sm:$0xf]
  %v1442 = vld [vmem:[%s6 + $0x154] sm:$0xf]
  %v1443 = vld [vmem:[%s6 + $0x158] sm:$0xf]
  %v1444 = vld [vmem:[%s6 + $0x15c] sm:$0xf]
  %v1445 = vld [vmem:[%s6 + $0x160] sm:$0xf]
  %v1446 = vld [vmem:[%s6 + $0x164] sm:$0xf]
  %v1447 = vld [vmem:[%s6 + $0x168] sm:$0xf]
  %v1448 = vld [vmem:[%s6 + $0x16c] sm:$0xf]
  %v1449 = vld [vmem:[%s6 + $0x170] sm:$0xf]
  %v1450 = vld [vmem:[%s6 + $0x174] sm:$0xf]
  %v1451 = vld [vmem:[%s6 + $0x178] sm:$0xf]
  %v1452 = vld [vmem:[%s6 + $0x17c] sm:$0xf]
  %v1485 = vunpack.c.l.b16 %v1421
  %v1486 = vunpack.c.l.b16 %v1422
  %v1487 = vunpack.c.l.b16 %v1423
  %v1488 = vunpack.c.l.b16 %v1424
  %v1489 = vunpack.c.l.b16 %v1425
  %v1490 = vunpack.c.l.b16 %v1426
  %v1491 = vunpack.c.l.b16 %v1427
  %v1492 = vunpack.c.l.b16 %v1428
  %v1493 = vunpack.c.l.b16 %v1429
  %v1494 = vunpack.c.l.b16 %v1430
  %v1495 = vunpack.c.l.b16 %v1431
  %v1496 = vunpack.c.l.b16 %v1432
  %v1497 = vunpack.c.l.b16 %v1433
  %v1498 = vunpack.c.l.b16 %v1434
  %v1499 = vunpack.c.l.b16 %v1435
  %v1500 = vunpack.c.l.b16 %v1436
  %v1501 = vunpack.c.l.b16 %v1437
  %v1502 = vunpack.c.l.b16 %v1438
  %v1503 = vunpack.c.l.b16 %v1439
  %v1504 = vunpack.c.l.b16 %v1440
  %v1505 = vunpack.c.l.b16 %v1441
  %v1506 = vunpack.c.l.b16 %v1442
  %v1507 = vunpack.c.l.b16 %v1443
  %v1508 = vunpack.c.l.b16 %v1444
  %v1509 = vunpack.c.l.b16 %v1445
  %v1510 = vunpack.c.l.b16 %v1446
  %v1511 = vunpack.c.l.b16 %v1447
  %v1512 = vunpack.c.l.b16 %v1448
  %v1513 = vunpack.c.l.b16 %v1449
  %v1514 = vunpack.c.l.b16 %v1450
  %v1515 = vunpack.c.l.b16 %v1451
  %v1516 = vunpack.c.l.b16 %v1452
  %v1517 = vpack.c.b16 %v1486, %v1485
  %v1518 = vpack.c.b16 %v1488, %v1487
  %v1519 = vpack.c.b16 %v1490, %v1489
  %v1520 = vpack.c.b16 %v1492, %v1491
  %v1521 = vpack.c.b16 %v1494, %v1493
  %v1522 = vpack.c.b16 %v1496, %v1495
  %v1523 = vpack.c.b16 %v1498, %v1497
  %v1524 = vpack.c.b16 %v1500, %v1499
  %v1525 = vpack.c.b16 %v1502, %v1501
  %v1526 = vpack.c.b16 %v1504, %v1503
  %v1527 = vpack.c.b16 %v1506, %v1505
  %v1528 = vpack.c.b16 %v1508, %v1507
  %v1529 = vpack.c.b16 %v1510, %v1509
  %v1530 = vpack.c.b16 %v1512, %v1511
  %v1531 = vpack.c.b16 %v1514, %v1513
  %v1532 = vpack.c.b16 %v1516, %v1515
  %1549 = vmatpush.bf16.msra.mxu0 %v1524
  %1550 = vmatpush.bf16.msra.mxu0 %v1523
  %1551 = vmatpush.bf16.msra.mxu0 %v1522
  %1552 = vmatpush.bf16.msra.mxu0 %v1521
  %1553 = vmatpush.bf16.msra.mxu0 %v1520
  %1554 = vmatpush.bf16.msra.mxu0 %v1519
  %1555 = vmatpush.bf16.msra.mxu0 %v1518
  %1556 = vmatpush.bf16.msra.mxu0 %v1517
  %1557 = vmatmul.bf16.gmra.mxu0 %v1293
  %v1558 = vpop.f32.mrf.mxu0
  %v1559 = vadd.f32 0.0, %v1558
  %v1560 = vpop.f32.mrf.mxu0
  %v1561 = vadd.f32 0.0, %v1560
  %1562 = vmatmul.bf16.gmra.mxu0 %v1294
  %v1563 = vpop.f32.mrf.mxu0
  %v1564 = vadd.f32 0.0, %v1563
  %v1565 = vpop.f32.mrf.mxu0
  %v1566 = vadd.f32 0.0, %v1565
  %1567 = vmatmul.bf16.gmra.mxu0 %v1295
  %v1568 = vpop.f32.mrf.mxu0
  %v1569 = vadd.f32 0.0, %v1568
  %v1570 = vpop.f32.mrf.mxu0
  %v1571 = vadd.f32 0.0, %v1570
  %1572 = vmatmul.bf16.gmra.mxu0 %v1296
  %v1573 = vpop.f32.mrf.mxu0
  %v1574 = vadd.f32 0.0, %v1573
  %v1575 = vpop.f32.mrf.mxu0
  %v1576 = vadd.f32 0.0, %v1575
  %1577 = vmatmul.bf16.gmra.mxu0 %v1297
  %v1578 = vpop.f32.mrf.mxu0
  %v1579 = vadd.f32 0.0, %v1578
  %v1580 = vpop.f32.mrf.mxu0
  %v1581 = vadd.f32 0.0, %v1580
  %1582 = vmatmul.bf16.gmra.mxu0 %v1298
  %v1583 = vpop.f32.mrf.mxu0
  %v1584 = vadd.f32 0.0, %v1583
  %v1585 = vpop.f32.mrf.mxu0
  %v1586 = vadd.f32 0.0, %v1585
  %1587 = vmatmul.bf16.gmra.mxu0 %v1299
  %v1588 = vpop.f32.mrf.mxu0
  %v1589 = vadd.f32 0.0, %v1588
  %v1590 = vpop.f32.mrf.mxu0
  %v1591 = vadd.f32 0.0, %v1590
  %1592 = vmatmul.bf16.gmra.mxu0 %v1300
  %v1593 = vpop.f32.mrf.mxu0
  %v1594 = vadd.f32 0.0, %v1593
  %v1595 = vpop.f32.mrf.mxu0
  %v1596 = vadd.f32 0.0, %v1595
  %1597 = vmatmul.bf16.gmra.mxu0 %v1301
  %v1598 = vpop.f32.mrf.mxu0
  %v1599 = vadd.f32 0.0, %v1598
  %v1600 = vpop.f32.mrf.mxu0
  %v1601 = vadd.f32 0.0, %v1600
  %1602 = vmatmul.bf16.gmra.mxu0 %v1302
  %v1603 = vpop.f32.mrf.mxu0
  %v1604 = vadd.f32 0.0, %v1603
  %v1605 = vpop.f32.mrf.mxu0
  %v1606 = vadd.f32 0.0, %v1605
  %1607 = vmatmul.bf16.gmra.mxu0 %v1303
  %v1608 = vpop.f32.mrf.mxu0
  %v1609 = vadd.f32 0.0, %v1608
  %v1610 = vpop.f32.mrf.mxu0
  %v1611 = vadd.f32 0.0, %v1610
  %1612 = vmatmul.bf16.gmra.mxu0 %v1304
  %v1613 = vpop.f32.mrf.mxu0
  %v1614 = vadd.f32 0.0, %v1613
  %v1615 = vpop.f32.mrf.mxu0
  %v1616 = vadd.f32 0.0, %v1615
  %1617 = vmatmul.bf16.gmra.mxu0 %v1305
  %v1618 = vpop.f32.mrf.mxu0
  %v1619 = vadd.f32 0.0, %v1618
  %v1620 = vpop.f32.mrf.mxu0
  %v1621 = vadd.f32 0.0, %v1620
  %1622 = vmatmul.bf16.gmra.mxu0 %v1306
  %v1623 = vpop.f32.mrf.mxu0
  %v1624 = vadd.f32 0.0, %v1623
  %v1625 = vpop.f32.mrf.mxu0
  %v1626 = vadd.f32 0.0, %v1625
  %1627 = vmatmul.bf16.gmra.mxu0 %v1307
  %v1628 = vpop.f32.mrf.mxu0
  %v1629 = vadd.f32 0.0, %v1628
  %v1630 = vpop.f32.mrf.mxu0
  %v1631 = vadd.f32 0.0, %v1630
  %1632 = vmatmul.bf16.gmra.mxu0 %v1308
  %v1633 = vpop.f32.mrf.mxu0
  %v1634 = vadd.f32 0.0, %v1633
  %v1635 = vpop.f32.mrf.mxu0
  %v1636 = vadd.f32 0.0, %v1635
  %1637 = vdwg.mxu0
  %1638 = vmatpush.bf16.msra.mxu0 %v1532
  %1639 = vmatpush.bf16.msra.mxu0 %v1531
  %1640 = vmatpush.bf16.msra.mxu0 %v1530
  %1641 = vmatpush.bf16.msra.mxu0 %v1529
  %1642 = vmatpush.bf16.msra.mxu0 %v1528
  %1643 = vmatpush.bf16.msra.mxu0 %v1527
  %1644 = vmatpush.bf16.msra.mxu0 %v1526
  %1645 = vmatpush.bf16.msra.mxu0 %v1525
  %1646 = vmatmul.bf16.gmra.mxu0 %v1389
  %v1647 = vpop.f32.mrf.mxu0
  %v1648 = vadd.f32 %v1559, %v1647
  %v1649 = vpop.f32.mrf.mxu0
  %v1650 = vadd.f32 %v1561, %v1649
  %1651 = vmatmul.bf16.gmra.mxu0 %v1390
  %v1652 = vpop.f32.mrf.mxu0
  %v1653 = vadd.f32 %v1564, %v1652
  %v1654 = vpop.f32.mrf.mxu0
  %v1655 = vadd.f32 %v1566, %v1654
  %1656 = vmatmul.bf16.gmra.mxu0 %v1391
  %v1657 = vpop.f32.mrf.mxu0
  %v1658 = vadd.f32 %v1569, %v1657
  %v1659 = vpop.f32.mrf.mxu0
  %v1660 = vadd.f32 %v1571, %v1659
  %1661 = vmatmul.bf16.gmra.mxu0 %v1392
  %v1662 = vpop.f32.mrf.mxu0
  %v1663 = vadd.f32 %v1574, %v1662
  %v1664 = vpop.f32.mrf.mxu0
  %v1665 = vadd.f32 %v1576, %v1664
  %1666 = vmatmul.bf16.gmra.mxu0 %v1393
  %v1667 = vpop.f32.mrf.mxu0
  %v1668 = vadd.f32 %v1579, %v1667
  %v1669 = vpop.f32.mrf.mxu0
  %v1670 = vadd.f32 %v1581, %v1669
  %1671 = vmatmul.bf16.gmra.mxu0 %v1394
  %v1672 = vpop.f32.mrf.mxu0
  %v1673 = vadd.f32 %v1584, %v1672
  %v1674 = vpop.f32.mrf.mxu0
  %v1675 = vadd.f32 %v1586, %v1674
  %1676 = vmatmul.bf16.gmra.mxu0 %v1395
  %v1677 = vpop.f32.mrf.mxu0
  %v1678 = vadd.f32 %v1589, %v1677
  %v1679 = vpop.f32.mrf.mxu0
  %v1680 = vadd.f32 %v1591, %v1679
  %1681 = vmatmul.bf16.gmra.mxu0 %v1396
  %v1682 = vpop.f32.mrf.mxu0
  %v1683 = vadd.f32 %v1594, %v1682
  %v1684 = vpop.f32.mrf.mxu0
  %v1685 = vadd.f32 %v1596, %v1684
  %1686 = vmatmul.bf16.gmra.mxu0 %v1397
  %v1687 = vpop.f32.mrf.mxu0
  %v1688 = vadd.f32 %v1599, %v1687
  %v1689 = vpop.f32.mrf.mxu0
  %v1690 = vadd.f32 %v1601, %v1689
  %1691 = vmatmul.bf16.gmra.mxu0 %v1398
  %v1692 = vpop.f32.mrf.mxu0
  %v1693 = vadd.f32 %v1604, %v1692
  %v1694 = vpop.f32.mrf.mxu0
  %v1695 = vadd.f32 %v1606, %v1694
  %1696 = vmatmul.bf16.gmra.mxu0 %v1399
  %v1697 = vpop.f32.mrf.mxu0
  %v1698 = vadd.f32 %v1609, %v1697
  %v1699 = vpop.f32.mrf.mxu0
  %v1700 = vadd.f32 %v1611, %v1699
  %1701 = vmatmul.bf16.gmra.mxu0 %v1400
  %v1702 = vpop.f32.mrf.mxu0
  %v1703 = vadd.f32 %v1614, %v1702
  %v1704 = vpop.f32.mrf.mxu0
  %v1705 = vadd.f32 %v1616, %v1704
  %1706 = vmatmul.bf16.gmra.mxu0 %v1401
  %v1707 = vpop.f32.mrf.mxu0
  %v1708 = vadd.f32 %v1619, %v1707
  %v1709 = vpop.f32.mrf.mxu0
  %v1710 = vadd.f32 %v1621, %v1709
  %1711 = vmatmul.bf16.gmra.mxu0 %v1402
  %v1712 = vpop.f32.mrf.mxu0
  %v1713 = vadd.f32 %v1624, %v1712
  %v1714 = vpop.f32.mrf.mxu0
  %v1715 = vadd.f32 %v1626, %v1714
  %1716 = vmatmul.bf16.gmra.mxu0 %v1403
  %v1717 = vpop.f32.mrf.mxu0
  %v1718 = vadd.f32 %v1629, %v1717
  %v1719 = vpop.f32.mrf.mxu0
  %v1720 = vadd.f32 %v1631, %v1719
  %1721 = vmatmul.bf16.gmra.mxu0 %v1404
  %v1722 = vpop.f32.mrf.mxu0
  %v1723 = vadd.f32 %v1634, %v1722
  %v1724 = vpop.f32.mrf.mxu0
  %v1725 = vadd.f32 %v1636, %v1724
  %1726 = vdwg.mxu0
  %v1727 = vadd.f32 %v1086, %v1648
  %v1728 = vadd.f32 %v1088, %v1650
  %v1729 = vadd.f32 %v1091, %v1653
  %v1730 = vadd.f32 %v1093, %v1655
  %v1731 = vadd.f32 %v1096, %v1658
  %v1732 = vadd.f32 %v1098, %v1660
  %v1733 = vadd.f32 %v1101, %v1663
  %v1734 = vadd.f32 %v1103, %v1665
  %v1735 = vadd.f32 %v1106, %v1668
  %v1736 = vadd.f32 %v1108, %v1670
  %v1737 = vadd.f32 %v1111, %v1673
  %v1738 = vadd.f32 %v1113, %v1675
  %v1739 = vadd.f32 %v1116, %v1678
  %v1740 = vadd.f32 %v1118, %v1680
  %v1741 = vadd.f32 %v1121, %v1683
  %v1742 = vadd.f32 %v1123, %v1685
  %v1743 = vadd.f32 %v1126, %v1688
  %v1744 = vadd.f32 %v1128, %v1690
  %v1745 = vadd.f32 %v1131, %v1693
  %v1746 = vadd.f32 %v1133, %v1695
  %v1747 = vadd.f32 %v1136, %v1698
  %v1748 = vadd.f32 %v1138, %v1700
  %v1749 = vadd.f32 %v1141, %v1703
  %v1750 = vadd.f32 %v1143, %v1705
  %v1751 = vadd.f32 %v1146, %v1708
  %v1752 = vadd.f32 %v1148, %v1710
  %v1753 = vadd.f32 %v1151, %v1713
  %v1754 = vadd.f32 %v1153, %v1715
  %v1755 = vadd.f32 %v1156, %v1718
  %v1756 = vadd.f32 %v1158, %v1720
  %v1757 = vadd.f32 %v1161, %v1723
  %v1758 = vadd.f32 %v1163, %v1725
  %v1759 = vld [vmem:[%s9] sm:$0x1]
  %v1761 = vperm.slane %v1759, 0
  %v1763 = vadd.f32 %v1727, %v1761
  %v1764 = vadd.f32 %v1728, %v1761
  %v1765 = vadd.f32 %v1729, %v1761
  %v1766 = vadd.f32 %v1730, %v1761
  %v1767 = vadd.f32 %v1731, %v1761
  %v1768 = vadd.f32 %v1732, %v1761
  %v1769 = vadd.f32 %v1733, %v1761
  %v1770 = vadd.f32 %v1734, %v1761
  %v1771 = vadd.f32 %v1735, %v1761
  %v1772 = vadd.f32 %v1736, %v1761
  %v1773 = vadd.f32 %v1737, %v1761
  %v1774 = vadd.f32 %v1738, %v1761
  %v1775 = vadd.f32 %v1739, %v1761
  %v1776 = vadd.f32 %v1740, %v1761
  %v1777 = vadd.f32 %v1741, %v1761
  %v1778 = vadd.f32 %v1742, %v1761
  %v1779 = vadd.f32 %v1743, %v1761
  %v1780 = vadd.f32 %v1744, %v1761
  %v1781 = vadd.f32 %v1745, %v1761
  %v1782 = vadd.f32 %v1746, %v1761
  %v1783 = vadd.f32 %v1747, %v1761
  %v1784 = vadd.f32 %v1748, %v1761
  %v1785 = vadd.f32 %v1749, %v1761
  %v1786 = vadd.f32 %v1750, %v1761
  %v1787 = vadd.f32 %v1751, %v1761
  %v1788 = vadd.f32 %v1752, %v1761
  %v1789 = vadd.f32 %v1753, %v1761
  %v1790 = vadd.f32 %v1754, %v1761
  %v1791 = vadd.f32 %v1755, %v1761
  %v1792 = vadd.f32 %v1756, %v1761
  %v1793 = vadd.f32 %v1757, %v1761
  %v1794 = vadd.f32 %v1758, %v1761
  %v1795 = vmax.f32 %v1763, 0.0
  %v1796 = vmax.f32 %v1764, 0.0
  %v1797 = vmax.f32 %v1765, 0.0
  %v1798 = vmax.f32 %v1766, 0.0
  %v1799 = vmax.f32 %v1767, 0.0
  %v1800 = vmax.f32 %v1768, 0.0
  %v1801 = vmax.f32 %v1769, 0.0
  %v1802 = vmax.f32 %v1770, 0.0
  %v1803 = vmax.f32 %v1771, 0.0
  %v1804 = vmax.f32 %v1772, 0.0
  %v1805 = vmax.f32 %v1773, 0.0
  %v1806 = vmax.f32 %v1774, 0.0
  %v1807 = vmax.f32 %v1775, 0.0
  %v1808 = vmax.f32 %v1776, 0.0
  %v1809 = vmax.f32 %v1777, 0.0
  %v1810 = vmax.f32 %v1778, 0.0
  %v1811 = vmax.f32 %v1779, 0.0
  %v1812 = vmax.f32 %v1780, 0.0
  %v1813 = vmax.f32 %v1781, 0.0
  %v1814 = vmax.f32 %v1782, 0.0
  %v1815 = vmax.f32 %v1783, 0.0
  %v1816 = vmax.f32 %v1784, 0.0
  %v1817 = vmax.f32 %v1785, 0.0
  %v1818 = vmax.f32 %v1786, 0.0
  %v1819 = vmax.f32 %v1787, 0.0
  %v1820 = vmax.f32 %v1788, 0.0
  %v1821 = vmax.f32 %v1789, 0.0
  %v1822 = vmax.f32 %v1790, 0.0
  %v1823 = vmax.f32 %v1791, 0.0
  %v1824 = vmax.f32 %v1792, 0.0
  %v1825 = vmax.f32 %v1793, 0.0
  %v1826 = vmax.f32 %v1794, 0.0
  %v1827 = vpack.c.bf16 %v1796, %v1795
  %v1828 = vpack.c.bf16 %v1798, %v1797
  %v1829 = vpack.c.bf16 %v1800, %v1799
  %v1830 = vpack.c.bf16 %v1802, %v1801
  %v1831 = vpack.c.bf16 %v1804, %v1803
  %v1832 = vpack.c.bf16 %v1806, %v1805
  %v1833 = vpack.c.bf16 %v1808, %v1807
  %v1834 = vpack.c.bf16 %v1810, %v1809
  %v1835 = vpack.c.bf16 %v1812, %v1811
  %v1836 = vpack.c.bf16 %v1814, %v1813
  %v1837 = vpack.c.bf16 %v1816, %v1815
  %v1838 = vpack.c.bf16 %v1818, %v1817
  %v1839 = vpack.c.bf16 %v1820, %v1819
  %v1840 = vpack.c.bf16 %v1822, %v1821
  %v1841 = vpack.c.bf16 %v1824, %v1823
  %v1842 = vpack.c.bf16 %v1826, %v1825
  %v1843 = vld [vmem:[%s7] sm:$0xf]
  %v1844 = vld [vmem:[%s7 + $0x4] sm:$0xf]
  %v1845 = vld [vmem:[%s7 + $0x8] sm:$0xf]
  %v1846 = vld [vmem:[%s7 + $0xc] sm:$0xf]
  %v1847 = vld [vmem:[%s7 + $0x10] sm:$0xf]
  %v1848 = vld [vmem:[%s7 + $0x14] sm:$0xf]
  %v1849 = vld [vmem:[%s7 + $0x18] sm:$0xf]
  %v1850 = vld [vmem:[%s7 + $0x1c] sm:$0xf]
  %v1851 = vld [vmem:[%s7 + $0x20] sm:$0xf]
  %v1852 = vld [vmem:[%s7 + $0x24] sm:$0xf]
  %v1853 = vld [vmem:[%s7 + $0x28] sm:$0xf]
  %v1854 = vld [vmem:[%s7 + $0x2c] sm:$0xf]
  %v1855 = vld [vmem:[%s7 + $0x30] sm:$0xf]
  %v1856 = vld [vmem:[%s7 + $0x34] sm:$0xf]
  %v1857 = vld [vmem:[%s7 + $0x38] sm:$0xf]
  %v1858 = vld [vmem:[%s7 + $0x3c] sm:$0xf]
  %v1859 = vld [vmem:[%s10] sm:$0x1]
  %v1861 = vperm.slane %v1859, 0
  %v1879 = vunpack.c.l.b16 %v1843
  %v1880 = vunpack.c.l.b16 %v1844
  %v1881 = vunpack.c.l.b16 %v1845
  %v1882 = vunpack.c.l.b16 %v1846
  %v1883 = vunpack.c.l.b16 %v1847
  %v1884 = vunpack.c.l.b16 %v1848
  %v1885 = vunpack.c.l.b16 %v1849
  %v1886 = vunpack.c.l.b16 %v1850
  %v1887 = vunpack.c.l.b16 %v1851
  %v1888 = vunpack.c.l.b16 %v1852
  %v1889 = vunpack.c.l.b16 %v1853
  %v1890 = vunpack.c.l.b16 %v1854
  %v1891 = vunpack.c.l.b16 %v1855
  %v1892 = vunpack.c.l.b16 %v1856
  %v1893 = vunpack.c.l.b16 %v1857
  %v1894 = vunpack.c.l.b16 %v1858
  %v1895 = vpack.c.b16 %v1880, %v1879
  %v1896 = vpack.c.b16 %v1882, %v1881
  %v1897 = vpack.c.b16 %v1884, %v1883
  %v1898 = vpack.c.b16 %v1886, %v1885
  %v1899 = vpack.c.b16 %v1888, %v1887
  %v1900 = vpack.c.b16 %v1890, %v1889
  %v1901 = vpack.c.b16 %v1892, %v1891
  %v1902 = vpack.c.b16 %v1894, %v1893
  %1911 = vmatpush.bf16.msra.mxu0 %v1902
  %1912 = vmatpush.bf16.msra.mxu0 %v1901
  %1913 = vmatpush.bf16.msra.mxu0 %v1900
  %1914 = vmatpush.bf16.msra.mxu0 %v1899
  %1915 = vmatpush.bf16.msra.mxu0 %v1898
  %1916 = vmatpush.bf16.msra.mxu0 %v1897
  %1917 = vmatpush.bf16.msra.mxu0 %v1896
  %1918 = vmatpush.bf16.msra.mxu0 %v1895
  %1919 = vmatmul.bf16.gmra.mxu0 %v1827
  %v1920 = vpop.f32.mrf.mxu0
  %v1921 = vadd.f32 %v1861, %v1920
  %v1922 = vpop.f32.mrf.mxu0
  %v1923 = vadd.f32 %v1861, %v1922
  %1924 = vmatmul.bf16.gmra.mxu0 %v1828
  %v1925 = vpop.f32.mrf.mxu0
  %v1926 = vadd.f32 %v1861, %v1925
  %v1927 = vpop.f32.mrf.mxu0
  %v1928 = vadd.f32 %v1861, %v1927
  %1929 = vmatmul.bf16.gmra.mxu0 %v1829
  %v1930 = vpop.f32.mrf.mxu0
  %v1931 = vadd.f32 %v1861, %v1930
  %v1932 = vpop.f32.mrf.mxu0
  %v1933 = vadd.f32 %v1861, %v1932
  %1934 = vmatmul.bf16.gmra.mxu0 %v1830
  %v1935 = vpop.f32.mrf.mxu0
  %v1936 = vadd.f32 %v1861, %v1935
  %v1937 = vpop.f32.mrf.mxu0
  %v1938 = vadd.f32 %v1861, %v1937
  %1939 = vmatmul.bf16.gmra.mxu0 %v1831
  %v1940 = vpop.f32.mrf.mxu0
  %v1941 = vadd.f32 %v1861, %v1940
  %v1942 = vpop.f32.mrf.mxu0
  %v1943 = vadd.f32 %v1861, %v1942
  %1944 = vmatmul.bf16.gmra.mxu0 %v1832
  %v1945 = vpop.f32.mrf.mxu0
  %v1946 = vadd.f32 %v1861, %v1945
  %v1947 = vpop.f32.mrf.mxu0
  %v1948 = vadd.f32 %v1861, %v1947
  %1949 = vmatmul.bf16.gmra.mxu0 %v1833
  %v1950 = vpop.f32.mrf.mxu0
  %v1951 = vadd.f32 %v1861, %v1950
  %v1952 = vpop.f32.mrf.mxu0
  %v1953 = vadd.f32 %v1861, %v1952
  %1954 = vmatmul.bf16.gmra.mxu0 %v1834
  %v1955 = vpop.f32.mrf.mxu0
  %v1956 = vadd.f32 %v1861, %v1955
  %v1957 = vpop.f32.mrf.mxu0
  %v1958 = vadd.f32 %v1861, %v1957
  %1959 = vmatmul.bf16.gmra.mxu0 %v1835
  %v1960 = vpop.f32.mrf.mxu0
  %v1961 = vadd.f32 %v1861, %v1960
  %v1962 = vpop.f32.mrf.mxu0
  %v1963 = vadd.f32 %v1861, %v1962
  %1964 = vmatmul.bf16.gmra.mxu0 %v1836
  %v1965 = vpop.f32.mrf.mxu0
  %v1966 = vadd.f32 %v1861, %v1965
  %v1967 = vpop.f32.mrf.mxu0
  %v1968 = vadd.f32 %v1861, %v1967
  %1969 = vmatmul.bf16.gmra.mxu0 %v1837
  %v1970 = vpop.f32.mrf.mxu0
  %v1971 = vadd.f32 %v1861, %v1970
  %v1972 = vpop.f32.mrf.mxu0
  %v1973 = vadd.f32 %v1861, %v1972
  %1974 = vmatmul.bf16.gmra.mxu0 %v1838
  %v1975 = vpop.f32.mrf.mxu0
  %v1976 = vadd.f32 %v1861, %v1975
  %v1977 = vpop.f32.mrf.mxu0
  %v1978 = vadd.f32 %v1861, %v1977
  %1979 = vmatmul.bf16.gmra.mxu0 %v1839
  %v1980 = vpop.f32.mrf.mxu0
  %v1981 = vadd.f32 %v1861, %v1980
  %v1982 = vpop.f32.mrf.mxu0
  %v1983 = vadd.f32 %v1861, %v1982
  %1984 = vmatmul.bf16.gmra.mxu0 %v1840
  %v1985 = vpop.f32.mrf.mxu0
  %v1986 = vadd.f32 %v1861, %v1985
  %v1987 = vpop.f32.mrf.mxu0
  %v1988 = vadd.f32 %v1861, %v1987
  %1989 = vmatmul.bf16.gmra.mxu0 %v1841
  %v1990 = vpop.f32.mrf.mxu0
  %v1991 = vadd.f32 %v1861, %v1990
  %v1992 = vpop.f32.mrf.mxu0
  %v1993 = vadd.f32 %v1861, %v1992
  %1994 = vmatmul.bf16.gmra.mxu0 %v1842
  %v1995 = vpop.f32.mrf.mxu0
  %v1996 = vadd.f32 %v1861, %v1995
  %v1997 = vpop.f32.mrf.mxu0
  %v1998 = vadd.f32 %v1861, %v1997
  %1999 = vdwg.mxu0
  %v2000 = vmax.f32 %v1921, 0.0
  %v2001 = vmax.f32 %v1923, 0.0
  %v2002 = vmax.f32 %v1926, 0.0
  %v2003 = vmax.f32 %v1928, 0.0
  %v2004 = vmax.f32 %v1931, 0.0
  %v2005 = vmax.f32 %v1933, 0.0
  %v2006 = vmax.f32 %v1936, 0.0
  %v2007 = vmax.f32 %v1938, 0.0
  %v2008 = vmax.f32 %v1941, 0.0
  %v2009 = vmax.f32 %v1943, 0.0
  %v2010 = vmax.f32 %v1946, 0.0
  %v2011 = vmax.f32 %v1948, 0.0
  %v2012 = vmax.f32 %v1951, 0.0
  %v2013 = vmax.f32 %v1953, 0.0
  %v2014 = vmax.f32 %v1956, 0.0
  %v2015 = vmax.f32 %v1958, 0.0
  %v2016 = vmax.f32 %v1961, 0.0
  %v2017 = vmax.f32 %v1963, 0.0
  %v2018 = vmax.f32 %v1966, 0.0
  %v2019 = vmax.f32 %v1968, 0.0
  %v2020 = vmax.f32 %v1971, 0.0
  %v2021 = vmax.f32 %v1973, 0.0
  %v2022 = vmax.f32 %v1976, 0.0
  %v2023 = vmax.f32 %v1978, 0.0
  %v2024 = vmax.f32 %v1981, 0.0
  %v2025 = vmax.f32 %v1983, 0.0
  %v2026 = vmax.f32 %v1986, 0.0
  %v2027 = vmax.f32 %v1988, 0.0
  %v2028 = vmax.f32 %v1991, 0.0
  %v2029 = vmax.f32 %v1993, 0.0
  %v2030 = vmax.f32 %v1996, 0.0
  %v2031 = vmax.f32 %v1998, 0.0
  %v2032 = vpack.c.bf16 %v2001, %v2000
  %v2033 = vpack.c.bf16 %v2003, %v2002
  %v2034 = vpack.c.bf16 %v2005, %v2004
  %v2035 = vpack.c.bf16 %v2007, %v2006
  %v2036 = vpack.c.bf16 %v2009, %v2008
  %v2037 = vpack.c.bf16 %v2011, %v2010
  %v2038 = vpack.c.bf16 %v2013, %v2012
  %v2039 = vpack.c.bf16 %v2015, %v2014
  %v2040 = vpack.c.bf16 %v2017, %v2016
  %v2041 = vpack.c.bf16 %v2019, %v2018
  %v2042 = vpack.c.bf16 %v2021, %v2020
  %v2043 = vpack.c.bf16 %v2023, %v2022
  %v2044 = vpack.c.bf16 %v2025, %v2024
  %v2045 = vpack.c.bf16 %v2027, %v2026
  %v2046 = vpack.c.bf16 %v2029, %v2028
  %v2047 = vpack.c.bf16 %v2031, %v2030
  %v2048 = vld [vmem:[%s8] sm:$0xf]
  %v2049 = vld [vmem:[%s8 + $0x4] sm:$0xf]
  %v2050 = vld [vmem:[%s8 + $0x8] sm:$0xf]
  %v2051 = vld [vmem:[%s8 + $0xc] sm:$0xf]
  %v2052 = vld [vmem:[%s8 + $0x10] sm:$0xf]
  %v2053 = vld [vmem:[%s8 + $0x14] sm:$0xf]
  %v2054 = vld [vmem:[%s8 + $0x18] sm:$0xf]
  %v2055 = vld [vmem:[%s8 + $0x1c] sm:$0xf]
  %v2056 = vld [vmem:[%s8 + $0x20] sm:$0xf]
  %v2057 = vld [vmem:[%s8 + $0x24] sm:$0xf]
  %v2058 = vld [vmem:[%s8 + $0x28] sm:$0xf]
  %v2059 = vld [vmem:[%s8 + $0x2c] sm:$0xf]
  %v2060 = vld [vmem:[%s8 + $0x30] sm:$0xf]
  %v2061 = vld [vmem:[%s8 + $0x34] sm:$0xf]
  %v2062 = vld [vmem:[%s8 + $0x38] sm:$0xf]
  %v2063 = vld [vmem:[%s8 + $0x3c] sm:$0xf]
  %v2064 = vld [vmem:[%s11] sm:$0x1]
  %v2066 = vperm.slane %v2064, 0
  %v2084 = vunpack.c.l.b16 %v2048
  %v2085 = vunpack.c.l.b16 %v2049
  %v2086 = vunpack.c.l.b16 %v2050
  %v2087 = vunpack.c.l.b16 %v2051
  %v2088 = vunpack.c.l.b16 %v2052
  %v2089 = vunpack.c.l.b16 %v2053
  %v2090 = vunpack.c.l.b16 %v2054
  %v2091 = vunpack.c.l.b16 %v2055
  %v2092 = vunpack.c.l.b16 %v2056
  %v2093 = vunpack.c.l.b16 %v2057
  %v2094 = vunpack.c.l.b16 %v2058
  %v2095 = vunpack.c.l.b16 %v2059
  %v2096 = vunpack.c.l.b16 %v2060
  %v2097 = vunpack.c.l.b16 %v2061
  %v2098 = vunpack.c.l.b16 %v2062
  %v2099 = vunpack.c.l.b16 %v2063
  %v2100 = vpack.c.b16 %v2085, %v2084
  %v2101 = vpack.c.b16 %v2087, %v2086
  %v2102 = vpack.c.b16 %v2089, %v2088
  %v2103 = vpack.c.b16 %v2091, %v2090
  %v2104 = vpack.c.b16 %v2093, %v2092
  %v2105 = vpack.c.b16 %v2095, %v2094
  %v2106 = vpack.c.b16 %v2097, %v2096
  %v2107 = vpack.c.b16 %v2099, %v2098
  %2116 = vmatpush.bf16.msra.mxu0 %v2107
  %2117 = vmatpush.bf16.msra.mxu0 %v2106
  %2118 = vmatpush.bf16.msra.mxu0 %v2105
  %2119 = vmatpush.bf16.msra.mxu0 %v2104
  %2120 = vmatpush.bf16.msra.mxu0 %v2103
  %2121 = vmatpush.bf16.msra.mxu0 %v2102
  %2122 = vmatpush.bf16.msra.mxu0 %v2101
  %2123 = vmatpush.bf16.msra.mxu0 %v2100
  %2124 = vmatmul.bf16.gmra.mxu0 %v2032
  %v2125 = vpop.f32.mrf.mxu0
  %v2126 = vadd.f32 %v2066, %v2125
  %v2127 = vpop.f32.mrf.mxu0
  %v2128 = vadd.f32 %v2066, %v2127
  %2129 = vmatmul.bf16.gmra.mxu0 %v2033
  %v2130 = vpop.f32.mrf.mxu0
  %v2131 = vadd.f32 %v2066, %v2130
  %v2132 = vpop.f32.mrf.mxu0
  %v2133 = vadd.f32 %v2066, %v2132
  %2134 = vmatmul.bf16.gmra.mxu0 %v2034
  %v2135 = vpop.f32.mrf.mxu0
  %v2136 = vadd.f32 %v2066, %v2135
  %v2137 = vpop.f32.mrf.mxu0
  %v2138 = vadd.f32 %v2066, %v2137
  %2139 = vmatmul.bf16.gmra.mxu0 %v2035
  %v2140 = vpop.f32.mrf.mxu0
  %v2141 = vadd.f32 %v2066, %v2140
  %v2142 = vpop.f32.mrf.mxu0
  %v2143 = vadd.f32 %v2066, %v2142
  %2144 = vmatmul.bf16.gmra.mxu0 %v2036
  %v2145 = vpop.f32.mrf.mxu0
  %v2146 = vadd.f32 %v2066, %v2145
  %v2147 = vpop.f32.mrf.mxu0
  %v2148 = vadd.f32 %v2066, %v2147
  %2149 = vmatmul.bf16.gmra.mxu0 %v2037
  %v2150 = vpop.f32.mrf.mxu0
  %v2151 = vadd.f32 %v2066, %v2150
  %v2152 = vpop.f32.mrf.mxu0
  %v2153 = vadd.f32 %v2066, %v2152
  %2154 = vmatmul.bf16.gmra.mxu0 %v2038
  %v2155 = vpop.f32.mrf.mxu0
  %v2156 = vadd.f32 %v2066, %v2155
  %v2157 = vpop.f32.mrf.mxu0
  %v2158 = vadd.f32 %v2066, %v2157
  %2159 = vmatmul.bf16.gmra.mxu0 %v2039
  %v2160 = vpop.f32.mrf.mxu0
  %v2161 = vadd.f32 %v2066, %v2160
  %v2162 = vpop.f32.mrf.mxu0
  %v2163 = vadd.f32 %v2066, %v2162
  %2164 = vmatmul.bf16.gmra.mxu0 %v2040
  %v2165 = vpop.f32.mrf.mxu0
  %v2166 = vadd.f32 %v2066, %v2165
  %v2167 = vpop.f32.mrf.mxu0
  %v2168 = vadd.f32 %v2066, %v2167
  %2169 = vmatmul.bf16.gmra.mxu0 %v2041
  %v2170 = vpop.f32.mrf.mxu0
  %v2171 = vadd.f32 %v2066, %v2170
  %v2172 = vpop.f32.mrf.mxu0
  %v2173 = vadd.f32 %v2066, %v2172
  %2174 = vmatmul.bf16.gmra.mxu0 %v2042
  %v2175 = vpop.f32.mrf.mxu0
  %v2176 = vadd.f32 %v2066, %v2175
  %v2177 = vpop.f32.mrf.mxu0
  %v2178 = vadd.f32 %v2066, %v2177
  %2179 = vmatmul.bf16.gmra.mxu0 %v2043
  %v2180 = vpop.f32.mrf.mxu0
  %v2181 = vadd.f32 %v2066, %v2180
  %v2182 = vpop.f32.mrf.mxu0
  %v2183 = vadd.f32 %v2066, %v2182
  %2184 = vmatmul.bf16.gmra.mxu0 %v2044
  %v2185 = vpop.f32.mrf.mxu0
  %v2186 = vadd.f32 %v2066, %v2185
  %v2187 = vpop.f32.mrf.mxu0
  %v2188 = vadd.f32 %v2066, %v2187
  %2189 = vmatmul.bf16.gmra.mxu0 %v2045
  %v2190 = vpop.f32.mrf.mxu0
  %v2191 = vadd.f32 %v2066, %v2190
  %v2192 = vpop.f32.mrf.mxu0
  %v2193 = vadd.f32 %v2066, %v2192
  %2194 = vmatmul.bf16.gmra.mxu0 %v2046
  %v2195 = vpop.f32.mrf.mxu0
  %v2196 = vadd.f32 %v2066, %v2195
  %v2197 = vpop.f32.mrf.mxu0
  %v2198 = vadd.f32 %v2066, %v2197
  %2199 = vmatmul.bf16.gmra.mxu0 %v2047
  %v2200 = vpop.f32.mrf.mxu0
  %v2201 = vadd.f32 %v2066, %v2200
  %v2202 = vpop.f32.mrf.mxu0
  %v2203 = vadd.f32 %v2066, %v2202
  %2204 = vdwg.mxu0
  %v2205 = vmax.f32 %v2126, 0.0
  %v2206 = vmax.f32 %v2128, 0.0
  %v2207 = vmax.f32 %v2131, 0.0
  %v2208 = vmax.f32 %v2133, 0.0
  %v2209 = vmax.f32 %v2136, 0.0
  %v2210 = vmax.f32 %v2138, 0.0
  %v2211 = vmax.f32 %v2141, 0.0
  %v2212 = vmax.f32 %v2143, 0.0
  %v2213 = vmax.f32 %v2146, 0.0
  %v2214 = vmax.f32 %v2148, 0.0
  %v2215 = vmax.f32 %v2151, 0.0
  %v2216 = vmax.f32 %v2153, 0.0
  %v2217 = vmax.f32 %v2156, 0.0
  %v2218 = vmax.f32 %v2158, 0.0
  %v2219 = vmax.f32 %v2161, 0.0
  %v2220 = vmax.f32 %v2163, 0.0
  %v2221 = vmax.f32 %v2166, 0.0
  %v2222 = vmax.f32 %v2168, 0.0
  %v2223 = vmax.f32 %v2171, 0.0
  %v2224 = vmax.f32 %v2173, 0.0
  %v2225 = vmax.f32 %v2176, 0.0
  %v2226 = vmax.f32 %v2178, 0.0
  %v2227 = vmax.f32 %v2181, 0.0
  %v2228 = vmax.f32 %v2183, 0.0
  %v2229 = vmax.f32 %v2186, 0.0
  %v2230 = vmax.f32 %v2188, 0.0
  %v2231 = vmax.f32 %v2191, 0.0
  %v2232 = vmax.f32 %v2193, 0.0
  %v2233 = vmax.f32 %v2196, 0.0
  %v2234 = vmax.f32 %v2198, 0.0
  %v2235 = vmax.f32 %v2201, 0.0
  %v2236 = vmax.f32 %v2203, 0.0
  %v2237 = vpack.c.bf16 %v2205, %v2205
  %v2238 = vpack.c.bf16 %v2206, %v2206
  %v2239 = vpack.c.bf16 %v2207, %v2207
  %v2240 = vpack.c.bf16 %v2208, %v2208
  %v2241 = vpack.c.bf16 %v2209, %v2209
  %v2242 = vpack.c.bf16 %v2210, %v2210
  %v2243 = vpack.c.bf16 %v2211, %v2211
  %v2244 = vpack.c.bf16 %v2212, %v2212
  %v2245 = vpack.c.bf16 %v2213, %v2213
  %v2246 = vpack.c.bf16 %v2214, %v2214
  %v2247 = vpack.c.bf16 %v2215, %v2215
  %v2248 = vpack.c.bf16 %v2216, %v2216
  %v2249 = vpack.c.bf16 %v2217, %v2217
  %v2250 = vpack.c.bf16 %v2218, %v2218
  %v2251 = vpack.c.bf16 %v2219, %v2219
  %v2252 = vpack.c.bf16 %v2220, %v2220
  %v2253 = vpack.c.bf16 %v2221, %v2221
  %v2254 = vpack.c.bf16 %v2222, %v2222
  %v2255 = vpack.c.bf16 %v2223, %v2223
  %v2256 = vpack.c.bf16 %v2224, %v2224
  %v2257 = vpack.c.bf16 %v2225, %v2225
  %v2258 = vpack.c.bf16 %v2226, %v2226
  %v2259 = vpack.c.bf16 %v2227, %v2227
  %v2260 = vpack.c.bf16 %v2228, %v2228
  %v2261 = vpack.c.bf16 %v2229, %v2229
  %v2262 = vpack.c.bf16 %v2230, %v2230
  %v2263 = vpack.c.bf16 %v2231, %v2231
  %v2264 = vpack.c.bf16 %v2232, %v2232
  %v2265 = vpack.c.bf16 %v2233, %v2233
  %v2266 = vpack.c.bf16 %v2234, %v2234
  %v2267 = vpack.c.bf16 %v2235, %v2235
  %v2268 = vpack.c.bf16 %v2236, %v2236
  %2269 = vst [vmem:[%s12] sm:$0xf] %v2237
  %2270 = vst [vmem:[%s12 + $0x4] sm:$0xf] %v2238
  %2271 = vst [vmem:[%s12 + $0x8] sm:$0xf] %v2239
  %2272 = vst [vmem:[%s12 + $0xc] sm:$0xf] %v2240
  %2273 = vst [vmem:[%s12 + $0x10] sm:$0xf] %v2241
  %2274 = vst [vmem:[%s12 + $0x14] sm:$0xf] %v2242
  %2275 = vst [vmem:[%s12 + $0x18] sm:$0xf] %v2243
  %2276 = vst [vmem:[%s12 + $0x1c] sm:$0xf] %v2244
  %2277 = vst [vmem:[%s12 + $0x20] sm:$0xf] %v2245
  %2278 = vst [vmem:[%s12 + $0x24] sm:$0xf] %v2246
  %2279 = vst [vmem:[%s12 + $0x28] sm:$0xf] %v2247
  %2280 = vst [vmem:[%s12 + $0x2c] sm:$0xf] %v2248
  %2281 = vst [vmem:[%s12 + $0x30] sm:$0xf] %v2249
  %2282 = vst [vmem:[%s12 + $0x34] sm:$0xf] %v2250
  %2283 = vst [vmem:[%s12 + $0x38] sm:$0xf] %v2251
  %2284 = vst [vmem:[%s12 + $0x3c] sm:$0xf] %v2252
  %2285 = vst [vmem:[%s12 + $0x40] sm:$0xf] %v2253
  %2286 = vst [vmem:[%s12 + $0x44] sm:$0xf] %v2254
  %2287 = vst [vmem:[%s12 + $0x48] sm:$0xf] %v2255
  %2288 = vst [vmem:[%s12 + $0x4c] sm:$0xf] %v2256
  %2289 = vst [vmem:[%s12 + $0x50] sm:$0xf] %v2257
  %2290 = vst [vmem:[%s12 + $0x54] sm:$0xf] %v2258
  %2291 = vst [vmem:[%s12 + $0x58] sm:$0xf] %v2259
  %2292 = vst [vmem:[%s12 + $0x5c] sm:$0xf] %v2260
  %2293 = vst [vmem:[%s12 + $0x60] sm:$0xf] %v2261
  %2294 = vst [vmem:[%s12 + $0x64] sm:$0xf] %v2262
  %2295 = vst [vmem:[%s12 + $0x68] sm:$0xf] %v2263
  %2296 = vst [vmem:[%s12 + $0x6c] sm:$0xf] %v2264
  %2297 = vst [vmem:[%s12 + $0x70] sm:$0xf] %v2265
  %2298 = vst [vmem:[%s12 + $0x74] sm:$0xf] %v2266
  %2299 = vst [vmem:[%s12 + $0x78] sm:$0xf] %v2267
  %2300 = vst [vmem:[%s12 + $0x7c] sm:$0xf] %v2268
  // Predicated region
  $region50: #{gnn_forward.23} parent=0 // pred_check
    _
  $region51: #{gnn_forward.23} parent=0 // pred_check_branch
    %2302 = sbr.rel (0) target = $region53
  $region52: #{gnn_forward.23} parent=0 // pred_region
    _
  $region53: #{gnn_forward.23} parent=0 // pred_fallthru
    _
  // Predicated region
  $region54: #{gnn_forward.23} parent=0 // pred_check
    _
  $region55: #{gnn_forward.23} parent=0 // pred_check_branch
    %2304 = sbr.rel (0) target = $region57
  $region56: #{gnn_forward.23} parent=0 // pred_region
    _
  $region57: #{gnn_forward.23} parent=0 // pred_fallthru
    _

// kernel: gnn_forward.27
$region0: #{gnn_forward.27}
  #allocation0 [shape = 'u32[]', space=smem, size = 0x4, offset = 0x4, fixed_abs, tag = 'smem constant byte address 0x4 - core index']
  #allocation1 [shape = 'u32[72,128]{1,0:T(1,128)}', space=vmem, size = 0x9000, scoped, tag = 'internal scratch']
  %s0 = inlined_call_operand.vmem [shape: bf16[256,128], index: 0, kind: input, shape index: {}]
  %s1 = inlined_call_operand.vmem [shape: f32[256,128], index: 1, kind: input, shape index: {}]
  %s2 = inlined_call_operand.vmem [shape: f32[256,128], index: 2, kind: input, shape index: {}]
  %s3 = inlined_call_operand.vmem [shape: f32[256,128], index: 3, kind: input, shape index: {}]
  %s4 = inlined_call_operand.vmem [shape: bf16[256,128], index: 4, kind: input, shape index: {}]
  %s5 = inlined_call_operand.vmem [shape: bf16[640,128], index: 5, kind: input, shape index: {}]
  %s6 = inlined_call_operand.vmem [shape: bf16[128,128], index: 6, kind: input, shape index: {}]
  %s7 = inlined_call_operand.vmem [shape: bf16[128,128], index: 7, kind: input, shape index: {}]
  %s8 = inlined_call_operand.vmem [shape: f32[1,128], index: 8, kind: input, shape index: {}]
  %s9 = inlined_call_operand.vmem [shape: f32[1,128], index: 9, kind: input, shape index: {}]
  %s10 = inlined_call_operand.vmem [shape: f32[1,128], index: 10, kind: input, shape index: {}]
  %s11 = inlined_call_operand.vmem [shape: bf16[256,128], index: 11, kind: output, shape index: {}]
  %s12 = sld [smem:[#allocation0]]
  $region54: #{gnn_forward.27} parent=0
    _
  %s14 = ssub.s32 1, %s12
  %s15 = scalar_select 0, %s14, %s12
  // Predicated region
  $region2: #{gnn_forward.27} parent=0 // pred_check
    _
  $region3: #{gnn_forward.27} parent=0 // pred_check_branch
    %17 = sbr.rel (0) target = $region5
  $region4: #{gnn_forward.27} parent=0 // pred_region
    _
  $region5: #{gnn_forward.27} parent=0 // pred_fallthru
    _
  // Predicated region
  $region6: #{gnn_forward.27} parent=0 // pred_check
    _
  $region7: #{gnn_forward.27} parent=0 // pred_check_branch
    %19 = sbr.rel (0) target = $region9
  $region8: #{gnn_forward.27} parent=0 // pred_region
    _
  $region9: #{gnn_forward.27} parent=0 // pred_fallthru
    _
  // Predicated region
  $region10: #{gnn_forward.27} parent=0 // pred_check
    _
  $region11: #{gnn_forward.27} parent=0 // pred_check_branch
    %21 = sbr.rel (0) target = $region13
  $region12: #{gnn_forward.27} parent=0 // pred_region
    _
  $region13: #{gnn_forward.27} parent=0 // pred_fallthru
    _
  // Predicated region
  $region14: #{gnn_forward.27} parent=0 // pred_check
    _
  $region15: #{gnn_forward.27} parent=0 // pred_check_branch
    %23 = sbr.rel (0) target = $region17
  $region16: #{gnn_forward.27} parent=0 // pred_region
    _
  $region17: #{gnn_forward.27} parent=0 // pred_fallthru
    _
  // Predicated region
  $region18: #{gnn_forward.27} parent=0 // pred_check
    _
  $region19: #{gnn_forward.27} parent=0 // pred_check_branch
    %25 = sbr.rel (0) target = $region21
  $region20: #{gnn_forward.27} parent=0 // pred_region
    _
  $region21: #{gnn_forward.27} parent=0 // pred_fallthru
    _
  // Predicated region
  $region22: #{gnn_forward.27} parent=0 // pred_check
    _
  $region23: #{gnn_forward.27} parent=0 // pred_check_branch
    %27 = sbr.rel (0) target = $region25
  $region24: #{gnn_forward.27} parent=0 // pred_region
    _
  $region25: #{gnn_forward.27} parent=0 // pred_fallthru
    _
  // Predicated region
  $region26: #{gnn_forward.27} parent=0 // pred_check
    _
  $region27: #{gnn_forward.27} parent=0 // pred_check_branch
    %29 = sbr.rel (0) target = $region29
  $region28: #{gnn_forward.27} parent=0 // pred_region
    _
  $region29: #{gnn_forward.27} parent=0 // pred_fallthru
    _
  // Predicated region
  $region30: #{gnn_forward.27} parent=0 // pred_check
    _
  $region31: #{gnn_forward.27} parent=0 // pred_check_branch
    %31 = sbr.rel (0) target = $region33
  $region32: #{gnn_forward.27} parent=0 // pred_region
    _
  $region33: #{gnn_forward.27} parent=0 // pred_fallthru
    _
  // Predicated region
  $region34: #{gnn_forward.27} parent=0 // pred_check
    _
  $region35: #{gnn_forward.27} parent=0 // pred_check_branch
    %33 = sbr.rel (0) target = $region37
  $region36: #{gnn_forward.27} parent=0 // pred_region
    _
  $region37: #{gnn_forward.27} parent=0 // pred_fallthru
    _
  // Predicated region
  $region38: #{gnn_forward.27} parent=0 // pred_check
    _
  $region39: #{gnn_forward.27} parent=0 // pred_check_branch
    %35 = sbr.rel (0) target = $region41
  $region40: #{gnn_forward.27} parent=0 // pred_region
    _
  $region41: #{gnn_forward.27} parent=0 // pred_fallthru
    _
  // Predicated region
  $region42: #{gnn_forward.27} parent=0 // pred_check
    _
  $region43: #{gnn_forward.27} parent=0 // pred_check_branch
    %37 = sbr.rel (0) target = $region45
  $region44: #{gnn_forward.27} parent=0 // pred_region
    _
  $region45: #{gnn_forward.27} parent=0 // pred_fallthru
    _
  %v38 = vld [vmem:[%s0] sm:$0xf]
  %v39 = vld [vmem:[%s0 + $0x4] sm:$0xf]
  %v40 = vld [vmem:[%s0 + $0x8] sm:$0xf]
  %v41 = vld [vmem:[%s0 + $0xc] sm:$0xf]
  %v42 = vld [vmem:[%s0 + $0x10] sm:$0xf]
  %v43 = vld [vmem:[%s0 + $0x14] sm:$0xf]
  %v44 = vld [vmem:[%s0 + $0x18] sm:$0xf]
  %v45 = vld [vmem:[%s0 + $0x1c] sm:$0xf]
  %v46 = vld [vmem:[%s0 + $0x20] sm:$0xf]
  %v47 = vld [vmem:[%s0 + $0x24] sm:$0xf]
  %v48 = vld [vmem:[%s0 + $0x28] sm:$0xf]
  %v49 = vld [vmem:[%s0 + $0x2c] sm:$0xf]
  %v50 = vld [vmem:[%s0 + $0x30] sm:$0xf]
  %v51 = vld [vmem:[%s0 + $0x34] sm:$0xf]
  %v52 = vld [vmem:[%s0 + $0x38] sm:$0xf]
  %v53 = vld [vmem:[%s0 + $0x3c] sm:$0xf]
  %v54 = vld [vmem:[%s0 + $0x40] sm:$0xf]
  %v55 = vld [vmem:[%s0 + $0x44] sm:$0xf]
  %v56 = vld [vmem:[%s0 + $0x48] sm:$0xf]
  %v57 = vld [vmem:[%s0 + $0x4c] sm:$0xf]
  %v58 = vld [vmem:[%s0 + $0x50] sm:$0xf]
  %v59 = vld [vmem:[%s0 + $0x54] sm:$0xf]
  %v60 = vld [vmem:[%s0 + $0x58] sm:$0xf]
  %v61 = vld [vmem:[%s0 + $0x5c] sm:$0xf]
  %v62 = vld [vmem:[%s0 + $0x60] sm:$0xf]
  %v63 = vld [vmem:[%s0 + $0x64] sm:$0xf]
  %v64 = vld [vmem:[%s0 + $0x68] sm:$0xf]
  %v65 = vld [vmem:[%s0 + $0x6c] sm:$0xf]
  %v66 = vld [vmem:[%s0 + $0x70] sm:$0xf]
  %v67 = vld [vmem:[%s0 + $0x74] sm:$0xf]
  %v68 = vld [vmem:[%s0 + $0x78] sm:$0xf]
  %v69 = vld [vmem:[%s0 + $0x7c] sm:$0xf]
  %v70 = vld [vmem:[%s1] sm:$0xff]
  %v71 = vld [vmem:[%s1 + $0x8] sm:$0xff]
  %v72 = vld [vmem:[%s1 + $0x10] sm:$0xff]
  %v73 = vld [vmem:[%s1 + $0x18] sm:$0xff]
  %v74 = vld [vmem:[%s1 + $0x20] sm:$0xff]
  %v75 = vld [vmem:[%s1 + $0x28] sm:$0xff]
  %v76 = vld [vmem:[%s1 + $0x30] sm:$0xff]
  %v77 = vld [vmem:[%s1 + $0x38] sm:$0xff]
  %v78 = vld [vmem:[%s1 + $0x40] sm:$0xff]
  %v79 = vld [vmem:[%s1 + $0x48] sm:$0xff]
  %v80 = vld [vmem:[%s1 + $0x50] sm:$0xff]
  %v81 = vld [vmem:[%s1 + $0x58] sm:$0xff]
  %v82 = vld [vmem:[%s1 + $0x60] sm:$0xff]
  %v83 = vld [vmem:[%s1 + $0x68] sm:$0xff]
  %v84 = vld [vmem:[%s1 + $0x70] sm:$0xff]
  %v85 = vld [vmem:[%s1 + $0x78] sm:$0xff]
  %v86 = vld [vmem:[%s1 + $0x80] sm:$0xff]
  %v87 = vld [vmem:[%s1 + $0x88] sm:$0xff]
  %v88 = vld [vmem:[%s1 + $0x90] sm:$0xff]
  %v89 = vld [vmem:[%s1 + $0x98] sm:$0xff]
  %v90 = vld [vmem:[%s1 + $0xa0] sm:$0xff]
  %v91 = vld [vmem:[%s1 + $0xa8] sm:$0xff]
  %v92 = vld [vmem:[%s1 + $0xb0] sm:$0xff]
  %v93 = vld [vmem:[%s1 + $0xb8] sm:$0xff]
  %v94 = vld [vmem:[%s1 + $0xc0] sm:$0xff]
  %v95 = vld [vmem:[%s1 + $0xc8] sm:$0xff]
  %v96 = vld [vmem:[%s1 + $0xd0] sm:$0xff]
  %v97 = vld [vmem:[%s1 + $0xd8] sm:$0xff]
  %v98 = vld [vmem:[%s1 + $0xe0] sm:$0xff]
  %v99 = vld [vmem:[%s1 + $0xe8] sm:$0xff]
  %v100 = vld [vmem:[%s1 + $0xf0] sm:$0xff]
  %v101 = vld [vmem:[%s1 + $0xf8] sm:$0xff]
  %v102 = vpack.c.bf16 %v70, %v70
  %v103 = vpack.c.bf16 %v71, %v71
  %v104 = vpack.c.bf16 %v72, %v72
  %v105 = vpack.c.bf16 %v73, %v73
  %v106 = vpack.c.bf16 %v74, %v74
  %v107 = vpack.c.bf16 %v75, %v75
  %v108 = vpack.c.bf16 %v76, %v76
  %v109 = vpack.c.bf16 %v77, %v77
  %v110 = vpack.c.bf16 %v78, %v78
  %v111 = vpack.c.bf16 %v79, %v79
  %v112 = vpack.c.bf16 %v80, %v80
  %v113 = vpack.c.bf16 %v81, %v81
  %v114 = vpack.c.bf16 %v82, %v82
  %v115 = vpack.c.bf16 %v83, %v83
  %v116 = vpack.c.bf16 %v84, %v84
  %v117 = vpack.c.bf16 %v85, %v85
  %v118 = vpack.c.bf16 %v86, %v86
  %v119 = vpack.c.bf16 %v87, %v87
  %v120 = vpack.c.bf16 %v88, %v88
  %v121 = vpack.c.bf16 %v89, %v89
  %v122 = vpack.c.bf16 %v90, %v90
  %v123 = vpack.c.bf16 %v91, %v91
  %v124 = vpack.c.bf16 %v92, %v92
  %v125 = vpack.c.bf16 %v93, %v93
  %v126 = vpack.c.bf16 %v94, %v94
  %v127 = vpack.c.bf16 %v95, %v95
  %v128 = vpack.c.bf16 %v96, %v96
  %v129 = vpack.c.bf16 %v97, %v97
  %v130 = vpack.c.bf16 %v98, %v98
  %v131 = vpack.c.bf16 %v99, %v99
  %v132 = vpack.c.bf16 %v100, %v100
  %v133 = vpack.c.bf16 %v101, %v101
  %v166 = vunpack.c.l.b16 %v38
  %v167 = vunpack.c.l.b16 %v39
  %v168 = vunpack.c.l.b16 %v40
  %v169 = vunpack.c.l.b16 %v41
  %v170 = vunpack.c.l.b16 %v42
  %v171 = vunpack.c.l.b16 %v43
  %v172 = vunpack.c.l.b16 %v44
  %v173 = vunpack.c.l.b16 %v45
  %v174 = vunpack.c.l.b16 %v46
  %v175 = vunpack.c.l.b16 %v47
  %v176 = vunpack.c.l.b16 %v48
  %v177 = vunpack.c.l.b16 %v49
  %v178 = vunpack.c.l.b16 %v50
  %v179 = vunpack.c.l.b16 %v51
  %v180 = vunpack.c.l.b16 %v52
  %v181 = vunpack.c.l.b16 %v53
  %v182 = vunpack.c.l.b16 %v54
  %v183 = vunpack.c.l.b16 %v55
  %v184 = vunpack.c.l.b16 %v56
  %v185 = vunpack.c.l.b16 %v57
  %v186 = vunpack.c.l.b16 %v58
  %v187 = vunpack.c.l.b16 %v59
  %v188 = vunpack.c.l.b16 %v60
  %v189 = vunpack.c.l.b16 %v61
  %v190 = vunpack.c.l.b16 %v62
  %v191 = vunpack.c.l.b16 %v63
  %v192 = vunpack.c.l.b16 %v64
  %v193 = vunpack.c.l.b16 %v65
  %v194 = vunpack.c.l.b16 %v66
  %v195 = vunpack.c.l.b16 %v67
  %v196 = vunpack.c.l.b16 %v68
  %v197 = vunpack.c.l.b16 %v69
  %v198 = vpack.c.b16 %v167, %v166
  %v199 = vpack.c.b16 %v169, %v168
  %v200 = vpack.c.b16 %v171, %v170
  %v201 = vpack.c.b16 %v173, %v172
  %v202 = vpack.c.b16 %v175, %v174
  %v203 = vpack.c.b16 %v177, %v176
  %v204 = vpack.c.b16 %v179, %v178
  %v205 = vpack.c.b16 %v181, %v180
  %v206 = vpack.c.b16 %v183, %v182
  %v207 = vpack.c.b16 %v185, %v184
  %v208 = vpack.c.b16 %v187, %v186
  %v209 = vpack.c.b16 %v189, %v188
  %v210 = vpack.c.b16 %v191, %v190
  %v211 = vpack.c.b16 %v193, %v192
  %v212 = vpack.c.b16 %v195, %v194
  %v213 = vpack.c.b16 %v197, %v196
  %v262 = vunpack.c.l.b16 %v102
  %v263 = vunpack.c.l.b16 %v103
  %v264 = vunpack.c.l.b16 %v104
  %v265 = vunpack.c.l.b16 %v105
  %v266 = vunpack.c.l.b16 %v106
  %v267 = vunpack.c.l.b16 %v107
  %v268 = vunpack.c.l.b16 %v108
  %v269 = vunpack.c.l.b16 %v109
  %v270 = vunpack.c.l.b16 %v110
  %v271 = vunpack.c.l.b16 %v111
  %v272 = vunpack.c.l.b16 %v112
  %v273 = vunpack.c.l.b16 %v113
  %v274 = vunpack.c.l.b16 %v114
  %v275 = vunpack.c.l.b16 %v115
  %v276 = vunpack.c.l.b16 %v116
  %v277 = vunpack.c.l.b16 %v117
  %v278 = vunpack.c.l.b16 %v118
  %v279 = vunpack.c.l.b16 %v119
  %v280 = vunpack.c.l.b16 %v120
  %v281 = vunpack.c.l.b16 %v121
  %v282 = vunpack.c.l.b16 %v122
  %v283 = vunpack.c.l.b16 %v123
  %v284 = vunpack.c.l.b16 %v124
  %v285 = vunpack.c.l.b16 %v125
  %v286 = vunpack.c.l.b16 %v126
  %v287 = vunpack.c.l.b16 %v127
  %v288 = vunpack.c.l.b16 %v128
  %v289 = vunpack.c.l.b16 %v129
  %v290 = vunpack.c.l.b16 %v130
  %v291 = vunpack.c.l.b16 %v131
  %v292 = vunpack.c.l.b16 %v132
  %v293 = vunpack.c.l.b16 %v133
  %v294 = vpack.c.b16 %v263, %v262
  %v295 = vpack.c.b16 %v265, %v264
  %v296 = vpack.c.b16 %v267, %v266
  %v297 = vpack.c.b16 %v269, %v268
  %v298 = vpack.c.b16 %v271, %v270
  %v299 = vpack.c.b16 %v273, %v272
  %v300 = vpack.c.b16 %v275, %v274
  %v301 = vpack.c.b16 %v277, %v276
  %v302 = vpack.c.b16 %v279, %v278
  %v303 = vpack.c.b16 %v281, %v280
  %v304 = vpack.c.b16 %v283, %v282
  %v305 = vpack.c.b16 %v285, %v284
  %v306 = vpack.c.b16 %v287, %v286
  %v307 = vpack.c.b16 %v289, %v288
  %v308 = vpack.c.b16 %v291, %v290
  %v309 = vpack.c.b16 %v293, %v292
  %v326 = vld [vmem:[%s5] sm:$0xf]
  %v327 = vld [vmem:[%s5 + $0x4] sm:$0xf]
  %v328 = vld [vmem:[%s5 + $0x8] sm:$0xf]
  %v329 = vld [vmem:[%s5 + $0xc] sm:$0xf]
  %v330 = vld [vmem:[%s5 + $0x10] sm:$0xf]
  %v331 = vld [vmem:[%s5 + $0x14] sm:$0xf]
  %v332 = vld [vmem:[%s5 + $0x18] sm:$0xf]
  %v333 = vld [vmem:[%s5 + $0x1c] sm:$0xf]
  %v334 = vld [vmem:[%s5 + $0x20] sm:$0xf]
  %v335 = vld [vmem:[%s5 + $0x24] sm:$0xf]
  %v336 = vld [vmem:[%s5 + $0x28] sm:$0xf]
  %v337 = vld [vmem:[%s5 + $0x2c] sm:$0xf]
  %v338 = vld [vmem:[%s5 + $0x30] sm:$0xf]
  %v339 = vld [vmem:[%s5 + $0x34] sm:$0xf]
  %v340 = vld [vmem:[%s5 + $0x38] sm:$0xf]
  %v341 = vld [vmem:[%s5 + $0x3c] sm:$0xf]
  %v342 = vld [vmem:[%s5 + $0x40] sm:$0xf]
  %v343 = vld [vmem:[%s5 + $0x44] sm:$0xf]
  %v344 = vld [vmem:[%s5 + $0x48] sm:$0xf]
  %v345 = vld [vmem:[%s5 + $0x4c] sm:$0xf]
  %v346 = vld [vmem:[%s5 + $0x50] sm:$0xf]
  %v347 = vld [vmem:[%s5 + $0x54] sm:$0xf]
  %v348 = vld [vmem:[%s5 + $0x58] sm:$0xf]
  %v349 = vld [vmem:[%s5 + $0x5c] sm:$0xf]
  %v350 = vld [vmem:[%s5 + $0x60] sm:$0xf]
  %v351 = vld [vmem:[%s5 + $0x64] sm:$0xf]
  %v352 = vld [vmem:[%s5 + $0x68] sm:$0xf]
  %v353 = vld [vmem:[%s5 + $0x6c] sm:$0xf]
  %v354 = vld [vmem:[%s5 + $0x70] sm:$0xf]
  %v355 = vld [vmem:[%s5 + $0x74] sm:$0xf]
  %v356 = vld [vmem:[%s5 + $0x78] sm:$0xf]
  %v357 = vld [vmem:[%s5 + $0x7c] sm:$0xf]
  %v358 = vld [vmem:[%s2] sm:$0xff]
  %v359 = vld [vmem:[%s2 + $0x8] sm:$0xff]
  %v360 = vld [vmem:[%s2 + $0x10] sm:$0xff]
  %v361 = vld [vmem:[%s2 + $0x18] sm:$0xff]
  %v362 = vld [vmem:[%s2 + $0x20] sm:$0xff]
  %v363 = vld [vmem:[%s2 + $0x28] sm:$0xff]
  %v364 = vld [vmem:[%s2 + $0x30] sm:$0xff]
  %v365 = vld [vmem:[%s2 + $0x38] sm:$0xff]
  %v366 = vld [vmem:[%s2 + $0x40] sm:$0xff]
  %v367 = vld [vmem:[%s2 + $0x48] sm:$0xff]
  %v368 = vld [vmem:[%s2 + $0x50] sm:$0xff]
  %v369 = vld [vmem:[%s2 + $0x58] sm:$0xff]
  %v370 = vld [vmem:[%s2 + $0x60] sm:$0xff]
  %v371 = vld [vmem:[%s2 + $0x68] sm:$0xff]
  %v372 = vld [vmem:[%s2 + $0x70] sm:$0xff]
  %v373 = vld [vmem:[%s2 + $0x78] sm:$0xff]
  %v374 = vld [vmem:[%s2 + $0x80] sm:$0xff]
  %v375 = vld [vmem:[%s2 + $0x88] sm:$0xff]
  %v376 = vld [vmem:[%s2 + $0x90] sm:$0xff]
  %v377 = vld [vmem:[%s2 + $0x98] sm:$0xff]
  %v378 = vld [vmem:[%s2 + $0xa0] sm:$0xff]
  %v379 = vld [vmem:[%s2 + $0xa8] sm:$0xff]
  %v380 = vld [vmem:[%s2 + $0xb0] sm:$0xff]
  %v381 = vld [vmem:[%s2 + $0xb8] sm:$0xff]
  %v382 = vld [vmem:[%s2 + $0xc0] sm:$0xff]
  %v383 = vld [vmem:[%s2 + $0xc8] sm:$0xff]
  %v384 = vld [vmem:[%s2 + $0xd0] sm:$0xff]
  %v385 = vld [vmem:[%s2 + $0xd8] sm:$0xff]
  %v386 = vld [vmem:[%s2 + $0xe0] sm:$0xff]
  %v387 = vld [vmem:[%s2 + $0xe8] sm:$0xff]
  %v388 = vld [vmem:[%s2 + $0xf0] sm:$0xff]
  %v389 = vld [vmem:[%s2 + $0xf8] sm:$0xff]
  %v390 = vpack.c.bf16 %v358, %v358
  %v391 = vpack.c.bf16 %v359, %v359
  %v392 = vpack.c.bf16 %v360, %v360
  %v393 = vpack.c.bf16 %v361, %v361
  %v394 = vpack.c.bf16 %v362, %v362
  %v395 = vpack.c.bf16 %v363, %v363
  %v396 = vpack.c.bf16 %v364, %v364
  %v397 = vpack.c.bf16 %v365, %v365
  %v398 = vpack.c.bf16 %v366, %v366
  %v399 = vpack.c.bf16 %v367, %v367
  %v400 = vpack.c.bf16 %v368, %v368
  %v401 = vpack.c.bf16 %v369, %v369
  %v402 = vpack.c.bf16 %v370, %v370
  %v403 = vpack.c.bf16 %v371, %v371
  %v404 = vpack.c.bf16 %v372, %v372
  %v405 = vpack.c.bf16 %v373, %v373
  %v406 = vpack.c.bf16 %v374, %v374
  %v407 = vpack.c.bf16 %v375, %v375
  %v408 = vpack.c.bf16 %v376, %v376
  %v409 = vpack.c.bf16 %v377, %v377
  %v410 = vpack.c.bf16 %v378, %v378
  %v411 = vpack.c.bf16 %v379, %v379
  %v412 = vpack.c.bf16 %v380, %v380
  %v413 = vpack.c.bf16 %v381, %v381
  %v414 = vpack.c.bf16 %v382, %v382
  %v415 = vpack.c.bf16 %v383, %v383
  %v416 = vpack.c.bf16 %v384, %v384
  %v417 = vpack.c.bf16 %v385, %v385
  %v418 = vpack.c.bf16 %v386, %v386
  %v419 = vpack.c.bf16 %v387, %v387
  %v420 = vpack.c.bf16 %v388, %v388
  %v421 = vpack.c.bf16 %v389, %v389
  %v422 = vld [vmem:[%s3] sm:$0xff]
  %v423 = vld [vmem:[%s3 + $0x8] sm:$0xff]
  %v424 = vld [vmem:[%s3 + $0x10] sm:$0xff]
  %v425 = vld [vmem:[%s3 + $0x18] sm:$0xff]
  %v426 = vld [vmem:[%s3 + $0x20] sm:$0xff]
  %v427 = vld [vmem:[%s3 + $0x28] sm:$0xff]
  %v428 = vld [vmem:[%s3 + $0x30] sm:$0xff]
  %v429 = vld [vmem:[%s3 + $0x38] sm:$0xff]
  %v430 = vld [vmem:[%s3 + $0x40] sm:$0xff]
  %v431 = vld [vmem:[%s3 + $0x48] sm:$0xff]
  %v432 = vld [vmem:[%s3 + $0x50] sm:$0xff]
  %v433 = vld [vmem:[%s3 + $0x58] sm:$0xff]
  %v434 = vld [vmem:[%s3 + $0x60] sm:$0xff]
  %v435 = vld [vmem:[%s3 + $0x68] sm:$0xff]
  %v436 = vld [vmem:[%s3 + $0x70] sm:$0xff]
  %v437 = vld [vmem:[%s3 + $0x78] sm:$0xff]
  %v438 = vld [vmem:[%s3 + $0x80] sm:$0xff]
  %v439 = vld [vmem:[%s3 + $0x88] sm:$0xff]
  %v440 = vld [vmem:[%s3 + $0x90] sm:$0xff]
  %v441 = vld [vmem:[%s3 + $0x98] sm:$0xff]
  %v442 = vld [vmem:[%s3 + $0xa0] sm:$0xff]
  %v443 = vld [vmem:[%s3 + $0xa8] sm:$0xff]
  %v444 = vld [vmem:[%s3 + $0xb0] sm:$0xff]
  %v445 = vld [vmem:[%s3 + $0xb8] sm:$0xff]
  %v446 = vld [vmem:[%s3 + $0xc0] sm:$0xff]
  %v447 = vld [vmem:[%s3 + $0xc8] sm:$0xff]
  %v448 = vld [vmem:[%s3 + $0xd0] sm:$0xff]
  %v449 = vld [vmem:[%s3 + $0xd8] sm:$0xff]
  %v450 = vld [vmem:[%s3 + $0xe0] sm:$0xff]
  %v451 = vld [vmem:[%s3 + $0xe8] sm:$0xff]
  %v452 = vld [vmem:[%s3 + $0xf0] sm:$0xff]
  %v453 = vld [vmem:[%s3 + $0xf8] sm:$0xff]
  %v454 = vpack.c.bf16 %v422, %v422
  %v455 = vpack.c.bf16 %v423, %v423
  %v456 = vpack.c.bf16 %v424, %v424
  %v457 = vpack.c.bf16 %v425, %v425
  %v458 = vpack.c.bf16 %v426, %v426
  %v459 = vpack.c.bf16 %v427, %v427
  %v460 = vpack.c.bf16 %v428, %v428
  %v461 = vpack.c.bf16 %v429, %v429
  %v462 = vpack.c.bf16 %v430, %v430
  %v463 = vpack.c.bf16 %v431, %v431
  %v464 = vpack.c.bf16 %v432, %v432
  %v465 = vpack.c.bf16 %v433, %v433
  %v466 = vpack.c.bf16 %v434, %v434
  %v467 = vpack.c.bf16 %v435, %v435
  %v468 = vpack.c.bf16 %v436, %v436
  %v469 = vpack.c.bf16 %v437, %v437
  %v470 = vpack.c.bf16 %v438, %v438
  %v471 = vpack.c.bf16 %v439, %v439
  %v472 = vpack.c.bf16 %v440, %v440
  %v473 = vpack.c.bf16 %v441, %v441
  %v474 = vpack.c.bf16 %v442, %v442
  %v475 = vpack.c.bf16 %v443, %v443
  %v476 = vpack.c.bf16 %v444, %v444
  %v477 = vpack.c.bf16 %v445, %v445
  %v478 = vpack.c.bf16 %v446, %v446
  %v479 = vpack.c.bf16 %v447, %v447
  %v480 = vpack.c.bf16 %v448, %v448
  %v481 = vpack.c.bf16 %v449, %v449
  %v482 = vpack.c.bf16 %v450, %v450
  %v483 = vpack.c.bf16 %v451, %v451
  %v484 = vpack.c.bf16 %v452, %v452
  %v485 = vpack.c.bf16 %v453, %v453
  %v518 = vunpack.c.l.b16 %v390
  %v519 = vunpack.c.l.b16 %v391
  %v520 = vunpack.c.l.b16 %v392
  %v521 = vunpack.c.l.b16 %v393
  %v522 = vunpack.c.l.b16 %v394
  %v523 = vunpack.c.l.b16 %v395
  %v524 = vunpack.c.l.b16 %v396
  %v525 = vunpack.c.l.b16 %v397
  %v526 = vunpack.c.l.b16 %v398
  %v527 = vunpack.c.l.b16 %v399
  %v528 = vunpack.c.l.b16 %v400
  %v529 = vunpack.c.l.b16 %v401
  %v530 = vunpack.c.l.b16 %v402
  %v531 = vunpack.c.l.b16 %v403
  %v532 = vunpack.c.l.b16 %v404
  %v533 = vunpack.c.l.b16 %v405
  %v534 = vunpack.c.l.b16 %v406
  %v535 = vunpack.c.l.b16 %v407
  %v536 = vunpack.c.l.b16 %v408
  %v537 = vunpack.c.l.b16 %v409
  %v538 = vunpack.c.l.b16 %v410
  %v539 = vunpack.c.l.b16 %v411
  %v540 = vunpack.c.l.b16 %v412
  %v541 = vunpack.c.l.b16 %v413
  %v542 = vunpack.c.l.b16 %v414
  %v543 = vunpack.c.l.b16 %v415
  %v544 = vunpack.c.l.b16 %v416
  %v545 = vunpack.c.l.b16 %v417
  %v546 = vunpack.c.l.b16 %v418
  %v547 = vunpack.c.l.b16 %v419
  %v548 = vunpack.c.l.b16 %v420
  %v549 = vunpack.c.l.b16 %v421
  %v550 = vpack.c.b16 %v519, %v518
  %v551 = vpack.c.b16 %v521, %v520
  %v552 = vpack.c.b16 %v523, %v522
  %v553 = vpack.c.b16 %v525, %v524
  %v554 = vpack.c.b16 %v527, %v526
  %v555 = vpack.c.b16 %v529, %v528
  %v556 = vpack.c.b16 %v531, %v530
  %v557 = vpack.c.b16 %v533, %v532
  %v558 = vpack.c.b16 %v535, %v534
  %v559 = vpack.c.b16 %v537, %v536
  %v560 = vpack.c.b16 %v539, %v538
  %v561 = vpack.c.b16 %v541, %v540
  %v562 = vpack.c.b16 %v543, %v542
  %v563 = vpack.c.b16 %v545, %v544
  %v564 = vpack.c.b16 %v547, %v546
  %v565 = vpack.c.b16 %v549, %v548
  %v614 = vunpack.c.l.b16 %v454
  %v615 = vunpack.c.l.b16 %v455
  %v616 = vunpack.c.l.b16 %v456
  %v617 = vunpack.c.l.b16 %v457
  %v618 = vunpack.c.l.b16 %v458
  %v619 = vunpack.c.l.b16 %v459
  %v620 = vunpack.c.l.b16 %v460
  %v621 = vunpack.c.l.b16 %v461
  %v622 = vunpack.c.l.b16 %v462
  %v623 = vunpack.c.l.b16 %v463
  %v624 = vunpack.c.l.b16 %v464
  %v625 = vunpack.c.l.b16 %v465
  %v626 = vunpack.c.l.b16 %v466
  %v627 = vunpack.c.l.b16 %v467
  %v628 = vunpack.c.l.b16 %v468
  %v629 = vunpack.c.l.b16 %v469
  %v630 = vunpack.c.l.b16 %v470
  %v631 = vunpack.c.l.b16 %v471
  %v632 = vunpack.c.l.b16 %v472
  %v633 = vunpack.c.l.b16 %v473
  %v634 = vunpack.c.l.b16 %v474
  %v635 = vunpack.c.l.b16 %v475
  %v636 = vunpack.c.l.b16 %v476
  %v637 = vunpack.c.l.b16 %v477
  %v638 = vunpack.c.l.b16 %v478
  %v639 = vunpack.c.l.b16 %v479
  %v640 = vunpack.c.l.b16 %v480
  %v641 = vunpack.c.l.b16 %v481
  %v642 = vunpack.c.l.b16 %v482
  %v643 = vunpack.c.l.b16 %v483
  %v644 = vunpack.c.l.b16 %v484
  %v645 = vunpack.c.l.b16 %v485
  %v646 = vpack.c.b16 %v615, %v614
  %v647 = vpack.c.b16 %v617, %v616
  %v648 = vpack.c.b16 %v619, %v618
  %v649 = vpack.c.b16 %v621, %v620
  %v650 = vpack.c.b16 %v623, %v622
  %v651 = vpack.c.b16 %v625, %v624
  %v652 = vpack.c.b16 %v627, %v626
  %v653 = vpack.c.b16 %v629, %v628
  %v654 = vpack.c.b16 %v631, %v630
  %v655 = vpack.c.b16 %v633, %v632
  %v656 = vpack.c.b16 %v635, %v634
  %v657 = vpack.c.b16 %v637, %v636
  %v658 = vpack.c.b16 %v639, %v638
  %v659 = vpack.c.b16 %v641, %v640
  %v660 = vpack.c.b16 %v643, %v642
  %v661 = vpack.c.b16 %v645, %v644
  %v678 = vld [vmem:[%s5 + $0x80] sm:$0xf]
  %v679 = vld [vmem:[%s5 + $0x84] sm:$0xf]
  %v680 = vld [vmem:[%s5 + $0x88] sm:$0xf]
  %v681 = vld [vmem:[%s5 + $0x8c] sm:$0xf]
  %v682 = vld [vmem:[%s5 + $0x90] sm:$0xf]
  %v683 = vld [vmem:[%s5 + $0x94] sm:$0xf]
  %v684 = vld [vmem:[%s5 + $0x98] sm:$0xf]
  %v685 = vld [vmem:[%s5 + $0x9c] sm:$0xf]
  %v686 = vld [vmem:[%s5 + $0xa0] sm:$0xf]
  %v687 = vld [vmem:[%s5 + $0xa4] sm:$0xf]
  %v688 = vld [vmem:[%s5 + $0xa8] sm:$0xf]
  %v689 = vld [vmem:[%s5 + $0xac] sm:$0xf]
  %v690 = vld [vmem:[%s5 + $0xb0] sm:$0xf]
  %v691 = vld [vmem:[%s5 + $0xb4] sm:$0xf]
  %v692 = vld [vmem:[%s5 + $0xb8] sm:$0xf]
  %v693 = vld [vmem:[%s5 + $0xbc] sm:$0xf]
  %v694 = vld [vmem:[%s5 + $0xc0] sm:$0xf]
  %v695 = vld [vmem:[%s5 + $0xc4] sm:$0xf]
  %v696 = vld [vmem:[%s5 + $0xc8] sm:$0xf]
  %v697 = vld [vmem:[%s5 + $0xcc] sm:$0xf]
  %v698 = vld [vmem:[%s5 + $0xd0] sm:$0xf]
  %v699 = vld [vmem:[%s5 + $0xd4] sm:$0xf]
  %v700 = vld [vmem:[%s5 + $0xd8] sm:$0xf]
  %v701 = vld [vmem:[%s5 + $0xdc] sm:$0xf]
  %v702 = vld [vmem:[%s5 + $0xe0] sm:$0xf]
  %v703 = vld [vmem:[%s5 + $0xe4] sm:$0xf]
  %v704 = vld [vmem:[%s5 + $0xe8] sm:$0xf]
  %v705 = vld [vmem:[%s5 + $0xec] sm:$0xf]
  %v706 = vld [vmem:[%s5 + $0xf0] sm:$0xf]
  %v707 = vld [vmem:[%s5 + $0xf4] sm:$0xf]
  %v708 = vld [vmem:[%s5 + $0xf8] sm:$0xf]
  %v709 = vld [vmem:[%s5 + $0xfc] sm:$0xf]
  %v742 = vunpack.c.l.b16 %v678
  %v743 = vunpack.c.l.b16 %v679
  %v744 = vunpack.c.l.b16 %v680
  %v745 = vunpack.c.l.b16 %v681
  %v746 = vunpack.c.l.b16 %v682
  %v747 = vunpack.c.l.b16 %v683
  %v748 = vunpack.c.l.b16 %v684
  %v749 = vunpack.c.l.b16 %v685
  %v750 = vunpack.c.l.b16 %v686
  %v751 = vunpack.c.l.b16 %v687
  %v752 = vunpack.c.l.b16 %v688
  %v753 = vunpack.c.l.b16 %v689
  %v754 = vunpack.c.l.b16 %v690
  %v755 = vunpack.c.l.b16 %v691
  %v756 = vunpack.c.l.b16 %v692
  %v757 = vunpack.c.l.b16 %v693
  %v758 = vunpack.c.l.b16 %v694
  %v759 = vunpack.c.l.b16 %v695
  %v760 = vunpack.c.l.b16 %v696
  %v761 = vunpack.c.l.b16 %v697
  %v762 = vunpack.c.l.b16 %v698
  %v763 = vunpack.c.l.b16 %v699
  %v764 = vunpack.c.l.b16 %v700
  %v765 = vunpack.c.l.b16 %v701
  %v766 = vunpack.c.l.b16 %v702
  %v767 = vunpack.c.l.b16 %v703
  %v768 = vunpack.c.l.b16 %v704
  %v769 = vunpack.c.l.b16 %v705
  %v770 = vunpack.c.l.b16 %v706
  %v771 = vunpack.c.l.b16 %v707
  %v772 = vunpack.c.l.b16 %v708
  %v773 = vunpack.c.l.b16 %v709
  %v774 = vpack.c.b16 %v743, %v742
  %v775 = vpack.c.b16 %v745, %v744
  %v776 = vpack.c.b16 %v747, %v746
  %v777 = vpack.c.b16 %v749, %v748
  %v778 = vpack.c.b16 %v751, %v750
  %v779 = vpack.c.b16 %v753, %v752
  %v780 = vpack.c.b16 %v755, %v754
  %v781 = vpack.c.b16 %v757, %v756
  %v782 = vpack.c.b16 %v759, %v758
  %v783 = vpack.c.b16 %v761, %v760
  %v784 = vpack.c.b16 %v763, %v762
  %v785 = vpack.c.b16 %v765, %v764
  %v786 = vpack.c.b16 %v767, %v766
  %v787 = vpack.c.b16 %v769, %v768
  %v788 = vpack.c.b16 %v771, %v770
  %v789 = vpack.c.b16 %v773, %v772
  %806 = vmatpush.bf16.msra.mxu0 %v781
  %807 = vmatpush.bf16.msra.mxu0 %v780
  %808 = vmatpush.bf16.msra.mxu0 %v779
  %809 = vmatpush.bf16.msra.mxu0 %v778
  %810 = vmatpush.bf16.msra.mxu0 %v777
  %811 = vmatpush.bf16.msra.mxu0 %v776
  %812 = vmatpush.bf16.msra.mxu0 %v775
  %813 = vmatpush.bf16.msra.mxu0 %v774
  %814 = vmatmul.bf16.gmra.mxu0 %v550
  %v815 = vpop.f32.mrf.mxu0
  %v816 = vadd.f32 0.0, %v815
  %v817 = vpop.f32.mrf.mxu0
  %v818 = vadd.f32 0.0, %v817
  %819 = vmatmul.bf16.gmra.mxu0 %v551
  %v820 = vpop.f32.mrf.mxu0
  %v821 = vadd.f32 0.0, %v820
  %v822 = vpop.f32.mrf.mxu0
  %v823 = vadd.f32 0.0, %v822
  %824 = vmatmul.bf16.gmra.mxu0 %v552
  %v825 = vpop.f32.mrf.mxu0
  %v826 = vadd.f32 0.0, %v825
  %v827 = vpop.f32.mrf.mxu0
  %v828 = vadd.f32 0.0, %v827
  %829 = vmatmul.bf16.gmra.mxu0 %v553
  %v830 = vpop.f32.mrf.mxu0
  %v831 = vadd.f32 0.0, %v830
  %v832 = vpop.f32.mrf.mxu0
  %v833 = vadd.f32 0.0, %v832
  %834 = vmatmul.bf16.gmra.mxu0 %v554
  %v835 = vpop.f32.mrf.mxu0
  %v836 = vadd.f32 0.0, %v835
  %v837 = vpop.f32.mrf.mxu0
  %v838 = vadd.f32 0.0, %v837
  %839 = vmatmul.bf16.gmra.mxu0 %v555
  %v840 = vpop.f32.mrf.mxu0
  %v841 = vadd.f32 0.0, %v840
  %v842 = vpop.f32.mrf.mxu0
  %v843 = vadd.f32 0.0, %v842
  %844 = vmatmul.bf16.gmra.mxu0 %v556
  %v845 = vpop.f32.mrf.mxu0
  %v846 = vadd.f32 0.0, %v845
  %v847 = vpop.f32.mrf.mxu0
  %v848 = vadd.f32 0.0, %v847
  %849 = vmatmul.bf16.gmra.mxu0 %v557
  %v850 = vpop.f32.mrf.mxu0
  %v851 = vadd.f32 0.0, %v850
  %v852 = vpop.f32.mrf.mxu0
  %v853 = vadd.f32 0.0, %v852
  %854 = vmatmul.bf16.gmra.mxu0 %v558
  %v855 = vpop.f32.mrf.mxu0
  %v856 = vadd.f32 0.0, %v855
  %v857 = vpop.f32.mrf.mxu0
  %v858 = vadd.f32 0.0, %v857
  %859 = vmatmul.bf16.gmra.mxu0 %v559
  %v860 = vpop.f32.mrf.mxu0
  %v861 = vadd.f32 0.0, %v860
  %v862 = vpop.f32.mrf.mxu0
  %v863 = vadd.f32 0.0, %v862
  %864 = vmatmul.bf16.gmra.mxu0 %v560
  %v865 = vpop.f32.mrf.mxu0
  %v866 = vadd.f32 0.0, %v865
  %v867 = vpop.f32.mrf.mxu0
  %v868 = vadd.f32 0.0, %v867
  %869 = vmatmul.bf16.gmra.mxu0 %v561
  %v870 = vpop.f32.mrf.mxu0
  %v871 = vadd.f32 0.0, %v870
  %v872 = vpop.f32.mrf.mxu0
  %v873 = vadd.f32 0.0, %v872
  %874 = vmatmul.bf16.gmra.mxu0 %v562
  %v875 = vpop.f32.mrf.mxu0
  %v876 = vadd.f32 0.0, %v875
  %v877 = vpop.f32.mrf.mxu0
  %v878 = vadd.f32 0.0, %v877
  %879 = vmatmul.bf16.gmra.mxu0 %v563
  %v880 = vpop.f32.mrf.mxu0
  %v881 = vadd.f32 0.0, %v880
  %v882 = vpop.f32.mrf.mxu0
  %v883 = vadd.f32 0.0, %v882
  %884 = vmatmul.bf16.gmra.mxu0 %v564
  %v885 = vpop.f32.mrf.mxu0
  %v886 = vadd.f32 0.0, %v885
  %v887 = vpop.f32.mrf.mxu0
  %v888 = vadd.f32 0.0, %v887
  %889 = vmatmul.bf16.gmra.mxu0 %v565
  %v890 = vpop.f32.mrf.mxu0
  %v891 = vadd.f32 0.0, %v890
  %v892 = vpop.f32.mrf.mxu0
  %v893 = vadd.f32 0.0, %v892
  %894 = vdwg.mxu0
  %895 = vmatpush.bf16.msra.mxu0 %v789
  %896 = vmatpush.bf16.msra.mxu0 %v788
  %897 = vmatpush.bf16.msra.mxu0 %v787
  %898 = vmatpush.bf16.msra.mxu0 %v786
  %899 = vmatpush.bf16.msra.mxu0 %v785
  %900 = vmatpush.bf16.msra.mxu0 %v784
  %901 = vmatpush.bf16.msra.mxu0 %v783
  %902 = vmatpush.bf16.msra.mxu0 %v782
  %903 = vmatmul.bf16.gmra.mxu0 %v646
  %v904 = vpop.f32.mrf.mxu0
  %v905 = vadd.f32 %v816, %v904
  %v906 = vpop.f32.mrf.mxu0
  %v907 = vadd.f32 %v818, %v906
  %908 = vmatmul.bf16.gmra.mxu0 %v647
  %v909 = vpop.f32.mrf.mxu0
  %v910 = vadd.f32 %v821, %v909
  %v911 = vpop.f32.mrf.mxu0
  %v912 = vadd.f32 %v823, %v911
  %913 = vmatmul.bf16.gmra.mxu0 %v648
  %v914 = vpop.f32.mrf.mxu0
  %v915 = vadd.f32 %v826, %v914
  %v916 = vpop.f32.mrf.mxu0
  %v917 = vadd.f32 %v828, %v916
  %918 = vmatmul.bf16.gmra.mxu0 %v649
  %v919 = vpop.f32.mrf.mxu0
  %v920 = vadd.f32 %v831, %v919
  %v921 = vpop.f32.mrf.mxu0
  %v922 = vadd.f32 %v833, %v921
  %923 = vmatmul.bf16.gmra.mxu0 %v650
  %v924 = vpop.f32.mrf.mxu0
  %v925 = vadd.f32 %v836, %v924
  %v926 = vpop.f32.mrf.mxu0
  %v927 = vadd.f32 %v838, %v926
  %928 = vmatmul.bf16.gmra.mxu0 %v651
  %v929 = vpop.f32.mrf.mxu0
  %v930 = vadd.f32 %v841, %v929
  %v931 = vpop.f32.mrf.mxu0
  %v932 = vadd.f32 %v843, %v931
  %933 = vmatmul.bf16.gmra.mxu0 %v652
  %v934 = vpop.f32.mrf.mxu0
  %v935 = vadd.f32 %v846, %v934
  %v936 = vpop.f32.mrf.mxu0
  %v937 = vadd.f32 %v848, %v936
  %938 = vmatmul.bf16.gmra.mxu0 %v653
  %v939 = vpop.f32.mrf.mxu0
  %v940 = vadd.f32 %v851, %v939
  %v941 = vpop.f32.mrf.mxu0
  %v942 = vadd.f32 %v853, %v941
  %943 = vmatmul.bf16.gmra.mxu0 %v654
  %v944 = vpop.f32.mrf.mxu0
  %v945 = vadd.f32 %v856, %v944
  %v946 = vpop.f32.mrf.mxu0
  %v947 = vadd.f32 %v858, %v946
  %948 = vmatmul.bf16.gmra.mxu0 %v655
  %v949 = vpop.f32.mrf.mxu0
  %v950 = vadd.f32 %v861, %v949
  %v951 = vpop.f32.mrf.mxu0
  %v952 = vadd.f32 %v863, %v951
  %953 = vmatmul.bf16.gmra.mxu0 %v656
  %v954 = vpop.f32.mrf.mxu0
  %v955 = vadd.f32 %v866, %v954
  %v956 = vpop.f32.mrf.mxu0
  %v957 = vadd.f32 %v868, %v956
  %958 = vmatmul.bf16.gmra.mxu0 %v657
  %v959 = vpop.f32.mrf.mxu0
  %v960 = vadd.f32 %v871, %v959
  %v961 = vpop.f32.mrf.mxu0
  %v962 = vadd.f32 %v873, %v961
  %963 = vmatmul.bf16.gmra.mxu0 %v658
  %v964 = vpop.f32.mrf.mxu0
  %v965 = vadd.f32 %v876, %v964
  %v966 = vpop.f32.mrf.mxu0
  %v967 = vadd.f32 %v878, %v966
  %968 = vmatmul.bf16.gmra.mxu0 %v659
  %v969 = vpop.f32.mrf.mxu0
  %v970 = vadd.f32 %v881, %v969
  %v971 = vpop.f32.mrf.mxu0
  %v972 = vadd.f32 %v883, %v971
  %973 = vmatmul.bf16.gmra.mxu0 %v660
  %v974 = vpop.f32.mrf.mxu0
  %v975 = vadd.f32 %v886, %v974
  %v976 = vpop.f32.mrf.mxu0
  %v977 = vadd.f32 %v888, %v976
  %978 = vmatmul.bf16.gmra.mxu0 %v661
  %v979 = vpop.f32.mrf.mxu0
  %v980 = vadd.f32 %v891, %v979
  %v981 = vpop.f32.mrf.mxu0
  %v982 = vadd.f32 %v893, %v981
  %983 = vdwg.mxu0
  %v1016 = vunpack.c.l.b16 %v326
  %v1017 = vunpack.c.l.b16 %v327
  %v1018 = vunpack.c.l.b16 %v328
  %v1019 = vunpack.c.l.b16 %v329
  %v1020 = vunpack.c.l.b16 %v330
  %v1021 = vunpack.c.l.b16 %v331
  %v1022 = vunpack.c.l.b16 %v332
  %v1023 = vunpack.c.l.b16 %v333
  %v1024 = vunpack.c.l.b16 %v334
  %v1025 = vunpack.c.l.b16 %v335
  %v1026 = vunpack.c.l.b16 %v336
  %v1027 = vunpack.c.l.b16 %v337
  %v1028 = vunpack.c.l.b16 %v338
  %v1029 = vunpack.c.l.b16 %v339
  %v1030 = vunpack.c.l.b16 %v340
  %v1031 = vunpack.c.l.b16 %v341
  %v1032 = vunpack.c.l.b16 %v342
  %v1033 = vunpack.c.l.b16 %v343
  %v1034 = vunpack.c.l.b16 %v344
  %v1035 = vunpack.c.l.b16 %v345
  %v1036 = vunpack.c.l.b16 %v346
  %v1037 = vunpack.c.l.b16 %v347
  %v1038 = vunpack.c.l.b16 %v348
  %v1039 = vunpack.c.l.b16 %v349
  %v1040 = vunpack.c.l.b16 %v350
  %v1041 = vunpack.c.l.b16 %v351
  %v1042 = vunpack.c.l.b16 %v352
  %v1043 = vunpack.c.l.b16 %v353
  %v1044 = vunpack.c.l.b16 %v354
  %v1045 = vunpack.c.l.b16 %v355
  %v1046 = vunpack.c.l.b16 %v356
  %v1047 = vunpack.c.l.b16 %v357
  %v1048 = vpack.c.b16 %v1017, %v1016
  %v1049 = vpack.c.b16 %v1019, %v1018
  %v1050 = vpack.c.b16 %v1021, %v1020
  %v1051 = vpack.c.b16 %v1023, %v1022
  %v1052 = vpack.c.b16 %v1025, %v1024
  %v1053 = vpack.c.b16 %v1027, %v1026
  %v1054 = vpack.c.b16 %v1029, %v1028
  %v1055 = vpack.c.b16 %v1031, %v1030
  %v1056 = vpack.c.b16 %v1033, %v1032
  %v1057 = vpack.c.b16 %v1035, %v1034
  %v1058 = vpack.c.b16 %v1037, %v1036
  %v1059 = vpack.c.b16 %v1039, %v1038
  %v1060 = vpack.c.b16 %v1041, %v1040
  %v1061 = vpack.c.b16 %v1043, %v1042
  %v1062 = vpack.c.b16 %v1045, %v1044
  %v1063 = vpack.c.b16 %v1047, %v1046
  %1080 = vmatpush.bf16.msra.mxu0 %v1055
  %1081 = vmatpush.bf16.msra.mxu0 %v1054
  %1082 = vmatpush.bf16.msra.mxu0 %v1053
  %1083 = vmatpush.bf16.msra.mxu0 %v1052
  %1084 = vmatpush.bf16.msra.mxu0 %v1051
  %1085 = vmatpush.bf16.msra.mxu0 %v1050
  %1086 = vmatpush.bf16.msra.mxu0 %v1049
  %1087 = vmatpush.bf16.msra.mxu0 %v1048
  %1088 = vmatmul.bf16.gmra.mxu0 %v198
  %v1089 = vpop.f32.mrf.mxu0
  %v1090 = vadd.f32 %v905, %v1089
  %v1091 = vpop.f32.mrf.mxu0
  %v1092 = vadd.f32 %v907, %v1091
  %1093 = vmatmul.bf16.gmra.mxu0 %v199
  %v1094 = vpop.f32.mrf.mxu0
  %v1095 = vadd.f32 %v910, %v1094
  %v1096 = vpop.f32.mrf.mxu0
  %v1097 = vadd.f32 %v912, %v1096
  %1098 = vmatmul.bf16.gmra.mxu0 %v200
  %v1099 = vpop.f32.mrf.mxu0
  %v1100 = vadd.f32 %v915, %v1099
  %v1101 = vpop.f32.mrf.mxu0
  %v1102 = vadd.f32 %v917, %v1101
  %1103 = vmatmul.bf16.gmra.mxu0 %v201
  %v1104 = vpop.f32.mrf.mxu0
  %v1105 = vadd.f32 %v920, %v1104
  %v1106 = vpop.f32.mrf.mxu0
  %v1107 = vadd.f32 %v922, %v1106
  %1108 = vmatmul.bf16.gmra.mxu0 %v202
  %v1109 = vpop.f32.mrf.mxu0
  %v1110 = vadd.f32 %v925, %v1109
  %v1111 = vpop.f32.mrf.mxu0
  %v1112 = vadd.f32 %v927, %v1111
  %1113 = vmatmul.bf16.gmra.mxu0 %v203
  %v1114 = vpop.f32.mrf.mxu0
  %v1115 = vadd.f32 %v930, %v1114
  %v1116 = vpop.f32.mrf.mxu0
  %v1117 = vadd.f32 %v932, %v1116
  %1118 = vmatmul.bf16.gmra.mxu0 %v204
  %v1119 = vpop.f32.mrf.mxu0
  %v1120 = vadd.f32 %v935, %v1119
  %v1121 = vpop.f32.mrf.mxu0
  %v1122 = vadd.f32 %v937, %v1121
  %1123 = vmatmul.bf16.gmra.mxu0 %v205
  %v1124 = vpop.f32.mrf.mxu0
  %v1125 = vadd.f32 %v940, %v1124
  %v1126 = vpop.f32.mrf.mxu0
  %v1127 = vadd.f32 %v942, %v1126
  %1128 = vmatmul.bf16.gmra.mxu0 %v206
  %v1129 = vpop.f32.mrf.mxu0
  %v1130 = vadd.f32 %v945, %v1129
  %v1131 = vpop.f32.mrf.mxu0
  %v1132 = vadd.f32 %v947, %v1131
  %1133 = vmatmul.bf16.gmra.mxu0 %v207
  %v1134 = vpop.f32.mrf.mxu0
  %v1135 = vadd.f32 %v950, %v1134
  %v1136 = vpop.f32.mrf.mxu0
  %v1137 = vadd.f32 %v952, %v1136
  %1138 = vmatmul.bf16.gmra.mxu0 %v208
  %v1139 = vpop.f32.mrf.mxu0
  %v1140 = vadd.f32 %v955, %v1139
  %v1141 = vpop.f32.mrf.mxu0
  %v1142 = vadd.f32 %v957, %v1141
  %1143 = vmatmul.bf16.gmra.mxu0 %v209
  %v1144 = vpop.f32.mrf.mxu0
  %v1145 = vadd.f32 %v960, %v1144
  %v1146 = vpop.f32.mrf.mxu0
  %v1147 = vadd.f32 %v962, %v1146
  %1148 = vmatmul.bf16.gmra.mxu0 %v210
  %v1149 = vpop.f32.mrf.mxu0
  %v1150 = vadd.f32 %v965, %v1149
  %v1151 = vpop.f32.mrf.mxu0
  %v1152 = vadd.f32 %v967, %v1151
  %1153 = vmatmul.bf16.gmra.mxu0 %v211
  %v1154 = vpop.f32.mrf.mxu0
  %v1155 = vadd.f32 %v970, %v1154
  %v1156 = vpop.f32.mrf.mxu0
  %v1157 = vadd.f32 %v972, %v1156
  %1158 = vmatmul.bf16.gmra.mxu0 %v212
  %v1159 = vpop.f32.mrf.mxu0
  %v1160 = vadd.f32 %v975, %v1159
  %v1161 = vpop.f32.mrf.mxu0
  %v1162 = vadd.f32 %v977, %v1161
  %1163 = vmatmul.bf16.gmra.mxu0 %v213
  %v1164 = vpop.f32.mrf.mxu0
  %v1165 = vadd.f32 %v980, %v1164
  %v1166 = vpop.f32.mrf.mxu0
  %v1167 = vadd.f32 %v982, %v1166
  %1168 = vdwg.mxu0
  %1169 = vmatpush.bf16.msra.mxu0 %v1063
  %1170 = vmatpush.bf16.msra.mxu0 %v1062
  %1171 = vmatpush.bf16.msra.mxu0 %v1061
  %1172 = vmatpush.bf16.msra.mxu0 %v1060
  %1173 = vmatpush.bf16.msra.mxu0 %v1059
  %1174 = vmatpush.bf16.msra.mxu0 %v1058
  %1175 = vmatpush.bf16.msra.mxu0 %v1057
  %1176 = vmatpush.bf16.msra.mxu0 %v1056
  %1177 = vmatmul.bf16.gmra.mxu0 %v294
  %v1178 = vpop.f32.mrf.mxu0
  %v1179 = vadd.f32 %v1090, %v1178
  %v1180 = vpop.f32.mrf.mxu0
  %v1181 = vadd.f32 %v1092, %v1180
  %1182 = vmatmul.bf16.gmra.mxu0 %v295
  %v1183 = vpop.f32.mrf.mxu0
  %v1184 = vadd.f32 %v1095, %v1183
  %v1185 = vpop.f32.mrf.mxu0
  %v1186 = vadd.f32 %v1097, %v1185
  %1187 = vmatmul.bf16.gmra.mxu0 %v296
  %v1188 = vpop.f32.mrf.mxu0
  %v1189 = vadd.f32 %v1100, %v1188
  %v1190 = vpop.f32.mrf.mxu0
  %v1191 = vadd.f32 %v1102, %v1190
  %1192 = vmatmul.bf16.gmra.mxu0 %v297
  %v1193 = vpop.f32.mrf.mxu0
  %v1194 = vadd.f32 %v1105, %v1193
  %v1195 = vpop.f32.mrf.mxu0
  %v1196 = vadd.f32 %v1107, %v1195
  %1197 = vmatmul.bf16.gmra.mxu0 %v298
  %v1198 = vpop.f32.mrf.mxu0
  %v1199 = vadd.f32 %v1110, %v1198
  %v1200 = vpop.f32.mrf.mxu0
  %v1201 = vadd.f32 %v1112, %v1200
  %1202 = vmatmul.bf16.gmra.mxu0 %v299
  %v1203 = vpop.f32.mrf.mxu0
  %v1204 = vadd.f32 %v1115, %v1203
  %v1205 = vpop.f32.mrf.mxu0
  %v1206 = vadd.f32 %v1117, %v1205
  %1207 = vmatmul.bf16.gmra.mxu0 %v300
  %v1208 = vpop.f32.mrf.mxu0
  %v1209 = vadd.f32 %v1120, %v1208
  %v1210 = vpop.f32.mrf.mxu0
  %v1211 = vadd.f32 %v1122, %v1210
  %1212 = vmatmul.bf16.gmra.mxu0 %v301
  %v1213 = vpop.f32.mrf.mxu0
  %v1214 = vadd.f32 %v1125, %v1213
  %v1215 = vpop.f32.mrf.mxu0
  %v1216 = vadd.f32 %v1127, %v1215
  %1217 = vmatmul.bf16.gmra.mxu0 %v302
  %v1218 = vpop.f32.mrf.mxu0
  %v1219 = vadd.f32 %v1130, %v1218
  %v1220 = vpop.f32.mrf.mxu0
  %v1221 = vadd.f32 %v1132, %v1220
  %1222 = vmatmul.bf16.gmra.mxu0 %v303
  %v1223 = vpop.f32.mrf.mxu0
  %v1224 = vadd.f32 %v1135, %v1223
  %v1225 = vpop.f32.mrf.mxu0
  %v1226 = vadd.f32 %v1137, %v1225
  %1227 = vmatmul.bf16.gmra.mxu0 %v304
  %v1228 = vpop.f32.mrf.mxu0
  %v1229 = vadd.f32 %v1140, %v1228
  %v1230 = vpop.f32.mrf.mxu0
  %v1231 = vadd.f32 %v1142, %v1230
  %1232 = vmatmul.bf16.gmra.mxu0 %v305
  %v1233 = vpop.f32.mrf.mxu0
  %v1234 = vadd.f32 %v1145, %v1233
  %v1235 = vpop.f32.mrf.mxu0
  %v1236 = vadd.f32 %v1147, %v1235
  %1237 = vmatmul.bf16.gmra.mxu0 %v306
  %v1238 = vpop.f32.mrf.mxu0
  %v1239 = vadd.f32 %v1150, %v1238
  %v1240 = vpop.f32.mrf.mxu0
  %v1241 = vadd.f32 %v1152, %v1240
  %1242 = vmatmul.bf16.gmra.mxu0 %v307
  %v1243 = vpop.f32.mrf.mxu0
  %v1244 = vadd.f32 %v1155, %v1243
  %v1245 = vpop.f32.mrf.mxu0
  %v1246 = vadd.f32 %v1157, %v1245
  %1247 = vmatmul.bf16.gmra.mxu0 %v308
  %v1248 = vpop.f32.mrf.mxu0
  %v1249 = vadd.f32 %v1160, %v1248
  %v1250 = vpop.f32.mrf.mxu0
  %v1251 = vadd.f32 %v1162, %v1250
  %1252 = vmatmul.bf16.gmra.mxu0 %v309
  %v1253 = vpop.f32.mrf.mxu0
  %v1254 = vadd.f32 %v1165, %v1253
  %v1255 = vpop.f32.mrf.mxu0
  %v1256 = vadd.f32 %v1167, %v1255
  %1257 = vdwg.mxu0
  %v1258 = vld [vmem:[%s4] sm:$0xf]
  %v1259 = vld [vmem:[%s4 + $0x4] sm:$0xf]
  %v1260 = vld [vmem:[%s4 + $0x8] sm:$0xf]
  %v1261 = vld [vmem:[%s4 + $0xc] sm:$0xf]
  %v1262 = vld [vmem:[%s4 + $0x10] sm:$0xf]
  %v1263 = vld [vmem:[%s4 + $0x14] sm:$0xf]
  %v1264 = vld [vmem:[%s4 + $0x18] sm:$0xf]
  %v1265 = vld [vmem:[%s4 + $0x1c] sm:$0xf]
  %v1266 = vld [vmem:[%s4 + $0x20] sm:$0xf]
  %v1267 = vld [vmem:[%s4 + $0x24] sm:$0xf]
  %v1268 = vld [vmem:[%s4 + $0x28] sm:$0xf]
  %v1269 = vld [vmem:[%s4 + $0x2c] sm:$0xf]
  %v1270 = vld [vmem:[%s4 + $0x30] sm:$0xf]
  %v1271 = vld [vmem:[%s4 + $0x34] sm:$0xf]
  %v1272 = vld [vmem:[%s4 + $0x38] sm:$0xf]
  %v1273 = vld [vmem:[%s4 + $0x3c] sm:$0xf]
  %v1274 = vld [vmem:[%s4 + $0x40] sm:$0xf]
  %v1275 = vld [vmem:[%s4 + $0x44] sm:$0xf]
  %v1276 = vld [vmem:[%s4 + $0x48] sm:$0xf]
  %v1277 = vld [vmem:[%s4 + $0x4c] sm:$0xf]
  %v1278 = vld [vmem:[%s4 + $0x50] sm:$0xf]
  %v1279 = vld [vmem:[%s4 + $0x54] sm:$0xf]
  %v1280 = vld [vmem:[%s4 + $0x58] sm:$0xf]
  %v1281 = vld [vmem:[%s4 + $0x5c] sm:$0xf]
  %v1282 = vld [vmem:[%s4 + $0x60] sm:$0xf]
  %v1283 = vld [vmem:[%s4 + $0x64] sm:$0xf]
  %v1284 = vld [vmem:[%s4 + $0x68] sm:$0xf]
  %v1285 = vld [vmem:[%s4 + $0x6c] sm:$0xf]
  %v1286 = vld [vmem:[%s4 + $0x70] sm:$0xf]
  %v1287 = vld [vmem:[%s4 + $0x74] sm:$0xf]
  %v1288 = vld [vmem:[%s4 + $0x78] sm:$0xf]
  %v1289 = vld [vmem:[%s4 + $0x7c] sm:$0xf]
  %v1290 = vld [vmem:[%s5 + $0x100] sm:$0xf]
  %v1291 = vld [vmem:[%s5 + $0x104] sm:$0xf]
  %v1292 = vld [vmem:[%s5 + $0x108] sm:$0xf]
  %v1293 = vld [vmem:[%s5 + $0x10c] sm:$0xf]
  %v1294 = vld [vmem:[%s5 + $0x110] sm:$0xf]
  %v1295 = vld [vmem:[%s5 + $0x114] sm:$0xf]
  %v1296 = vld [vmem:[%s5 + $0x118] sm:$0xf]
  %v1297 = vld [vmem:[%s5 + $0x11c] sm:$0xf]
  %v1298 = vld [vmem:[%s5 + $0x120] sm:$0xf]
  %v1299 = vld [vmem:[%s5 + $0x124] sm:$0xf]
  %v1300 = vld [vmem:[%s5 + $0x128] sm:$0xf]
  %v1301 = vld [vmem:[%s5 + $0x12c] sm:$0xf]
  %v1302 = vld [vmem:[%s5 + $0x130] sm:$0xf]
  %v1303 = vld [vmem:[%s5 + $0x134] sm:$0xf]
  %v1304 = vld [vmem:[%s5 + $0x138] sm:$0xf]
  %v1305 = vld [vmem:[%s5 + $0x13c] sm:$0xf]
  %v1338 = vunpack.c.l.b16 %v1258
  %v1339 = vunpack.c.l.b16 %v1259
  %v1340 = vunpack.c.l.b16 %v1260
  %v1341 = vunpack.c.l.b16 %v1261
  %v1342 = vunpack.c.l.b16 %v1262
  %v1343 = vunpack.c.l.b16 %v1263
  %v1344 = vunpack.c.l.b16 %v1264
  %v1345 = vunpack.c.l.b16 %v1265
  %v1346 = vunpack.c.l.b16 %v1266
  %v1347 = vunpack.c.l.b16 %v1267
  %v1348 = vunpack.c.l.b16 %v1268
  %v1349 = vunpack.c.l.b16 %v1269
  %v1350 = vunpack.c.l.b16 %v1270
  %v1351 = vunpack.c.l.b16 %v1271
  %v1352 = vunpack.c.l.b16 %v1272
  %v1353 = vunpack.c.l.b16 %v1273
  %v1354 = vunpack.c.l.b16 %v1274
  %v1355 = vunpack.c.l.b16 %v1275
  %v1356 = vunpack.c.l.b16 %v1276
  %v1357 = vunpack.c.l.b16 %v1277
  %v1358 = vunpack.c.l.b16 %v1278
  %v1359 = vunpack.c.l.b16 %v1279
  %v1360 = vunpack.c.l.b16 %v1280
  %v1361 = vunpack.c.l.b16 %v1281
  %v1362 = vunpack.c.l.b16 %v1282
  %v1363 = vunpack.c.l.b16 %v1283
  %v1364 = vunpack.c.l.b16 %v1284
  %v1365 = vunpack.c.l.b16 %v1285
  %v1366 = vunpack.c.l.b16 %v1286
  %v1367 = vunpack.c.l.b16 %v1287
  %v1368 = vunpack.c.l.b16 %v1288
  %v1369 = vunpack.c.l.b16 %v1289
  %v1370 = vpack.c.b16 %v1339, %v1338
  %v1371 = vpack.c.b16 %v1341, %v1340
  %v1372 = vpack.c.b16 %v1343, %v1342
  %v1373 = vpack.c.b16 %v1345, %v1344
  %v1374 = vpack.c.b16 %v1347, %v1346
  %v1375 = vpack.c.b16 %v1349, %v1348
  %v1376 = vpack.c.b16 %v1351, %v1350
  %v1377 = vpack.c.b16 %v1353, %v1352
  %v1378 = vpack.c.b16 %v1355, %v1354
  %v1379 = vpack.c.b16 %v1357, %v1356
  %v1380 = vpack.c.b16 %v1359, %v1358
  %v1381 = vpack.c.b16 %v1361, %v1360
  %v1382 = vpack.c.b16 %v1363, %v1362
  %v1383 = vpack.c.b16 %v1365, %v1364
  %v1384 = vpack.c.b16 %v1367, %v1366
  %v1385 = vpack.c.b16 %v1369, %v1368
  %v1418 = vunpack.c.l.b16 %v1290
  %v1419 = vunpack.c.l.b16 %v1291
  %v1420 = vunpack.c.l.b16 %v1292
  %v1421 = vunpack.c.l.b16 %v1293
  %v1422 = vunpack.c.l.b16 %v1294
  %v1423 = vunpack.c.l.b16 %v1295
  %v1424 = vunpack.c.l.b16 %v1296
  %v1425 = vunpack.c.l.b16 %v1297
  %v1426 = vunpack.c.l.b16 %v1298
  %v1427 = vunpack.c.l.b16 %v1299
  %v1428 = vunpack.c.l.b16 %v1300
  %v1429 = vunpack.c.l.b16 %v1301
  %v1430 = vunpack.c.l.b16 %v1302
  %v1431 = vunpack.c.l.b16 %v1303
  %v1432 = vunpack.c.l.b16 %v1304
  %v1433 = vunpack.c.l.b16 %v1305
  %v1434 = vpack.c.b16 %v1419, %v1418
  %v1435 = vpack.c.b16 %v1421, %v1420
  %v1436 = vpack.c.b16 %v1423, %v1422
  %v1437 = vpack.c.b16 %v1425, %v1424
  %v1438 = vpack.c.b16 %v1427, %v1426
  %v1439 = vpack.c.b16 %v1429, %v1428
  %v1440 = vpack.c.b16 %v1431, %v1430
  %v1441 = vpack.c.b16 %v1433, %v1432
  %1450 = vmatpush.bf16.msra.mxu0 %v1441
  %1451 = vmatpush.bf16.msra.mxu0 %v1440
  %1452 = vmatpush.bf16.msra.mxu0 %v1439
  %1453 = vmatpush.bf16.msra.mxu0 %v1438
  %1454 = vmatpush.bf16.msra.mxu0 %v1437
  %1455 = vmatpush.bf16.msra.mxu0 %v1436
  %1456 = vmatpush.bf16.msra.mxu0 %v1435
  %1457 = vmatpush.bf16.msra.mxu0 %v1434
  %1458 = vmatmul.bf16.gmra.mxu0 %v1370
  %v1459 = vpop.f32.mrf.mxu0
  %v1460 = vadd.f32 0.0, %v1459
  %v1461 = vpop.f32.mrf.mxu0
  %v1462 = vadd.f32 0.0, %v1461
  %1463 = vmatmul.bf16.gmra.mxu0 %v1371
  %v1464 = vpop.f32.mrf.mxu0
  %v1465 = vadd.f32 0.0, %v1464
  %v1466 = vpop.f32.mrf.mxu0
  %v1467 = vadd.f32 0.0, %v1466
  %1468 = vmatmul.bf16.gmra.mxu0 %v1372
  %v1469 = vpop.f32.mrf.mxu0
  %v1470 = vadd.f32 0.0, %v1469
  %v1471 = vpop.f32.mrf.mxu0
  %v1472 = vadd.f32 0.0, %v1471
  %1473 = vmatmul.bf16.gmra.mxu0 %v1373
  %v1474 = vpop.f32.mrf.mxu0
  %v1475 = vadd.f32 0.0, %v1474
  %v1476 = vpop.f32.mrf.mxu0
  %v1477 = vadd.f32 0.0, %v1476
  %1478 = vmatmul.bf16.gmra.mxu0 %v1374
  %v1479 = vpop.f32.mrf.mxu0
  %v1480 = vadd.f32 0.0, %v1479
  %v1481 = vpop.f32.mrf.mxu0
  %v1482 = vadd.f32 0.0, %v1481
  %1483 = vmatmul.bf16.gmra.mxu0 %v1375
  %v1484 = vpop.f32.mrf.mxu0
  %v1485 = vadd.f32 0.0, %v1484
  %v1486 = vpop.f32.mrf.mxu0
  %v1487 = vadd.f32 0.0, %v1486
  %1488 = vmatmul.bf16.gmra.mxu0 %v1376
  %v1489 = vpop.f32.mrf.mxu0
  %v1490 = vadd.f32 0.0, %v1489
  %v1491 = vpop.f32.mrf.mxu0
  %v1492 = vadd.f32 0.0, %v1491
  %1493 = vmatmul.bf16.gmra.mxu0 %v1377
  %v1494 = vpop.f32.mrf.mxu0
  %v1495 = vadd.f32 0.0, %v1494
  %v1496 = vpop.f32.mrf.mxu0
  %v1497 = vadd.f32 0.0, %v1496
  %1498 = vmatmul.bf16.gmra.mxu0 %v1378
  %v1499 = vpop.f32.mrf.mxu0
  %v1500 = vadd.f32 0.0, %v1499
  %v1501 = vpop.f32.mrf.mxu0
  %v1502 = vadd.f32 0.0, %v1501
  %1503 = vmatmul.bf16.gmra.mxu0 %v1379
  %v1504 = vpop.f32.mrf.mxu0
  %v1505 = vadd.f32 0.0, %v1504
  %v1506 = vpop.f32.mrf.mxu0
  %v1507 = vadd.f32 0.0, %v1506
  %1508 = vmatmul.bf16.gmra.mxu0 %v1380
  %v1509 = vpop.f32.mrf.mxu0
  %v1510 = vadd.f32 0.0, %v1509
  %v1511 = vpop.f32.mrf.mxu0
  %v1512 = vadd.f32 0.0, %v1511
  %1513 = vmatmul.bf16.gmra.mxu0 %v1381
  %v1514 = vpop.f32.mrf.mxu0
  %v1515 = vadd.f32 0.0, %v1514
  %v1516 = vpop.f32.mrf.mxu0
  %v1517 = vadd.f32 0.0, %v1516
  %1518 = vmatmul.bf16.gmra.mxu0 %v1382
  %v1519 = vpop.f32.mrf.mxu0
  %v1520 = vadd.f32 0.0, %v1519
  %v1521 = vpop.f32.mrf.mxu0
  %v1522 = vadd.f32 0.0, %v1521
  %1523 = vmatmul.bf16.gmra.mxu0 %v1383
  %v1524 = vpop.f32.mrf.mxu0
  %v1525 = vadd.f32 0.0, %v1524
  %v1526 = vpop.f32.mrf.mxu0
  %v1527 = vadd.f32 0.0, %v1526
  %1528 = vmatmul.bf16.gmra.mxu0 %v1384
  %v1529 = vpop.f32.mrf.mxu0
  %v1530 = vadd.f32 0.0, %v1529
  %v1531 = vpop.f32.mrf.mxu0
  %v1532 = vadd.f32 0.0, %v1531
  %1533 = vmatmul.bf16.gmra.mxu0 %v1385
  %v1534 = vpop.f32.mrf.mxu0
  %v1535 = vadd.f32 0.0, %v1534
  %v1536 = vpop.f32.mrf.mxu0
  %v1537 = vadd.f32 0.0, %v1536
  %1538 = vdwg.mxu0
  %v1539 = vadd.f32 %v1179, %v1460
  %v1540 = vadd.f32 %v1181, %v1462
  %v1541 = vadd.f32 %v1184, %v1465
  %v1542 = vadd.f32 %v1186, %v1467
  %v1543 = vadd.f32 %v1189, %v1470
  %v1544 = vadd.f32 %v1191, %v1472
  %v1545 = vadd.f32 %v1194, %v1475
  %v1546 = vadd.f32 %v1196, %v1477
  %v1547 = vadd.f32 %v1199, %v1480
  %v1548 = vadd.f32 %v1201, %v1482
  %v1549 = vadd.f32 %v1204, %v1485
  %v1550 = vadd.f32 %v1206, %v1487
  %v1551 = vadd.f32 %v1209, %v1490
  %v1552 = vadd.f32 %v1211, %v1492
  %v1553 = vadd.f32 %v1214, %v1495
  %v1554 = vadd.f32 %v1216, %v1497
  %v1555 = vadd.f32 %v1219, %v1500
  %v1556 = vadd.f32 %v1221, %v1502
  %v1557 = vadd.f32 %v1224, %v1505
  %v1558 = vadd.f32 %v1226, %v1507
  %v1559 = vadd.f32 %v1229, %v1510
  %v1560 = vadd.f32 %v1231, %v1512
  %v1561 = vadd.f32 %v1234, %v1515
  %v1562 = vadd.f32 %v1236, %v1517
  %v1563 = vadd.f32 %v1239, %v1520
  %v1564 = vadd.f32 %v1241, %v1522
  %v1565 = vadd.f32 %v1244, %v1525
  %v1566 = vadd.f32 %v1246, %v1527
  %v1567 = vadd.f32 %v1249, %v1530
  %v1568 = vadd.f32 %v1251, %v1532
  %v1569 = vadd.f32 %v1254, %v1535
  %v1570 = vadd.f32 %v1256, %v1537
  %v1571 = vld [vmem:[%s8] sm:$0x1]
  %v1573 = vperm.slane %v1571, 0
  %v1575 = vadd.f32 %v1539, %v1573
  %v1576 = vadd.f32 %v1540, %v1573
  %v1577 = vadd.f32 %v1541, %v1573
  %v1578 = vadd.f32 %v1542, %v1573
  %v1579 = vadd.f32 %v1543, %v1573
  %v1580 = vadd.f32 %v1544, %v1573
  %v1581 = vadd.f32 %v1545, %v1573
  %v1582 = vadd.f32 %v1546, %v1573
  %v1583 = vadd.f32 %v1547, %v1573
  %v1584 = vadd.f32 %v1548, %v1573
  %v1585 = vadd.f32 %v1549, %v1573
  %v1586 = vadd.f32 %v1550, %v1573
  %v1587 = vadd.f32 %v1551, %v1573
  %v1588 = vadd.f32 %v1552, %v1573
  %v1589 = vadd.f32 %v1553, %v1573
  %v1590 = vadd.f32 %v1554, %v1573
  %v1591 = vadd.f32 %v1555, %v1573
  %v1592 = vadd.f32 %v1556, %v1573
  %v1593 = vadd.f32 %v1557, %v1573
  %v1594 = vadd.f32 %v1558, %v1573
  %v1595 = vadd.f32 %v1559, %v1573
  %v1596 = vadd.f32 %v1560, %v1573
  %v1597 = vadd.f32 %v1561, %v1573
  %v1598 = vadd.f32 %v1562, %v1573
  %v1599 = vadd.f32 %v1563, %v1573
  %v1600 = vadd.f32 %v1564, %v1573
  %v1601 = vadd.f32 %v1565, %v1573
  %v1602 = vadd.f32 %v1566, %v1573
  %v1603 = vadd.f32 %v1567, %v1573
  %v1604 = vadd.f32 %v1568, %v1573
  %v1605 = vadd.f32 %v1569, %v1573
  %v1606 = vadd.f32 %v1570, %v1573
  %v1607 = vmax.f32 %v1575, 0.0
  %v1608 = vmax.f32 %v1576, 0.0
  %v1609 = vmax.f32 %v1577, 0.0
  %v1610 = vmax.f32 %v1578, 0.0
  %v1611 = vmax.f32 %v1579, 0.0
  %v1612 = vmax.f32 %v1580, 0.0
  %v1613 = vmax.f32 %v1581, 0.0
  %v1614 = vmax.f32 %v1582, 0.0
  %v1615 = vmax.f32 %v1583, 0.0
  %v1616 = vmax.f32 %v1584, 0.0
  %v1617 = vmax.f32 %v1585, 0.0
  %v1618 = vmax.f32 %v1586, 0.0
  %v1619 = vmax.f32 %v1587, 0.0
  %v1620 = vmax.f32 %v1588, 0.0
  %v1621 = vmax.f32 %v1589, 0.0
  %v1622 = vmax.f32 %v1590, 0.0
  %v1623 = vmax.f32 %v1591, 0.0
  %v1624 = vmax.f32 %v1592, 0.0
  %v1625 = vmax.f32 %v1593, 0.0
  %v1626 = vmax.f32 %v1594, 0.0
  %v1627 = vmax.f32 %v1595, 0.0
  %v1628 = vmax.f32 %v1596, 0.0
  %v1629 = vmax.f32 %v1597, 0.0
  %v1630 = vmax.f32 %v1598, 0.0
  %v1631 = vmax.f32 %v1599, 0.0
  %v1632 = vmax.f32 %v1600, 0.0
  %v1633 = vmax.f32 %v1601, 0.0
  %v1634 = vmax.f32 %v1602, 0.0
  %v1635 = vmax.f32 %v1603, 0.0
  %v1636 = vmax.f32 %v1604, 0.0
  %v1637 = vmax.f32 %v1605, 0.0
  %v1638 = vmax.f32 %v1606, 0.0
  %v1639 = vpack.c.bf16 %v1608, %v1607
  %v1640 = vpack.c.bf16 %v1610, %v1609
  %v1641 = vpack.c.bf16 %v1612, %v1611
  %v1642 = vpack.c.bf16 %v1614, %v1613
  %v1643 = vpack.c.bf16 %v1616, %v1615
  %v1644 = vpack.c.bf16 %v1618, %v1617
  %v1645 = vpack.c.bf16 %v1620, %v1619
  %v1646 = vpack.c.bf16 %v1622, %v1621
  %v1647 = vpack.c.bf16 %v1624, %v1623
  %v1648 = vpack.c.bf16 %v1626, %v1625
  %v1649 = vpack.c.bf16 %v1628, %v1627
  %v1650 = vpack.c.bf16 %v1630, %v1629
  %v1651 = vpack.c.bf16 %v1632, %v1631
  %v1652 = vpack.c.bf16 %v1634, %v1633
  %v1653 = vpack.c.bf16 %v1636, %v1635
  %v1654 = vpack.c.bf16 %v1638, %v1637
  %v1655 = vld [vmem:[%s6] sm:$0xf]
  %v1656 = vld [vmem:[%s6 + $0x4] sm:$0xf]
  %v1657 = vld [vmem:[%s6 + $0x8] sm:$0xf]
  %v1658 = vld [vmem:[%s6 + $0xc] sm:$0xf]
  %v1659 = vld [vmem:[%s6 + $0x10] sm:$0xf]
  %v1660 = vld [vmem:[%s6 + $0x14] sm:$0xf]
  %v1661 = vld [vmem:[%s6 + $0x18] sm:$0xf]
  %v1662 = vld [vmem:[%s6 + $0x1c] sm:$0xf]
  %v1663 = vld [vmem:[%s6 + $0x20] sm:$0xf]
  %v1664 = vld [vmem:[%s6 + $0x24] sm:$0xf]
  %v1665 = vld [vmem:[%s6 + $0x28] sm:$0xf]
  %v1666 = vld [vmem:[%s6 + $0x2c] sm:$0xf]
  %v1667 = vld [vmem:[%s6 + $0x30] sm:$0xf]
  %v1668 = vld [vmem:[%s6 + $0x34] sm:$0xf]
  %v1669 = vld [vmem:[%s6 + $0x38] sm:$0xf]
  %v1670 = vld [vmem:[%s6 + $0x3c] sm:$0xf]
  %v1671 = vld [vmem:[%s9] sm:$0x1]
  %v1673 = vperm.slane %v1671, 0
  %v1691 = vunpack.c.l.b16 %v1655
  %v1692 = vunpack.c.l.b16 %v1656
  %v1693 = vunpack.c.l.b16 %v1657
  %v1694 = vunpack.c.l.b16 %v1658
  %v1695 = vunpack.c.l.b16 %v1659
  %v1696 = vunpack.c.l.b16 %v1660
  %v1697 = vunpack.c.l.b16 %v1661
  %v1698 = vunpack.c.l.b16 %v1662
  %v1699 = vunpack.c.l.b16 %v1663
  %v1700 = vunpack.c.l.b16 %v1664
  %v1701 = vunpack.c.l.b16 %v1665
  %v1702 = vunpack.c.l.b16 %v1666
  %v1703 = vunpack.c.l.b16 %v1667
  %v1704 = vunpack.c.l.b16 %v1668
  %v1705 = vunpack.c.l.b16 %v1669
  %v1706 = vunpack.c.l.b16 %v1670
  %v1707 = vpack.c.b16 %v1692, %v1691
  %v1708 = vpack.c.b16 %v1694, %v1693
  %v1709 = vpack.c.b16 %v1696, %v1695
  %v1710 = vpack.c.b16 %v1698, %v1697
  %v1711 = vpack.c.b16 %v1700, %v1699
  %v1712 = vpack.c.b16 %v1702, %v1701
  %v1713 = vpack.c.b16 %v1704, %v1703
  %v1714 = vpack.c.b16 %v1706, %v1705
  %1723 = vmatpush.bf16.msra.mxu0 %v1714
  %1724 = vmatpush.bf16.msra.mxu0 %v1713
  %1725 = vmatpush.bf16.msra.mxu0 %v1712
  %1726 = vmatpush.bf16.msra.mxu0 %v1711
  %1727 = vmatpush.bf16.msra.mxu0 %v1710
  %1728 = vmatpush.bf16.msra.mxu0 %v1709
  %1729 = vmatpush.bf16.msra.mxu0 %v1708
  %1730 = vmatpush.bf16.msra.mxu0 %v1707
  %1731 = vmatmul.bf16.gmra.mxu0 %v1639
  %v1732 = vpop.f32.mrf.mxu0
  %v1733 = vadd.f32 %v1673, %v1732
  %v1734 = vpop.f32.mrf.mxu0
  %v1735 = vadd.f32 %v1673, %v1734
  %1736 = vmatmul.bf16.gmra.mxu0 %v1640
  %v1737 = vpop.f32.mrf.mxu0
  %v1738 = vadd.f32 %v1673, %v1737
  %v1739 = vpop.f32.mrf.mxu0
  %v1740 = vadd.f32 %v1673, %v1739
  %1741 = vmatmul.bf16.gmra.mxu0 %v1641
  %v1742 = vpop.f32.mrf.mxu0
  %v1743 = vadd.f32 %v1673, %v1742
  %v1744 = vpop.f32.mrf.mxu0
  %v1745 = vadd.f32 %v1673, %v1744
  %1746 = vmatmul.bf16.gmra.mxu0 %v1642
  %v1747 = vpop.f32.mrf.mxu0
  %v1748 = vadd.f32 %v1673, %v1747
  %v1749 = vpop.f32.mrf.mxu0
  %v1750 = vadd.f32 %v1673, %v1749
  %1751 = vmatmul.bf16.gmra.mxu0 %v1643
  %v1752 = vpop.f32.mrf.mxu0
  %v1753 = vadd.f32 %v1673, %v1752
  %v1754 = vpop.f32.mrf.mxu0
  %v1755 = vadd.f32 %v1673, %v1754
  %1756 = vmatmul.bf16.gmra.mxu0 %v1644
  %v1757 = vpop.f32.mrf.mxu0
  %v1758 = vadd.f32 %v1673, %v1757
  %v1759 = vpop.f32.mrf.mxu0
  %v1760 = vadd.f32 %v1673, %v1759
  %1761 = vmatmul.bf16.gmra.mxu0 %v1645
  %v1762 = vpop.f32.mrf.mxu0
  %v1763 = vadd.f32 %v1673, %v1762
  %v1764 = vpop.f32.mrf.mxu0
  %v1765 = vadd.f32 %v1673, %v1764
  %1766 = vmatmul.bf16.gmra.mxu0 %v1646
  %v1767 = vpop.f32.mrf.mxu0
  %v1768 = vadd.f32 %v1673, %v1767
  %v1769 = vpop.f32.mrf.mxu0
  %v1770 = vadd.f32 %v1673, %v1769
  %1771 = vmatmul.bf16.gmra.mxu0 %v1647
  %v1772 = vpop.f32.mrf.mxu0
  %v1773 = vadd.f32 %v1673, %v1772
  %v1774 = vpop.f32.mrf.mxu0
  %v1775 = vadd.f32 %v1673, %v1774
  %1776 = vmatmul.bf16.gmra.mxu0 %v1648
  %v1777 = vpop.f32.mrf.mxu0
  %v1778 = vadd.f32 %v1673, %v1777
  %v1779 = vpop.f32.mrf.mxu0
  %v1780 = vadd.f32 %v1673, %v1779
  %1781 = vmatmul.bf16.gmra.mxu0 %v1649
  %v1782 = vpop.f32.mrf.mxu0
  %v1783 = vadd.f32 %v1673, %v1782
  %v1784 = vpop.f32.mrf.mxu0
  %v1785 = vadd.f32 %v1673, %v1784
  %1786 = vmatmul.bf16.gmra.mxu0 %v1650
  %v1787 = vpop.f32.mrf.mxu0
  %v1788 = vadd.f32 %v1673, %v1787
  %v1789 = vpop.f32.mrf.mxu0
  %v1790 = vadd.f32 %v1673, %v1789
  %1791 = vmatmul.bf16.gmra.mxu0 %v1651
  %v1792 = vpop.f32.mrf.mxu0
  %v1793 = vadd.f32 %v1673, %v1792
  %v1794 = vpop.f32.mrf.mxu0
  %v1795 = vadd.f32 %v1673, %v1794
  %1796 = vmatmul.bf16.gmra.mxu0 %v1652
  %v1797 = vpop.f32.mrf.mxu0
  %v1798 = vadd.f32 %v1673, %v1797
  %v1799 = vpop.f32.mrf.mxu0
  %v1800 = vadd.f32 %v1673, %v1799
  %1801 = vmatmul.bf16.gmra.mxu0 %v1653
  %v1802 = vpop.f32.mrf.mxu0
  %v1803 = vadd.f32 %v1673, %v1802
  %v1804 = vpop.f32.mrf.mxu0
  %v1805 = vadd.f32 %v1673, %v1804
  %1806 = vmatmul.bf16.gmra.mxu0 %v1654
  %v1807 = vpop.f32.mrf.mxu0
  %v1808 = vadd.f32 %v1673, %v1807
  %v1809 = vpop.f32.mrf.mxu0
  %v1810 = vadd.f32 %v1673, %v1809
  %1811 = vdwg.mxu0
  %v1812 = vmax.f32 %v1733, 0.0
  %v1813 = vmax.f32 %v1735, 0.0
  %v1814 = vmax.f32 %v1738, 0.0
  %v1815 = vmax.f32 %v1740, 0.0
  %v1816 = vmax.f32 %v1743, 0.0
  %v1817 = vmax.f32 %v1745, 0.0
  %v1818 = vmax.f32 %v1748, 0.0
  %v1819 = vmax.f32 %v1750, 0.0
  %v1820 = vmax.f32 %v1753, 0.0
  %v1821 = vmax.f32 %v1755, 0.0
  %v1822 = vmax.f32 %v1758, 0.0
  %v1823 = vmax.f32 %v1760, 0.0
  %v1824 = vmax.f32 %v1763, 0.0
  %v1825 = vmax.f32 %v1765, 0.0
  %v1826 = vmax.f32 %v1768, 0.0
  %v1827 = vmax.f32 %v1770, 0.0
  %v1828 = vmax.f32 %v1773, 0.0
  %v1829 = vmax.f32 %v1775, 0.0
  %v1830 = vmax.f32 %v1778, 0.0
  %v1831 = vmax.f32 %v1780, 0.0
  %v1832 = vmax.f32 %v1783, 0.0
  %v1833 = vmax.f32 %v1785, 0.0
  %v1834 = vmax.f32 %v1788, 0.0
  %v1835 = vmax.f32 %v1790, 0.0
  %v1836 = vmax.f32 %v1793, 0.0
  %v1837 = vmax.f32 %v1795, 0.0
  %v1838 = vmax.f32 %v1798, 0.0
  %v1839 = vmax.f32 %v1800, 0.0
  %v1840 = vmax.f32 %v1803, 0.0
  %v1841 = vmax.f32 %v1805, 0.0
  %v1842 = vmax.f32 %v1808, 0.0
  %v1843 = vmax.f32 %v1810, 0.0
  %v1844 = vpack.c.bf16 %v1813, %v1812
  %v1845 = vpack.c.bf16 %v1815, %v1814
  %v1846 = vpack.c.bf16 %v1817, %v1816
  %v1847 = vpack.c.bf16 %v1819, %v1818
  %v1848 = vpack.c.bf16 %v1821, %v1820
  %v1849 = vpack.c.bf16 %v1823, %v1822
  %v1850 = vpack.c.bf16 %v1825, %v1824
  %v1851 = vpack.c.bf16 %v1827, %v1826
  %v1852 = vpack.c.bf16 %v1829, %v1828
  %v1853 = vpack.c.bf16 %v1831, %v1830
  %v1854 = vpack.c.bf16 %v1833, %v1832
  %v1855 = vpack.c.bf16 %v1835, %v1834
  %v1856 = vpack.c.bf16 %v1837, %v1836
  %v1857 = vpack.c.bf16 %v1839, %v1838
  %v1858 = vpack.c.bf16 %v1841, %v1840
  %v1859 = vpack.c.bf16 %v1843, %v1842
  %v1860 = vld [vmem:[%s7] sm:$0xf]
  %v1861 = vld [vmem:[%s7 + $0x4] sm:$0xf]
  %v1862 = vld [vmem:[%s7 + $0x8] sm:$0xf]
  %v1863 = vld [vmem:[%s7 + $0xc] sm:$0xf]
  %v1864 = vld [vmem:[%s7 + $0x10] sm:$0xf]
  %v1865 = vld [vmem:[%s7 + $0x14] sm:$0xf]
  %v1866 = vld [vmem:[%s7 + $0x18] sm:$0xf]
  %v1867 = vld [vmem:[%s7 + $0x1c] sm:$0xf]
  %v1868 = vld [vmem:[%s7 + $0x20] sm:$0xf]
  %v1869 = vld [vmem:[%s7 + $0x24] sm:$0xf]
  %v1870 = vld [vmem:[%s7 + $0x28] sm:$0xf]
  %v1871 = vld [vmem:[%s7 + $0x2c] sm:$0xf]
  %v1872 = vld [vmem:[%s7 + $0x30] sm:$0xf]
  %v1873 = vld [vmem:[%s7 + $0x34] sm:$0xf]
  %v1874 = vld [vmem:[%s7 + $0x38] sm:$0xf]
  %v1875 = vld [vmem:[%s7 + $0x3c] sm:$0xf]
  %v1876 = vld [vmem:[%s10] sm:$0x1]
  %v1878 = vperm.slane %v1876, 0
  %v1896 = vunpack.c.l.b16 %v1860
  %v1897 = vunpack.c.l.b16 %v1861
  %v1898 = vunpack.c.l.b16 %v1862
  %v1899 = vunpack.c.l.b16 %v1863
  %v1900 = vunpack.c.l.b16 %v1864
  %v1901 = vunpack.c.l.b16 %v1865
  %v1902 = vunpack.c.l.b16 %v1866
  %v1903 = vunpack.c.l.b16 %v1867
  %v1904 = vunpack.c.l.b16 %v1868
  %v1905 = vunpack.c.l.b16 %v1869
  %v1906 = vunpack.c.l.b16 %v1870
  %v1907 = vunpack.c.l.b16 %v1871
  %v1908 = vunpack.c.l.b16 %v1872
  %v1909 = vunpack.c.l.b16 %v1873
  %v1910 = vunpack.c.l.b16 %v1874
  %v1911 = vunpack.c.l.b16 %v1875
  %v1912 = vpack.c.b16 %v1897, %v1896
  %v1913 = vpack.c.b16 %v1899, %v1898
  %v1914 = vpack.c.b16 %v1901, %v1900
  %v1915 = vpack.c.b16 %v1903, %v1902
  %v1916 = vpack.c.b16 %v1905, %v1904
  %v1917 = vpack.c.b16 %v1907, %v1906
  %v1918 = vpack.c.b16 %v1909, %v1908
  %v1919 = vpack.c.b16 %v1911, %v1910
  %1928 = vmatpush.bf16.msra.mxu0 %v1919
  %1929 = vmatpush.bf16.msra.mxu0 %v1918
  %1930 = vmatpush.bf16.msra.mxu0 %v1917
  %1931 = vmatpush.bf16.msra.mxu0 %v1916
  %1932 = vmatpush.bf16.msra.mxu0 %v1915
  %1933 = vmatpush.bf16.msra.mxu0 %v1914
  %1934 = vmatpush.bf16.msra.mxu0 %v1913
  %1935 = vmatpush.bf16.msra.mxu0 %v1912
  %1936 = vmatmul.bf16.gmra.mxu0 %v1844
  %v1937 = vpop.f32.mrf.mxu0
  %v1938 = vadd.f32 %v1878, %v1937
  %v1939 = vpop.f32.mrf.mxu0
  %v1940 = vadd.f32 %v1878, %v1939
  %1941 = vmatmul.bf16.gmra.mxu0 %v1845
  %v1942 = vpop.f32.mrf.mxu0
  %v1943 = vadd.f32 %v1878, %v1942
  %v1944 = vpop.f32.mrf.mxu0
  %v1945 = vadd.f32 %v1878, %v1944
  %1946 = vmatmul.bf16.gmra.mxu0 %v1846
  %v1947 = vpop.f32.mrf.mxu0
  %v1948 = vadd.f32 %v1878, %v1947
  %v1949 = vpop.f32.mrf.mxu0
  %v1950 = vadd.f32 %v1878, %v1949
  %1951 = vmatmul.bf16.gmra.mxu0 %v1847
  %v1952 = vpop.f32.mrf.mxu0
  %v1953 = vadd.f32 %v1878, %v1952
  %v1954 = vpop.f32.mrf.mxu0
  %v1955 = vadd.f32 %v1878, %v1954
  %1956 = vmatmul.bf16.gmra.mxu0 %v1848
  %v1957 = vpop.f32.mrf.mxu0
  %v1958 = vadd.f32 %v1878, %v1957
  %v1959 = vpop.f32.mrf.mxu0
  %v1960 = vadd.f32 %v1878, %v1959
  %1961 = vmatmul.bf16.gmra.mxu0 %v1849
  %v1962 = vpop.f32.mrf.mxu0
  %v1963 = vadd.f32 %v1878, %v1962
  %v1964 = vpop.f32.mrf.mxu0
  %v1965 = vadd.f32 %v1878, %v1964
  %1966 = vmatmul.bf16.gmra.mxu0 %v1850
  %v1967 = vpop.f32.mrf.mxu0
  %v1968 = vadd.f32 %v1878, %v1967
  %v1969 = vpop.f32.mrf.mxu0
  %v1970 = vadd.f32 %v1878, %v1969
  %1971 = vmatmul.bf16.gmra.mxu0 %v1851
  %v1972 = vpop.f32.mrf.mxu0
  %v1973 = vadd.f32 %v1878, %v1972
  %v1974 = vpop.f32.mrf.mxu0
  %v1975 = vadd.f32 %v1878, %v1974
  %1976 = vmatmul.bf16.gmra.mxu0 %v1852
  %v1977 = vpop.f32.mrf.mxu0
  %v1978 = vadd.f32 %v1878, %v1977
  %v1979 = vpop.f32.mrf.mxu0
  %v1980 = vadd.f32 %v1878, %v1979
  %1981 = vmatmul.bf16.gmra.mxu0 %v1853
  %v1982 = vpop.f32.mrf.mxu0
  %v1983 = vadd.f32 %v1878, %v1982
  %v1984 = vpop.f32.mrf.mxu0
  %v1985 = vadd.f32 %v1878, %v1984
  %1986 = vmatmul.bf16.gmra.mxu0 %v1854
  %v1987 = vpop.f32.mrf.mxu0
  %v1988 = vadd.f32 %v1878, %v1987
  %v1989 = vpop.f32.mrf.mxu0
  %v1990 = vadd.f32 %v1878, %v1989
  %1991 = vmatmul.bf16.gmra.mxu0 %v1855
  %v1992 = vpop.f32.mrf.mxu0
  %v1993 = vadd.f32 %v1878, %v1992
  %v1994 = vpop.f32.mrf.mxu0
  %v1995 = vadd.f32 %v1878, %v1994
  %1996 = vmatmul.bf16.gmra.mxu0 %v1856
  %v1997 = vpop.f32.mrf.mxu0
  %v1998 = vadd.f32 %v1878, %v1997
  %v1999 = vpop.f32.mrf.mxu0
  %v2000 = vadd.f32 %v1878, %v1999
  %2001 = vmatmul.bf16.gmra.mxu0 %v1857
  %v2002 = vpop.f32.mrf.mxu0
  %v2003 = vadd.f32 %v1878, %v2002
  %v2004 = vpop.f32.mrf.mxu0
  %v2005 = vadd.f32 %v1878, %v2004
  %2006 = vmatmul.bf16.gmra.mxu0 %v1858
  %v2007 = vpop.f32.mrf.mxu0
  %v2008 = vadd.f32 %v1878, %v2007
  %v2009 = vpop.f32.mrf.mxu0
  %v2010 = vadd.f32 %v1878, %v2009
  %2011 = vmatmul.bf16.gmra.mxu0 %v1859
  %v2012 = vpop.f32.mrf.mxu0
  %v2013 = vadd.f32 %v1878, %v2012
  %v2014 = vpop.f32.mrf.mxu0
  %v2015 = vadd.f32 %v1878, %v2014
  %2016 = vdwg.mxu0
  %v2017 = vmax.f32 %v1938, 0.0
  %v2018 = vmax.f32 %v1940, 0.0
  %v2019 = vmax.f32 %v1943, 0.0
  %v2020 = vmax.f32 %v1945, 0.0
  %v2021 = vmax.f32 %v1948, 0.0
  %v2022 = vmax.f32 %v1950, 0.0
  %v2023 = vmax.f32 %v1953, 0.0
  %v2024 = vmax.f32 %v1955, 0.0
  %v2025 = vmax.f32 %v1958, 0.0
  %v2026 = vmax.f32 %v1960, 0.0
  %v2027 = vmax.f32 %v1963, 0.0
  %v2028 = vmax.f32 %v1965, 0.0
  %v2029 = vmax.f32 %v1968, 0.0
  %v2030 = vmax.f32 %v1970, 0.0
  %v2031 = vmax.f32 %v1973, 0.0
  %v2032 = vmax.f32 %v1975, 0.0
  %v2033 = vmax.f32 %v1978, 0.0
  %v2034 = vmax.f32 %v1980, 0.0
  %v2035 = vmax.f32 %v1983, 0.0
  %v2036 = vmax.f32 %v1985, 0.0
  %v2037 = vmax.f32 %v1988, 0.0
  %v2038 = vmax.f32 %v1990, 0.0
  %v2039 = vmax.f32 %v1993, 0.0
  %v2040 = vmax.f32 %v1995, 0.0
  %v2041 = vmax.f32 %v1998, 0.0
  %v2042 = vmax.f32 %v2000, 0.0
  %v2043 = vmax.f32 %v2003, 0.0
  %v2044 = vmax.f32 %v2005, 0.0
  %v2045 = vmax.f32 %v2008, 0.0
  %v2046 = vmax.f32 %v2010, 0.0
  %v2047 = vmax.f32 %v2013, 0.0
  %v2048 = vmax.f32 %v2015, 0.0
  %v2049 = vpack.c.bf16 %v2017, %v2017
  %v2050 = vpack.c.bf16 %v2018, %v2018
  %v2051 = vpack.c.bf16 %v2019, %v2019
  %v2052 = vpack.c.bf16 %v2020, %v2020
  %v2053 = vpack.c.bf16 %v2021, %v2021
  %v2054 = vpack.c.bf16 %v2022, %v2022
  %v2055 = vpack.c.bf16 %v2023, %v2023
  %v2056 = vpack.c.bf16 %v2024, %v2024
  %v2057 = vpack.c.bf16 %v2025, %v2025
  %v2058 = vpack.c.bf16 %v2026, %v2026
  %v2059 = vpack.c.bf16 %v2027, %v2027
  %v2060 = vpack.c.bf16 %v2028, %v2028
  %v2061 = vpack.c.bf16 %v2029, %v2029
  %v2062 = vpack.c.bf16 %v2030, %v2030
  %v2063 = vpack.c.bf16 %v2031, %v2031
  %v2064 = vpack.c.bf16 %v2032, %v2032
  %v2065 = vpack.c.bf16 %v2033, %v2033
  %v2066 = vpack.c.bf16 %v2034, %v2034
  %v2067 = vpack.c.bf16 %v2035, %v2035
  %v2068 = vpack.c.bf16 %v2036, %v2036
  %v2069 = vpack.c.bf16 %v2037, %v2037
  %v2070 = vpack.c.bf16 %v2038, %v2038
  %v2071 = vpack.c.bf16 %v2039, %v2039
  %v2072 = vpack.c.bf16 %v2040, %v2040
  %v2073 = vpack.c.bf16 %v2041, %v2041
  %v2074 = vpack.c.bf16 %v2042, %v2042
  %v2075 = vpack.c.bf16 %v2043, %v2043
  %v2076 = vpack.c.bf16 %v2044, %v2044
  %v2077 = vpack.c.bf16 %v2045, %v2045
  %v2078 = vpack.c.bf16 %v2046, %v2046
  %v2079 = vpack.c.bf16 %v2047, %v2047
  %v2080 = vpack.c.bf16 %v2048, %v2048
  %2081 = vst [vmem:[%s11] sm:$0xf] %v2049
  %2082 = vst [vmem:[%s11 + $0x4] sm:$0xf] %v2050
  %2083 = vst [vmem:[%s11 + $0x8] sm:$0xf] %v2051
  %2084 = vst [vmem:[%s11 + $0xc] sm:$0xf] %v2052
  %2085 = vst [vmem:[%s11 + $0x10] sm:$0xf] %v2053
  %2086 = vst [vmem:[%s11 + $0x14] sm:$0xf] %v2054
  %2087 = vst [vmem:[%s11 + $0x18] sm:$0xf] %v2055
  %2088 = vst [vmem:[%s11 + $0x1c] sm:$0xf] %v2056
  %2089 = vst [vmem:[%s11 + $0x20] sm:$0xf] %v2057
  %2090 = vst [vmem:[%s11 + $0x24] sm:$0xf] %v2058
  %2091 = vst [vmem:[%s11 + $0x28] sm:$0xf] %v2059
  %2092 = vst [vmem:[%s11 + $0x2c] sm:$0xf] %v2060
  %2093 = vst [vmem:[%s11 + $0x30] sm:$0xf] %v2061
  %2094 = vst [vmem:[%s11 + $0x34] sm:$0xf] %v2062
  %2095 = vst [vmem:[%s11 + $0x38] sm:$0xf] %v2063
  %2096 = vst [vmem:[%s11 + $0x3c] sm:$0xf] %v2064
  %2097 = vst [vmem:[%s11 + $0x40] sm:$0xf] %v2065
  %2098 = vst [vmem:[%s11 + $0x44] sm:$0xf] %v2066
  %2099 = vst [vmem:[%s11 + $0x48] sm:$0xf] %v2067
  %2100 = vst [vmem:[%s11 + $0x4c] sm:$0xf] %v2068
  %2101 = vst [vmem:[%s11 + $0x50] sm:$0xf] %v2069
  %2102 = vst [vmem:[%s11 + $0x54] sm:$0xf] %v2070
  %2103 = vst [vmem:[%s11 + $0x58] sm:$0xf] %v2071
  %2104 = vst [vmem:[%s11 + $0x5c] sm:$0xf] %v2072
  %2105 = vst [vmem:[%s11 + $0x60] sm:$0xf] %v2073
  %2106 = vst [vmem:[%s11 + $0x64] sm:$0xf] %v2074
  %2107 = vst [vmem:[%s11 + $0x68] sm:$0xf] %v2075
  %2108 = vst [vmem:[%s11 + $0x6c] sm:$0xf] %v2076
  %2109 = vst [vmem:[%s11 + $0x70] sm:$0xf] %v2077
  %2110 = vst [vmem:[%s11 + $0x74] sm:$0xf] %v2078
  %2111 = vst [vmem:[%s11 + $0x78] sm:$0xf] %v2079
  %2112 = vst [vmem:[%s11 + $0x7c] sm:$0xf] %v2080
  // Predicated region
  $region46: #{gnn_forward.27} parent=0 // pred_check
    _
  $region47: #{gnn_forward.27} parent=0 // pred_check_branch
    %2114 = sbr.rel (0) target = $region49
  $region48: #{gnn_forward.27} parent=0 // pred_region
    _
  $region49: #{gnn_forward.27} parent=0 // pred_fallthru
    _
  // Predicated region
  $region50: #{gnn_forward.27} parent=0 // pred_check
    _
  $region51: #{gnn_forward.27} parent=0 // pred_check_branch
    %2116 = sbr.rel (0) target = $region53
  $region52: #{gnn_forward.27} parent=0 // pred_region
    _
  $region53: #{gnn_forward.27} parent=0 // pred_fallthru
    _

// kernel: gnn_forward.35
$region0: #{gnn_forward.35}
  #allocation0 [shape = 'u32[]', space=smem, size = 0x4, offset = 0x4, fixed_abs, tag = 'smem constant byte address 0x4 - core index']
  #allocation1 [shape = 'u32[72,128]{1,0:T(1,128)}', space=vmem, size = 0x9000, scoped, tag = 'internal scratch']
  %s0 = inlined_call_operand.vmem [shape: bf16[256,128], index: 0, kind: input, shape index: {}]
  %s1 = inlined_call_operand.vmem [shape: f32[256,128], index: 1, kind: input, shape index: {}]
  %s2 = inlined_call_operand.vmem [shape: f32[256,128], index: 2, kind: input, shape index: {}]
  %s3 = inlined_call_operand.vmem [shape: f32[256,128], index: 3, kind: input, shape index: {}]
  %s4 = inlined_call_operand.vmem [shape: bf16[512,128], index: 4, kind: input, shape index: {}]
  %s5 = inlined_call_operand.vmem [shape: bf16[128,128], index: 5, kind: input, shape index: {}]
  %s6 = inlined_call_operand.vmem [shape: bf16[128,128], index: 6, kind: input, shape index: {}]
  %s7 = inlined_call_operand.vmem [shape: f32[1,128], index: 7, kind: input, shape index: {}]
  %s8 = inlined_call_operand.vmem [shape: f32[1,128], index: 8, kind: input, shape index: {}]
  %s9 = inlined_call_operand.vmem [shape: f32[1,128], index: 9, kind: input, shape index: {}]
  %s10 = inlined_call_operand.vmem [shape: bf16[256,128], index: 10, kind: output, shape index: {}]
  %s11 = sld [smem:[#allocation0]]
  $region50: #{gnn_forward.35} parent=0
    _
  %s13 = ssub.s32 1, %s11
  %s14 = scalar_select 0, %s13, %s11
  // Predicated region
  $region2: #{gnn_forward.35} parent=0 // pred_check
    _
  $region3: #{gnn_forward.35} parent=0 // pred_check_branch
    %16 = sbr.rel (0) target = $region5
  $region4: #{gnn_forward.35} parent=0 // pred_region
    _
  $region5: #{gnn_forward.35} parent=0 // pred_fallthru
    _
  // Predicated region
  $region6: #{gnn_forward.35} parent=0 // pred_check
    _
  $region7: #{gnn_forward.35} parent=0 // pred_check_branch
    %18 = sbr.rel (0) target = $region9
  $region8: #{gnn_forward.35} parent=0 // pred_region
    _
  $region9: #{gnn_forward.35} parent=0 // pred_fallthru
    _
  // Predicated region
  $region10: #{gnn_forward.35} parent=0 // pred_check
    _
  $region11: #{gnn_forward.35} parent=0 // pred_check_branch
    %20 = sbr.rel (0) target = $region13
  $region12: #{gnn_forward.35} parent=0 // pred_region
    _
  $region13: #{gnn_forward.35} parent=0 // pred_fallthru
    _
  // Predicated region
  $region14: #{gnn_forward.35} parent=0 // pred_check
    _
  $region15: #{gnn_forward.35} parent=0 // pred_check_branch
    %22 = sbr.rel (0) target = $region17
  $region16: #{gnn_forward.35} parent=0 // pred_region
    _
  $region17: #{gnn_forward.35} parent=0 // pred_fallthru
    _
  // Predicated region
  $region18: #{gnn_forward.35} parent=0 // pred_check
    _
  $region19: #{gnn_forward.35} parent=0 // pred_check_branch
    %24 = sbr.rel (0) target = $region21
  $region20: #{gnn_forward.35} parent=0 // pred_region
    _
  $region21: #{gnn_forward.35} parent=0 // pred_fallthru
    _
  // Predicated region
  $region22: #{gnn_forward.35} parent=0 // pred_check
    _
  $region23: #{gnn_forward.35} parent=0 // pred_check_branch
    %26 = sbr.rel (0) target = $region25
  $region24: #{gnn_forward.35} parent=0 // pred_region
    _
  $region25: #{gnn_forward.35} parent=0 // pred_fallthru
    _
  // Predicated region
  $region26: #{gnn_forward.35} parent=0 // pred_check
    _
  $region27: #{gnn_forward.35} parent=0 // pred_check_branch
    %28 = sbr.rel (0) target = $region29
  $region28: #{gnn_forward.35} parent=0 // pred_region
    _
  $region29: #{gnn_forward.35} parent=0 // pred_fallthru
    _
  // Predicated region
  $region30: #{gnn_forward.35} parent=0 // pred_check
    _
  $region31: #{gnn_forward.35} parent=0 // pred_check_branch
    %30 = sbr.rel (0) target = $region33
  $region32: #{gnn_forward.35} parent=0 // pred_region
    _
  $region33: #{gnn_forward.35} parent=0 // pred_fallthru
    _
  // Predicated region
  $region34: #{gnn_forward.35} parent=0 // pred_check
    _
  $region35: #{gnn_forward.35} parent=0 // pred_check_branch
    %32 = sbr.rel (0) target = $region37
  $region36: #{gnn_forward.35} parent=0 // pred_region
    _
  $region37: #{gnn_forward.35} parent=0 // pred_fallthru
    _
  // Predicated region
  $region38: #{gnn_forward.35} parent=0 // pred_check
    _
  $region39: #{gnn_forward.35} parent=0 // pred_check_branch
    %34 = sbr.rel (0) target = $region41
  $region40: #{gnn_forward.35} parent=0 // pred_region
    _
  $region41: #{gnn_forward.35} parent=0 // pred_fallthru
    _
  %v35 = vld [vmem:[%s0] sm:$0xf]
  %v36 = vld [vmem:[%s0 + $0x4] sm:$0xf]
  %v37 = vld [vmem:[%s0 + $0x8] sm:$0xf]
  %v38 = vld [vmem:[%s0 + $0xc] sm:$0xf]
  %v39 = vld [vmem:[%s0 + $0x10] sm:$0xf]
  %v40 = vld [vmem:[%s0 + $0x14] sm:$0xf]
  %v41 = vld [vmem:[%s0 + $0x18] sm:$0xf]
  %v42 = vld [vmem:[%s0 + $0x1c] sm:$0xf]
  %v43 = vld [vmem:[%s0 + $0x20] sm:$0xf]
  %v44 = vld [vmem:[%s0 + $0x24] sm:$0xf]
  %v45 = vld [vmem:[%s0 + $0x28] sm:$0xf]
  %v46 = vld [vmem:[%s0 + $0x2c] sm:$0xf]
  %v47 = vld [vmem:[%s0 + $0x30] sm:$0xf]
  %v48 = vld [vmem:[%s0 + $0x34] sm:$0xf]
  %v49 = vld [vmem:[%s0 + $0x38] sm:$0xf]
  %v50 = vld [vmem:[%s0 + $0x3c] sm:$0xf]
  %v51 = vld [vmem:[%s0 + $0x40] sm:$0xf]
  %v52 = vld [vmem:[%s0 + $0x44] sm:$0xf]
  %v53 = vld [vmem:[%s0 + $0x48] sm:$0xf]
  %v54 = vld [vmem:[%s0 + $0x4c] sm:$0xf]
  %v55 = vld [vmem:[%s0 + $0x50] sm:$0xf]
  %v56 = vld [vmem:[%s0 + $0x54] sm:$0xf]
  %v57 = vld [vmem:[%s0 + $0x58] sm:$0xf]
  %v58 = vld [vmem:[%s0 + $0x5c] sm:$0xf]
  %v59 = vld [vmem:[%s0 + $0x60] sm:$0xf]
  %v60 = vld [vmem:[%s0 + $0x64] sm:$0xf]
  %v61 = vld [vmem:[%s0 + $0x68] sm:$0xf]
  %v62 = vld [vmem:[%s0 + $0x6c] sm:$0xf]
  %v63 = vld [vmem:[%s0 + $0x70] sm:$0xf]
  %v64 = vld [vmem:[%s0 + $0x74] sm:$0xf]
  %v65 = vld [vmem:[%s0 + $0x78] sm:$0xf]
  %v66 = vld [vmem:[%s0 + $0x7c] sm:$0xf]
  %v67 = vld [vmem:[%s1] sm:$0xff]
  %v68 = vld [vmem:[%s1 + $0x8] sm:$0xff]
  %v69 = vld [vmem:[%s1 + $0x10] sm:$0xff]
  %v70 = vld [vmem:[%s1 + $0x18] sm:$0xff]
  %v71 = vld [vmem:[%s1 + $0x20] sm:$0xff]
  %v72 = vld [vmem:[%s1 + $0x28] sm:$0xff]
  %v73 = vld [vmem:[%s1 + $0x30] sm:$0xff]
  %v74 = vld [vmem:[%s1 + $0x38] sm:$0xff]
  %v75 = vld [vmem:[%s1 + $0x40] sm:$0xff]
  %v76 = vld [vmem:[%s1 + $0x48] sm:$0xff]
  %v77 = vld [vmem:[%s1 + $0x50] sm:$0xff]
  %v78 = vld [vmem:[%s1 + $0x58] sm:$0xff]
  %v79 = vld [vmem:[%s1 + $0x60] sm:$0xff]
  %v80 = vld [vmem:[%s1 + $0x68] sm:$0xff]
  %v81 = vld [vmem:[%s1 + $0x70] sm:$0xff]
  %v82 = vld [vmem:[%s1 + $0x78] sm:$0xff]
  %v83 = vld [vmem:[%s1 + $0x80] sm:$0xff]
  %v84 = vld [vmem:[%s1 + $0x88] sm:$0xff]
  %v85 = vld [vmem:[%s1 + $0x90] sm:$0xff]
  %v86 = vld [vmem:[%s1 + $0x98] sm:$0xff]
  %v87 = vld [vmem:[%s1 + $0xa0] sm:$0xff]
  %v88 = vld [vmem:[%s1 + $0xa8] sm:$0xff]
  %v89 = vld [vmem:[%s1 + $0xb0] sm:$0xff]
  %v90 = vld [vmem:[%s1 + $0xb8] sm:$0xff]
  %v91 = vld [vmem:[%s1 + $0xc0] sm:$0xff]
  %v92 = vld [vmem:[%s1 + $0xc8] sm:$0xff]
  %v93 = vld [vmem:[%s1 + $0xd0] sm:$0xff]
  %v94 = vld [vmem:[%s1 + $0xd8] sm:$0xff]
  %v95 = vld [vmem:[%s1 + $0xe0] sm:$0xff]
  %v96 = vld [vmem:[%s1 + $0xe8] sm:$0xff]
  %v97 = vld [vmem:[%s1 + $0xf0] sm:$0xff]
  %v98 = vld [vmem:[%s1 + $0xf8] sm:$0xff]
  %v99 = vpack.c.bf16 %v67, %v67
  %v100 = vpack.c.bf16 %v68, %v68
  %v101 = vpack.c.bf16 %v69, %v69
  %v102 = vpack.c.bf16 %v70, %v70
  %v103 = vpack.c.bf16 %v71, %v71
  %v104 = vpack.c.bf16 %v72, %v72
  %v105 = vpack.c.bf16 %v73, %v73
  %v106 = vpack.c.bf16 %v74, %v74
  %v107 = vpack.c.bf16 %v75, %v75
  %v108 = vpack.c.bf16 %v76, %v76
  %v109 = vpack.c.bf16 %v77, %v77
  %v110 = vpack.c.bf16 %v78, %v78
  %v111 = vpack.c.bf16 %v79, %v79
  %v112 = vpack.c.bf16 %v80, %v80
  %v113 = vpack.c.bf16 %v81, %v81
  %v114 = vpack.c.bf16 %v82, %v82
  %v115 = vpack.c.bf16 %v83, %v83
  %v116 = vpack.c.bf16 %v84, %v84
  %v117 = vpack.c.bf16 %v85, %v85
  %v118 = vpack.c.bf16 %v86, %v86
  %v119 = vpack.c.bf16 %v87, %v87
  %v120 = vpack.c.bf16 %v88, %v88
  %v121 = vpack.c.bf16 %v89, %v89
  %v122 = vpack.c.bf16 %v90, %v90
  %v123 = vpack.c.bf16 %v91, %v91
  %v124 = vpack.c.bf16 %v92, %v92
  %v125 = vpack.c.bf16 %v93, %v93
  %v126 = vpack.c.bf16 %v94, %v94
  %v127 = vpack.c.bf16 %v95, %v95
  %v128 = vpack.c.bf16 %v96, %v96
  %v129 = vpack.c.bf16 %v97, %v97
  %v130 = vpack.c.bf16 %v98, %v98
  %v163 = vunpack.c.l.b16 %v35
  %v164 = vunpack.c.l.b16 %v36
  %v165 = vunpack.c.l.b16 %v37
  %v166 = vunpack.c.l.b16 %v38
  %v167 = vunpack.c.l.b16 %v39
  %v168 = vunpack.c.l.b16 %v40
  %v169 = vunpack.c.l.b16 %v41
  %v170 = vunpack.c.l.b16 %v42
  %v171 = vunpack.c.l.b16 %v43
  %v172 = vunpack.c.l.b16 %v44
  %v173 = vunpack.c.l.b16 %v45
  %v174 = vunpack.c.l.b16 %v46
  %v175 = vunpack.c.l.b16 %v47
  %v176 = vunpack.c.l.b16 %v48
  %v177 = vunpack.c.l.b16 %v49
  %v178 = vunpack.c.l.b16 %v50
  %v179 = vunpack.c.l.b16 %v51
  %v180 = vunpack.c.l.b16 %v52
  %v181 = vunpack.c.l.b16 %v53
  %v182 = vunpack.c.l.b16 %v54
  %v183 = vunpack.c.l.b16 %v55
  %v184 = vunpack.c.l.b16 %v56
  %v185 = vunpack.c.l.b16 %v57
  %v186 = vunpack.c.l.b16 %v58
  %v187 = vunpack.c.l.b16 %v59
  %v188 = vunpack.c.l.b16 %v60
  %v189 = vunpack.c.l.b16 %v61
  %v190 = vunpack.c.l.b16 %v62
  %v191 = vunpack.c.l.b16 %v63
  %v192 = vunpack.c.l.b16 %v64
  %v193 = vunpack.c.l.b16 %v65
  %v194 = vunpack.c.l.b16 %v66
  %v195 = vpack.c.b16 %v164, %v163
  %v196 = vpack.c.b16 %v166, %v165
  %v197 = vpack.c.b16 %v168, %v167
  %v198 = vpack.c.b16 %v170, %v169
  %v199 = vpack.c.b16 %v172, %v171
  %v200 = vpack.c.b16 %v174, %v173
  %v201 = vpack.c.b16 %v176, %v175
  %v202 = vpack.c.b16 %v178, %v177
  %v203 = vpack.c.b16 %v180, %v179
  %v204 = vpack.c.b16 %v182, %v181
  %v205 = vpack.c.b16 %v184, %v183
  %v206 = vpack.c.b16 %v186, %v185
  %v207 = vpack.c.b16 %v188, %v187
  %v208 = vpack.c.b16 %v190, %v189
  %v209 = vpack.c.b16 %v192, %v191
  %v210 = vpack.c.b16 %v194, %v193
  %v259 = vunpack.c.l.b16 %v99
  %v260 = vunpack.c.l.b16 %v100
  %v261 = vunpack.c.l.b16 %v101
  %v262 = vunpack.c.l.b16 %v102
  %v263 = vunpack.c.l.b16 %v103
  %v264 = vunpack.c.l.b16 %v104
  %v265 = vunpack.c.l.b16 %v105
  %v266 = vunpack.c.l.b16 %v106
  %v267 = vunpack.c.l.b16 %v107
  %v268 = vunpack.c.l.b16 %v108
  %v269 = vunpack.c.l.b16 %v109
  %v270 = vunpack.c.l.b16 %v110
  %v271 = vunpack.c.l.b16 %v111
  %v272 = vunpack.c.l.b16 %v112
  %v273 = vunpack.c.l.b16 %v113
  %v274 = vunpack.c.l.b16 %v114
  %v275 = vunpack.c.l.b16 %v115
  %v276 = vunpack.c.l.b16 %v116
  %v277 = vunpack.c.l.b16 %v117
  %v278 = vunpack.c.l.b16 %v118
  %v279 = vunpack.c.l.b16 %v119
  %v280 = vunpack.c.l.b16 %v120
  %v281 = vunpack.c.l.b16 %v121
  %v282 = vunpack.c.l.b16 %v122
  %v283 = vunpack.c.l.b16 %v123
  %v284 = vunpack.c.l.b16 %v124
  %v285 = vunpack.c.l.b16 %v125
  %v286 = vunpack.c.l.b16 %v126
  %v287 = vunpack.c.l.b16 %v127
  %v288 = vunpack.c.l.b16 %v128
  %v289 = vunpack.c.l.b16 %v129
  %v290 = vunpack.c.l.b16 %v130
  %v291 = vpack.c.b16 %v260, %v259
  %v292 = vpack.c.b16 %v262, %v261
  %v293 = vpack.c.b16 %v264, %v263
  %v294 = vpack.c.b16 %v266, %v265
  %v295 = vpack.c.b16 %v268, %v267
  %v296 = vpack.c.b16 %v270, %v269
  %v297 = vpack.c.b16 %v272, %v271
  %v298 = vpack.c.b16 %v274, %v273
  %v299 = vpack.c.b16 %v276, %v275
  %v300 = vpack.c.b16 %v278, %v277
  %v301 = vpack.c.b16 %v280, %v279
  %v302 = vpack.c.b16 %v282, %v281
  %v303 = vpack.c.b16 %v284, %v283
  %v304 = vpack.c.b16 %v286, %v285
  %v305 = vpack.c.b16 %v288, %v287
  %v306 = vpack.c.b16 %v290, %v289
  %v323 = vld [vmem:[%s4] sm:$0xf]
  %v324 = vld [vmem:[%s4 + $0x4] sm:$0xf]
  %v325 = vld [vmem:[%s4 + $0x8] sm:$0xf]
  %v326 = vld [vmem:[%s4 + $0xc] sm:$0xf]
  %v327 = vld [vmem:[%s4 + $0x10] sm:$0xf]
  %v328 = vld [vmem:[%s4 + $0x14] sm:$0xf]
  %v329 = vld [vmem:[%s4 + $0x18] sm:$0xf]
  %v330 = vld [vmem:[%s4 + $0x1c] sm:$0xf]
  %v331 = vld [vmem:[%s4 + $0x20] sm:$0xf]
  %v332 = vld [vmem:[%s4 + $0x24] sm:$0xf]
  %v333 = vld [vmem:[%s4 + $0x28] sm:$0xf]
  %v334 = vld [vmem:[%s4 + $0x2c] sm:$0xf]
  %v335 = vld [vmem:[%s4 + $0x30] sm:$0xf]
  %v336 = vld [vmem:[%s4 + $0x34] sm:$0xf]
  %v337 = vld [vmem:[%s4 + $0x38] sm:$0xf]
  %v338 = vld [vmem:[%s4 + $0x3c] sm:$0xf]
  %v339 = vld [vmem:[%s4 + $0x40] sm:$0xf]
  %v340 = vld [vmem:[%s4 + $0x44] sm:$0xf]
  %v341 = vld [vmem:[%s4 + $0x48] sm:$0xf]
  %v342 = vld [vmem:[%s4 + $0x4c] sm:$0xf]
  %v343 = vld [vmem:[%s4 + $0x50] sm:$0xf]
  %v344 = vld [vmem:[%s4 + $0x54] sm:$0xf]
  %v345 = vld [vmem:[%s4 + $0x58] sm:$0xf]
  %v346 = vld [vmem:[%s4 + $0x5c] sm:$0xf]
  %v347 = vld [vmem:[%s4 + $0x60] sm:$0xf]
  %v348 = vld [vmem:[%s4 + $0x64] sm:$0xf]
  %v349 = vld [vmem:[%s4 + $0x68] sm:$0xf]
  %v350 = vld [vmem:[%s4 + $0x6c] sm:$0xf]
  %v351 = vld [vmem:[%s4 + $0x70] sm:$0xf]
  %v352 = vld [vmem:[%s4 + $0x74] sm:$0xf]
  %v353 = vld [vmem:[%s4 + $0x78] sm:$0xf]
  %v354 = vld [vmem:[%s4 + $0x7c] sm:$0xf]
  %v355 = vld [vmem:[%s2] sm:$0xff]
  %v356 = vld [vmem:[%s2 + $0x8] sm:$0xff]
  %v357 = vld [vmem:[%s2 + $0x10] sm:$0xff]
  %v358 = vld [vmem:[%s2 + $0x18] sm:$0xff]
  %v359 = vld [vmem:[%s2 + $0x20] sm:$0xff]
  %v360 = vld [vmem:[%s2 + $0x28] sm:$0xff]
  %v361 = vld [vmem:[%s2 + $0x30] sm:$0xff]
  %v362 = vld [vmem:[%s2 + $0x38] sm:$0xff]
  %v363 = vld [vmem:[%s2 + $0x40] sm:$0xff]
  %v364 = vld [vmem:[%s2 + $0x48] sm:$0xff]
  %v365 = vld [vmem:[%s2 + $0x50] sm:$0xff]
  %v366 = vld [vmem:[%s2 + $0x58] sm:$0xff]
  %v367 = vld [vmem:[%s2 + $0x60] sm:$0xff]
  %v368 = vld [vmem:[%s2 + $0x68] sm:$0xff]
  %v369 = vld [vmem:[%s2 + $0x70] sm:$0xff]
  %v370 = vld [vmem:[%s2 + $0x78] sm:$0xff]
  %v371 = vld [vmem:[%s2 + $0x80] sm:$0xff]
  %v372 = vld [vmem:[%s2 + $0x88] sm:$0xff]
  %v373 = vld [vmem:[%s2 + $0x90] sm:$0xff]
  %v374 = vld [vmem:[%s2 + $0x98] sm:$0xff]
  %v375 = vld [vmem:[%s2 + $0xa0] sm:$0xff]
  %v376 = vld [vmem:[%s2 + $0xa8] sm:$0xff]
  %v377 = vld [vmem:[%s2 + $0xb0] sm:$0xff]
  %v378 = vld [vmem:[%s2 + $0xb8] sm:$0xff]
  %v379 = vld [vmem:[%s2 + $0xc0] sm:$0xff]
  %v380 = vld [vmem:[%s2 + $0xc8] sm:$0xff]
  %v381 = vld [vmem:[%s2 + $0xd0] sm:$0xff]
  %v382 = vld [vmem:[%s2 + $0xd8] sm:$0xff]
  %v383 = vld [vmem:[%s2 + $0xe0] sm:$0xff]
  %v384 = vld [vmem:[%s2 + $0xe8] sm:$0xff]
  %v385 = vld [vmem:[%s2 + $0xf0] sm:$0xff]
  %v386 = vld [vmem:[%s2 + $0xf8] sm:$0xff]
  %v387 = vpack.c.bf16 %v355, %v355
  %v388 = vpack.c.bf16 %v356, %v356
  %v389 = vpack.c.bf16 %v357, %v357
  %v390 = vpack.c.bf16 %v358, %v358
  %v391 = vpack.c.bf16 %v359, %v359
  %v392 = vpack.c.bf16 %v360, %v360
  %v393 = vpack.c.bf16 %v361, %v361
  %v394 = vpack.c.bf16 %v362, %v362
  %v395 = vpack.c.bf16 %v363, %v363
  %v396 = vpack.c.bf16 %v364, %v364
  %v397 = vpack.c.bf16 %v365, %v365
  %v398 = vpack.c.bf16 %v366, %v366
  %v399 = vpack.c.bf16 %v367, %v367
  %v400 = vpack.c.bf16 %v368, %v368
  %v401 = vpack.c.bf16 %v369, %v369
  %v402 = vpack.c.bf16 %v370, %v370
  %v403 = vpack.c.bf16 %v371, %v371
  %v404 = vpack.c.bf16 %v372, %v372
  %v405 = vpack.c.bf16 %v373, %v373
  %v406 = vpack.c.bf16 %v374, %v374
  %v407 = vpack.c.bf16 %v375, %v375
  %v408 = vpack.c.bf16 %v376, %v376
  %v409 = vpack.c.bf16 %v377, %v377
  %v410 = vpack.c.bf16 %v378, %v378
  %v411 = vpack.c.bf16 %v379, %v379
  %v412 = vpack.c.bf16 %v380, %v380
  %v413 = vpack.c.bf16 %v381, %v381
  %v414 = vpack.c.bf16 %v382, %v382
  %v415 = vpack.c.bf16 %v383, %v383
  %v416 = vpack.c.bf16 %v384, %v384
  %v417 = vpack.c.bf16 %v385, %v385
  %v418 = vpack.c.bf16 %v386, %v386
  %v419 = vld [vmem:[%s3] sm:$0xff]
  %v420 = vld [vmem:[%s3 + $0x8] sm:$0xff]
  %v421 = vld [vmem:[%s3 + $0x10] sm:$0xff]
  %v422 = vld [vmem:[%s3 + $0x18] sm:$0xff]
  %v423 = vld [vmem:[%s3 + $0x20] sm:$0xff]
  %v424 = vld [vmem:[%s3 + $0x28] sm:$0xff]
  %v425 = vld [vmem:[%s3 + $0x30] sm:$0xff]
  %v426 = vld [vmem:[%s3 + $0x38] sm:$0xff]
  %v427 = vld [vmem:[%s3 + $0x40] sm:$0xff]
  %v428 = vld [vmem:[%s3 + $0x48] sm:$0xff]
  %v429 = vld [vmem:[%s3 + $0x50] sm:$0xff]
  %v430 = vld [vmem:[%s3 + $0x58] sm:$0xff]
  %v431 = vld [vmem:[%s3 + $0x60] sm:$0xff]
  %v432 = vld [vmem:[%s3 + $0x68] sm:$0xff]
  %v433 = vld [vmem:[%s3 + $0x70] sm:$0xff]
  %v434 = vld [vmem:[%s3 + $0x78] sm:$0xff]
  %v435 = vld [vmem:[%s3 + $0x80] sm:$0xff]
  %v436 = vld [vmem:[%s3 + $0x88] sm:$0xff]
  %v437 = vld [vmem:[%s3 + $0x90] sm:$0xff]
  %v438 = vld [vmem:[%s3 + $0x98] sm:$0xff]
  %v439 = vld [vmem:[%s3 + $0xa0] sm:$0xff]
  %v440 = vld [vmem:[%s3 + $0xa8] sm:$0xff]
  %v441 = vld [vmem:[%s3 + $0xb0] sm:$0xff]
  %v442 = vld [vmem:[%s3 + $0xb8] sm:$0xff]
  %v443 = vld [vmem:[%s3 + $0xc0] sm:$0xff]
  %v444 = vld [vmem:[%s3 + $0xc8] sm:$0xff]
  %v445 = vld [vmem:[%s3 + $0xd0] sm:$0xff]
  %v446 = vld [vmem:[%s3 + $0xd8] sm:$0xff]
  %v447 = vld [vmem:[%s3 + $0xe0] sm:$0xff]
  %v448 = vld [vmem:[%s3 + $0xe8] sm:$0xff]
  %v449 = vld [vmem:[%s3 + $0xf0] sm:$0xff]
  %v450 = vld [vmem:[%s3 + $0xf8] sm:$0xff]
  %v451 = vpack.c.bf16 %v419, %v419
  %v452 = vpack.c.bf16 %v420, %v420
  %v453 = vpack.c.bf16 %v421, %v421
  %v454 = vpack.c.bf16 %v422, %v422
  %v455 = vpack.c.bf16 %v423, %v423
  %v456 = vpack.c.bf16 %v424, %v424
  %v457 = vpack.c.bf16 %v425, %v425
  %v458 = vpack.c.bf16 %v426, %v426
  %v459 = vpack.c.bf16 %v427, %v427
  %v460 = vpack.c.bf16 %v428, %v428
  %v461 = vpack.c.bf16 %v429, %v429
  %v462 = vpack.c.bf16 %v430, %v430
  %v463 = vpack.c.bf16 %v431, %v431
  %v464 = vpack.c.bf16 %v432, %v432
  %v465 = vpack.c.bf16 %v433, %v433
  %v466 = vpack.c.bf16 %v434, %v434
  %v467 = vpack.c.bf16 %v435, %v435
  %v468 = vpack.c.bf16 %v436, %v436
  %v469 = vpack.c.bf16 %v437, %v437
  %v470 = vpack.c.bf16 %v438, %v438
  %v471 = vpack.c.bf16 %v439, %v439
  %v472 = vpack.c.bf16 %v440, %v440
  %v473 = vpack.c.bf16 %v441, %v441
  %v474 = vpack.c.bf16 %v442, %v442
  %v475 = vpack.c.bf16 %v443, %v443
  %v476 = vpack.c.bf16 %v444, %v444
  %v477 = vpack.c.bf16 %v445, %v445
  %v478 = vpack.c.bf16 %v446, %v446
  %v479 = vpack.c.bf16 %v447, %v447
  %v480 = vpack.c.bf16 %v448, %v448
  %v481 = vpack.c.bf16 %v449, %v449
  %v482 = vpack.c.bf16 %v450, %v450
  %v515 = vunpack.c.l.b16 %v387
  %v516 = vunpack.c.l.b16 %v388
  %v517 = vunpack.c.l.b16 %v389
  %v518 = vunpack.c.l.b16 %v390
  %v519 = vunpack.c.l.b16 %v391
  %v520 = vunpack.c.l.b16 %v392
  %v521 = vunpack.c.l.b16 %v393
  %v522 = vunpack.c.l.b16 %v394
  %v523 = vunpack.c.l.b16 %v395
  %v524 = vunpack.c.l.b16 %v396
  %v525 = vunpack.c.l.b16 %v397
  %v526 = vunpack.c.l.b16 %v398
  %v527 = vunpack.c.l.b16 %v399
  %v528 = vunpack.c.l.b16 %v400
  %v529 = vunpack.c.l.b16 %v401
  %v530 = vunpack.c.l.b16 %v402
  %v531 = vunpack.c.l.b16 %v403
  %v532 = vunpack.c.l.b16 %v404
  %v533 = vunpack.c.l.b16 %v405
  %v534 = vunpack.c.l.b16 %v406
  %v535 = vunpack.c.l.b16 %v407
  %v536 = vunpack.c.l.b16 %v408
  %v537 = vunpack.c.l.b16 %v409
  %v538 = vunpack.c.l.b16 %v410
  %v539 = vunpack.c.l.b16 %v411
  %v540 = vunpack.c.l.b16 %v412
  %v541 = vunpack.c.l.b16 %v413
  %v542 = vunpack.c.l.b16 %v414
  %v543 = vunpack.c.l.b16 %v415
  %v544 = vunpack.c.l.b16 %v416
  %v545 = vunpack.c.l.b16 %v417
  %v546 = vunpack.c.l.b16 %v418
  %v547 = vpack.c.b16 %v516, %v515
  %v548 = vpack.c.b16 %v518, %v517
  %v549 = vpack.c.b16 %v520, %v519
  %v550 = vpack.c.b16 %v522, %v521
  %v551 = vpack.c.b16 %v524, %v523
  %v552 = vpack.c.b16 %v526, %v525
  %v553 = vpack.c.b16 %v528, %v527
  %v554 = vpack.c.b16 %v530, %v529
  %v555 = vpack.c.b16 %v532, %v531
  %v556 = vpack.c.b16 %v534, %v533
  %v557 = vpack.c.b16 %v536, %v535
  %v558 = vpack.c.b16 %v538, %v537
  %v559 = vpack.c.b16 %v540, %v539
  %v560 = vpack.c.b16 %v542, %v541
  %v561 = vpack.c.b16 %v544, %v543
  %v562 = vpack.c.b16 %v546, %v545
  %v611 = vunpack.c.l.b16 %v451
  %v612 = vunpack.c.l.b16 %v452
  %v613 = vunpack.c.l.b16 %v453
  %v614 = vunpack.c.l.b16 %v454
  %v615 = vunpack.c.l.b16 %v455
  %v616 = vunpack.c.l.b16 %v456
  %v617 = vunpack.c.l.b16 %v457
  %v618 = vunpack.c.l.b16 %v458
  %v619 = vunpack.c.l.b16 %v459
  %v620 = vunpack.c.l.b16 %v460
  %v621 = vunpack.c.l.b16 %v461
  %v622 = vunpack.c.l.b16 %v462
  %v623 = vunpack.c.l.b16 %v463
  %v624 = vunpack.c.l.b16 %v464
  %v625 = vunpack.c.l.b16 %v465
  %v626 = vunpack.c.l.b16 %v466
  %v627 = vunpack.c.l.b16 %v467
  %v628 = vunpack.c.l.b16 %v468
  %v629 = vunpack.c.l.b16 %v469
  %v630 = vunpack.c.l.b16 %v470
  %v631 = vunpack.c.l.b16 %v471
  %v632 = vunpack.c.l.b16 %v472
  %v633 = vunpack.c.l.b16 %v473
  %v634 = vunpack.c.l.b16 %v474
  %v635 = vunpack.c.l.b16 %v475
  %v636 = vunpack.c.l.b16 %v476
  %v637 = vunpack.c.l.b16 %v477
  %v638 = vunpack.c.l.b16 %v478
  %v639 = vunpack.c.l.b16 %v479
  %v640 = vunpack.c.l.b16 %v480
  %v641 = vunpack.c.l.b16 %v481
  %v642 = vunpack.c.l.b16 %v482
  %v643 = vpack.c.b16 %v612, %v611
  %v644 = vpack.c.b16 %v614, %v613
  %v645 = vpack.c.b16 %v616, %v615
  %v646 = vpack.c.b16 %v618, %v617
  %v647 = vpack.c.b16 %v620, %v619
  %v648 = vpack.c.b16 %v622, %v621
  %v649 = vpack.c.b16 %v624, %v623
  %v650 = vpack.c.b16 %v626, %v625
  %v651 = vpack.c.b16 %v628, %v627
  %v652 = vpack.c.b16 %v630, %v629
  %v653 = vpack.c.b16 %v632, %v631
  %v654 = vpack.c.b16 %v634, %v633
  %v655 = vpack.c.b16 %v636, %v635
  %v656 = vpack.c.b16 %v638, %v637
  %v657 = vpack.c.b16 %v640, %v639
  %v658 = vpack.c.b16 %v642, %v641
  %v675 = vld [vmem:[%s4 + $0x80] sm:$0xf]
  %v676 = vld [vmem:[%s4 + $0x84] sm:$0xf]
  %v677 = vld [vmem:[%s4 + $0x88] sm:$0xf]
  %v678 = vld [vmem:[%s4 + $0x8c] sm:$0xf]
  %v679 = vld [vmem:[%s4 + $0x90] sm:$0xf]
  %v680 = vld [vmem:[%s4 + $0x94] sm:$0xf]
  %v681 = vld [vmem:[%s4 + $0x98] sm:$0xf]
  %v682 = vld [vmem:[%s4 + $0x9c] sm:$0xf]
  %v683 = vld [vmem:[%s4 + $0xa0] sm:$0xf]
  %v684 = vld [vmem:[%s4 + $0xa4] sm:$0xf]
  %v685 = vld [vmem:[%s4 + $0xa8] sm:$0xf]
  %v686 = vld [vmem:[%s4 + $0xac] sm:$0xf]
  %v687 = vld [vmem:[%s4 + $0xb0] sm:$0xf]
  %v688 = vld [vmem:[%s4 + $0xb4] sm:$0xf]
  %v689 = vld [vmem:[%s4 + $0xb8] sm:$0xf]
  %v690 = vld [vmem:[%s4 + $0xbc] sm:$0xf]
  %v691 = vld [vmem:[%s4 + $0xc0] sm:$0xf]
  %v692 = vld [vmem:[%s4 + $0xc4] sm:$0xf]
  %v693 = vld [vmem:[%s4 + $0xc8] sm:$0xf]
  %v694 = vld [vmem:[%s4 + $0xcc] sm:$0xf]
  %v695 = vld [vmem:[%s4 + $0xd0] sm:$0xf]
  %v696 = vld [vmem:[%s4 + $0xd4] sm:$0xf]
  %v697 = vld [vmem:[%s4 + $0xd8] sm:$0xf]
  %v698 = vld [vmem:[%s4 + $0xdc] sm:$0xf]
  %v699 = vld [vmem:[%s4 + $0xe0] sm:$0xf]
  %v700 = vld [vmem:[%s4 + $0xe4] sm:$0xf]
  %v701 = vld [vmem:[%s4 + $0xe8] sm:$0xf]
  %v702 = vld [vmem:[%s4 + $0xec] sm:$0xf]
  %v703 = vld [vmem:[%s4 + $0xf0] sm:$0xf]
  %v704 = vld [vmem:[%s4 + $0xf4] sm:$0xf]
  %v705 = vld [vmem:[%s4 + $0xf8] sm:$0xf]
  %v706 = vld [vmem:[%s4 + $0xfc] sm:$0xf]
  %v739 = vunpack.c.l.b16 %v675
  %v740 = vunpack.c.l.b16 %v676
  %v741 = vunpack.c.l.b16 %v677
  %v742 = vunpack.c.l.b16 %v678
  %v743 = vunpack.c.l.b16 %v679
  %v744 = vunpack.c.l.b16 %v680
  %v745 = vunpack.c.l.b16 %v681
  %v746 = vunpack.c.l.b16 %v682
  %v747 = vunpack.c.l.b16 %v683
  %v748 = vunpack.c.l.b16 %v684
  %v749 = vunpack.c.l.b16 %v685
  %v750 = vunpack.c.l.b16 %v686
  %v751 = vunpack.c.l.b16 %v687
  %v752 = vunpack.c.l.b16 %v688
  %v753 = vunpack.c.l.b16 %v689
  %v754 = vunpack.c.l.b16 %v690
  %v755 = vunpack.c.l.b16 %v691
  %v756 = vunpack.c.l.b16 %v692
  %v757 = vunpack.c.l.b16 %v693
  %v758 = vunpack.c.l.b16 %v694
  %v759 = vunpack.c.l.b16 %v695
  %v760 = vunpack.c.l.b16 %v696
  %v761 = vunpack.c.l.b16 %v697
  %v762 = vunpack.c.l.b16 %v698
  %v763 = vunpack.c.l.b16 %v699
  %v764 = vunpack.c.l.b16 %v700
  %v765 = vunpack.c.l.b16 %v701
  %v766 = vunpack.c.l.b16 %v702
  %v767 = vunpack.c.l.b16 %v703
  %v768 = vunpack.c.l.b16 %v704
  %v769 = vunpack.c.l.b16 %v705
  %v770 = vunpack.c.l.b16 %v706
  %v771 = vpack.c.b16 %v740, %v739
  %v772 = vpack.c.b16 %v742, %v741
  %v773 = vpack.c.b16 %v744, %v743
  %v774 = vpack.c.b16 %v746, %v745
  %v775 = vpack.c.b16 %v748, %v747
  %v776 = vpack.c.b16 %v750, %v749
  %v777 = vpack.c.b16 %v752, %v751
  %v778 = vpack.c.b16 %v754, %v753
  %v779 = vpack.c.b16 %v756, %v755
  %v780 = vpack.c.b16 %v758, %v757
  %v781 = vpack.c.b16 %v760, %v759
  %v782 = vpack.c.b16 %v762, %v761
  %v783 = vpack.c.b16 %v764, %v763
  %v784 = vpack.c.b16 %v766, %v765
  %v785 = vpack.c.b16 %v768, %v767
  %v786 = vpack.c.b16 %v770, %v769
  %803 = vmatpush.bf16.msra.mxu0 %v778
  %804 = vmatpush.bf16.msra.mxu0 %v777
  %805 = vmatpush.bf16.msra.mxu0 %v776
  %806 = vmatpush.bf16.msra.mxu0 %v775
  %807 = vmatpush.bf16.msra.mxu0 %v774
  %808 = vmatpush.bf16.msra.mxu0 %v773
  %809 = vmatpush.bf16.msra.mxu0 %v772
  %810 = vmatpush.bf16.msra.mxu0 %v771
  %811 = vmatmul.bf16.gmra.mxu0 %v547
  %v812 = vpop.f32.mrf.mxu0
  %v813 = vadd.f32 0.0, %v812
  %v814 = vpop.f32.mrf.mxu0
  %v815 = vadd.f32 0.0, %v814
  %816 = vmatmul.bf16.gmra.mxu0 %v548
  %v817 = vpop.f32.mrf.mxu0
  %v818 = vadd.f32 0.0, %v817
  %v819 = vpop.f32.mrf.mxu0
  %v820 = vadd.f32 0.0, %v819
  %821 = vmatmul.bf16.gmra.mxu0 %v549
  %v822 = vpop.f32.mrf.mxu0
  %v823 = vadd.f32 0.0, %v822
  %v824 = vpop.f32.mrf.mxu0
  %v825 = vadd.f32 0.0, %v824
  %826 = vmatmul.bf16.gmra.mxu0 %v550
  %v827 = vpop.f32.mrf.mxu0
  %v828 = vadd.f32 0.0, %v827
  %v829 = vpop.f32.mrf.mxu0
  %v830 = vadd.f32 0.0, %v829
  %831 = vmatmul.bf16.gmra.mxu0 %v551
  %v832 = vpop.f32.mrf.mxu0
  %v833 = vadd.f32 0.0, %v832
  %v834 = vpop.f32.mrf.mxu0
  %v835 = vadd.f32 0.0, %v834
  %836 = vmatmul.bf16.gmra.mxu0 %v552
  %v837 = vpop.f32.mrf.mxu0
  %v838 = vadd.f32 0.0, %v837
  %v839 = vpop.f32.mrf.mxu0
  %v840 = vadd.f32 0.0, %v839
  %841 = vmatmul.bf16.gmra.mxu0 %v553
  %v842 = vpop.f32.mrf.mxu0
  %v843 = vadd.f32 0.0, %v842
  %v844 = vpop.f32.mrf.mxu0
  %v845 = vadd.f32 0.0, %v844
  %846 = vmatmul.bf16.gmra.mxu0 %v554
  %v847 = vpop.f32.mrf.mxu0
  %v848 = vadd.f32 0.0, %v847
  %v849 = vpop.f32.mrf.mxu0
  %v850 = vadd.f32 0.0, %v849
  %851 = vmatmul.bf16.gmra.mxu0 %v555
  %v852 = vpop.f32.mrf.mxu0
  %v853 = vadd.f32 0.0, %v852
  %v854 = vpop.f32.mrf.mxu0
  %v855 = vadd.f32 0.0, %v854
  %856 = vmatmul.bf16.gmra.mxu0 %v556
  %v857 = vpop.f32.mrf.mxu0
  %v858 = vadd.f32 0.0, %v857
  %v859 = vpop.f32.mrf.mxu0
  %v860 = vadd.f32 0.0, %v859
  %861 = vmatmul.bf16.gmra.mxu0 %v557
  %v862 = vpop.f32.mrf.mxu0
  %v863 = vadd.f32 0.0, %v862
  %v864 = vpop.f32.mrf.mxu0
  %v865 = vadd.f32 0.0, %v864
  %866 = vmatmul.bf16.gmra.mxu0 %v558
  %v867 = vpop.f32.mrf.mxu0
  %v868 = vadd.f32 0.0, %v867
  %v869 = vpop.f32.mrf.mxu0
  %v870 = vadd.f32 0.0, %v869
  %871 = vmatmul.bf16.gmra.mxu0 %v559
  %v872 = vpop.f32.mrf.mxu0
  %v873 = vadd.f32 0.0, %v872
  %v874 = vpop.f32.mrf.mxu0
  %v875 = vadd.f32 0.0, %v874
  %876 = vmatmul.bf16.gmra.mxu0 %v560
  %v877 = vpop.f32.mrf.mxu0
  %v878 = vadd.f32 0.0, %v877
  %v879 = vpop.f32.mrf.mxu0
  %v880 = vadd.f32 0.0, %v879
  %881 = vmatmul.bf16.gmra.mxu0 %v561
  %v882 = vpop.f32.mrf.mxu0
  %v883 = vadd.f32 0.0, %v882
  %v884 = vpop.f32.mrf.mxu0
  %v885 = vadd.f32 0.0, %v884
  %886 = vmatmul.bf16.gmra.mxu0 %v562
  %v887 = vpop.f32.mrf.mxu0
  %v888 = vadd.f32 0.0, %v887
  %v889 = vpop.f32.mrf.mxu0
  %v890 = vadd.f32 0.0, %v889
  %891 = vdwg.mxu0
  %892 = vmatpush.bf16.msra.mxu0 %v786
  %893 = vmatpush.bf16.msra.mxu0 %v785
  %894 = vmatpush.bf16.msra.mxu0 %v784
  %895 = vmatpush.bf16.msra.mxu0 %v783
  %896 = vmatpush.bf16.msra.mxu0 %v782
  %897 = vmatpush.bf16.msra.mxu0 %v781
  %898 = vmatpush.bf16.msra.mxu0 %v780
  %899 = vmatpush.bf16.msra.mxu0 %v779
  %900 = vmatmul.bf16.gmra.mxu0 %v643
  %v901 = vpop.f32.mrf.mxu0
  %v902 = vadd.f32 %v813, %v901
  %v903 = vpop.f32.mrf.mxu0
  %v904 = vadd.f32 %v815, %v903
  %905 = vmatmul.bf16.gmra.mxu0 %v644
  %v906 = vpop.f32.mrf.mxu0
  %v907 = vadd.f32 %v818, %v906
  %v908 = vpop.f32.mrf.mxu0
  %v909 = vadd.f32 %v820, %v908
  %910 = vmatmul.bf16.gmra.mxu0 %v645
  %v911 = vpop.f32.mrf.mxu0
  %v912 = vadd.f32 %v823, %v911
  %v913 = vpop.f32.mrf.mxu0
  %v914 = vadd.f32 %v825, %v913
  %915 = vmatmul.bf16.gmra.mxu0 %v646
  %v916 = vpop.f32.mrf.mxu0
  %v917 = vadd.f32 %v828, %v916
  %v918 = vpop.f32.mrf.mxu0
  %v919 = vadd.f32 %v830, %v918
  %920 = vmatmul.bf16.gmra.mxu0 %v647
  %v921 = vpop.f32.mrf.mxu0
  %v922 = vadd.f32 %v833, %v921
  %v923 = vpop.f32.mrf.mxu0
  %v924 = vadd.f32 %v835, %v923
  %925 = vmatmul.bf16.gmra.mxu0 %v648
  %v926 = vpop.f32.mrf.mxu0
  %v927 = vadd.f32 %v838, %v926
  %v928 = vpop.f32.mrf.mxu0
  %v929 = vadd.f32 %v840, %v928
  %930 = vmatmul.bf16.gmra.mxu0 %v649
  %v931 = vpop.f32.mrf.mxu0
  %v932 = vadd.f32 %v843, %v931
  %v933 = vpop.f32.mrf.mxu0
  %v934 = vadd.f32 %v845, %v933
  %935 = vmatmul.bf16.gmra.mxu0 %v650
  %v936 = vpop.f32.mrf.mxu0
  %v937 = vadd.f32 %v848, %v936
  %v938 = vpop.f32.mrf.mxu0
  %v939 = vadd.f32 %v850, %v938
  %940 = vmatmul.bf16.gmra.mxu0 %v651
  %v941 = vpop.f32.mrf.mxu0
  %v942 = vadd.f32 %v853, %v941
  %v943 = vpop.f32.mrf.mxu0
  %v944 = vadd.f32 %v855, %v943
  %945 = vmatmul.bf16.gmra.mxu0 %v652
  %v946 = vpop.f32.mrf.mxu0
  %v947 = vadd.f32 %v858, %v946
  %v948 = vpop.f32.mrf.mxu0
  %v949 = vadd.f32 %v860, %v948
  %950 = vmatmul.bf16.gmra.mxu0 %v653
  %v951 = vpop.f32.mrf.mxu0
  %v952 = vadd.f32 %v863, %v951
  %v953 = vpop.f32.mrf.mxu0
  %v954 = vadd.f32 %v865, %v953
  %955 = vmatmul.bf16.gmra.mxu0 %v654
  %v956 = vpop.f32.mrf.mxu0
  %v957 = vadd.f32 %v868, %v956
  %v958 = vpop.f32.mrf.mxu0
  %v959 = vadd.f32 %v870, %v958
  %960 = vmatmul.bf16.gmra.mxu0 %v655
  %v961 = vpop.f32.mrf.mxu0
  %v962 = vadd.f32 %v873, %v961
  %v963 = vpop.f32.mrf.mxu0
  %v964 = vadd.f32 %v875, %v963
  %965 = vmatmul.bf16.gmra.mxu0 %v656
  %v966 = vpop.f32.mrf.mxu0
  %v967 = vadd.f32 %v878, %v966
  %v968 = vpop.f32.mrf.mxu0
  %v969 = vadd.f32 %v880, %v968
  %970 = vmatmul.bf16.gmra.mxu0 %v657
  %v971 = vpop.f32.mrf.mxu0
  %v972 = vadd.f32 %v883, %v971
  %v973 = vpop.f32.mrf.mxu0
  %v974 = vadd.f32 %v885, %v973
  %975 = vmatmul.bf16.gmra.mxu0 %v658
  %v976 = vpop.f32.mrf.mxu0
  %v977 = vadd.f32 %v888, %v976
  %v978 = vpop.f32.mrf.mxu0
  %v979 = vadd.f32 %v890, %v978
  %980 = vdwg.mxu0
  %v1013 = vunpack.c.l.b16 %v323
  %v1014 = vunpack.c.l.b16 %v324
  %v1015 = vunpack.c.l.b16 %v325
  %v1016 = vunpack.c.l.b16 %v326
  %v1017 = vunpack.c.l.b16 %v327
  %v1018 = vunpack.c.l.b16 %v328
  %v1019 = vunpack.c.l.b16 %v329
  %v1020 = vunpack.c.l.b16 %v330
  %v1021 = vunpack.c.l.b16 %v331
  %v1022 = vunpack.c.l.b16 %v332
  %v1023 = vunpack.c.l.b16 %v333
  %v1024 = vunpack.c.l.b16 %v334
  %v1025 = vunpack.c.l.b16 %v335
  %v1026 = vunpack.c.l.b16 %v336
  %v1027 = vunpack.c.l.b16 %v337
  %v1028 = vunpack.c.l.b16 %v338
  %v1029 = vunpack.c.l.b16 %v339
  %v1030 = vunpack.c.l.b16 %v340
  %v1031 = vunpack.c.l.b16 %v341
  %v1032 = vunpack.c.l.b16 %v342
  %v1033 = vunpack.c.l.b16 %v343
  %v1034 = vunpack.c.l.b16 %v344
  %v1035 = vunpack.c.l.b16 %v345
  %v1036 = vunpack.c.l.b16 %v346
  %v1037 = vunpack.c.l.b16 %v347
  %v1038 = vunpack.c.l.b16 %v348
  %v1039 = vunpack.c.l.b16 %v349
  %v1040 = vunpack.c.l.b16 %v350
  %v1041 = vunpack.c.l.b16 %v351
  %v1042 = vunpack.c.l.b16 %v352
  %v1043 = vunpack.c.l.b16 %v353
  %v1044 = vunpack.c.l.b16 %v354
  %v1045 = vpack.c.b16 %v1014, %v1013
  %v1046 = vpack.c.b16 %v1016, %v1015
  %v1047 = vpack.c.b16 %v1018, %v1017
  %v1048 = vpack.c.b16 %v1020, %v1019
  %v1049 = vpack.c.b16 %v1022, %v1021
  %v1050 = vpack.c.b16 %v1024, %v1023
  %v1051 = vpack.c.b16 %v1026, %v1025
  %v1052 = vpack.c.b16 %v1028, %v1027
  %v1053 = vpack.c.b16 %v1030, %v1029
  %v1054 = vpack.c.b16 %v1032, %v1031
  %v1055 = vpack.c.b16 %v1034, %v1033
  %v1056 = vpack.c.b16 %v1036, %v1035
  %v1057 = vpack.c.b16 %v1038, %v1037
  %v1058 = vpack.c.b16 %v1040, %v1039
  %v1059 = vpack.c.b16 %v1042, %v1041
  %v1060 = vpack.c.b16 %v1044, %v1043
  %1077 = vmatpush.bf16.msra.mxu0 %v1052
  %1078 = vmatpush.bf16.msra.mxu0 %v1051
  %1079 = vmatpush.bf16.msra.mxu0 %v1050
  %1080 = vmatpush.bf16.msra.mxu0 %v1049
  %1081 = vmatpush.bf16.msra.mxu0 %v1048
  %1082 = vmatpush.bf16.msra.mxu0 %v1047
  %1083 = vmatpush.bf16.msra.mxu0 %v1046
  %1084 = vmatpush.bf16.msra.mxu0 %v1045
  %1085 = vmatmul.bf16.gmra.mxu0 %v195
  %v1086 = vpop.f32.mrf.mxu0
  %v1087 = vadd.f32 %v902, %v1086
  %v1088 = vpop.f32.mrf.mxu0
  %v1089 = vadd.f32 %v904, %v1088
  %1090 = vmatmul.bf16.gmra.mxu0 %v196
  %v1091 = vpop.f32.mrf.mxu0
  %v1092 = vadd.f32 %v907, %v1091
  %v1093 = vpop.f32.mrf.mxu0
  %v1094 = vadd.f32 %v909, %v1093
  %1095 = vmatmul.bf16.gmra.mxu0 %v197
  %v1096 = vpop.f32.mrf.mxu0
  %v1097 = vadd.f32 %v912, %v1096
  %v1098 = vpop.f32.mrf.mxu0
  %v1099 = vadd.f32 %v914, %v1098
  %1100 = vmatmul.bf16.gmra.mxu0 %v198
  %v1101 = vpop.f32.mrf.mxu0
  %v1102 = vadd.f32 %v917, %v1101
  %v1103 = vpop.f32.mrf.mxu0
  %v1104 = vadd.f32 %v919, %v1103
  %1105 = vmatmul.bf16.gmra.mxu0 %v199
  %v1106 = vpop.f32.mrf.mxu0
  %v1107 = vadd.f32 %v922, %v1106
  %v1108 = vpop.f32.mrf.mxu0
  %v1109 = vadd.f32 %v924, %v1108
  %1110 = vmatmul.bf16.gmra.mxu0 %v200
  %v1111 = vpop.f32.mrf.mxu0
  %v1112 = vadd.f32 %v927, %v1111
  %v1113 = vpop.f32.mrf.mxu0
  %v1114 = vadd.f32 %v929, %v1113
  %1115 = vmatmul.bf16.gmra.mxu0 %v201
  %v1116 = vpop.f32.mrf.mxu0
  %v1117 = vadd.f32 %v932, %v1116
  %v1118 = vpop.f32.mrf.mxu0
  %v1119 = vadd.f32 %v934, %v1118
  %1120 = vmatmul.bf16.gmra.mxu0 %v202
  %v1121 = vpop.f32.mrf.mxu0
  %v1122 = vadd.f32 %v937, %v1121
  %v1123 = vpop.f32.mrf.mxu0
  %v1124 = vadd.f32 %v939, %v1123
  %1125 = vmatmul.bf16.gmra.mxu0 %v203
  %v1126 = vpop.f32.mrf.mxu0
  %v1127 = vadd.f32 %v942, %v1126
  %v1128 = vpop.f32.mrf.mxu0
  %v1129 = vadd.f32 %v944, %v1128
  %1130 = vmatmul.bf16.gmra.mxu0 %v204
  %v1131 = vpop.f32.mrf.mxu0
  %v1132 = vadd.f32 %v947, %v1131
  %v1133 = vpop.f32.mrf.mxu0
  %v1134 = vadd.f32 %v949, %v1133
  %1135 = vmatmul.bf16.gmra.mxu0 %v205
  %v1136 = vpop.f32.mrf.mxu0
  %v1137 = vadd.f32 %v952, %v1136
  %v1138 = vpop.f32.mrf.mxu0
  %v1139 = vadd.f32 %v954, %v1138
  %1140 = vmatmul.bf16.gmra.mxu0 %v206
  %v1141 = vpop.f32.mrf.mxu0
  %v1142 = vadd.f32 %v957, %v1141
  %v1143 = vpop.f32.mrf.mxu0
  %v1144 = vadd.f32 %v959, %v1143
  %1145 = vmatmul.bf16.gmra.mxu0 %v207
  %v1146 = vpop.f32.mrf.mxu0
  %v1147 = vadd.f32 %v962, %v1146
  %v1148 = vpop.f32.mrf.mxu0
  %v1149 = vadd.f32 %v964, %v1148
  %1150 = vmatmul.bf16.gmra.mxu0 %v208
  %v1151 = vpop.f32.mrf.mxu0
  %v1152 = vadd.f32 %v967, %v1151
  %v1153 = vpop.f32.mrf.mxu0
  %v1154 = vadd.f32 %v969, %v1153
  %1155 = vmatmul.bf16.gmra.mxu0 %v209
  %v1156 = vpop.f32.mrf.mxu0
  %v1157 = vadd.f32 %v972, %v1156
  %v1158 = vpop.f32.mrf.mxu0
  %v1159 = vadd.f32 %v974, %v1158
  %1160 = vmatmul.bf16.gmra.mxu0 %v210
  %v1161 = vpop.f32.mrf.mxu0
  %v1162 = vadd.f32 %v977, %v1161
  %v1163 = vpop.f32.mrf.mxu0
  %v1164 = vadd.f32 %v979, %v1163
  %1165 = vdwg.mxu0
  %1166 = vmatpush.bf16.msra.mxu0 %v1060
  %1167 = vmatpush.bf16.msra.mxu0 %v1059
  %1168 = vmatpush.bf16.msra.mxu0 %v1058
  %1169 = vmatpush.bf16.msra.mxu0 %v1057
  %1170 = vmatpush.bf16.msra.mxu0 %v1056
  %1171 = vmatpush.bf16.msra.mxu0 %v1055
  %1172 = vmatpush.bf16.msra.mxu0 %v1054
  %1173 = vmatpush.bf16.msra.mxu0 %v1053
  %1174 = vmatmul.bf16.gmra.mxu0 %v291
  %v1175 = vpop.f32.mrf.mxu0
  %v1176 = vadd.f32 %v1087, %v1175
  %v1177 = vpop.f32.mrf.mxu0
  %v1178 = vadd.f32 %v1089, %v1177
  %1179 = vmatmul.bf16.gmra.mxu0 %v292
  %v1180 = vpop.f32.mrf.mxu0
  %v1181 = vadd.f32 %v1092, %v1180
  %v1182 = vpop.f32.mrf.mxu0
  %v1183 = vadd.f32 %v1094, %v1182
  %1184 = vmatmul.bf16.gmra.mxu0 %v293
  %v1185 = vpop.f32.mrf.mxu0
  %v1186 = vadd.f32 %v1097, %v1185
  %v1187 = vpop.f32.mrf.mxu0
  %v1188 = vadd.f32 %v1099, %v1187
  %1189 = vmatmul.bf16.gmra.mxu0 %v294
  %v1190 = vpop.f32.mrf.mxu0
  %v1191 = vadd.f32 %v1102, %v1190
  %v1192 = vpop.f32.mrf.mxu0
  %v1193 = vadd.f32 %v1104, %v1192
  %1194 = vmatmul.bf16.gmra.mxu0 %v295
  %v1195 = vpop.f32.mrf.mxu0
  %v1196 = vadd.f32 %v1107, %v1195
  %v1197 = vpop.f32.mrf.mxu0
  %v1198 = vadd.f32 %v1109, %v1197
  %1199 = vmatmul.bf16.gmra.mxu0 %v296
  %v1200 = vpop.f32.mrf.mxu0
  %v1201 = vadd.f32 %v1112, %v1200
  %v1202 = vpop.f32.mrf.mxu0
  %v1203 = vadd.f32 %v1114, %v1202
  %1204 = vmatmul.bf16.gmra.mxu0 %v297
  %v1205 = vpop.f32.mrf.mxu0
  %v1206 = vadd.f32 %v1117, %v1205
  %v1207 = vpop.f32.mrf.mxu0
  %v1208 = vadd.f32 %v1119, %v1207
  %1209 = vmatmul.bf16.gmra.mxu0 %v298
  %v1210 = vpop.f32.mrf.mxu0
  %v1211 = vadd.f32 %v1122, %v1210
  %v1212 = vpop.f32.mrf.mxu0
  %v1213 = vadd.f32 %v1124, %v1212
  %1214 = vmatmul.bf16.gmra.mxu0 %v299
  %v1215 = vpop.f32.mrf.mxu0
  %v1216 = vadd.f32 %v1127, %v1215
  %v1217 = vpop.f32.mrf.mxu0
  %v1218 = vadd.f32 %v1129, %v1217
  %1219 = vmatmul.bf16.gmra.mxu0 %v300
  %v1220 = vpop.f32.mrf.mxu0
  %v1221 = vadd.f32 %v1132, %v1220
  %v1222 = vpop.f32.mrf.mxu0
  %v1223 = vadd.f32 %v1134, %v1222
  %1224 = vmatmul.bf16.gmra.mxu0 %v301
  %v1225 = vpop.f32.mrf.mxu0
  %v1226 = vadd.f32 %v1137, %v1225
  %v1227 = vpop.f32.mrf.mxu0
  %v1228 = vadd.f32 %v1139, %v1227
  %1229 = vmatmul.bf16.gmra.mxu0 %v302
  %v1230 = vpop.f32.mrf.mxu0
  %v1231 = vadd.f32 %v1142, %v1230
  %v1232 = vpop.f32.mrf.mxu0
  %v1233 = vadd.f32 %v1144, %v1232
  %1234 = vmatmul.bf16.gmra.mxu0 %v303
  %v1235 = vpop.f32.mrf.mxu0
  %v1236 = vadd.f32 %v1147, %v1235
  %v1237 = vpop.f32.mrf.mxu0
  %v1238 = vadd.f32 %v1149, %v1237
  %1239 = vmatmul.bf16.gmra.mxu0 %v304
  %v1240 = vpop.f32.mrf.mxu0
  %v1241 = vadd.f32 %v1152, %v1240
  %v1242 = vpop.f32.mrf.mxu0
  %v1243 = vadd.f32 %v1154, %v1242
  %1244 = vmatmul.bf16.gmra.mxu0 %v305
  %v1245 = vpop.f32.mrf.mxu0
  %v1246 = vadd.f32 %v1157, %v1245
  %v1247 = vpop.f32.mrf.mxu0
  %v1248 = vadd.f32 %v1159, %v1247
  %1249 = vmatmul.bf16.gmra.mxu0 %v306
  %v1250 = vpop.f32.mrf.mxu0
  %v1251 = vadd.f32 %v1162, %v1250
  %v1252 = vpop.f32.mrf.mxu0
  %v1253 = vadd.f32 %v1164, %v1252
  %1254 = vdwg.mxu0
  %v1255 = vld [vmem:[%s7] sm:$0x1]
  %v1257 = vperm.slane %v1255, 0
  %v1259 = vadd.f32 %v1176, %v1257
  %v1260 = vadd.f32 %v1178, %v1257
  %v1261 = vadd.f32 %v1181, %v1257
  %v1262 = vadd.f32 %v1183, %v1257
  %v1263 = vadd.f32 %v1186, %v1257
  %v1264 = vadd.f32 %v1188, %v1257
  %v1265 = vadd.f32 %v1191, %v1257
  %v1266 = vadd.f32 %v1193, %v1257
  %v1267 = vadd.f32 %v1196, %v1257
  %v1268 = vadd.f32 %v1198, %v1257
  %v1269 = vadd.f32 %v1201, %v1257
  %v1270 = vadd.f32 %v1203, %v1257
  %v1271 = vadd.f32 %v1206, %v1257
  %v1272 = vadd.f32 %v1208, %v1257
  %v1273 = vadd.f32 %v1211, %v1257
  %v1274 = vadd.f32 %v1213, %v1257
  %v1275 = vadd.f32 %v1216, %v1257
  %v1276 = vadd.f32 %v1218, %v1257
  %v1277 = vadd.f32 %v1221, %v1257
  %v1278 = vadd.f32 %v1223, %v1257
  %v1279 = vadd.f32 %v1226, %v1257
  %v1280 = vadd.f32 %v1228, %v1257
  %v1281 = vadd.f32 %v1231, %v1257
  %v1282 = vadd.f32 %v1233, %v1257
  %v1283 = vadd.f32 %v1236, %v1257
  %v1284 = vadd.f32 %v1238, %v1257
  %v1285 = vadd.f32 %v1241, %v1257
  %v1286 = vadd.f32 %v1243, %v1257
  %v1287 = vadd.f32 %v1246, %v1257
  %v1288 = vadd.f32 %v1248, %v1257
  %v1289 = vadd.f32 %v1251, %v1257
  %v1290 = vadd.f32 %v1253, %v1257
  %v1291 = vmax.f32 %v1259, 0.0
  %v1292 = vmax.f32 %v1260, 0.0
  %v1293 = vmax.f32 %v1261, 0.0
  %v1294 = vmax.f32 %v1262, 0.0
  %v1295 = vmax.f32 %v1263, 0.0
  %v1296 = vmax.f32 %v1264, 0.0
  %v1297 = vmax.f32 %v1265, 0.0
  %v1298 = vmax.f32 %v1266, 0.0
  %v1299 = vmax.f32 %v1267, 0.0
  %v1300 = vmax.f32 %v1268, 0.0
  %v1301 = vmax.f32 %v1269, 0.0
  %v1302 = vmax.f32 %v1270, 0.0
  %v1303 = vmax.f32 %v1271, 0.0
  %v1304 = vmax.f32 %v1272, 0.0
  %v1305 = vmax.f32 %v1273, 0.0
  %v1306 = vmax.f32 %v1274, 0.0
  %v1307 = vmax.f32 %v1275, 0.0
  %v1308 = vmax.f32 %v1276, 0.0
  %v1309 = vmax.f32 %v1277, 0.0
  %v1310 = vmax.f32 %v1278, 0.0
  %v1311 = vmax.f32 %v1279, 0.0
  %v1312 = vmax.f32 %v1280, 0.0
  %v1313 = vmax.f32 %v1281, 0.0
  %v1314 = vmax.f32 %v1282, 0.0
  %v1315 = vmax.f32 %v1283, 0.0
  %v1316 = vmax.f32 %v1284, 0.0
  %v1317 = vmax.f32 %v1285, 0.0
  %v1318 = vmax.f32 %v1286, 0.0
  %v1319 = vmax.f32 %v1287, 0.0
  %v1320 = vmax.f32 %v1288, 0.0
  %v1321 = vmax.f32 %v1289, 0.0
  %v1322 = vmax.f32 %v1290, 0.0
  %v1323 = vpack.c.bf16 %v1292, %v1291
  %v1324 = vpack.c.bf16 %v1294, %v1293
  %v1325 = vpack.c.bf16 %v1296, %v1295
  %v1326 = vpack.c.bf16 %v1298, %v1297
  %v1327 = vpack.c.bf16 %v1300, %v1299
  %v1328 = vpack.c.bf16 %v1302, %v1301
  %v1329 = vpack.c.bf16 %v1304, %v1303
  %v1330 = vpack.c.bf16 %v1306, %v1305
  %v1331 = vpack.c.bf16 %v1308, %v1307
  %v1332 = vpack.c.bf16 %v1310, %v1309
  %v1333 = vpack.c.bf16 %v1312, %v1311
  %v1334 = vpack.c.bf16 %v1314, %v1313
  %v1335 = vpack.c.bf16 %v1316, %v1315
  %v1336 = vpack.c.bf16 %v1318, %v1317
  %v1337 = vpack.c.bf16 %v1320, %v1319
  %v1338 = vpack.c.bf16 %v1322, %v1321
  %v1339 = vld [vmem:[%s5] sm:$0xf]
  %v1340 = vld [vmem:[%s5 + $0x4] sm:$0xf]
  %v1341 = vld [vmem:[%s5 + $0x8] sm:$0xf]
  %v1342 = vld [vmem:[%s5 + $0xc] sm:$0xf]
  %v1343 = vld [vmem:[%s5 + $0x10] sm:$0xf]
  %v1344 = vld [vmem:[%s5 + $0x14] sm:$0xf]
  %v1345 = vld [vmem:[%s5 + $0x18] sm:$0xf]
  %v1346 = vld [vmem:[%s5 + $0x1c] sm:$0xf]
  %v1347 = vld [vmem:[%s5 + $0x20] sm:$0xf]
  %v1348 = vld [vmem:[%s5 + $0x24] sm:$0xf]
  %v1349 = vld [vmem:[%s5 + $0x28] sm:$0xf]
  %v1350 = vld [vmem:[%s5 + $0x2c] sm:$0xf]
  %v1351 = vld [vmem:[%s5 + $0x30] sm:$0xf]
  %v1352 = vld [vmem:[%s5 + $0x34] sm:$0xf]
  %v1353 = vld [vmem:[%s5 + $0x38] sm:$0xf]
  %v1354 = vld [vmem:[%s5 + $0x3c] sm:$0xf]
  %v1355 = vld [vmem:[%s8] sm:$0x1]
  %v1357 = vperm.slane %v1355, 0
  %v1375 = vunpack.c.l.b16 %v1339
  %v1376 = vunpack.c.l.b16 %v1340
  %v1377 = vunpack.c.l.b16 %v1341
  %v1378 = vunpack.c.l.b16 %v1342
  %v1379 = vunpack.c.l.b16 %v1343
  %v1380 = vunpack.c.l.b16 %v1344
  %v1381 = vunpack.c.l.b16 %v1345
  %v1382 = vunpack.c.l.b16 %v1346
  %v1383 = vunpack.c.l.b16 %v1347
  %v1384 = vunpack.c.l.b16 %v1348
  %v1385 = vunpack.c.l.b16 %v1349
  %v1386 = vunpack.c.l.b16 %v1350
  %v1387 = vunpack.c.l.b16 %v1351
  %v1388 = vunpack.c.l.b16 %v1352
  %v1389 = vunpack.c.l.b16 %v1353
  %v1390 = vunpack.c.l.b16 %v1354
  %v1391 = vpack.c.b16 %v1376, %v1375
  %v1392 = vpack.c.b16 %v1378, %v1377
  %v1393 = vpack.c.b16 %v1380, %v1379
  %v1394 = vpack.c.b16 %v1382, %v1381
  %v1395 = vpack.c.b16 %v1384, %v1383
  %v1396 = vpack.c.b16 %v1386, %v1385
  %v1397 = vpack.c.b16 %v1388, %v1387
  %v1398 = vpack.c.b16 %v1390, %v1389
  %1407 = vmatpush.bf16.msra.mxu0 %v1398
  %1408 = vmatpush.bf16.msra.mxu0 %v1397
  %1409 = vmatpush.bf16.msra.mxu0 %v1396
  %1410 = vmatpush.bf16.msra.mxu0 %v1395
  %1411 = vmatpush.bf16.msra.mxu0 %v1394
  %1412 = vmatpush.bf16.msra.mxu0 %v1393
  %1413 = vmatpush.bf16.msra.mxu0 %v1392
  %1414 = vmatpush.bf16.msra.mxu0 %v1391
  %1415 = vmatmul.bf16.gmra.mxu0 %v1323
  %v1416 = vpop.f32.mrf.mxu0
  %v1417 = vadd.f32 %v1357, %v1416
  %v1418 = vpop.f32.mrf.mxu0
  %v1419 = vadd.f32 %v1357, %v1418
  %1420 = vmatmul.bf16.gmra.mxu0 %v1324
  %v1421 = vpop.f32.mrf.mxu0
  %v1422 = vadd.f32 %v1357, %v1421
  %v1423 = vpop.f32.mrf.mxu0
  %v1424 = vadd.f32 %v1357, %v1423
  %1425 = vmatmul.bf16.gmra.mxu0 %v1325
  %v1426 = vpop.f32.mrf.mxu0
  %v1427 = vadd.f32 %v1357, %v1426
  %v1428 = vpop.f32.mrf.mxu0
  %v1429 = vadd.f32 %v1357, %v1428
  %1430 = vmatmul.bf16.gmra.mxu0 %v1326
  %v1431 = vpop.f32.mrf.mxu0
  %v1432 = vadd.f32 %v1357, %v1431
  %v1433 = vpop.f32.mrf.mxu0
  %v1434 = vadd.f32 %v1357, %v1433
  %1435 = vmatmul.bf16.gmra.mxu0 %v1327
  %v1436 = vpop.f32.mrf.mxu0
  %v1437 = vadd.f32 %v1357, %v1436
  %v1438 = vpop.f32.mrf.mxu0
  %v1439 = vadd.f32 %v1357, %v1438
  %1440 = vmatmul.bf16.gmra.mxu0 %v1328
  %v1441 = vpop.f32.mrf.mxu0
  %v1442 = vadd.f32 %v1357, %v1441
  %v1443 = vpop.f32.mrf.mxu0
  %v1444 = vadd.f32 %v1357, %v1443
  %1445 = vmatmul.bf16.gmra.mxu0 %v1329
  %v1446 = vpop.f32.mrf.mxu0
  %v1447 = vadd.f32 %v1357, %v1446
  %v1448 = vpop.f32.mrf.mxu0
  %v1449 = vadd.f32 %v1357, %v1448
  %1450 = vmatmul.bf16.gmra.mxu0 %v1330
  %v1451 = vpop.f32.mrf.mxu0
  %v1452 = vadd.f32 %v1357, %v1451
  %v1453 = vpop.f32.mrf.mxu0
  %v1454 = vadd.f32 %v1357, %v1453
  %1455 = vmatmul.bf16.gmra.mxu0 %v1331
  %v1456 = vpop.f32.mrf.mxu0
  %v1457 = vadd.f32 %v1357, %v1456
  %v1458 = vpop.f32.mrf.mxu0
  %v1459 = vadd.f32 %v1357, %v1458
  %1460 = vmatmul.bf16.gmra.mxu0 %v1332
  %v1461 = vpop.f32.mrf.mxu0
  %v1462 = vadd.f32 %v1357, %v1461
  %v1463 = vpop.f32.mrf.mxu0
  %v1464 = vadd.f32 %v1357, %v1463
  %1465 = vmatmul.bf16.gmra.mxu0 %v1333
  %v1466 = vpop.f32.mrf.mxu0
  %v1467 = vadd.f32 %v1357, %v1466
  %v1468 = vpop.f32.mrf.mxu0
  %v1469 = vadd.f32 %v1357, %v1468
  %1470 = vmatmul.bf16.gmra.mxu0 %v1334
  %v1471 = vpop.f32.mrf.mxu0
  %v1472 = vadd.f32 %v1357, %v1471
  %v1473 = vpop.f32.mrf.mxu0
  %v1474 = vadd.f32 %v1357, %v1473
  %1475 = vmatmul.bf16.gmra.mxu0 %v1335
  %v1476 = vpop.f32.mrf.mxu0
  %v1477 = vadd.f32 %v1357, %v1476
  %v1478 = vpop.f32.mrf.mxu0
  %v1479 = vadd.f32 %v1357, %v1478
  %1480 = vmatmul.bf16.gmra.mxu0 %v1336
  %v1481 = vpop.f32.mrf.mxu0
  %v1482 = vadd.f32 %v1357, %v1481
  %v1483 = vpop.f32.mrf.mxu0
  %v1484 = vadd.f32 %v1357, %v1483
  %1485 = vmatmul.bf16.gmra.mxu0 %v1337
  %v1486 = vpop.f32.mrf.mxu0
  %v1487 = vadd.f32 %v1357, %v1486
  %v1488 = vpop.f32.mrf.mxu0
  %v1489 = vadd.f32 %v1357, %v1488
  %1490 = vmatmul.bf16.gmra.mxu0 %v1338
  %v1491 = vpop.f32.mrf.mxu0
  %v1492 = vadd.f32 %v1357, %v1491
  %v1493 = vpop.f32.mrf.mxu0
  %v1494 = vadd.f32 %v1357, %v1493
  %1495 = vdwg.mxu0
  %v1496 = vmax.f32 %v1417, 0.0
  %v1497 = vmax.f32 %v1419, 0.0
  %v1498 = vmax.f32 %v1422, 0.0
  %v1499 = vmax.f32 %v1424, 0.0
  %v1500 = vmax.f32 %v1427, 0.0
  %v1501 = vmax.f32 %v1429, 0.0
  %v1502 = vmax.f32 %v1432, 0.0
  %v1503 = vmax.f32 %v1434, 0.0
  %v1504 = vmax.f32 %v1437, 0.0
  %v1505 = vmax.f32 %v1439, 0.0
  %v1506 = vmax.f32 %v1442, 0.0
  %v1507 = vmax.f32 %v1444, 0.0
  %v1508 = vmax.f32 %v1447, 0.0
  %v1509 = vmax.f32 %v1449, 0.0
  %v1510 = vmax.f32 %v1452, 0.0
  %v1511 = vmax.f32 %v1454, 0.0
  %v1512 = vmax.f32 %v1457, 0.0
  %v1513 = vmax.f32 %v1459, 0.0
  %v1514 = vmax.f32 %v1462, 0.0
  %v1515 = vmax.f32 %v1464, 0.0
  %v1516 = vmax.f32 %v1467, 0.0
  %v1517 = vmax.f32 %v1469, 0.0
  %v1518 = vmax.f32 %v1472, 0.0
  %v1519 = vmax.f32 %v1474, 0.0
  %v1520 = vmax.f32 %v1477, 0.0
  %v1521 = vmax.f32 %v1479, 0.0
  %v1522 = vmax.f32 %v1482, 0.0
  %v1523 = vmax.f32 %v1484, 0.0
  %v1524 = vmax.f32 %v1487, 0.0
  %v1525 = vmax.f32 %v1489, 0.0
  %v1526 = vmax.f32 %v1492, 0.0
  %v1527 = vmax.f32 %v1494, 0.0
  %v1528 = vpack.c.bf16 %v1497, %v1496
  %v1529 = vpack.c.bf16 %v1499, %v1498
  %v1530 = vpack.c.bf16 %v1501, %v1500
  %v1531 = vpack.c.bf16 %v1503, %v1502
  %v1532 = vpack.c.bf16 %v1505, %v1504
  %v1533 = vpack.c.bf16 %v1507, %v1506
  %v1534 = vpack.c.bf16 %v1509, %v1508
  %v1535 = vpack.c.bf16 %v1511, %v1510
  %v1536 = vpack.c.bf16 %v1513, %v1512
  %v1537 = vpack.c.bf16 %v1515, %v1514
  %v1538 = vpack.c.bf16 %v1517, %v1516
  %v1539 = vpack.c.bf16 %v1519, %v1518
  %v1540 = vpack.c.bf16 %v1521, %v1520
  %v1541 = vpack.c.bf16 %v1523, %v1522
  %v1542 = vpack.c.bf16 %v1525, %v1524
  %v1543 = vpack.c.bf16 %v1527, %v1526
  %v1544 = vld [vmem:[%s6] sm:$0xf]
  %v1545 = vld [vmem:[%s6 + $0x4] sm:$0xf]
  %v1546 = vld [vmem:[%s6 + $0x8] sm:$0xf]
  %v1547 = vld [vmem:[%s6 + $0xc] sm:$0xf]
  %v1548 = vld [vmem:[%s6 + $0x10] sm:$0xf]
  %v1549 = vld [vmem:[%s6 + $0x14] sm:$0xf]
  %v1550 = vld [vmem:[%s6 + $0x18] sm:$0xf]
  %v1551 = vld [vmem:[%s6 + $0x1c] sm:$0xf]
  %v1552 = vld [vmem:[%s6 + $0x20] sm:$0xf]
  %v1553 = vld [vmem:[%s6 + $0x24] sm:$0xf]
  %v1554 = vld [vmem:[%s6 + $0x28] sm:$0xf]
  %v1555 = vld [vmem:[%s6 + $0x2c] sm:$0xf]
  %v1556 = vld [vmem:[%s6 + $0x30] sm:$0xf]
  %v1557 = vld [vmem:[%s6 + $0x34] sm:$0xf]
  %v1558 = vld [vmem:[%s6 + $0x38] sm:$0xf]
  %v1559 = vld [vmem:[%s6 + $0x3c] sm:$0xf]
  %v1560 = vld [vmem:[%s9] sm:$0x1]
  %v1562 = vperm.slane %v1560, 0
  %v1580 = vunpack.c.l.b16 %v1544
  %v1581 = vunpack.c.l.b16 %v1545
  %v1582 = vunpack.c.l.b16 %v1546
  %v1583 = vunpack.c.l.b16 %v1547
  %v1584 = vunpack.c.l.b16 %v1548
  %v1585 = vunpack.c.l.b16 %v1549
  %v1586 = vunpack.c.l.b16 %v1550
  %v1587 = vunpack.c.l.b16 %v1551
  %v1588 = vunpack.c.l.b16 %v1552
  %v1589 = vunpack.c.l.b16 %v1553
  %v1590 = vunpack.c.l.b16 %v1554
  %v1591 = vunpack.c.l.b16 %v1555
  %v1592 = vunpack.c.l.b16 %v1556
  %v1593 = vunpack.c.l.b16 %v1557
  %v1594 = vunpack.c.l.b16 %v1558
  %v1595 = vunpack.c.l.b16 %v1559
  %v1596 = vpack.c.b16 %v1581, %v1580
  %v1597 = vpack.c.b16 %v1583, %v1582
  %v1598 = vpack.c.b16 %v1585, %v1584
  %v1599 = vpack.c.b16 %v1587, %v1586
  %v1600 = vpack.c.b16 %v1589, %v1588
  %v1601 = vpack.c.b16 %v1591, %v1590
  %v1602 = vpack.c.b16 %v1593, %v1592
  %v1603 = vpack.c.b16 %v1595, %v1594
  %1612 = vmatpush.bf16.msra.mxu0 %v1603
  %1613 = vmatpush.bf16.msra.mxu0 %v1602
  %1614 = vmatpush.bf16.msra.mxu0 %v1601
  %1615 = vmatpush.bf16.msra.mxu0 %v1600
  %1616 = vmatpush.bf16.msra.mxu0 %v1599
  %1617 = vmatpush.bf16.msra.mxu0 %v1598
  %1618 = vmatpush.bf16.msra.mxu0 %v1597
  %1619 = vmatpush.bf16.msra.mxu0 %v1596
  %1620 = vmatmul.bf16.gmra.mxu0 %v1528
  %v1621 = vpop.f32.mrf.mxu0
  %v1622 = vadd.f32 %v1562, %v1621
  %v1623 = vpop.f32.mrf.mxu0
  %v1624 = vadd.f32 %v1562, %v1623
  %1625 = vmatmul.bf16.gmra.mxu0 %v1529
  %v1626 = vpop.f32.mrf.mxu0
  %v1627 = vadd.f32 %v1562, %v1626
  %v1628 = vpop.f32.mrf.mxu0
  %v1629 = vadd.f32 %v1562, %v1628
  %1630 = vmatmul.bf16.gmra.mxu0 %v1530
  %v1631 = vpop.f32.mrf.mxu0
  %v1632 = vadd.f32 %v1562, %v1631
  %v1633 = vpop.f32.mrf.mxu0
  %v1634 = vadd.f32 %v1562, %v1633
  %1635 = vmatmul.bf16.gmra.mxu0 %v1531
  %v1636 = vpop.f32.mrf.mxu0
  %v1637 = vadd.f32 %v1562, %v1636
  %v1638 = vpop.f32.mrf.mxu0
  %v1639 = vadd.f32 %v1562, %v1638
  %1640 = vmatmul.bf16.gmra.mxu0 %v1532
  %v1641 = vpop.f32.mrf.mxu0
  %v1642 = vadd.f32 %v1562, %v1641
  %v1643 = vpop.f32.mrf.mxu0
  %v1644 = vadd.f32 %v1562, %v1643
  %1645 = vmatmul.bf16.gmra.mxu0 %v1533
  %v1646 = vpop.f32.mrf.mxu0
  %v1647 = vadd.f32 %v1562, %v1646
  %v1648 = vpop.f32.mrf.mxu0
  %v1649 = vadd.f32 %v1562, %v1648
  %1650 = vmatmul.bf16.gmra.mxu0 %v1534
  %v1651 = vpop.f32.mrf.mxu0
  %v1652 = vadd.f32 %v1562, %v1651
  %v1653 = vpop.f32.mrf.mxu0
  %v1654 = vadd.f32 %v1562, %v1653
  %1655 = vmatmul.bf16.gmra.mxu0 %v1535
  %v1656 = vpop.f32.mrf.mxu0
  %v1657 = vadd.f32 %v1562, %v1656
  %v1658 = vpop.f32.mrf.mxu0
  %v1659 = vadd.f32 %v1562, %v1658
  %1660 = vmatmul.bf16.gmra.mxu0 %v1536
  %v1661 = vpop.f32.mrf.mxu0
  %v1662 = vadd.f32 %v1562, %v1661
  %v1663 = vpop.f32.mrf.mxu0
  %v1664 = vadd.f32 %v1562, %v1663
  %1665 = vmatmul.bf16.gmra.mxu0 %v1537
  %v1666 = vpop.f32.mrf.mxu0
  %v1667 = vadd.f32 %v1562, %v1666
  %v1668 = vpop.f32.mrf.mxu0
  %v1669 = vadd.f32 %v1562, %v1668
  %1670 = vmatmul.bf16.gmra.mxu0 %v1538
  %v1671 = vpop.f32.mrf.mxu0
  %v1672 = vadd.f32 %v1562, %v1671
  %v1673 = vpop.f32.mrf.mxu0
  %v1674 = vadd.f32 %v1562, %v1673
  %1675 = vmatmul.bf16.gmra.mxu0 %v1539
  %v1676 = vpop.f32.mrf.mxu0
  %v1677 = vadd.f32 %v1562, %v1676
  %v1678 = vpop.f32.mrf.mxu0
  %v1679 = vadd.f32 %v1562, %v1678
  %1680 = vmatmul.bf16.gmra.mxu0 %v1540
  %v1681 = vpop.f32.mrf.mxu0
  %v1682 = vadd.f32 %v1562, %v1681
  %v1683 = vpop.f32.mrf.mxu0
  %v1684 = vadd.f32 %v1562, %v1683
  %1685 = vmatmul.bf16.gmra.mxu0 %v1541
  %v1686 = vpop.f32.mrf.mxu0
  %v1687 = vadd.f32 %v1562, %v1686
  %v1688 = vpop.f32.mrf.mxu0
  %v1689 = vadd.f32 %v1562, %v1688
  %1690 = vmatmul.bf16.gmra.mxu0 %v1542
  %v1691 = vpop.f32.mrf.mxu0
  %v1692 = vadd.f32 %v1562, %v1691
  %v1693 = vpop.f32.mrf.mxu0
  %v1694 = vadd.f32 %v1562, %v1693
  %1695 = vmatmul.bf16.gmra.mxu0 %v1543
  %v1696 = vpop.f32.mrf.mxu0
  %v1697 = vadd.f32 %v1562, %v1696
  %v1698 = vpop.f32.mrf.mxu0
  %v1699 = vadd.f32 %v1562, %v1698
  %1700 = vdwg.mxu0
  %v1701 = vmax.f32 %v1622, 0.0
  %v1702 = vmax.f32 %v1624, 0.0
  %v1703 = vmax.f32 %v1627, 0.0
  %v1704 = vmax.f32 %v1629, 0.0
  %v1705 = vmax.f32 %v1632, 0.0
  %v1706 = vmax.f32 %v1634, 0.0
  %v1707 = vmax.f32 %v1637, 0.0
  %v1708 = vmax.f32 %v1639, 0.0
  %v1709 = vmax.f32 %v1642, 0.0
  %v1710 = vmax.f32 %v1644, 0.0
  %v1711 = vmax.f32 %v1647, 0.0
  %v1712 = vmax.f32 %v1649, 0.0
  %v1713 = vmax.f32 %v1652, 0.0
  %v1714 = vmax.f32 %v1654, 0.0
  %v1715 = vmax.f32 %v1657, 0.0
  %v1716 = vmax.f32 %v1659, 0.0
  %v1717 = vmax.f32 %v1662, 0.0
  %v1718 = vmax.f32 %v1664, 0.0
  %v1719 = vmax.f32 %v1667, 0.0
  %v1720 = vmax.f32 %v1669, 0.0
  %v1721 = vmax.f32 %v1672, 0.0
  %v1722 = vmax.f32 %v1674, 0.0
  %v1723 = vmax.f32 %v1677, 0.0
  %v1724 = vmax.f32 %v1679, 0.0
  %v1725 = vmax.f32 %v1682, 0.0
  %v1726 = vmax.f32 %v1684, 0.0
  %v1727 = vmax.f32 %v1687, 0.0
  %v1728 = vmax.f32 %v1689, 0.0
  %v1729 = vmax.f32 %v1692, 0.0
  %v1730 = vmax.f32 %v1694, 0.0
  %v1731 = vmax.f32 %v1697, 0.0
  %v1732 = vmax.f32 %v1699, 0.0
  %v1733 = vpack.c.bf16 %v1701, %v1701
  %v1734 = vpack.c.bf16 %v1702, %v1702
  %v1735 = vpack.c.bf16 %v1703, %v1703
  %v1736 = vpack.c.bf16 %v1704, %v1704
  %v1737 = vpack.c.bf16 %v1705, %v1705
  %v1738 = vpack.c.bf16 %v1706, %v1706
  %v1739 = vpack.c.bf16 %v1707, %v1707
  %v1740 = vpack.c.bf16 %v1708, %v1708
  %v1741 = vpack.c.bf16 %v1709, %v1709
  %v1742 = vpack.c.bf16 %v1710, %v1710
  %v1743 = vpack.c.bf16 %v1711, %v1711
  %v1744 = vpack.c.bf16 %v1712, %v1712
  %v1745 = vpack.c.bf16 %v1713, %v1713
  %v1746 = vpack.c.bf16 %v1714, %v1714
  %v1747 = vpack.c.bf16 %v1715, %v1715
  %v1748 = vpack.c.bf16 %v1716, %v1716
  %v1749 = vpack.c.bf16 %v1717, %v1717
  %v1750 = vpack.c.bf16 %v1718, %v1718
  %v1751 = vpack.c.bf16 %v1719, %v1719
  %v1752 = vpack.c.bf16 %v1720, %v1720
  %v1753 = vpack.c.bf16 %v1721, %v1721
  %v1754 = vpack.c.bf16 %v1722, %v1722
  %v1755 = vpack.c.bf16 %v1723, %v1723
  %v1756 = vpack.c.bf16 %v1724, %v1724
  %v1757 = vpack.c.bf16 %v1725, %v1725
  %v1758 = vpack.c.bf16 %v1726, %v1726
  %v1759 = vpack.c.bf16 %v1727, %v1727
  %v1760 = vpack.c.bf16 %v1728, %v1728
  %v1761 = vpack.c.bf16 %v1729, %v1729
  %v1762 = vpack.c.bf16 %v1730, %v1730
  %v1763 = vpack.c.bf16 %v1731, %v1731
  %v1764 = vpack.c.bf16 %v1732, %v1732
  %1765 = vst [vmem:[%s10] sm:$0xf] %v1733
  %1766 = vst [vmem:[%s10 + $0x4] sm:$0xf] %v1734
  %1767 = vst [vmem:[%s10 + $0x8] sm:$0xf] %v1735
  %1768 = vst [vmem:[%s10 + $0xc] sm:$0xf] %v1736
  %1769 = vst [vmem:[%s10 + $0x10] sm:$0xf] %v1737
  %1770 = vst [vmem:[%s10 + $0x14] sm:$0xf] %v1738
  %1771 = vst [vmem:[%s10 + $0x18] sm:$0xf] %v1739
  %1772 = vst [vmem:[%s10 + $0x1c] sm:$0xf] %v1740
  %1773 = vst [vmem:[%s10 + $0x20] sm:$0xf] %v1741
  %1774 = vst [vmem:[%s10 + $0x24] sm:$0xf] %v1742
  %1775 = vst [vmem:[%s10 + $0x28] sm:$0xf] %v1743
  %1776 = vst [vmem:[%s10 + $0x2c] sm:$0xf] %v1744
  %1777 = vst [vmem:[%s10 + $0x30] sm:$0xf] %v1745
  %1778 = vst [vmem:[%s10 + $0x34] sm:$0xf] %v1746
  %1779 = vst [vmem:[%s10 + $0x38] sm:$0xf] %v1747
  %1780 = vst [vmem:[%s10 + $0x3c] sm:$0xf] %v1748
  %1781 = vst [vmem:[%s10 + $0x40] sm:$0xf] %v1749
  %1782 = vst [vmem:[%s10 + $0x44] sm:$0xf] %v1750
  %1783 = vst [vmem:[%s10 + $0x48] sm:$0xf] %v1751
  %1784 = vst [vmem:[%s10 + $0x4c] sm:$0xf] %v1752
  %1785 = vst [vmem:[%s10 + $0x50] sm:$0xf] %v1753
  %1786 = vst [vmem:[%s10 + $0x54] sm:$0xf] %v1754
  %1787 = vst [vmem:[%s10 + $0x58] sm:$0xf] %v1755
  %1788 = vst [vmem:[%s10 + $0x5c] sm:$0xf] %v1756
  %1789 = vst [vmem:[%s10 + $0x60] sm:$0xf] %v1757
  %1790 = vst [vmem:[%s10 + $0x64] sm:$0xf] %v1758
  %1791 = vst [vmem:[%s10 + $0x68] sm:$0xf] %v1759
  %1792 = vst [vmem:[%s10 + $0x6c] sm:$0xf] %v1760
  %1793 = vst [vmem:[%s10 + $0x70] sm:$0xf] %v1761
  %1794 = vst [vmem:[%s10 + $0x74] sm:$0xf] %v1762
  %1795 = vst [vmem:[%s10 + $0x78] sm:$0xf] %v1763
  %1796 = vst [vmem:[%s10 + $0x7c] sm:$0xf] %v1764
  // Predicated region
  $region42: #{gnn_forward.35} parent=0 // pred_check
    _
  $region43: #{gnn_forward.35} parent=0 // pred_check_branch
    %1798 = sbr.rel (0) target = $region45
  $region44: #{gnn_forward.35} parent=0 // pred_region
    _
  $region45: #{gnn_forward.35} parent=0 // pred_fallthru
    _
  // Predicated region
  $region46: #{gnn_forward.35} parent=0 // pred_check
    _
  $region47: #{gnn_forward.35} parent=0 // pred_check_branch
    %1800 = sbr.rel (0) target = $region49
  $region48: #{gnn_forward.35} parent=0 // pred_region
    _
  $region49: #{gnn_forward.35} parent=0 // pred_fallthru
    _

</llo_original>
